<compile_context>
chip_gen: v7x
topology: tpu7x:2x2x1
jax: 0.10.0
libtpu: 0.0.40
codegen_flags: <defaults>
</compile_context>

<pallas_src>
import functools
import math

import jax
import jax.numpy as jnp
import numpy as np
from jax.experimental import pallas as pl
from jax.experimental.pallas import tpu as pltpu

_BBOX_XFORM_CLIP = math.log(1000.0 / 16.0)


def _round_up(x, m):
    return ((x + m - 1) // m) * m


# ----------------------------------------------------------------------------
# Fused kernel: 3x3 conv + ReLU + fused 1x1 heads + box decode + clip + sigmoid
# ----------------------------------------------------------------------------
def _rpn_fused_kernel(x_ref, halo_ref, anc_ref, wc_ref, bc_ref, wh_ref, bh_ref,
                      out_ref, acc_ref, *, Ht, Wp, A, im_w, im_h, fast):
    C = wc_ref.shape[-1]
    R = Ht * Wp                       # output rows handled by this tile (incl. pad cols)
    HEAD_W = wh_ref.shape[-1]

    # Assemble the flattened padded window: body rows + 2 halo rows + small zero tail.
    # (bf16 -> f32 up-cast once; rolls below stay in 32-bit layout.)
    body = x_ref[0].astype(jnp.float32).reshape(R, C)
    halo = halo_ref[0].astype(jnp.float32).reshape(2 * Wp, C)
    tail = jnp.zeros((8, C), jnp.float32)
    flat = jnp.concatenate([body, halo, tail], axis=0)       # (Nf, C)
    Nf = R + 2 * Wp + 8

    # 3x3 conv (padding=1) as 9 shifted MXU matmuls.  The (dy, dx) tap is a shift of
    # s = dy*Wp + dx rows on the flattened window; shifts go through the XLU
    # (pltpu.roll) instead of 9 strided-slice relayouts.  Wrap / tail garbage only
    # lands in rows/columns outside the valid (H, W) region, which are discarded.
    first = True
    for dy in range(3):
        for dx in range(3):
            s = dy * Wp + dx
            if s == 0:
                win = flat[:R]
            elif fast:
                win = pltpu.roll(flat, Nf - s, 0)[:R]        # win[p] = flat[p + s]
            else:                                            # conservative fallback
                win = flat[s:s + R]
            contrib = jnp.dot(win.astype(jnp.bfloat16), wc_ref[dy * 3 + dx],
                              preferred_element_type=jnp.float32)
            if first:
                acc_ref[...] = contrib
                first = False
            else:
                acc_ref[...] += contrib

    # conv bias + ReLU (f32), then both 1x1 heads as ONE lane-dense (C, 128) matmul.
    t = jnp.maximum(acc_ref[...] + bc_ref[...], 0.0).astype(jnp.bfloat16)   # (R, C)
    heads = jnp.dot(t, wh_ref[...], preferred_element_type=jnp.float32) + bh_ref[...]

    # fused columns: [objectness(A) | dx(A) | dy(A) | dw(A) | dh(A) | zero pad]
    obj = heads[:, 0:A]
    dxs = heads[:, A:2 * A]
    dys = heads[:, 2 * A:3 * A]
    dws = jnp.minimum(heads[:, 3 * A:4 * A], _BBOX_XFORM_CLIP)
    dhs = jnp.minimum(heads[:, 4 * A:5 * A], _BBOX_XFORM_CLIP)

    # anchors in coordinate-major planar layout: [x1*A | y1*A | x2*A | y2*A]
    anc = anc_ref[...]
    ax1 = anc[:, 0:A]
    ay1 = anc[:, A:2 * A]
    ax2 = anc[:, 2 * A:3 * A]
    ay2 = anc[:, 3 * A:4 * A]

    widths = ax2 - ax1 + 1.0
    heights = ay2 - ay1 + 1.0
    ctr_x = ax1 + 0.5 * widths
    ctr_y = ay1 + 0.5 * heights

    pcx = dxs * widths + ctr_x
    pcy = dys * heights + ctr_y
    pw = jnp.exp(dws) * widths
    ph = jnp.exp(dhs) * heights

    # decode + BoxList.clip_to_image (remove_empty=False)
    x1 = jnp.clip(pcx - 0.5 * pw, 0.0, im_w - 1.0)
    y1 = jnp.clip(pcy - 0.5 * ph, 0.0, im_h - 1.0)
    x2 = jnp.clip(pcx + 0.5 * pw - 1.0, 0.0, im_w - 1.0)
    y2 = jnp.clip(pcy + 0.5 * ph - 1.0, 0.0, im_h - 1.0)
    scores = jax.nn.sigmoid(obj)

    if fast:
        # single unmasked 128-lane store of the whole slab
        pieces = [scores, x1, y1, x2, y2]
        if HEAD_W > 5 * A:
            pieces.append(jnp.zeros((R, HEAD_W - 5 * A), jnp.float32))
        out_ref[0] = jnp.concatenate(pieces, axis=1)
    else:
        out_ref[0, :, 0:A] = scores
        out_ref[0, :, A:2 * A] = x1
        out_ref[0, :, 2 * A:3 * A] = y1
        out_ref[0, :, 3 * A:4 * A] = x2
        out_ref[0, :, 4 * A:5 * A] = y2


def rpn_head_decode_pallas(xp, anchors, wc, bc, wh, bh, *, Ht, Wp, A, im_w, im_h, fast):
    N, Hpad, _, C = xp.shape
    Hc = Hpad - 2
    RT = Hc // Ht
    R = Ht * Wp
    HEAD_W = wh.shape[1]
    kernel = functools.partial(_rpn_fused_kernel, Ht=Ht, Wp=Wp, A=A,
                               im_w=float(im_w), im_h=float(im_h), fast=fast)
    return pl.pallas_call(
        kernel,
        out_shape=jax.ShapeDtypeStruct((N, Hc * Wp, HEAD_W), jnp.float32),
        grid=(N, RT),
        in_specs=[
            # body rows of the padded feature map
            pl.BlockSpec((1, Ht, Wp, C), lambda n, r: (n, r, 0, 0)),
            # 2-row halo: second view of the same padded array (next 2 rows)
            pl.BlockSpec((1, 2, Wp, C), lambda n, r: (n, (r + 1) * (Ht // 2), 0, 0)),
            # anchors, coordinate-major planar layout
            pl.BlockSpec((R, 4 * A), lambda n, r: (r, 0)),
            pl.BlockSpec((9, C, C), lambda n, r: (0, 0, 0)),      # 3x3 conv weights (bf16)
            pl.BlockSpec((1, C), lambda n, r: (0, 0)),            # conv bias (f32)
            pl.BlockSpec((C, HEAD_W), lambda n, r: (0, 0)),       # fused cls+box 1x1 weights
            pl.BlockSpec((1, HEAD_W), lambda n, r: (0, 0)),       # fused bias
        ],
        out_specs=pl.BlockSpec((1, R, HEAD_W), lambda n, r: (n, r, 0)),
        scratch_shapes=[pltpu.VMEM((R, C), jnp.float32)],         # conv accumulator
        compiler_params=pltpu.CompilerParams(
            dimension_semantics=("parallel", "parallel"),
            vmem_limit_bytes=32 * 1024 * 1024),
    )(xp, xp, anchors, wc, bc, wh, bh)


# ----------------------------------------------------------------------------
# Anchor generation (glue, mirrors maskrcnn-benchmark generate_anchors)
# ----------------------------------------------------------------------------
def _whctrs(a):
    w = a[2] - a[0] + 1.0
    h = a[3] - a[1] + 1.0
    return w, h, a[0] + 0.5 * (w - 1.0), a[1] + 0.5 * (h - 1.0)


def _mkanchors(ws, hs, xc, yc):
    ws = ws[:, None]
    hs = hs[:, None]
    return np.hstack([xc - 0.5 * (ws - 1.0), yc - 0.5 * (hs - 1.0),
                      xc + 0.5 * (ws - 1.0), yc + 0.5 * (hs - 1.0)])


def generate_cell_anchors(stride, sizes, aspect_ratios):
    scales = np.array(sizes, dtype=np.float64) / stride
    ratios = np.array(aspect_ratios, dtype=np.float64)
    base = np.array([1.0, 1.0, float(stride), float(stride)]) - 1.0
    w, h, xc, yc = _whctrs(base)
    size = w * h
    size_ratios = size / ratios
    ws = np.round(np.sqrt(size_ratios))
    hs = np.round(ws * ratios)
    ratio_anchors = _mkanchors(ws, hs, xc, yc)
    out = []
    for i in range(ratio_anchors.shape[0]):
        w, h, xc, yc = _whctrs(ratio_anchors[i])
        out.append(_mkanchors(w * scales, h * scales, xc, yc))
    return np.vstack(out).astype(np.float32)            # (A, 4) = (x1, y1, x2, y2)


# ----------------------------------------------------------------------------
# RPNModule forward (inference), RPN_ONLY=True
# ----------------------------------------------------------------------------
def rpn_module_forward(features_nchw, params, *, stride, sizes, aspect_ratios,
                       image_size, pre_nms_top_n, post_nms_top_n, row_tile=8):
    N, C, H, W = features_nchw.shape
    A = len(sizes) * len(aspect_ratios)
    im_h, im_w = image_size

    # ---- spatial row tiling parameters ----
    Ht = max(2, min(int(row_tile), H))
    Ht += Ht % 2                                    # halo BlockSpec uses 2-row blocks
    RT = -(-H // Ht)
    Hc = RT * Ht                                    # computed rows (>= H; surplus discarded)
    Wp = _round_up(W + 2, 8)                        # padded width, sublane friendly
    Hpad = Hc + 2

    # NCHW -> NHWC, bf16, single padded copy (zeros in the halo rows/cols).
    # TODO(synk): fold the halo into the BlockSpec index_map on the unpadded tensor to
    # avoid this extra HBM copy of the features.
    x = jnp.transpose(features_nchw, (0, 2, 3, 1)).astype(jnp.bfloat16)
    xp = jnp.pad(x, ((0, 0), (1, Hpad - H - 1), (1, Wp - W - 1), (0, 0)))

    # ---- fuse the two 1x1 heads into one lane-dense padded weight ----
    # Columns: [objectness(A) | dx(A) | dy(A) | dw(A) | dh(A) | zero pad to 128].
    # Box columns are permuted offline from PyTorch's (a*4 + coord) channel order to
    # coordinate-major so each decode quantity is lane-contiguous in the kernel.
    HEAD_W = max(128, _round_up(5 * A, 128))
    pad_w = HEAD_W - 5 * A
    box_w_cm = params["box_w"].reshape(C, A, 4).transpose(0, 2, 1).reshape(C, 4 * A)
    box_b_cm = params["box_b"].reshape(A, 4).T.reshape(1, 4 * A)
    wh = jnp.concatenate(
        [params["cls_w"], box_w_cm, jnp.zeros((C, pad_w), jnp.float32)],
        axis=1).astype(jnp.bfloat16)
    bh = jnp.concatenate(
        [params["cls_b"], box_b_cm, jnp.zeros((1, pad_w), jnp.float32)], axis=1)
    wc = params["conv_w"].astype(jnp.bfloat16)
    bc = params["conv_b"]

    # ---- anchor table in coordinate-major planar layout: (Hc*Wp, 4A) ----
    cell = generate_cell_anchors(stride, sizes, aspect_ratios)          # (A, 4)
    sx = np.arange(Wp, dtype=np.float32) * float(stride)
    sy = np.arange(Hc, dtype=np.float32) * float(stride)
    anc = np.empty((Hc, Wp, 4 * A), np.float32)
    anc[:, :, 0 * A:1 * A] = cell[None, None, :, 0] + sx[None, :, None]
    anc[:, :, 1 * A:2 * A] = cell[None, None, :, 1] + sy[:, None, None]
    anc[:, :, 2 * A:3 * A] = cell[None, None, :, 2] + sx[None, :, None]
    anc[:, :, 3 * A:4 * A] = cell[None, None, :, 3] + sy[:, None, None]
    anchors = jnp.asarray(anc.reshape(Hc * Wp, 4 * A))

    def run(fast):
        slab = rpn_head_decode_pallas(xp, anchors, wc, bc, wh, bh, Ht=Ht, Wp=Wp, A=A,
                                      im_w=im_w, im_h=im_h, fast=fast)
        return jax.block_until_ready(slab)

    try:
        slab = run(True)
    except Exception:
        # conservative variant (no XLU roll / no unaligned lane concat) if the
        # optimized lowering is unavailable on this toolchain.
        slab = run(False)

    # split the lane-dense slab: [scores(A) | x1(A) | y1(A) | x2(A) | y2(A) | pad]
    slab = slab.reshape(N, Hc, Wp, HEAD_W)[:, :H, :W, :5 * A]
    K = H * W * A
    scores = slab[..., 0:A].reshape(N, K)
    boxes = slab[..., A:5 * A].reshape(N, H, W, 4, A)
    boxes = jnp.transpose(boxes, (0, 1, 2, 4, 3)).reshape(N, K, 4)

    # RPNPostProcessor (test): pre-NMS top-k by objectness (scores unaffected by decode).
    k = min(pre_nms_top_n, K)
    top_scores, top_idx = jax.lax.top_k(scores, k)
    top_boxes = jnp.take_along_axis(boxes, top_idx[:, :, None], axis=1)

    # min_size == 0 -> remove_small_boxes keeps everything.
    # TODO(synk): boxlist_nms (greedy IoU NMS) not implemented in Pallas; skipped.
    n_keep = min(post_nms_top_n, k)
    # lax.top_k already returns scores in descending order, so the reference
    # RPN_ONLY objectness re-sort is a no-op here (redundant argsort removed).
    return top_boxes[:, :n_keep], top_scores[:, :n_keep]


# ----------------------------------------------------------------------------
# Deterministic parameter init (RPNHead: normal(std=0.01), bias=0)
# ----------------------------------------------------------------------------
def init_params(key, in_channels, num_anchors):
    k1, k2, k3 = jax.random.split(key, 3)
    C, A = in_channels, num_anchors
    # Layouts (for loading real PyTorch weights):
    #   conv:  torch (C, C, 3, 3)   -> transpose(2, 3, 1, 0).reshape(9, C, C)   (k = ky*3+kx)
    #   cls:   torch (A, C, 1, 1)   -> (C, A)
    #   box:   torch (4A, C, 1, 1)  -> (C, 4A), columns ordered a*4 + coord (dx,dy,dw,dh)
    conv_w = (jax.random.normal(k1, (3, 3, C, C), jnp.float32) * 0.01).reshape(9, C, C)
    cls_w = jax.random.normal(k2, (C, A), jnp.float32) * 0.01
    box_w = jax.random.normal(k3, (C, 4 * A), jnp.float32) * 0.01
    return dict(conv_w=conv_w, conv_b=jnp.zeros((1, C), jnp.float32),
                cls_w=cls_w, cls_b=jnp.zeros((1, A), jnp.float32),
                box_w=box_w, box_b=jnp.zeros((1, 4 * A), jnp.float32))


if __name__ == "__main__":
    key = jax.random.PRNGKey(0)
    kf, kp = jax.random.split(key)

    N, C, H, W = 2, 16, 16, 16          # batch, in_channels, feature height/width
    A = 3                               # anchors per location (3 aspect ratios, 1 size)
    stride = 8
    image_size = (H * stride, W * stride)   # (im_h, im_w)

    features = jax.random.normal(kf, (N, C, H, W), jnp.float32)  # NCHW like PyTorch
    params = init_params(kp, C, A)

    boxes, scores = rpn_module_forward(
        features, params, stride=stride, sizes=(32,), aspect_ratios=(0.5, 1.0, 2.0),
        image_size=image_size, pre_nms_top_n=128, post_nms_top_n=32, row_tile=8)

    jax.block_until_ready((boxes, scores))
    assert boxes.shape == (N, 32, 4) and scores.shape == (N, 32)
    print("KERNEL_OK")
</pallas_src>

<mosaic_0001>
module attributes {stable_mosaic.version = 11 : i64} {
  func.func @_rpn_fused_kernel(%arg0: i32, %arg1: i32, %arg2: memref<1x8x24x16xbf16, #tpu.memory_space<vmem>>, %arg3: memref<1x2x24x16xbf16, #tpu.memory_space<vmem>>, %arg4: memref<192x12xf32, #tpu.memory_space<vmem>>, %arg5: memref<9x16x16xbf16, #tpu.memory_space<vmem>>, %arg6: memref<1x16xf32, #tpu.memory_space<vmem>>, %arg7: memref<16x128xbf16, #tpu.memory_space<vmem>>, %arg8: memref<1x128xf32, #tpu.memory_space<vmem>>, %arg9: memref<1x192x128xf32, #tpu.memory_space<vmem>>, %arg10: memref<192x16xf32, #tpu.memory_space<vmem>>) attributes {dimension_semantics = [#tpu.dimension_semantics<parallel>, #tpu.dimension_semantics<parallel>], iteration_bounds = array<i64: 2, 2>, scalar_prefetch = 0 : i64, scratch_operands = 1 : i64, tpu.core_type = #tpu.core_type<tc>, window_params = [{transform_indices = @transform_0, window_bounds = array<i64: 1, 8, 24, 16>}, {transform_indices = @transform_1, window_bounds = array<i64: 1, 2, 24, 16>}, {transform_indices = @transform_2, window_bounds = array<i64: 192, 12>}, {pipeline_mode = #tpu.pipeline_mode<synchronous>, transform_indices = @transform_3, window_bounds = array<i64: 9, 16, 16>}, {pipeline_mode = #tpu.pipeline_mode<synchronous>, transform_indices = @transform_4, window_bounds = array<i64: 1, 16>}, {pipeline_mode = #tpu.pipeline_mode<synchronous>, transform_indices = @transform_5, window_bounds = array<i64: 16, 128>}, {pipeline_mode = #tpu.pipeline_mode<synchronous>, transform_indices = @transform_6, window_bounds = array<i64: 1, 128>}, {transform_indices = @transform_7, window_bounds = array<i64: 1, 192, 128>}]} {
    %c0 = arith.constant 0 : index
    %c0_0 = arith.constant 0 : index
    %c0_1 = arith.constant 0 : index
    %c0_2 = arith.constant 0 : index
    %0 = vector.load %arg2[%c0, %c0_0, %c0_1, %c0_2] : memref<1x8x24x16xbf16, #tpu.memory_space<vmem>>, vector<1x8x24x16xbf16>
    %1 = vector.shape_cast %0 : vector<1x8x24x16xbf16> to vector<8x24x16xbf16>
    %2 = arith.extf %1 : vector<8x24x16xbf16> to vector<8x24x16xf32>
    %3 = vector.shape_cast %2 : vector<8x24x16xf32> to vector<192x16xf32>
    %c0_3 = arith.constant 0 : index
    %c0_4 = arith.constant 0 : index
    %c0_5 = arith.constant 0 : index
    %c0_6 = arith.constant 0 : index
    %4 = vector.load %arg3[%c0_3, %c0_4, %c0_5, %c0_6] : memref<1x2x24x16xbf16, #tpu.memory_space<vmem>>, vector<1x2x24x16xbf16>
    %5 = vector.shape_cast %4 : vector<1x2x24x16xbf16> to vector<2x24x16xbf16>
    %6 = arith.extf %5 : vector<2x24x16xbf16> to vector<2x24x16xf32>
    %7 = vector.shape_cast %6 : vector<2x24x16xf32> to vector<48x16xf32>
    %cst = arith.constant 0.000000e+00 : f32
    %8 = vector.broadcast %cst : f32 to vector<8x16xf32>
    %9 = tpu.concatenate %3, %7, %8 in 0 : vector<192x16xf32>, vector<48x16xf32>, vector<8x16xf32> -> vector<248x16xf32>
    %10 = vector.extract_strided_slice %9 {offsets = [0, 0], sizes = [192, 16], strides = [1, 1]} : vector<248x16xf32> to vector<192x16xf32>
    %11 = arith.truncf %10 : vector<192x16xf32> to vector<192x16xbf16>
    %c0_7 = arith.constant 0 : index
    %c0_8 = arith.constant 0 : index
    %c0_9 = arith.constant 0 : index
    %12 = vector.load %arg5[%c0_7, %c0_8, %c0_9] : memref<9x16x16xbf16, #tpu.memory_space<vmem>>, vector<1x16x16xbf16>
    %13 = vector.shape_cast %12 : vector<1x16x16xbf16> to vector<16x16xbf16>
    %cst_10 = arith.constant dense<0.000000e+00> : vector<192x16xf32>
    %14 = tpu.matmul %11, %13, %cst_10 {dimension_numbers = #tpu.dot_dimension_numbers<[1], [0], [0], [1], [0, 0, 1, 1], [], []>} : vector<192x16xbf16>, vector<16x16xbf16>, vector<192x16xf32> -> vector<192x16xf32>
    %c0_11 = arith.constant 0 : index
    %c0_12 = arith.constant 0 : index
    %15 = vector.load %arg10[%c0_11, %c0_12] : memref<192x16xf32, #tpu.memory_space<vmem>>, vector<192x16xf32>
    tpu.vector_store %arg10[%c0_11, %c0_12], %14 {strides = array<i32>} : memref<192x16xf32, #tpu.memory_space<vmem>>, vector<192x16xf32>,
    %c247_i32 = arith.constant 247 : i32
    %16 = tpu.dynamic_rotate %9 by %c247_i32 dim 0 : vector<248x16xf32>, i32 -> vector<248x16xf32>
    %17 = vector.extract_strided_slice %16 {offsets = [0, 0], sizes = [192, 16], strides = [1, 1]} : vector<248x16xf32> to vector<192x16xf32>
    %18 = arith.truncf %17 : vector<192x16xf32> to vector<192x16xbf16>
    %c1 = arith.constant 1 : index
    %c0_13 = arith.constant 0 : index
    %c0_14 = arith.constant 0 : index
    %19 = vector.load %arg5[%c1, %c0_13, %c0_14] : memref<9x16x16xbf16, #tpu.memory_space<vmem>>, vector<1x16x16xbf16>
    %20 = vector.shape_cast %19 : vector<1x16x16xbf16> to vector<16x16xbf16>
    %cst_15 = arith.constant dense<0.000000e+00> : vector<192x16xf32>
    %21 = tpu.matmul %18, %20, %cst_15 {dimension_numbers = #tpu.dot_dimension_numbers<[1], [0], [0], [1], [0, 0, 1, 1], [], []>} : vector<192x16xbf16>, vector<16x16xbf16>, vector<192x16xf32> -> vector<192x16xf32>
    %c0_16 = arith.constant 0 : index
    %c0_17 = arith.constant 0 : index
    %22 = vector.load %arg10[%c0_16, %c0_17] : memref<192x16xf32, #tpu.memory_space<vmem>>, vector<192x16xf32>
    %23 = arith.addf %22, %21 : vector<192x16xf32>
    %c0_18 = arith.constant 0 : index
    %c0_19 = arith.constant 0 : index
    %24 = vector.load %arg10[%c0_18, %c0_19] : memref<192x16xf32, #tpu.memory_space<vmem>>, vector<192x16xf32>
    tpu.vector_store %arg10[%c0_18, %c0_19], %23 {strides = array<i32>} : memref<192x16xf32, #tpu.memory_space<vmem>>, vector<192x16xf32>,
    %c246_i32 = arith.constant 246 : i32
    %25 = tpu.dynamic_rotate %9 by %c246_i32 dim 0 : vector<248x16xf32>, i32 -> vector<248x16xf32>
    %26 = vector.extract_strided_slice %25 {offsets = [0, 0], sizes = [192, 16], strides = [1, 1]} : vector<248x16xf32> to vector<192x16xf32>
    %27 = arith.truncf %26 : vector<192x16xf32> to vector<192x16xbf16>
    %c2 = arith.constant 2 : index
    %c0_20 = arith.constant 0 : index
    %c0_21 = arith.constant 0 : index
    %28 = vector.load %arg5[%c2, %c0_20, %c0_21] : memref<9x16x16xbf16, #tpu.memory_space<vmem>>, vector<1x16x16xbf16>
    %29 = vector.shape_cast %28 : vector<1x16x16xbf16> to vector<16x16xbf16>
    %cst_22 = arith.constant dense<0.000000e+00> : vector<192x16xf32>
    %30 = tpu.matmul %27, %29, %cst_22 {dimension_numbers = #tpu.dot_dimension_numbers<[1], [0], [0], [1], [0, 0, 1, 1], [], []>} : vector<192x16xbf16>, vector<16x16xbf16>, vector<192x16xf32> -> vector<192x16xf32>
    %c0_23 = arith.constant 0 : index
    %c0_24 = arith.constant 0 : index
    %31 = vector.load %arg10[%c0_23, %c0_24] : memref<192x16xf32, #tpu.memory_space<vmem>>, vector<192x16xf32>
    %32 = arith.addf %31, %30 : vector<192x16xf32>
    %c0_25 = arith.constant 0 : index
    %c0_26 = arith.constant 0 : index
    %33 = vector.load %arg10[%c0_25, %c0_26] : memref<192x16xf32, #tpu.memory_space<vmem>>, vector<192x16xf32>
    tpu.vector_store %arg10[%c0_25, %c0_26], %32 {strides = array<i32>} : memref<192x16xf32, #tpu.memory_space<vmem>>, vector<192x16xf32>,
    %c224_i32 = arith.constant 224 : i32
    %34 = tpu.dynamic_rotate %9 by %c224_i32 dim 0 : vector<248x16xf32>, i32 -> vector<248x16xf32>
    %35 = vector.extract_strided_slice %34 {offsets = [0, 0], sizes = [192, 16], strides = [1, 1]} : vector<248x16xf32> to vector<192x16xf32>
    %36 = arith.truncf %35 : vector<192x16xf32> to vector<192x16xbf16>
    %c3 = arith.constant 3 : index
    %c0_27 = arith.constant 0 : index
    %c0_28 = arith.constant 0 : index
    %37 = vector.load %arg5[%c3, %c0_27, %c0_28] : memref<9x16x16xbf16, #tpu.memory_space<vmem>>, vector<1x16x16xbf16>
    %38 = vector.shape_cast %37 : vector<1x16x16xbf16> to vector<16x16xbf16>
    %cst_29 = arith.constant dense<0.000000e+00> : vector<192x16xf32>
    %39 = tpu.matmul %36, %38, %cst_29 {dimension_numbers = #tpu.dot_dimension_numbers<[1], [0], [0], [1], [0, 0, 1, 1], [], []>} : vector<192x16xbf16>, vector<16x16xbf16>, vector<192x16xf32> -> vector<192x16xf32>
    %c0_30 = arith.constant 0 : index
    %c0_31 = arith.constant 0 : index
    %40 = vector.load %arg10[%c0_30, %c0_31] : memref<192x16xf32, #tpu.memory_space<vmem>>, vector<192x16xf32>
    %41 = arith.addf %40, %39 : vector<192x16xf32>
    %c0_32 = arith.constant 0 : index
    %c0_33 = arith.constant 0 : index
    %42 = vector.load %arg10[%c0_32, %c0_33] : memref<192x16xf32, #tpu.memory_space<vmem>>, vector<192x16xf32>
    tpu.vector_store %arg10[%c0_32, %c0_33], %41 {strides = array<i32>} : memref<192x16xf32, #tpu.memory_space<vmem>>, vector<192x16xf32>,
    %c223_i32 = arith.constant 223 : i32
    %43 = tpu.dynamic_rotate %9 by %c223_i32 dim 0 : vector<248x16xf32>, i32 -> vector<248x16xf32>
    %44 = vector.extract_strided_slice %43 {offsets = [0, 0], sizes = [192, 16], strides = [1, 1]} : vector<248x16xf32> to vector<192x16xf32>
    %45 = arith.truncf %44 : vector<192x16xf32> to vector<192x16xbf16>
    %c4 = arith.constant 4 : index
    %c0_34 = arith.constant 0 : index
    %c0_35 = arith.constant 0 : index
    %46 = vector.load %arg5[%c4, %c0_34, %c0_35] : memref<9x16x16xbf16, #tpu.memory_space<vmem>>, vector<1x16x16xbf16>
    %47 = vector.shape_cast %46 : vector<1x16x16xbf16> to vector<16x16xbf16>
    %cst_36 = arith.constant dense<0.000000e+00> : vector<192x16xf32>
    %48 = tpu.matmul %45, %47, %cst_36 {dimension_numbers = #tpu.dot_dimension_numbers<[1], [0], [0], [1], [0, 0, 1, 1], [], []>} : vector<192x16xbf16>, vector<16x16xbf16>, vector<192x16xf32> -> vector<192x16xf32>
    %c0_37 = arith.constant 0 : index
    %c0_38 = arith.constant 0 : index
    %49 = vector.load %arg10[%c0_37, %c0_38] : memref<192x16xf32, #tpu.memory_space<vmem>>, vector<192x16xf32>
    %50 = arith.addf %49, %48 : vector<192x16xf32>
    %c0_39 = arith.constant 0 : index
    %c0_40 = arith.constant 0 : index
    %51 = vector.load %arg10[%c0_39, %c0_40] : memref<192x16xf32, #tpu.memory_space<vmem>>, vector<192x16xf32>
    tpu.vector_store %arg10[%c0_39, %c0_40], %50 {strides = array<i32>} : memref<192x16xf32, #tpu.memory_space<vmem>>, vector<192x16xf32>,
    %c222_i32 = arith.constant 222 : i32
    %52 = tpu.dynamic_rotate %9 by %c222_i32 dim 0 : vector<248x16xf32>, i32 -> vector<248x16xf32>
    %53 = vector.extract_strided_slice %52 {offsets = [0, 0], sizes = [192, 16], strides = [1, 1]} : vector<248x16xf32> to vector<192x16xf32>
    %54 = arith.truncf %53 : vector<192x16xf32> to vector<192x16xbf16>
    %c5 = arith.constant 5 : index
    %c0_41 = arith.constant 0 : index
    %c0_42 = arith.constant 0 : index
    %55 = vector.load %arg5[%c5, %c0_41, %c0_42] : memref<9x16x16xbf16, #tpu.memory_space<vmem>>, vector<1x16x16xbf16>
    %56 = vector.shape_cast %55 : vector<1x16x16xbf16> to vector<16x16xbf16>
    %cst_43 = arith.constant dense<0.000000e+00> : vector<192x16xf32>
    %57 = tpu.matmul %54, %56, %cst_43 {dimension_numbers = #tpu.dot_dimension_numbers<[1], [0], [0], [1], [0, 0, 1, 1], [], []>} : vector<192x16xbf16>, vector<16x16xbf16>, vector<192x16xf32> -> vector<192x16xf32>
    %c0_44 = arith.constant 0 : index
    %c0_45 = arith.constant 0 : index
    %58 = vector.load %arg10[%c0_44, %c0_45] : memref<192x16xf32, #tpu.memory_space<vmem>>, vector<192x16xf32>
    %59 = arith.addf %58, %57 : vector<192x16xf32>
    %c0_46 = arith.constant 0 : index
    %c0_47 = arith.constant 0 : index
    %60 = vector.load %arg10[%c0_46, %c0_47] : memref<192x16xf32, #tpu.memory_space<vmem>>, vector<192x16xf32>
    tpu.vector_store %arg10[%c0_46, %c0_47], %59 {strides = array<i32>} : memref<192x16xf32, #tpu.memory_space<vmem>>, vector<192x16xf32>,
    %c200_i32 = arith.constant 200 : i32
    %61 = tpu.dynamic_rotate %9 by %c200_i32 dim 0 : vector<248x16xf32>, i32 -> vector<248x16xf32>
    %62 = vector.extract_strided_slice %61 {offsets = [0, 0], sizes = [192, 16], strides = [1, 1]} : vector<248x16xf32> to vector<192x16xf32>
    %63 = arith.truncf %62 : vector<192x16xf32> to vector<192x16xbf16>
    %c6 = arith.constant 6 : index
    %c0_48 = arith.constant 0 : index
    %c0_49 = arith.constant 0 : index
    %64 = vector.load %arg5[%c6, %c0_48, %c0_49] : memref<9x16x16xbf16, #tpu.memory_space<vmem>>, vector<1x16x16xbf16>
    %65 = vector.shape_cast %64 : vector<1x16x16xbf16> to vector<16x16xbf16>
    %cst_50 = arith.constant dense<0.000000e+00> : vector<192x16xf32>
    %66 = tpu.matmul %63, %65, %cst_50 {dimension_numbers = #tpu.dot_dimension_numbers<[1], [0], [0], [1], [0, 0, 1, 1], [], []>} : vector<192x16xbf16>, vector<16x16xbf16>, vector<192x16xf32> -> vector<192x16xf32>
    %c0_51 = arith.constant 0 : index
    %c0_52 = arith.constant 0 : index
    %67 = vector.load %arg10[%c0_51, %c0_52] : memref<192x16xf32, #tpu.memory_space<vmem>>, vector<192x16xf32>
    %68 = arith.addf %67, %66 : vector<192x16xf32>
    %c0_53 = arith.constant 0 : index
    %c0_54 = arith.constant 0 : index
    %69 = vector.load %arg10[%c0_53, %c0_54] : memref<192x16xf32, #tpu.memory_space<vmem>>, vector<192x16xf32>
    tpu.vector_store %arg10[%c0_53, %c0_54], %68 {strides = array<i32>} : memref<192x16xf32, #tpu.memory_space<vmem>>, vector<192x16xf32>,
    %c199_i32 = arith.constant 199 : i32
    %70 = tpu.dynamic_rotate %9 by %c199_i32 dim 0 : vector<248x16xf32>, i32 -> vector<248x16xf32>
    %71 = vector.extract_strided_slice %70 {offsets = [0, 0], sizes = [192, 16], strides = [1, 1]} : vector<248x16xf32> to vector<192x16xf32>
    %72 = arith.truncf %71 : vector<192x16xf32> to vector<192x16xbf16>
    %c7 = arith.constant 7 : index
    %c0_55 = arith.constant 0 : index
    %c0_56 = arith.constant 0 : index
    %73 = vector.load %arg5[%c7, %c0_55, %c0_56] : memref<9x16x16xbf16, #tpu.memory_space<vmem>>, vector<1x16x16xbf16>
    %74 = vector.shape_cast %73 : vector<1x16x16xbf16> to vector<16x16xbf16>
    %cst_57 = arith.constant dense<0.000000e+00> : vector<192x16xf32>
    %75 = tpu.matmul %72, %74, %cst_57 {dimension_numbers = #tpu.dot_dimension_numbers<[1], [0], [0], [1], [0, 0, 1, 1], [], []>} : vector<192x16xbf16>, vector<16x16xbf16>, vector<192x16xf32> -> vector<192x16xf32>
    %c0_58 = arith.constant 0 : index
    %c0_59 = arith.constant 0 : index
    %76 = vector.load %arg10[%c0_58, %c0_59] : memref<192x16xf32, #tpu.memory_space<vmem>>, vector<192x16xf32>
    %77 = arith.addf %76, %75 : vector<192x16xf32>
    %c0_60 = arith.constant 0 : index
    %c0_61 = arith.constant 0 : index
    %78 = vector.load %arg10[%c0_60, %c0_61] : memref<192x16xf32, #tpu.memory_space<vmem>>, vector<192x16xf32>
    tpu.vector_store %arg10[%c0_60, %c0_61], %77 {strides = array<i32>} : memref<192x16xf32, #tpu.memory_space<vmem>>, vector<192x16xf32>,
    %c198_i32 = arith.constant 198 : i32
    %79 = tpu.dynamic_rotate %9 by %c198_i32 dim 0 : vector<248x16xf32>, i32 -> vector<248x16xf32>
    %80 = vector.extract_strided_slice %79 {offsets = [0, 0], sizes = [192, 16], strides = [1, 1]} : vector<248x16xf32> to vector<192x16xf32>
    %81 = arith.truncf %80 : vector<192x16xf32> to vector<192x16xbf16>
    %c8 = arith.constant 8 : index
    %c0_62 = arith.constant 0 : index
    %c0_63 = arith.constant 0 : index
    %82 = vector.load %arg5[%c8, %c0_62, %c0_63] : memref<9x16x16xbf16, #tpu.memory_space<vmem>>, vector<1x16x16xbf16>
    %83 = vector.shape_cast %82 : vector<1x16x16xbf16> to vector<16x16xbf16>
    %cst_64 = arith.constant dense<0.000000e+00> : vector<192x16xf32>
    %84 = tpu.matmul %81, %83, %cst_64 {dimension_numbers = #tpu.dot_dimension_numbers<[1], [0], [0], [1], [0, 0, 1, 1], [], []>} : vector<192x16xbf16>, vector<16x16xbf16>, vector<192x16xf32> -> vector<192x16xf32>
    %c0_65 = arith.constant 0 : index
    %c0_66 = arith.constant 0 : index
    %85 = vector.load %arg10[%c0_65, %c0_66] : memref<192x16xf32, #tpu.memory_space<vmem>>, vector<192x16xf32>
    %86 = arith.addf %85, %84 : vector<192x16xf32>
    %c0_67 = arith.constant 0 : index
    %c0_68 = arith.constant 0 : index
    %87 = vector.load %arg10[%c0_67, %c0_68] : memref<192x16xf32, #tpu.memory_space<vmem>>, vector<192x16xf32>
    tpu.vector_store %arg10[%c0_67, %c0_68], %86 {strides = array<i32>} : memref<192x16xf32, #tpu.memory_space<vmem>>, vector<192x16xf32>,
    %c0_69 = arith.constant 0 : index
    %c0_70 = arith.constant 0 : index
    %88 = vector.load %arg10[%c0_69, %c0_70] : memref<192x16xf32, #tpu.memory_space<vmem>>, vector<192x16xf32>
    %c0_71 = arith.constant 0 : index
    %c0_72 = arith.constant 0 : index
    %89 = vector.load %arg6[%c0_71, %c0_72] : memref<1x16xf32, #tpu.memory_space<vmem>>, vector<1x16xf32>
    %90 = vector.broadcast %89 : vector<1x16xf32> to vector<192x16xf32>
    %91 = arith.addf %88, %90 : vector<192x16xf32>
    %cst_73 = arith.constant 0.000000e+00 : f32
    %92 = vector.broadcast %cst_73 : f32 to vector<192x16xf32>
    %93 = arith.maximumf %91, %92 : vector<192x16xf32>
    %94 = arith.truncf %93 : vector<192x16xf32> to vector<192x16xbf16>
    %c0_74 = arith.constant 0 : index
    %c0_75 = arith.constant 0 : index
    %95 = vector.load %arg7[%c0_74, %c0_75] : memref<16x128xbf16, #tpu.memory_space<vmem>>, vector<16x128xbf16>
    %cst_76 = arith.constant dense<0.000000e+00> : vector<192x128xf32>
    %96 = tpu.matmul %94, %95, %cst_76 {dimension_numbers = #tpu.dot_dimension_numbers<[1], [0], [0], [1], [0, 0, 1, 1], [], []>} : vector<192x16xbf16>, vector<16x128xbf16>, vector<192x128xf32> -> vector<192x128xf32>
    %c0_77 = arith.constant 0 : index
    %c0_78 = arith.constant 0 : index
    %97 = vector.load %arg8[%c0_77, %c0_78] : memref<1x128xf32, #tpu.memory_space<vmem>>, vector<1x128xf32>
    %98 = vector.broadcast %97 : vector<1x128xf32> to vector<192x128xf32>
    %99 = arith.addf %96, %98 : vector<192x128xf32>
    %100 = vector.extract_strided_slice %99 {offsets = [0, 0], sizes = [192, 3], strides = [1, 1]} : vector<192x128xf32> to vector<192x3xf32>
    %101 = vector.extract_strided_slice %99 {offsets = [0, 3], sizes = [192, 3], strides = [1, 1]} : vector<192x128xf32> to vector<192x3xf32>
    %102 = vector.extract_strided_slice %99 {offsets = [0, 6], sizes = [192, 3], strides = [1, 1]} : vector<192x128xf32> to vector<192x3xf32>
    %103 = vector.extract_strided_slice %99 {offsets = [0, 9], sizes = [192, 3], strides = [1, 1]} : vector<192x128xf32> to vector<192x3xf32>
    %cst_79 = arith.constant 4.13516665 : f32
    %104 = vector.broadcast %cst_79 : f32 to vector<192x3xf32>
    %105 = arith.minimumf %103, %104 : vector<192x3xf32>
    %106 = vector.extract_strided_slice %99 {offsets = [0, 12], sizes = [192, 3], strides = [1, 1]} : vector<192x128xf32> to vector<192x3xf32>
    %cst_80 = arith.constant 4.13516665 : f32
    %107 = vector.broadcast %cst_80 : f32 to vector<192x3xf32>
    %108 = arith.minimumf %106, %107 : vector<192x3xf32>
    %c0_81 = arith.constant 0 : index
    %c0_82 = arith.constant 0 : index
    %109 = vector.load %arg4[%c0_81, %c0_82] : memref<192x12xf32, #tpu.memory_space<vmem>>, vector<192x12xf32>
    %110 = vector.extract_strided_slice %109 {offsets = [0, 0], sizes = [192, 3], strides = [1, 1]} : vector<192x12xf32> to vector<192x3xf32>
    %111 = vector.extract_strided_slice %109 {offsets = [0, 3], sizes = [192, 3], strides = [1, 1]} : vector<192x12xf32> to vector<192x3xf32>
    %112 = vector.extract_strided_slice %109 {offsets = [0, 6], sizes = [192, 3], strides = [1, 1]} : vector<192x12xf32> to vector<192x3xf32>
    %113 = vector.extract_strided_slice %109 {offsets = [0, 9], sizes = [192, 3], strides = [1, 1]} : vector<192x12xf32> to vector<192x3xf32>
    %114 = arith.subf %112, %110 : vector<192x3xf32>
    %cst_83 = arith.constant 1.000000e+00 : f32
    %115 = vector.broadcast %cst_83 : f32 to vector<192x3xf32>
    %116 = arith.addf %114, %115 : vector<192x3xf32>
    %117 = arith.subf %113, %111 : vector<192x3xf32>
    %cst_84 = arith.constant 1.000000e+00 : f32
    %118 = vector.broadcast %cst_84 : f32 to vector<192x3xf32>
    %119 = arith.addf %117, %118 : vector<192x3xf32>
    %cst_85 = arith.constant 5.000000e-01 : f32
    %120 = vector.broadcast %cst_85 : f32 to vector<192x3xf32>
    %121 = arith.mulf %120, %116 : vector<192x3xf32>
    %122 = arith.addf %110, %121 : vector<192x3xf32>
    %cst_86 = arith.constant 5.000000e-01 : f32
    %123 = vector.broadcast %cst_86 : f32 to vector<192x3xf32>
    %124 = arith.mulf %123, %119 : vector<192x3xf32>
    %125 = arith.addf %111, %124 : vector<192x3xf32>
    %126 = arith.mulf %101, %116 : vector<192x3xf32>
    %127 = arith.addf %126, %122 : vector<192x3xf32>
    %128 = arith.mulf %102, %119 : vector<192x3xf32>
    %129 = arith.addf %128, %125 : vector<192x3xf32>
    %130 = math.exp %105 : vector<192x3xf32>
    %131 = arith.mulf %130, %116 : vector<192x3xf32>
    %132 = math.exp %108 : vector<192x3xf32>
    %133 = arith.mulf %132, %119 : vector<192x3xf32>
    %cst_87 = arith.constant 5.000000e-01 : f32
    %134 = vector.broadcast %cst_87 : f32 to vector<192x3xf32>
    %135 = arith.mulf %134, %131 : vector<192x3xf32>
    %136 = arith.subf %127, %135 : vector<192x3xf32>
    %cst_88 = arith.constant 0.000000e+00 : f32
    %cst_89 = arith.constant 1.270000e+02 : f32
    %137 = vector.broadcast %cst_88 : f32 to vector<192x3xf32>
    %138 = arith.maximumf %137, %136 : vector<192x3xf32>
    %139 = vector.broadcast %cst_89 : f32 to vector<192x3xf32>
    %140 = arith.minimumf %139, %138 : vector<192x3xf32>
    %cst_90 = arith.constant 5.000000e-01 : f32
    %141 = vector.broadcast %cst_90 : f32 to vector<192x3xf32>
    %142 = arith.mulf %141, %133 : vector<192x3xf32>
    %143 = arith.subf %129, %142 : vector<192x3xf32>
    %cst_91 = arith.constant 0.000000e+00 : f32
    %cst_92 = arith.constant 1.270000e+02 : f32
    %144 = vector.broadcast %cst_91 : f32 to vector<192x3xf32>
    %145 = arith.maximumf %144, %143 : vector<192x3xf32>
    %146 = vector.broadcast %cst_92 : f32 to vector<192x3xf32>
    %147 = arith.minimumf %146, %145 : vector<192x3xf32>
    %cst_93 = arith.constant 5.000000e-01 : f32
    %148 = vector.broadcast %cst_93 : f32 to vector<192x3xf32>
    %149 = arith.mulf %148, %131 : vector<192x3xf32>
    %150 = arith.addf %127, %149 : vector<192x3xf32>
    %cst_94 = arith.constant 1.000000e+00 : f32
    %151 = vector.broadcast %cst_94 : f32 to vector<192x3xf32>
    %152 = arith.subf %150, %151 : vector<192x3xf32>
    %cst_95 = arith.constant 0.000000e+00 : f32
    %cst_96 = arith.constant 1.270000e+02 : f32
    %153 = vector.broadcast %cst_95 : f32 to vector<192x3xf32>
    %154 = arith.maximumf %153, %152 : vector<192x3xf32>
    %155 = vector.broadcast %cst_96 : f32 to vector<192x3xf32>
    %156 = arith.minimumf %155, %154 : vector<192x3xf32>
    %cst_97 = arith.constant 5.000000e-01 : f32
    %157 = vector.broadcast %cst_97 : f32 to vector<192x3xf32>
    %158 = arith.mulf %157, %133 : vector<192x3xf32>
    %159 = arith.addf %129, %158 : vector<192x3xf32>
    %cst_98 = arith.constant 1.000000e+00 : f32
    %160 = vector.broadcast %cst_98 : f32 to vector<192x3xf32>
    %161 = arith.subf %159, %160 : vector<192x3xf32>
    %cst_99 = arith.constant 0.000000e+00 : f32
    %cst_100 = arith.constant 1.270000e+02 : f32
    %162 = vector.broadcast %cst_99 : f32 to vector<192x3xf32>
    %163 = arith.maximumf %162, %161 : vector<192x3xf32>
    %164 = vector.broadcast %cst_100 : f32 to vector<192x3xf32>
    %165 = arith.minimumf %164, %163 : vector<192x3xf32>
    %166 = arith.negf %100 : vector<192x3xf32>
    %167 = math.exp %166 : vector<192x3xf32>
    %cst_101 = arith.constant 1.000000e+00 : f32
    %168 = vector.broadcast %cst_101 : f32 to vector<192x3xf32>
    %169 = arith.addf %168, %167 : vector<192x3xf32>
    %170 = arith.divf %168, %169 : vector<192x3xf32>
    %cst_102 = arith.constant 0.000000e+00 : f32
    %171 = vector.broadcast %cst_102 : f32 to vector<192x113xf32>
    %172 = tpu.concatenate %170, %140, %147, %156, %165, %171 in 1 : vector<192x3xf32>, vector<192x3xf32>, vector<192x3xf32>, vector<192x3xf32>, vector<192x3xf32>, vector<192x113xf32> -> vector<192x128xf32>
    %c0_103 = arith.constant 0 : index
    %c0_104 = arith.constant 0 : index
    %c0_105 = arith.constant 0 : index
    %173 = vector.load %arg9[%c0_103, %c0_104, %c0_105] : memref<1x192x128xf32, #tpu.memory_space<vmem>>, vector<1x192x128xf32>
    %174 = vector.shape_cast %173 : vector<1x192x128xf32> to vector<192x128xf32>
    %175 = vector.shape_cast %172 : vector<192x128xf32> to vector<1x192x128xf32>
    tpu.vector_store %arg9[%c0_103, %c0_104, %c0_105], %175 {strides = array<i32>} : memref<1x192x128xf32, #tpu.memory_space<vmem>>, vector<1x192x128xf32>,
    return
  }
  func.func @transform_0(%arg0: i32, %arg1: i32) -> (i32, i32, i32, i32) {
    %c0_i32 = arith.constant 0 : i32
    %c0_i32_0 = arith.constant 0 : i32
    %c0_i32_1 = arith.constant 0 : i32
    return %arg0, %arg1, %c0_i32, %c0_i32_0 : i32, i32, i32, i32
  }
  func.func @transform_1(%arg0: i32, %arg1: i32) -> (i32, i32, i32, i32) {
    %c1_i32 = arith.constant 1 : i32
    %0 = arith.addi %arg1, %c1_i32 : i32
    %c4_i32 = arith.constant 4 : i32
    %1 = arith.muli %0, %c4_i32 : i32
    %c0_i32 = arith.constant 0 : i32
    %c0_i32_0 = arith.constant 0 : i32
    %c0_i32_1 = arith.constant 0 : i32
    return %arg0, %1, %c0_i32, %c0_i32_0 : i32, i32, i32, i32
  }
  func.func @transform_2(%arg0: i32, %arg1: i32) -> (i32, i32) {
    %c0_i32 = arith.constant 0 : i32
    %c0_i32_0 = arith.constant 0 : i32
    return %arg1, %c0_i32 : i32, i32
  }
  func.func @transform_3(%arg0: i32, %arg1: i32) -> (i32, i32, i32) {
    %c0_i32 = arith.constant 0 : i32
    %c0_i32_0 = arith.constant 0 : i32
    %c0_i32_1 = arith.constant 0 : i32
    %c0_i32_2 = arith.constant 0 : i32
    return %c0_i32, %c0_i32_0, %c0_i32_1 : i32, i32, i32
  }
  func.func @transform_4(%arg0: i32, %arg1: i32) -> (i32, i32) {
    %c0_i32 = arith.constant 0 : i32
    %c0_i32_0 = arith.constant 0 : i32
    %c0_i32_1 = arith.constant 0 : i32
    return %c0_i32, %c0_i32_0 : i32, i32
  }
  func.func @transform_5(%arg0: i32, %arg1: i32) -> (i32, i32) {
    %c0_i32 = arith.constant 0 : i32
    %c0_i32_0 = arith.constant 0 : i32
    %c0_i32_1 = arith.constant 0 : i32
    return %c0_i32, %c0_i32_0 : i32, i32
  }
  func.func @transform_6(%arg0: i32, %arg1: i32) -> (i32, i32) {
    %c0_i32 = arith.constant 0 : i32
    %c0_i32_0 = arith.constant 0 : i32
    %c0_i32_1 = arith.constant 0 : i32
    return %c0_i32, %c0_i32_0 : i32, i32
  }
  func.func @transform_7(%arg0: i32, %arg1: i32) -> (i32, i32, i32) {
    %c0_i32 = arith.constant 0 : i32
    %c0_i32_0 = arith.constant 0 : i32
    return %arg0, %arg1, %c0_i32 : i32, i32, i32
  }
}

module attributes {stable_mosaic.version = 11 : i64} {
  func.func @_rpn_fused_kernel(%arg0: i32, %arg1: i32, %arg2: memref<1x8x24x16xbf16, #tpu.memory_space<vmem>>, %arg3: memref<1x2x24x16xbf16, #tpu.memory_space<vmem>>, %arg4: memref<192x12xf32, #tpu.memory_space<vmem>>, %arg5: memref<9x16x16xbf16, #tpu.memory_space<vmem>>, %arg6: memref<1x16xf32, #tpu.memory_space<vmem>>, %arg7: memref<16x128xbf16, #tpu.memory_space<vmem>>, %arg8: memref<1x128xf32, #tpu.memory_space<vmem>>, %arg9: memref<1x192x128xf32, #tpu.memory_space<vmem>>, %arg10: memref<192x16xf32, #tpu.memory_space<vmem>>) attributes {dimension_semantics = [#tpu.dimension_semantics<parallel>, #tpu.dimension_semantics<parallel>], iteration_bounds = array<i64: 2, 2>, scalar_prefetch = 0 : i64, scratch_operands = 1 : i64, tpu.core_type = #tpu.core_type<tc>, window_params = [{transform_indices = @transform_0, window_bounds = array<i64: 1, 8, 24, 16>}, {transform_indices = @transform_1, window_bounds = array<i64: 1, 2, 24, 16>}, {transform_indices = @transform_2, window_bounds = array<i64: 192, 12>}, {pipeline_mode = #tpu.pipeline_mode<synchronous>, transform_indices = @transform_3, window_bounds = array<i64: 9, 16, 16>}, {pipeline_mode = #tpu.pipeline_mode<synchronous>, transform_indices = @transform_4, window_bounds = array<i64: 1, 16>}, {pipeline_mode = #tpu.pipeline_mode<synchronous>, transform_indices = @transform_5, window_bounds = array<i64: 16, 128>}, {pipeline_mode = #tpu.pipeline_mode<synchronous>, transform_indices = @transform_6, window_bounds = array<i64: 1, 128>}, {transform_indices = @transform_7, window_bounds = array<i64: 1, 192, 128>}]} {
    %c0 = arith.constant 0 : index
    %c0_0 = arith.constant 0 : index
    %c0_1 = arith.constant 0 : index
    %c0_2 = arith.constant 0 : index
    %0 = vector.load %arg2[%c0, %c0_0, %c0_1, %c0_2] : memref<1x8x24x16xbf16, #tpu.memory_space<vmem>>, vector<1x8x24x16xbf16>
    %1 = vector.shape_cast %0 : vector<1x8x24x16xbf16> to vector<8x24x16xbf16>
    %2 = arith.extf %1 : vector<8x24x16xbf16> to vector<8x24x16xf32>
    %3 = vector.shape_cast %2 : vector<8x24x16xf32> to vector<192x16xf32>
    %c0_3 = arith.constant 0 : index
    %c0_4 = arith.constant 0 : index
    %c0_5 = arith.constant 0 : index
    %c0_6 = arith.constant 0 : index
    %4 = vector.load %arg3[%c0_3, %c0_4, %c0_5, %c0_6] : memref<1x2x24x16xbf16, #tpu.memory_space<vmem>>, vector<1x2x24x16xbf16>
    %5 = vector.shape_cast %4 : vector<1x2x24x16xbf16> to vector<2x24x16xbf16>
    %6 = arith.extf %5 : vector<2x24x16xbf16> to vector<2x24x16xf32>
    %7 = vector.shape_cast %6 : vector<2x24x16xf32> to vector<48x16xf32>
    %cst = arith.constant 0.000000e+00 : f32
    %8 = vector.broadcast %cst : f32 to vector<8x16xf32>
    %9 = tpu.concatenate %3, %7, %8 in 0 : vector<192x16xf32>, vector<48x16xf32>, vector<8x16xf32> -> vector<248x16xf32>
    %10 = vector.extract_strided_slice %9 {offsets = [0, 0], sizes = [192, 16], strides = [1, 1]} : vector<248x16xf32> to vector<192x16xf32>
    %11 = arith.truncf %10 : vector<192x16xf32> to vector<192x16xbf16>
    %c0_7 = arith.constant 0 : index
    %c0_8 = arith.constant 0 : index
    %c0_9 = arith.constant 0 : index
    %12 = vector.load %arg5[%c0_7, %c0_8, %c0_9] : memref<9x16x16xbf16, #tpu.memory_space<vmem>>, vector<1x16x16xbf16>
    %13 = vector.shape_cast %12 : vector<1x16x16xbf16> to vector<16x16xbf16>
    %cst_10 = arith.constant dense<0.000000e+00> : vector<192x16xf32>
    %14 = tpu.matmul %11, %13, %cst_10 {dimension_numbers = #tpu.dot_dimension_numbers<[1], [0], [0], [1], [0, 0, 1, 1], [], []>} : vector<192x16xbf16>, vector<16x16xbf16>, vector<192x16xf32> -> vector<192x16xf32>
    %c0_11 = arith.constant 0 : index
    %c0_12 = arith.constant 0 : index
    %15 = vector.load %arg10[%c0_11, %c0_12] : memref<192x16xf32, #tpu.memory_space<vmem>>, vector<192x16xf32>
    tpu.vector_store %arg10[%c0_11, %c0_12], %14 {strides = array<i32>} : memref<192x16xf32, #tpu.memory_space<vmem>>, vector<192x16xf32>,
    %16 = vector.extract_strided_slice %9 {offsets = [1, 0], sizes = [192, 16], strides = [1, 1]} : vector<248x16xf32> to vector<192x16xf32>
    %17 = arith.truncf %16 : vector<192x16xf32> to vector<192x16xbf16>
    %c1 = arith.constant 1 : index
    %c0_13 = arith.constant 0 : index
    %c0_14 = arith.constant 0 : index
    %18 = vector.load %arg5[%c1, %c0_13, %c0_14] : memref<9x16x16xbf16, #tpu.memory_space<vmem>>, vector<1x16x16xbf16>
    %19 = vector.shape_cast %18 : vector<1x16x16xbf16> to vector<16x16xbf16>
    %cst_15 = arith.constant dense<0.000000e+00> : vector<192x16xf32>
    %20 = tpu.matmul %17, %19, %cst_15 {dimension_numbers = #tpu.dot_dimension_numbers<[1], [0], [0], [1], [0, 0, 1, 1], [], []>} : vector<192x16xbf16>, vector<16x16xbf16>, vector<192x16xf32> -> vector<192x16xf32>
    %c0_16 = arith.constant 0 : index
    %c0_17 = arith.constant 0 : index
    %21 = vector.load %arg10[%c0_16, %c0_17] : memref<192x16xf32, #tpu.memory_space<vmem>>, vector<192x16xf32>
    %22 = arith.addf %21, %20 : vector<192x16xf32>
    %c0_18 = arith.constant 0 : index
    %c0_19 = arith.constant 0 : index
    %23 = vector.load %arg10[%c0_18, %c0_19] : memref<192x16xf32, #tpu.memory_space<vmem>>, vector<192x16xf32>
    tpu.vector_store %arg10[%c0_18, %c0_19], %22 {strides = array<i32>} : memref<192x16xf32, #tpu.memory_space<vmem>>, vector<192x16xf32>,
    %24 = vector.extract_strided_slice %9 {offsets = [2, 0], sizes = [192, 16], strides = [1, 1]} : vector<248x16xf32> to vector<192x16xf32>
    %25 = arith.truncf %24 : vector<192x16xf32> to vector<192x16xbf16>
    %c2 = arith.constant 2 : index
    %c0_20 = arith.constant 0 : index
    %c0_21 = arith.constant 0 : index
    %26 = vector.load %arg5[%c2, %c0_20, %c0_21] : memref<9x16x16xbf16, #tpu.memory_space<vmem>>, vector<1x16x16xbf16>
    %27 = vector.shape_cast %26 : vector<1x16x16xbf16> to vector<16x16xbf16>
    %cst_22 = arith.constant dense<0.000000e+00> : vector<192x16xf32>
    %28 = tpu.matmul %25, %27, %cst_22 {dimension_numbers = #tpu.dot_dimension_numbers<[1], [0], [0], [1], [0, 0, 1, 1], [], []>} : vector<192x16xbf16>, vector<16x16xbf16>, vector<192x16xf32> -> vector<192x16xf32>
    %c0_23 = arith.constant 0 : index
    %c0_24 = arith.constant 0 : index
    %29 = vector.load %arg10[%c0_23, %c0_24] : memref<192x16xf32, #tpu.memory_space<vmem>>, vector<192x16xf32>
    %30 = arith.addf %29, %28 : vector<192x16xf32>
    %c0_25 = arith.constant 0 : index
    %c0_26 = arith.constant 0 : index
    %31 = vector.load %arg10[%c0_25, %c0_26] : memref<192x16xf32, #tpu.memory_space<vmem>>, vector<192x16xf32>
    tpu.vector_store %arg10[%c0_25, %c0_26], %30 {strides = array<i32>} : memref<192x16xf32, #tpu.memory_space<vmem>>, vector<192x16xf32>,
    %32 = vector.extract_strided_slice %9 {offsets = [24, 0], sizes = [192, 16], strides = [1, 1]} : vector<248x16xf32> to vector<192x16xf32>
    %33 = arith.truncf %32 : vector<192x16xf32> to vector<192x16xbf16>
    %c3 = arith.constant 3 : index
    %c0_27 = arith.constant 0 : index
    %c0_28 = arith.constant 0 : index
    %34 = vector.load %arg5[%c3, %c0_27, %c0_28] : memref<9x16x16xbf16, #tpu.memory_space<vmem>>, vector<1x16x16xbf16>
    %35 = vector.shape_cast %34 : vector<1x16x16xbf16> to vector<16x16xbf16>
    %cst_29 = arith.constant dense<0.000000e+00> : vector<192x16xf32>
    %36 = tpu.matmul %33, %35, %cst_29 {dimension_numbers = #tpu.dot_dimension_numbers<[1], [0], [0], [1], [0, 0, 1, 1], [], []>} : vector<192x16xbf16>, vector<16x16xbf16>, vector<192x16xf32> -> vector<192x16xf32>
    %c0_30 = arith.constant 0 : index
    %c0_31 = arith.constant 0 : index
    %37 = vector.load %arg10[%c0_30, %c0_31] : memref<192x16xf32, #tpu.memory_space<vmem>>, vector<192x16xf32>
    %38 = arith.addf %37, %36 : vector<192x16xf32>
    %c0_32 = arith.constant 0 : index
    %c0_33 = arith.constant 0 : index
    %39 = vector.load %arg10[%c0_32, %c0_33] : memref<192x16xf32, #tpu.memory_space<vmem>>, vector<192x16xf32>
    tpu.vector_store %arg10[%c0_32, %c0_33], %38 {strides = array<i32>} : memref<192x16xf32, #tpu.memory_space<vmem>>, vector<192x16xf32>,
    %40 = vector.extract_strided_slice %9 {offsets = [25, 0], sizes = [192, 16], strides = [1, 1]} : vector<248x16xf32> to vector<192x16xf32>
    %41 = arith.truncf %40 : vector<192x16xf32> to vector<192x16xbf16>
    %c4 = arith.constant 4 : index
    %c0_34 = arith.constant 0 : index
    %c0_35 = arith.constant 0 : index
    %42 = vector.load %arg5[%c4, %c0_34, %c0_35] : memref<9x16x16xbf16, #tpu.memory_space<vmem>>, vector<1x16x16xbf16>
    %43 = vector.shape_cast %42 : vector<1x16x16xbf16> to vector<16x16xbf16>
    %cst_36 = arith.constant dense<0.000000e+00> : vector<192x16xf32>
    %44 = tpu.matmul %41, %43, %cst_36 {dimension_numbers = #tpu.dot_dimension_numbers<[1], [0], [0], [1], [0, 0, 1, 1], [], []>} : vector<192x16xbf16>, vector<16x16xbf16>, vector<192x16xf32> -> vector<192x16xf32>
    %c0_37 = arith.constant 0 : index
    %c0_38 = arith.constant 0 : index
    %45 = vector.load %arg10[%c0_37, %c0_38] : memref<192x16xf32, #tpu.memory_space<vmem>>, vector<192x16xf32>
    %46 = arith.addf %45, %44 : vector<192x16xf32>
    %c0_39 = arith.constant 0 : index
    %c0_40 = arith.constant 0 : index
    %47 = vector.load %arg10[%c0_39, %c0_40] : memref<192x16xf32, #tpu.memory_space<vmem>>, vector<192x16xf32>
    tpu.vector_store %arg10[%c0_39, %c0_40], %46 {strides = array<i32>} : memref<192x16xf32, #tpu.memory_space<vmem>>, vector<192x16xf32>,
    %48 = vector.extract_strided_slice %9 {offsets = [26, 0], sizes = [192, 16], strides = [1, 1]} : vector<248x16xf32> to vector<192x16xf32>
    %49 = arith.truncf %48 : vector<192x16xf32> to vector<192x16xbf16>
    %c5 = arith.constant 5 : index
    %c0_41 = arith.constant 0 : index
    %c0_42 = arith.constant 0 : index
    %50 = vector.load %arg5[%c5, %c0_41, %c0_42] : memref<9x16x16xbf16, #tpu.memory_space<vmem>>, vector<1x16x16xbf16>
    %51 = vector.shape_cast %50 : vector<1x16x16xbf16> to vector<16x16xbf16>
    %cst_43 = arith.constant dense<0.000000e+00> : vector<192x16xf32>
    %52 = tpu.matmul %49, %51, %cst_43 {dimension_numbers = #tpu.dot_dimension_numbers<[1], [0], [0], [1], [0, 0, 1, 1], [], []>} : vector<192x16xbf16>, vector<16x16xbf16>, vector<192x16xf32> -> vector<192x16xf32>
    %c0_44 = arith.constant 0 : index
    %c0_45 = arith.constant 0 : index
    %53 = vector.load %arg10[%c0_44, %c0_45] : memref<192x16xf32, #tpu.memory_space<vmem>>, vector<192x16xf32>
    %54 = arith.addf %53, %52 : vector<192x16xf32>
    %c0_46 = arith.constant 0 : index
    %c0_47 = arith.constant 0 : index
    %55 = vector.load %arg10[%c0_46, %c0_47] : memref<192x16xf32, #tpu.memory_space<vmem>>, vector<192x16xf32>
    tpu.vector_store %arg10[%c0_46, %c0_47], %54 {strides = array<i32>} : memref<192x16xf32, #tpu.memory_space<vmem>>, vector<192x16xf32>,
    %56 = vector.extract_strided_slice %9 {offsets = [48, 0], sizes = [192, 16], strides = [1, 1]} : vector<248x16xf32> to vector<192x16xf32>
    %57 = arith.truncf %56 : vector<192x16xf32> to vector<192x16xbf16>
    %c6 = arith.constant 6 : index
    %c0_48 = arith.constant 0 : index
    %c0_49 = arith.constant 0 : index
    %58 = vector.load %arg5[%c6, %c0_48, %c0_49] : memref<9x16x16xbf16, #tpu.memory_space<vmem>>, vector<1x16x16xbf16>
    %59 = vector.shape_cast %58 : vector<1x16x16xbf16> to vector<16x16xbf16>
    %cst_50 = arith.constant dense<0.000000e+00> : vector<192x16xf32>
    %60 = tpu.matmul %57, %59, %cst_50 {dimension_numbers = #tpu.dot_dimension_numbers<[1], [0], [0], [1], [0, 0, 1, 1], [], []>} : vector<192x16xbf16>, vector<16x16xbf16>, vector<192x16xf32> -> vector<192x16xf32>
    %c0_51 = arith.constant 0 : index
    %c0_52 = arith.constant 0 : index
    %61 = vector.load %arg10[%c0_51, %c0_52] : memref<192x16xf32, #tpu.memory_space<vmem>>, vector<192x16xf32>
    %62 = arith.addf %61, %60 : vector<192x16xf32>
    %c0_53 = arith.constant 0 : index
    %c0_54 = arith.constant 0 : index
    %63 = vector.load %arg10[%c0_53, %c0_54] : memref<192x16xf32, #tpu.memory_space<vmem>>, vector<192x16xf32>
    tpu.vector_store %arg10[%c0_53, %c0_54], %62 {strides = array<i32>} : memref<192x16xf32, #tpu.memory_space<vmem>>, vector<192x16xf32>,
    %64 = vector.extract_strided_slice %9 {offsets = [49, 0], sizes = [192, 16], strides = [1, 1]} : vector<248x16xf32> to vector<192x16xf32>
    %65 = arith.truncf %64 : vector<192x16xf32> to vector<192x16xbf16>
    %c7 = arith.constant 7 : index
    %c0_55 = arith.constant 0 : index
    %c0_56 = arith.constant 0 : index
    %66 = vector.load %arg5[%c7, %c0_55, %c0_56] : memref<9x16x16xbf16, #tpu.memory_space<vmem>>, vector<1x16x16xbf16>
    %67 = vector.shape_cast %66 : vector<1x16x16xbf16> to vector<16x16xbf16>
    %cst_57 = arith.constant dense<0.000000e+00> : vector<192x16xf32>
    %68 = tpu.matmul %65, %67, %cst_57 {dimension_numbers = #tpu.dot_dimension_numbers<[1], [0], [0], [1], [0, 0, 1, 1], [], []>} : vector<192x16xbf16>, vector<16x16xbf16>, vector<192x16xf32> -> vector<192x16xf32>
    %c0_58 = arith.constant 0 : index
    %c0_59 = arith.constant 0 : index
    %69 = vector.load %arg10[%c0_58, %c0_59] : memref<192x16xf32, #tpu.memory_space<vmem>>, vector<192x16xf32>
    %70 = arith.addf %69, %68 : vector<192x16xf32>
    %c0_60 = arith.constant 0 : index
    %c0_61 = arith.constant 0 : index
    %71 = vector.load %arg10[%c0_60, %c0_61] : memref<192x16xf32, #tpu.memory_space<vmem>>, vector<192x16xf32>
    tpu.vector_store %arg10[%c0_60, %c0_61], %70 {strides = array<i32>} : memref<192x16xf32, #tpu.memory_space<vmem>>, vector<192x16xf32>,
    %72 = vector.extract_strided_slice %9 {offsets = [50, 0], sizes = [192, 16], strides = [1, 1]} : vector<248x16xf32> to vector<192x16xf32>
    %73 = arith.truncf %72 : vector<192x16xf32> to vector<192x16xbf16>
    %c8 = arith.constant 8 : index
    %c0_62 = arith.constant 0 : index
    %c0_63 = arith.constant 0 : index
    %74 = vector.load %arg5[%c8, %c0_62, %c0_63] : memref<9x16x16xbf16, #tpu.memory_space<vmem>>, vector<1x16x16xbf16>
    %75 = vector.shape_cast %74 : vector<1x16x16xbf16> to vector<16x16xbf16>
    %cst_64 = arith.constant dense<0.000000e+00> : vector<192x16xf32>
    %76 = tpu.matmul %73, %75, %cst_64 {dimension_numbers = #tpu.dot_dimension_numbers<[1], [0], [0], [1], [0, 0, 1, 1], [], []>} : vector<192x16xbf16>, vector<16x16xbf16>, vector<192x16xf32> -> vector<192x16xf32>
    %c0_65 = arith.constant 0 : index
    %c0_66 = arith.constant 0 : index
    %77 = vector.load %arg10[%c0_65, %c0_66] : memref<192x16xf32, #tpu.memory_space<vmem>>, vector<192x16xf32>
    %78 = arith.addf %77, %76 : vector<192x16xf32>
    %c0_67 = arith.constant 0 : index
    %c0_68 = arith.constant 0 : index
    %79 = vector.load %arg10[%c0_67, %c0_68] : memref<192x16xf32, #tpu.memory_space<vmem>>, vector<192x16xf32>
    tpu.vector_store %arg10[%c0_67, %c0_68], %78 {strides = array<i32>} : memref<192x16xf32, #tpu.memory_space<vmem>>, vector<192x16xf32>,
    %c0_69 = arith.constant 0 : index
    %c0_70 = arith.constant 0 : index
    %80 = vector.load %arg10[%c0_69, %c0_70] : memref<192x16xf32, #tpu.memory_space<vmem>>, vector<192x16xf32>
    %c0_71 = arith.constant 0 : index
    %c0_72 = arith.constant 0 : index
    %81 = vector.load %arg6[%c0_71, %c0_72] : memref<1x16xf32, #tpu.memory_space<vmem>>, vector<1x16xf32>
    %82 = vector.broadcast %81 : vector<1x16xf32> to vector<192x16xf32>
    %83 = arith.addf %80, %82 : vector<192x16xf32>
    %cst_73 = arith.constant 0.000000e+00 : f32
    %84 = vector.broadcast %cst_73 : f32 to vector<192x16xf32>
    %85 = arith.maximumf %83, %84 : vector<192x16xf32>
    %86 = arith.truncf %85 : vector<192x16xf32> to vector<192x16xbf16>
    %c0_74 = arith.constant 0 : index
    %c0_75 = arith.constant 0 : index
    %87 = vector.load %arg7[%c0_74, %c0_75] : memref<16x128xbf16, #tpu.memory_space<vmem>>, vector<16x128xbf16>
    %cst_76 = arith.constant dense<0.000000e+00> : vector<192x128xf32>
    %88 = tpu.matmul %86, %87, %cst_76 {dimension_numbers = #tpu.dot_dimension_numbers<[1], [0], [0], [1], [0, 0, 1, 1], [], []>} : vector<192x16xbf16>, vector<16x128xbf16>, vector<192x128xf32> -> vector<192x128xf32>
    %c0_77 = arith.constant 0 : index
    %c0_78 = arith.constant 0 : index
    %89 = vector.load %arg8[%c0_77, %c0_78] : memref<1x128xf32, #tpu.memory_space<vmem>>, vector<1x128xf32>
    %90 = vector.broadcast %89 : vector<1x128xf32> to vector<192x128xf32>
    %91 = arith.addf %88, %90 : vector<192x128xf32>
    %92 = vector.extract_strided_slice %91 {offsets = [0, 0], sizes = [192, 3], strides = [1, 1]} : vector<192x128xf32> to vector<192x3xf32>
    %93 = vector.extract_strided_slice %91 {offsets = [0, 3], sizes = [192, 3], strides = [1, 1]} : vector<192x128xf32> to vector<192x3xf32>
    %94 = vector.extract_strided_slice %91 {offsets = [0, 6], sizes = [192, 3], strides = [1, 1]} : vector<192x128xf32> to vector<192x3xf32>
    %95 = vector.extract_strided_slice %91 {offsets = [0, 9], sizes = [192, 3], strides = [1, 1]} : vector<192x128xf32> to vector<192x3xf32>
    %cst_79 = arith.constant 4.13516665 : f32
    %96 = vector.broadcast %cst_79 : f32 to vector<192x3xf32>
    %97 = arith.minimumf %95, %96 : vector<192x3xf32>
    %98 = vector.extract_strided_slice %91 {offsets = [0, 12], sizes = [192, 3], strides = [1, 1]} : vector<192x128xf32> to vector<192x3xf32>
    %cst_80 = arith.constant 4.13516665 : f32
    %99 = vector.broadcast %cst_80 : f32 to vector<192x3xf32>
    %100 = arith.minimumf %98, %99 : vector<192x3xf32>
    %c0_81 = arith.constant 0 : index
    %c0_82 = arith.constant 0 : index
    %101 = vector.load %arg4[%c0_81, %c0_82] : memref<192x12xf32, #tpu.memory_space<vmem>>, vector<192x12xf32>
    %102 = vector.extract_strided_slice %101 {offsets = [0, 0], sizes = [192, 3], strides = [1, 1]} : vector<192x12xf32> to vector<192x3xf32>
    %103 = vector.extract_strided_slice %101 {offsets = [0, 3], sizes = [192, 3], strides = [1, 1]} : vector<192x12xf32> to vector<192x3xf32>
    %104 = vector.extract_strided_slice %101 {offsets = [0, 6], sizes = [192, 3], strides = [1, 1]} : vector<192x12xf32> to vector<192x3xf32>
    %105 = vector.extract_strided_slice %101 {offsets = [0, 9], sizes = [192, 3], strides = [1, 1]} : vector<192x12xf32> to vector<192x3xf32>
    %106 = arith.subf %104, %102 : vector<192x3xf32>
    %cst_83 = arith.constant 1.000000e+00 : f32
    %107 = vector.broadcast %cst_83 : f32 to vector<192x3xf32>
    %108 = arith.addf %106, %107 : vector<192x3xf32>
    %109 = arith.subf %105, %103 : vector<192x3xf32>
    %cst_84 = arith.constant 1.000000e+00 : f32
    %110 = vector.broadcast %cst_84 : f32 to vector<192x3xf32>
    %111 = arith.addf %109, %110 : vector<192x3xf32>
    %cst_85 = arith.constant 5.000000e-01 : f32
    %112 = vector.broadcast %cst_85 : f32 to vector<192x3xf32>
    %113 = arith.mulf %112, %108 : vector<192x3xf32>
    %114 = arith.addf %102, %113 : vector<192x3xf32>
    %cst_86 = arith.constant 5.000000e-01 : f32
    %115 = vector.broadcast %cst_86 : f32 to vector<192x3xf32>
    %116 = arith.mulf %115, %111 : vector<192x3xf32>
    %117 = arith.addf %103, %116 : vector<192x3xf32>
    %118 = arith.mulf %93, %108 : vector<192x3xf32>
    %119 = arith.addf %118, %114 : vector<192x3xf32>
    %120 = arith.mulf %94, %111 : vector<192x3xf32>
    %121 = arith.addf %120, %117 : vector<192x3xf32>
    %122 = math.exp %97 : vector<192x3xf32>
    %123 = arith.mulf %122, %108 : vector<192x3xf32>
    %124 = math.exp %100 : vector<192x3xf32>
    %125 = arith.mulf %124, %111 : vector<192x3xf32>
    %cst_87 = arith.constant 5.000000e-01 : f32
    %126 = vector.broadcast %cst_87 : f32 to vector<192x3xf32>
    %127 = arith.mulf %126, %123 : vector<192x3xf32>
    %128 = arith.subf %119, %127 : vector<192x3xf32>
    %cst_88 = arith.constant 0.000000e+00 : f32
    %cst_89 = arith.constant 1.270000e+02 : f32
    %129 = vector.broadcast %cst_88 : f32 to vector<192x3xf32>
    %130 = arith.maximumf %129, %128 : vector<192x3xf32>
    %131 = vector.broadcast %cst_89 : f32 to vector<192x3xf32>
    %132 = arith.minimumf %131, %130 : vector<192x3xf32>
    %cst_90 = arith.constant 5.000000e-01 : f32
    %133 = vector.broadcast %cst_90 : f32 to vector<192x3xf32>
    %134 = arith.mulf %133, %125 : vector<192x3xf32>
    %135 = arith.subf %121, %134 : vector<192x3xf32>
    %cst_91 = arith.constant 0.000000e+00 : f32
    %cst_92 = arith.constant 1.270000e+02 : f32
    %136 = vector.broadcast %cst_91 : f32 to vector<192x3xf32>
    %137 = arith.maximumf %136, %135 : vector<192x3xf32>
    %138 = vector.broadcast %cst_92 : f32 to vector<192x3xf32>
    %139 = arith.minimumf %138, %137 : vector<192x3xf32>
    %cst_93 = arith.constant 5.000000e-01 : f32
    %140 = vector.broadcast %cst_93 : f32 to vector<192x3xf32>
    %141 = arith.mulf %140, %123 : vector<192x3xf32>
    %142 = arith.addf %119, %141 : vector<192x3xf32>
    %cst_94 = arith.constant 1.000000e+00 : f32
    %143 = vector.broadcast %cst_94 : f32 to vector<192x3xf32>
    %144 = arith.subf %142, %143 : vector<192x3xf32>
    %cst_95 = arith.constant 0.000000e+00 : f32
    %cst_96 = arith.constant 1.270000e+02 : f32
    %145 = vector.broadcast %cst_95 : f32 to vector<192x3xf32>
    %146 = arith.maximumf %145, %144 : vector<192x3xf32>
    %147 = vector.broadcast %cst_96 : f32 to vector<192x3xf32>
    %148 = arith.minimumf %147, %146 : vector<192x3xf32>
    %cst_97 = arith.constant 5.000000e-01 : f32
    %149 = vector.broadcast %cst_97 : f32 to vector<192x3xf32>
    %150 = arith.mulf %149, %125 : vector<192x3xf32>
    %151 = arith.addf %121, %150 : vector<192x3xf32>
    %cst_98 = arith.constant 1.000000e+00 : f32
    %152 = vector.broadcast %cst_98 : f32 to vector<192x3xf32>
    %153 = arith.subf %151, %152 : vector<192x3xf32>
    %cst_99 = arith.constant 0.000000e+00 : f32
    %cst_100 = arith.constant 1.270000e+02 : f32
    %154 = vector.broadcast %cst_99 : f32 to vector<192x3xf32>
    %155 = arith.maximumf %154, %153 : vector<192x3xf32>
    %156 = vector.broadcast %cst_100 : f32 to vector<192x3xf32>
    %157 = arith.minimumf %156, %155 : vector<192x3xf32>
    %158 = arith.negf %92 : vector<192x3xf32>
    %159 = math.exp %158 : vector<192x3xf32>
    %cst_101 = arith.constant 1.000000e+00 : f32
    %160 = vector.broadcast %cst_101 : f32 to vector<192x3xf32>
    %161 = arith.addf %160, %159 : vector<192x3xf32>
    %162 = arith.divf %160, %161 : vector<192x3xf32>
    %c0_102 = arith.constant 0 : index
    %c0_103 = arith.constant 0 : index
    %c0_104 = arith.constant 0 : index
    %163 = vector.load %arg9[%c0_102, %c0_103, %c0_104] : memref<1x192x128xf32, #tpu.memory_space<vmem>>, vector<1x192x3xf32>
    %164 = vector.shape_cast %163 : vector<1x192x3xf32> to vector<192x3xf32>
    %165 = vector.shape_cast %162 : vector<192x3xf32> to vector<1x192x3xf32>
    tpu.vector_store %arg9[%c0_102, %c0_103, %c0_104], %165 {strides = array<i32>} : memref<1x192x128xf32, #tpu.memory_space<vmem>>, vector<1x192x3xf32>,
    %c0_105 = arith.constant 0 : index
    %c0_106 = arith.constant 0 : index
    %c3_107 = arith.constant 3 : index
    %166 = vector.load %arg9[%c0_105, %c0_106, %c3_107] : memref<1x192x128xf32, #tpu.memory_space<vmem>>, vector<1x192x3xf32>
    %167 = vector.shape_cast %166 : vector<1x192x3xf32> to vector<192x3xf32>
    %168 = vector.shape_cast %132 : vector<192x3xf32> to vector<1x192x3xf32>
    tpu.vector_store %arg9[%c0_105, %c0_106, %c3_107], %168 {strides = array<i32>} : memref<1x192x128xf32, #tpu.memory_space<vmem>>, vector<1x192x3xf32>,
    %c0_108 = arith.constant 0 : index
    %c0_109 = arith.constant 0 : index
    %c6_110 = arith.constant 6 : index
    %169 = vector.load %arg9[%c0_108, %c0_109, %c6_110] : memref<1x192x128xf32, #tpu.memory_space<vmem>>, vector<1x192x3xf32>
    %170 = vector.shape_cast %169 : vector<1x192x3xf32> to vector<192x3xf32>
    %171 = vector.shape_cast %139 : vector<192x3xf32> to vector<1x192x3xf32>
    tpu.vector_store %arg9[%c0_108, %c0_109, %c6_110], %171 {strides = array<i32>} : memref<1x192x128xf32, #tpu.memory_space<vmem>>, vector<1x192x3xf32>,
    %c0_111 = arith.constant 0 : index
    %c0_112 = arith.constant 0 : index
    %c9 = arith.constant 9 : index
    %172 = vector.load %arg9[%c0_111, %c0_112, %c9] : memref<1x192x128xf32, #tpu.memory_space<vmem>>, vector<1x192x3xf32>
    %173 = vector.shape_cast %172 : vector<1x192x3xf32> to vector<192x3xf32>
    %174 = vector.shape_cast %148 : vector<192x3xf32> to vector<1x192x3xf32>
    tpu.vector_store %arg9[%c0_111, %c0_112, %c9], %174 {strides = array<i32>} : memref<1x192x128xf32, #tpu.memory_space<vmem>>, vector<1x192x3xf32>,
    %c0_113 = arith.constant 0 : index
    %c0_114 = arith.constant 0 : index
    %c12 = arith.constant 12 : index
    %175 = vector.load %arg9[%c0_113, %c0_114, %c12] : memref<1x192x128xf32, #tpu.memory_space<vmem>>, vector<1x192x3xf32>
    %176 = vector.shape_cast %175 : vector<1x192x3xf32> to vector<192x3xf32>
    %177 = vector.shape_cast %157 : vector<192x3xf32> to vector<1x192x3xf32>
    tpu.vector_store %arg9[%c0_113, %c0_114, %c12], %177 {strides = array<i32>} : memref<1x192x128xf32, #tpu.memory_space<vmem>>, vector<1x192x3xf32>,
    return
  }
  func.func @transform_0(%arg0: i32, %arg1: i32) -> (i32, i32, i32, i32) {
    %c0_i32 = arith.constant 0 : i32
    %c0_i32_0 = arith.constant 0 : i32
    %c0_i32_1 = arith.constant 0 : i32
    return %arg0, %arg1, %c0_i32, %c0_i32_0 : i32, i32, i32, i32
  }
  func.func @transform_1(%arg0: i32, %arg1: i32) -> (i32, i32, i32, i32) {
    %c1_i32 = arith.constant 1 : i32
    %0 = arith.addi %arg1, %c1_i32 : i32
    %c4_i32 = arith.constant 4 : i32
    %1 = arith.muli %0, %c4_i32 : i32
    %c0_i32 = arith.constant 0 : i32
    %c0_i32_0 = arith.constant 0 : i32
    %c0_i32_1 = arith.constant 0 : i32
    return %arg0, %1, %c0_i32, %c0_i32_0 : i32, i32, i32, i32
  }
  func.func @transform_2(%arg0: i32, %arg1: i32) -> (i32, i32) {
    %c0_i32 = arith.constant 0 : i32
    %c0_i32_0 = arith.constant 0 : i32
    return %arg1, %c0_i32 : i32, i32
  }
  func.func @transform_3(%arg0: i32, %arg1: i32) -> (i32, i32, i32) {
    %c0_i32 = arith.constant 0 : i32
    %c0_i32_0 = arith.constant 0 : i32
    %c0_i32_1 = arith.constant 0 : i32
    %c0_i32_2 = arith.constant 0 : i32
    return %c0_i32, %c0_i32_0, %c0_i32_1 : i32, i32, i32
  }
  func.func @transform_4(%arg0: i32, %arg1: i32) -> (i32, i32) {
    %c0_i32 = arith.constant 0 : i32
    %c0_i32_0 = arith.constant 0 : i32
    %c0_i32_1 = arith.constant 0 : i32
    return %c0_i32, %c0_i32_0 : i32, i32
  }
  func.func @transform_5(%arg0: i32, %arg1: i32) -> (i32, i32) {
    %c0_i32 = arith.constant 0 : i32
    %c0_i32_0 = arith.constant 0 : i32
    %c0_i32_1 = arith.constant 0 : i32
    return %c0_i32, %c0_i32_0 : i32, i32
  }
  func.func @transform_6(%arg0: i32, %arg1: i32) -> (i32, i32) {
    %c0_i32 = arith.constant 0 : i32
    %c0_i32_0 = arith.constant 0 : i32
    %c0_i32_1 = arith.constant 0 : i32
    return %c0_i32, %c0_i32_0 : i32, i32
  }
  func.func @transform_7(%arg0: i32, %arg1: i32) -> (i32, i32, i32) {
    %c0_i32 = arith.constant 0 : i32
    %c0_i32_0 = arith.constant 0 : i32
    return %arg0, %arg1, %c0_i32 : i32, i32, i32
  }
}

</mosaic_0001>

<llo_original>
// kernel: tpu_custom_call.1
$region0: #{tpu_custom_call.1}
  #allocation0 [shape = 'u32[]', space=smem, size = 0x4, offset = 0x4, fixed_abs, tag = 'smem constant byte address 0x4 - core index']
  #allocation1 [shape = 'u32[144,128]{1,0:T(1,128)}', space=vmem, size = 0x12000, scoped, tag = 'internal scratch']
  #allocation2 [shape = 'f32[192,16]{1,0:T(8,128)}', space=vmem, size = 0x18000, scoped, tag = 'scratch operand']
  %s0 = inlined_call_operand.vmem [shape: bf16[2,18,24,16], index: 0, kind: input, shape index: {}]
  %s1 = inlined_call_operand.vmem [shape: bf16[2,18,24,16], index: 1, kind: input, shape index: {}]
  %s2 = inlined_call_operand.vmem [shape: f32[384,12], index: 2, kind: input, shape index: {}]
  %s3 = inlined_call_operand.vmem [shape: bf16[9,16,16], index: 3, kind: input, shape index: {}]
  %s4 = inlined_call_operand.vmem [shape: f32[1,16], index: 4, kind: input, shape index: {}]
  %s5 = inlined_call_operand.vmem [shape: bf16[16,128], index: 5, kind: input, shape index: {}]
  %s6 = inlined_call_operand.vmem [shape: f32[1,128], index: 6, kind: input, shape index: {}]
  %s7 = inlined_call_operand.hbm [shape: f32[2,384,128], index: 7, kind: output, shape index: {}]
  %s8 = sld [smem:[#allocation0]]
  $region61: #{tpu_custom_call.1} parent=0
    _
  %s10 = ssub.s32 1, %s8
  %s11 = scalar_select 0, %s10, %s8
  $region1: #{tpu_custom_call.1} parent=0
    #allocation3 [shape = 'u8[196608]{0}', space=vmem, size = 0x30000, scoped, tag = 'output window, operand 0']
    #allocation4 [shape = 's32[2]{0}', space=sflag, size = 0x8, scoped, tag = 'scoped memory for tpu_custom_call.1']
    %12 = vsyncpa [#allocation4], 0
    %s13 = scalar_lea.sflag [#allocation4], 1
    %14 = vsyncpa %s13, 0
    loop: start=0, step=1, limit=6
    $region2: #{tpu_custom_call.1} parent=1 // loop_pre_header
      _
    $region3: #{tpu_custom_call.1} parent=1 // loop_header
      %s16 = sphi 0, %s20
      %p17 = scmp.ge.s32.totalorder %s16, 6
      %s23 = sphi 0, %s35
      %s24 = sphi 0, %s31
      %s25 = sphi 0, %s23
      %s26 = sphi 0, %s24
      %s27 = sphi 0, %s25
      %s28 = sphi 0, %s26
      %s40 = sphi 0, %s42
      %s43 = sphi 0, %s40
      %s44 = sphi 0, %s43
      %s60 = sphi 0, %s44
      %s72 = sphi 0, %s74
      %s75 = sphi 0, %s72
      %s76 = sphi 0, %s75
      %s92 = sphi 0, %s76
      %s98 = sphi 0, %s100
      %s101 = sphi 0, %s98
      %s102 = sphi 0, %s101
      %s118 = sphi 0, %s102
      %s122 = sphi 0, %s122
      %s124 = sphi 0, %s122
      %s125 = sphi 0, %s124
      %s139 = sphi 0, %s125
      %s143 = sphi 0, %s143
      %s145 = sphi 0, %s143
      %s146 = sphi 0, %s145
      %s160 = sphi 0, %s146
      %s164 = sphi 0, %s164
      %s166 = sphi 0, %s164
      %s167 = sphi 0, %s166
      %s181 = sphi 0, %s167
      %s185 = sphi 0, %s185
      %s187 = sphi 0, %s185
      %s188 = sphi 0, %s187
      %s202 = sphi 0, %s188
      %s210 = sphi 0, %s212
      %s213 = sphi 0, %s210
      %s214 = sphi 0, %s213
      %s230 = sphi 0, %s214
    $region4: #{tpu_custom_call.1} parent=1 // loop_header_branch
      %19 = sbr.rel (%p17) target = $region8
    $region5: #{tpu_custom_call.1} parent=1 // loop_body
      %s21 = ssub.s32 %s16, 1
      %s22 = ssub.s32 %s16, 2
      %s29 = sadd.s32 1, %s24
      %p30 = scmp.ge.s32.totalorder %s29, 2
      %s31 = scalar_select %p30, 0, %s29
      %s32 = sadd.s32 1, %s23
      %s33 = scalar_select %p30, %s32, %s23
      %p34 = scmp.ge.s32.totalorder %s33, 2
      %s35 = scalar_select %p34, 0, %s33
      %s36 = ssub.s32 %s23, %s35
      %s37 = ssub.s32 %s24, %s31
      %s38 = sor.u32 %s36, %s37
      %p39 = scmp.eq.s32.totalorder %s38, 0
      %s41 = sadd.s32 %s40, 1
      %s42 = scalar_select %p39, %s40, %s41
      %p45 = pneg %p39
      %p46 = scmp.eq.s32.totalorder %s16, 3
      %p47 = por %p45, %p46
      %p48 = scmp.ne.s32.totalorder %s40, %s43
      %p49 = scmp.eq.s32.totalorder %s16, 0
      %p50 = por %p48, %p49
      %p51 = scmp.ne.s32.totalorder %s40, %s43
      %p52 = scmp.eq.s32.totalorder %s21, 3
      %p53 = por %p51, %p52
      %p54 = scmp.ne.s32.totalorder %s43, %s44
      %p55 = scmp.eq.s32.totalorder %s21, 0
      %p56 = por %p54, %p55
      %p57 = scmp.ne.s32.totalorder %s43, %s44
      %p58 = scmp.eq.s32.totalorder %s22, 3
      %p59 = por %p57, %p58
      %p61 = scmp.ne.s32.totalorder %s44, %s60
      %p62 = scmp.eq.s32.totalorder %s22, 0
      %p63 = por %p61, %p62
      %s64 = sadd.s32 %s24, 1
      %s65 = smul.u32 %s64, 4
      %s66 = sadd.s32 %s31, 1
      %s67 = smul.u32 %s66, 4
      %s68 = ssub.s32 %s23, %s35
      %s69 = ssub.s32 %s65, %s67
      %s70 = sor.u32 %s68, %s69
      %p71 = scmp.eq.s32.totalorder %s70, 0
      %s73 = sadd.s32 %s72, 1
      %s74 = scalar_select %p71, %s72, %s73
      %p77 = pneg %p71
      %p78 = scmp.eq.s32.totalorder %s16, 3
      %p79 = por %p77, %p78
      %p80 = scmp.ne.s32.totalorder %s72, %s75
      %p81 = scmp.eq.s32.totalorder %s16, 0
      %p82 = por %p80, %p81
      %p83 = scmp.ne.s32.totalorder %s72, %s75
      %p84 = scmp.eq.s32.totalorder %s21, 3
      %p85 = por %p83, %p84
      %p86 = scmp.ne.s32.totalorder %s75, %s76
      %p87 = scmp.eq.s32.totalorder %s21, 0
      %p88 = por %p86, %p87
      %p89 = scmp.ne.s32.totalorder %s75, %s76
      %p90 = scmp.eq.s32.totalorder %s22, 3
      %p91 = por %p89, %p90
      %p93 = scmp.ne.s32.totalorder %s76, %s92
      %p94 = scmp.eq.s32.totalorder %s22, 0
      %p95 = por %p93, %p94
      %s96 = ssub.s32 %s24, %s31
      %p97 = scmp.eq.s32.totalorder %s96, 0
      %s99 = sadd.s32 %s98, 1
      %s100 = scalar_select %p97, %s98, %s99
      %p103 = pneg %p97
      %p104 = scmp.eq.s32.totalorder %s16, 3
      %p105 = por %p103, %p104
      %p106 = scmp.ne.s32.totalorder %s98, %s101
      %p107 = scmp.eq.s32.totalorder %s16, 0
      %p108 = por %p106, %p107
      %p109 = scmp.ne.s32.totalorder %s98, %s101
      %p110 = scmp.eq.s32.totalorder %s21, 3
      %p111 = por %p109, %p110
      %p112 = scmp.ne.s32.totalorder %s101, %s102
      %p113 = scmp.eq.s32.totalorder %s21, 0
      %p114 = por %p112, %p113
      %p115 = scmp.ne.s32.totalorder %s101, %s102
      %p116 = scmp.eq.s32.totalorder %s22, 3
      %p117 = por %p115, %p116
      %p119 = scmp.ne.s32.totalorder %s102, %s118
      %p120 = scmp.eq.s32.totalorder %s22, 0
      %p121 = por %p119, %p120
      %s123 = sadd.s32 %s122, 1
      %p126 = scmp.eq.s32.totalorder %s16, 3
      %p127 = scmp.ne.s32.totalorder %s122, %s124
      %p128 = scmp.eq.s32.totalorder %s16, 0
      %p129 = por %p127, %p128
      %p130 = scmp.ne.s32.totalorder %s122, %s124
      %p131 = scmp.eq.s32.totalorder %s21, 3
      %p132 = por %p130, %p131
      %p133 = scmp.ne.s32.totalorder %s124, %s125
      %p134 = scmp.eq.s32.totalorder %s21, 0
      %p135 = por %p133, %p134
      %p136 = scmp.ne.s32.totalorder %s124, %s125
      %p137 = scmp.eq.s32.totalorder %s22, 3
      %p138 = por %p136, %p137
      %p140 = scmp.ne.s32.totalorder %s125, %s139
      %p141 = scmp.eq.s32.totalorder %s22, 0
      %p142 = por %p140, %p141
      %s144 = sadd.s32 %s143, 1
      %p147 = scmp.eq.s32.totalorder %s16, 3
      %p148 = scmp.ne.s32.totalorder %s143, %s145
      %p149 = scmp.eq.s32.totalorder %s16, 0
      %p150 = por %p148, %p149
      %p151 = scmp.ne.s32.totalorder %s143, %s145
      %p152 = scmp.eq.s32.totalorder %s21, 3
      %p153 = por %p151, %p152
      %p154 = scmp.ne.s32.totalorder %s145, %s146
      %p155 = scmp.eq.s32.totalorder %s21, 0
      %p156 = por %p154, %p155
      %p157 = scmp.ne.s32.totalorder %s145, %s146
      %p158 = scmp.eq.s32.totalorder %s22, 3
      %p159 = por %p157, %p158
      %p161 = scmp.ne.s32.totalorder %s146, %s160
      %p162 = scmp.eq.s32.totalorder %s22, 0
      %p163 = por %p161, %p162
      %s165 = sadd.s32 %s164, 1
      %p168 = scmp.eq.s32.totalorder %s16, 3
      %p169 = scmp.ne.s32.totalorder %s164, %s166
      %p170 = scmp.eq.s32.totalorder %s16, 0
      %p171 = por %p169, %p170
      %p172 = scmp.ne.s32.totalorder %s164, %s166
      %p173 = scmp.eq.s32.totalorder %s21, 3
      %p174 = por %p172, %p173
      %p175 = scmp.ne.s32.totalorder %s166, %s167
      %p176 = scmp.eq.s32.totalorder %s21, 0
      %p177 = por %p175, %p176
      %p178 = scmp.ne.s32.totalorder %s166, %s167
      %p179 = scmp.eq.s32.totalorder %s22, 3
      %p180 = por %p178, %p179
      %p182 = scmp.ne.s32.totalorder %s167, %s181
      %p183 = scmp.eq.s32.totalorder %s22, 0
      %p184 = por %p182, %p183
      %s186 = sadd.s32 %s185, 1
      %p189 = scmp.eq.s32.totalorder %s16, 3
      %p190 = scmp.ne.s32.totalorder %s185, %s187
      %p191 = scmp.eq.s32.totalorder %s16, 0
      %p192 = por %p190, %p191
      %p193 = scmp.ne.s32.totalorder %s185, %s187
      %p194 = scmp.eq.s32.totalorder %s21, 3
      %p195 = por %p193, %p194
      %p196 = scmp.ne.s32.totalorder %s187, %s188
      %p197 = scmp.eq.s32.totalorder %s21, 0
      %p198 = por %p196, %p197
      %p199 = scmp.ne.s32.totalorder %s187, %s188
      %p200 = scmp.eq.s32.totalorder %s22, 3
      %p201 = por %p199, %p200
      %p203 = scmp.ne.s32.totalorder %s188, %s202
      %p204 = scmp.eq.s32.totalorder %s22, 0
      %p205 = por %p203, %p204
      %s206 = ssub.s32 %s23, %s35
      %s207 = ssub.s32 %s24, %s31
      %s208 = sor.u32 %s206, %s207
      %p209 = scmp.eq.s32.totalorder %s208, 0
      %s211 = sadd.s32 %s210, 1
      %s212 = scalar_select %p209, %s210, %s211
      %p215 = pneg %p209
      %p216 = scmp.eq.s32.totalorder %s16, 3
      %p217 = por %p215, %p216
      %p218 = scmp.ne.s32.totalorder %s210, %s213
      %p219 = scmp.eq.s32.totalorder %s16, 0
      %p220 = por %p218, %p219
      %p221 = scmp.ne.s32.totalorder %s210, %s213
      %p222 = scmp.eq.s32.totalorder %s21, 3
      %p223 = por %p221, %p222
      %p224 = scmp.ne.s32.totalorder %s213, %s214
      %p225 = scmp.eq.s32.totalorder %s21, 0
      %p226 = por %p224, %p225
      %p227 = scmp.ne.s32.totalorder %s213, %s214
      %p228 = scmp.eq.s32.totalorder %s22, 3
      %p229 = por %p227, %p228
      %p231 = scmp.ne.s32.totalorder %s214, %s230
      %p232 = scmp.eq.s32.totalorder %s22, 0
      %p233 = por %p231, %p232
      %p234 = scmp.le.s32.totalorder 1, %s16
      %p235 = scmp.lt.s32.totalorder %s16, 5
      %p236 = pnand %p234, %p235
      %p237 = pneg %p236
      // Predicated region
      $region9: #{tpu_custom_call.1} parent=5 // pred_check
        _
      $region10: #{tpu_custom_call.1} parent=5 // pred_check_branch
        %239 = sbr.rel (%p236) target = $region12
      $region11: #{tpu_custom_call.1} parent=5 // pred_region
        %s240 = ssub.s32 %s16, 1
        // Predicated region
        $region13: #{tpu_custom_call.1} parent=11 // pred_check
          %p241 = pneg %p135
        $region14: #{tpu_custom_call.1} parent=11 // pred_check_branch
          %243 = sbr.rel (%p241) target = $region16
        $region15: #{tpu_custom_call.1} parent=11 // pred_region
          _
        $region16: #{tpu_custom_call.1} parent=11 // pred_fallthru
          _
        // Predicated region
        $region17: #{tpu_custom_call.1} parent=11 // pred_check
          %p244 = pneg %p156
        $region18: #{tpu_custom_call.1} parent=11 // pred_check_branch
          %246 = sbr.rel (%p244) target = $region20
        $region19: #{tpu_custom_call.1} parent=11 // pred_region
          _
        $region20: #{tpu_custom_call.1} parent=11 // pred_fallthru
          _
        // Predicated region
        $region21: #{tpu_custom_call.1} parent=11 // pred_check
          %p247 = pneg %p177
        $region22: #{tpu_custom_call.1} parent=11 // pred_check_branch
          %249 = sbr.rel (%p247) target = $region24
        $region23: #{tpu_custom_call.1} parent=11 // pred_region
          _
        $region24: #{tpu_custom_call.1} parent=11 // pred_fallthru
          _
        // Predicated region
        $region25: #{tpu_custom_call.1} parent=11 // pred_check
          %p250 = pneg %p198
        $region26: #{tpu_custom_call.1} parent=11 // pred_check_branch
          %252 = sbr.rel (%p250) target = $region28
        $region27: #{tpu_custom_call.1} parent=11 // pred_region
          _
        $region28: #{tpu_custom_call.1} parent=11 // pred_fallthru
          _
      $region12: #{tpu_custom_call.1} parent=5 // pred_fallthru
        _
      %p253 = scmp.lt.s32.totalorder %s16, 4
      // Predicated region
      $region29: #{tpu_custom_call.1} parent=5 // pred_check
        %p254 = pneg %p253
      $region30: #{tpu_custom_call.1} parent=5 // pred_check_branch
        %256 = sbr.rel (%p254) target = $region32
      $region31: #{tpu_custom_call.1} parent=5 // pred_region
        // Predicated region
        $region33: #{tpu_custom_call.1} parent=31 // pred_check
          %p257 = pneg %p50
        $region34: #{tpu_custom_call.1} parent=31 // pred_check_branch
          %259 = sbr.rel (%p257) target = $region36
        $region35: #{tpu_custom_call.1} parent=31 // pred_region
          %s260 = smul.u32 8, %s24
          %s261 = ssub.s32 18, %s260
          %p262 = scmp.lt.s32.totalorder %s261, 8
          %s263 = scalar_select %p262, %s261, 8
          %s264 = smul.u32 64, %s263
          %s265 = smul.u32 %s264, 3
          %p266 = scmp.lt.s32.totalorder %s23, 1
          %s267 = scalar_select %p266, %s23, 1
          %p268 = scmp.lt.s32.totalorder %s260, 17
          %s269 = scalar_select %p268, %s260, 17
          %s270 = smul.addr %s269, 3
          %s271 = smul.addr %s267, 54
          %s272 = sadd.s32 %s270, %s271
          %s273 = smul.addr %s272, 4
          %s274 = scalar_lea.vmem %s0, %s273
          %s275 = smul.u32 8, %s24
          %s276 = ssub.s32 18, %s275
          %p277 = scmp.lt.s32.totalorder %s276, 8
          %s278 = scalar_select %p277, %s276, 8
          %s279 = smul.u32 64, %s278
          %s280 = smul.u32 %s279, 3
        $region36: #{tpu_custom_call.1} parent=31 // pred_fallthru
          _
        // Predicated region
        $region37: #{tpu_custom_call.1} parent=31 // pred_check
          %p281 = pneg %p82
        $region38: #{tpu_custom_call.1} parent=31 // pred_check_branch
          %283 = sbr.rel (%p281) target = $region40
        $region39: #{tpu_custom_call.1} parent=31 // pred_region
          %s284 = sadd.s32 %s24, 1
          %s285 = smul.u32 %s284, 4
          %s286 = smul.u32 2, %s285
          %p287 = scmp.lt.s32.totalorder %s23, 1
          %s288 = scalar_select %p287, %s23, 1
          %p289 = scmp.lt.s32.totalorder %s286, 17
          %s290 = scalar_select %p289, %s286, 17
          %s291 = smul.addr %s290, 3
          %s292 = smul.addr %s288, 54
          %s293 = sadd.s32 %s291, %s292
          %s294 = smul.addr %s293, 4
          %s295 = scalar_lea.vmem %s1, %s294
          %s296 = sadd.s32 %s24, 1
          %s297 = smul.u32 %s296, 4
          %s298 = smul.u32 2, %s297
        $region40: #{tpu_custom_call.1} parent=31 // pred_fallthru
          _
        // Predicated region
        $region41: #{tpu_custom_call.1} parent=31 // pred_check
          %p299 = pneg %p108
        $region42: #{tpu_custom_call.1} parent=31 // pred_check_branch
          %301 = sbr.rel (%p299) target = $region44
        $region43: #{tpu_custom_call.1} parent=31 // pred_region
          %s302 = smul.u32 24, %s24
          %p303 = scmp.lt.s32.totalorder %s302, 47
          %s304 = scalar_select %p303, %s302, 47
          %s305 = smul.addr %s304, 8
          %s306 = scalar_lea.vmem %s2, %s305
          %s307 = smul.u32 24, %s24
        $region44: #{tpu_custom_call.1} parent=31 // pred_fallthru
          _
      $region32: #{tpu_custom_call.1} parent=5 // pred_fallthru
        _
      %p308 = scmp.le.s32.totalorder 1, %s16
      %p309 = scmp.lt.s32.totalorder %s16, 5
      %p310 = pnand %p308, %p309
      %p311 = pneg %p310
      // Predicated region
      $region45: #{tpu_custom_call.1} parent=5 // pred_check
        _
      $region46: #{tpu_custom_call.1} parent=5 // pred_check_branch
        %313 = sbr.rel (%p310) target = $region48
      $region47: #{tpu_custom_call.1} parent=5 // pred_region
        %s314 = ssub.s32 %s16, 1
        %s315 = smul.u32 8, %s26
        %s316 = ssub.s32 18, %s315
        %p317 = scmp.lt.s32.totalorder %s316, 8
        %s318 = scalar_select %p317, %s316, 8
        %s319 = smul.u32 64, %s318
        %s320 = smul.u32 %s319, 3
        %p321 = scmp.lt.s32.totalorder %s25, 1
        %s322 = scalar_select %p321, %s25, 1
        %p323 = scmp.lt.s32.totalorder %s315, 17
        %s324 = scalar_select %p323, %s315, 17
        %s325 = smul.addr %s324, 3
        %s326 = smul.addr %s322, 54
        %s327 = sadd.s32 %s325, %s326
        %s328 = smul.addr %s327, 4
        %s329 = scalar_lea.vmem %s0, %s328
        %p330 = pneg %p56
        %p331 = pneg %p53
        %s332 = sadd.s32 %s26, 1
        %s333 = smul.u32 %s332, 4
        %s334 = smul.u32 2, %s333
        %p335 = scmp.lt.s32.totalorder %s25, 1
        %s336 = scalar_select %p335, %s25, 1
        %p337 = scmp.lt.s32.totalorder %s334, 17
        %s338 = scalar_select %p337, %s334, 17
        %s339 = smul.addr %s338, 3
        %s340 = smul.addr %s336, 54
        %s341 = sadd.s32 %s339, %s340
        %s342 = smul.addr %s341, 4
        %s343 = scalar_lea.vmem %s1, %s342
        %p344 = pneg %p88
        %p345 = pneg %p85
        %s346 = smul.u32 24, %s26
        %p347 = scmp.lt.s32.totalorder %s346, 47
        %s348 = scalar_select %p347, %s346, 47
        %s349 = smul.addr %s348, 8
        %s350 = scalar_lea.vmem %s2, %s349
        %p351 = pneg %p114
        %p352 = pneg %p111
        %p353 = pneg %p135
        %p354 = pneg %p132
        %p355 = pneg %p156
        %p356 = pneg %p153
        %p357 = pneg %p177
        %p358 = pneg %p174
        %p359 = pneg %p198
        %p360 = pneg %p195
        %p361 = pneg %p226
        %p362 = pneg %p223
        %s363 = sand.u32 %s213, 1
        %s364 = scalar_lea.sflag [#allocation4], %s363
        %s365 = sand.u32 %s213, 1
        %s366 = smul.addr %s365, 192
        %s367 = scalar_lea.vmem [#allocation3], %s366
        %s368 = smul.u32 8, %s26
        %s369 = ssub.s32 18, %s368
        %p370 = scmp.lt.s32.totalorder %s369, 8
        %s371 = scalar_select %p370, %s369, 8
        %s372 = smul.u32 64, %s371
        %s373 = smul.u32 %s372, 3
        %p374 = scmp.lt.s32.totalorder %s25, 1
        %s375 = scalar_select %p374, %s25, 1
        %p376 = scmp.lt.s32.totalorder %s368, 17
        %s377 = scalar_select %p376, %s368, 17
        %s378 = smul.addr %s377, 3
        %s379 = smul.addr %s375, 54
        %s380 = sadd.s32 %s378, %s379
        %s381 = smul.addr %s380, 4
        %s382 = scalar_lea.vmem %s0, %s381
        %s383 = smul.u32 8, %s26
        %s384 = ssub.s32 18, %s383
        %p385 = scmp.lt.s32.totalorder %s384, 8
        %s386 = scalar_select %p385, %s384, 8
        %s387 = smul.u32 64, %s386
        %s388 = smul.u32 %s387, 3
        %s389 = sadd.s32 %s26, 1
        %s390 = smul.u32 %s389, 4
        %s391 = smul.u32 2, %s390
        %p392 = scmp.lt.s32.totalorder %s25, 1
        %s393 = scalar_select %p392, %s25, 1
        %p394 = scmp.lt.s32.totalorder %s391, 17
        %s395 = scalar_select %p394, %s391, 17
        %s396 = smul.addr %s395, 3
        %s397 = smul.addr %s393, 54
        %s398 = sadd.s32 %s396, %s397
        %s399 = smul.addr %s398, 4
        %s400 = scalar_lea.vmem %s1, %s399
        %s401 = sadd.s32 %s26, 1
        %s402 = smul.u32 %s401, 4
        %s403 = smul.u32 2, %s402
        %s404 = smul.u32 24, %s26
        %p405 = scmp.lt.s32.totalorder %s404, 47
        %s406 = scalar_select %p405, %s404, 47
        %s407 = smul.addr %s406, 8
        %s408 = scalar_lea.vmem %s2, %s407
        %s409 = smul.u32 24, %s26
        %s410 = smul.u32 24, %s26
        %v412 = vld [vmem:[%s382] sm:$0xf]
        %v413 = vld [vmem:[%s382 + $0x4] sm:$0xf]
        %v414 = vld [vmem:[%s382 + $0x8] sm:$0xf]
        %v415 = vld [vmem:[%s382 + $0xc] sm:$0xf]
        %v416 = vld [vmem:[%s382 + $0x10] sm:$0xf]
        %v417 = vld [vmem:[%s382 + $0x14] sm:$0xf]
        %v418 = vld [vmem:[%s382 + $0x18] sm:$0xf]
        %v419 = vld [vmem:[%s382 + $0x1c] sm:$0xf]
        %v420 = vld [vmem:[%s382 + $0x20] sm:$0xf]
        %v421 = vld [vmem:[%s382 + $0x24] sm:$0xf]
        %v422 = vld [vmem:[%s382 + $0x28] sm:$0xf]
        %v423 = vld [vmem:[%s382 + $0x2c] sm:$0xf]
        %v424 = vld [vmem:[%s382 + $0x30] sm:$0xf]
        %v425 = vld [vmem:[%s382 + $0x34] sm:$0xf]
        %v426 = vld [vmem:[%s382 + $0x38] sm:$0xf]
        %v427 = vld [vmem:[%s382 + $0x3c] sm:$0xf]
        %v428 = vld [vmem:[%s382 + $0x40] sm:$0xf]
        %v429 = vld [vmem:[%s382 + $0x44] sm:$0xf]
        %v430 = vld [vmem:[%s382 + $0x48] sm:$0xf]
        %v431 = vld [vmem:[%s382 + $0x4c] sm:$0xf]
        %v432 = vld [vmem:[%s382 + $0x50] sm:$0xf]
        %v433 = vld [vmem:[%s382 + $0x54] sm:$0xf]
        %v434 = vld [vmem:[%s382 + $0x58] sm:$0xf]
        %v435 = vld [vmem:[%s382 + $0x5c] sm:$0xf]
        %v436 = vunpack.c.l.bf16 %v412
        %v437 = vunpack.c.l.bf16 %v413
        %v438 = vunpack.c.l.bf16 %v414
        %v439 = vunpack.c.l.bf16 %v415
        %v440 = vunpack.c.l.bf16 %v416
        %v441 = vunpack.c.l.bf16 %v417
        %v442 = vunpack.c.l.bf16 %v418
        %v443 = vunpack.c.l.bf16 %v419
        %v444 = vunpack.c.l.bf16 %v420
        %v445 = vunpack.c.l.bf16 %v421
        %v446 = vunpack.c.l.bf16 %v422
        %v447 = vunpack.c.l.bf16 %v423
        %v448 = vunpack.c.l.bf16 %v424
        %v449 = vunpack.c.l.bf16 %v425
        %v450 = vunpack.c.l.bf16 %v426
        %v451 = vunpack.c.l.bf16 %v427
        %v452 = vunpack.c.l.bf16 %v428
        %v453 = vunpack.c.l.bf16 %v429
        %v454 = vunpack.c.l.bf16 %v430
        %v455 = vunpack.c.l.bf16 %v431
        %v456 = vunpack.c.l.bf16 %v432
        %v457 = vunpack.c.l.bf16 %v433
        %v458 = vunpack.c.l.bf16 %v434
        %v459 = vunpack.c.l.bf16 %v435
        %v460 = vld [vmem:[%s400] sm:$0xf]
        %v461 = vld [vmem:[%s400 + $0x4] sm:$0xf]
        %v462 = vld [vmem:[%s400 + $0x8] sm:$0xf]
        %v463 = vld [vmem:[%s400 + $0xc] sm:$0xf]
        %v464 = vld [vmem:[%s400 + $0x10] sm:$0xf]
        %v465 = vld [vmem:[%s400 + $0x14] sm:$0xf]
        %v466 = vunpack.c.l.bf16 %v460
        %v467 = vunpack.c.l.bf16 %v461
        %v468 = vunpack.c.l.bf16 %v462
        %v469 = vunpack.c.l.bf16 %v463
        %v470 = vunpack.c.l.bf16 %v464
        %v471 = vunpack.c.l.bf16 %v465
        %v472 = vpack.c.bf16 %v437, %v436
        %v473 = vpack.c.bf16 %v439, %v438
        %v474 = vpack.c.bf16 %v441, %v440
        %v475 = vpack.c.bf16 %v443, %v442
        %v476 = vpack.c.bf16 %v445, %v444
        %v477 = vpack.c.bf16 %v447, %v446
        %v478 = vpack.c.bf16 %v449, %v448
        %v479 = vpack.c.bf16 %v451, %v450
        %v480 = vpack.c.bf16 %v453, %v452
        %v481 = vpack.c.bf16 %v455, %v454
        %v482 = vpack.c.bf16 %v457, %v456
        %v483 = vpack.c.bf16 %v459, %v458
        %v484 = vld [vmem:[%s3] sm:$0xf]
        %v485 = vld [vmem:[%s3 + $0x4] sm:$0xf]
        %v488 = vunpack.c.l.b16 %v484
        %v489 = vunpack.c.l.b16 %v485
        %v490 = vpack.c.b16 %v489, %v488
        %vm492 = vcmask 130048
        %v494 = vsel %vm492, %v472, 0
        %v497 = vsel %vm492, %v473, 0
        %v500 = vsel %vm492, %v474, 0
        %v503 = vsel %vm492, %v475, 0
        %v506 = vsel %vm492, %v476, 0
        %v509 = vsel %vm492, %v477, 0
        %v512 = vsel %vm492, %v478, 0
        %v515 = vsel %vm492, %v479, 0
        %v518 = vsel %vm492, %v480, 0
        %v521 = vsel %vm492, %v481, 0
        %v524 = vsel %vm492, %v482, 0
        %v527 = vsel %vm492, %v483, 0
        %529 = vmatprep.subr.bf16.mxu0 0
        %530 = vmatpush1.bf16.msra.mxu0 %v490
        %531 = vmatprep.subr.bf16.mxu0 0
        %532 = vmatpush1.bf16.msra.mxu0 0
        %533 = vmatprep.subr.bf16.mxu0 0
        %534 = vmatpush1.bf16.msra.mxu0 0
        %535 = vmatprep.subr.bf16.mxu0 0
        %536 = vmatpush1.bf16.msra.mxu0 0
        %537 = vmatprep.subr.bf16.mxu0 0
        %538 = vmatpush1.bf16.msra.mxu0 0
        %539 = vmatprep.subr.bf16.mxu0 0
        %540 = vmatpush1.bf16.msra.mxu0 0
        %541 = vmatprep.subr.bf16.mxu0 0
        %542 = vmatpush1.bf16.msra.mxu0 0
        %543 = vmatprep.subr.bf16.mxu0 0
        %544 = vmatpush1.bf16.msra.mxu0 0
        %545 = vmatprep.subr.bf16.mxu0 0
        %546 = vmatpush1.bf16.msra.mxu0 0
        %547 = vmatprep.subr.bf16.mxu0 0
        %548 = vmatpush1.bf16.msra.mxu0 0
        %549 = vmatprep.subr.bf16.mxu0 0
        %550 = vmatpush1.bf16.msra.mxu0 0
        %551 = vmatprep.subr.bf16.mxu0 0
        %552 = vmatpush1.bf16.msra.mxu0 0
        %553 = vmatprep.subr.bf16.mxu0 0
        %554 = vmatpush1.bf16.msra.mxu0 0
        %555 = vmatprep.subr.bf16.mxu0 0
        %556 = vmatpush1.bf16.msra.mxu0 0
        %557 = vmatprep.subr.bf16.mxu0 0
        %558 = vmatpush1.bf16.msra.mxu0 0
        %559 = vmatprep.subr.bf16.mxu0 0
        %560 = vmatpush1.bf16.msra.mxu0 0
        %561 = vmatprep.mubr.bf16.mxu0 0
        %562 = vmatmul.mubr.bf16.gmra.mrb[0].mxu0 %v494
        %v563 = vpop.f32.mrb[0].mxu0
        %v564 = vadd.f32 0.0, %v563
        %v565 = vpop.f32.mrb[0].mxu0
        %v566 = vpop.f32.mrb[0].mxu0
        %v567 = vadd.f32 0.0, %v566
        %v568 = vpop.f32.mrb[0].mxu0
        %569 = vmatprep.mubr.bf16.mxu0 0
        %570 = vmatmul.mubr.bf16.gmra.mrb[0].mxu0 %v497
        %v571 = vpop.f32.mrb[0].mxu0
        %v572 = vadd.f32 0.0, %v571
        %v573 = vpop.f32.mrb[0].mxu0
        %v574 = vpop.f32.mrb[0].mxu0
        %v575 = vadd.f32 0.0, %v574
        %v576 = vpop.f32.mrb[0].mxu0
        %577 = vmatprep.mubr.bf16.mxu0 0
        %578 = vmatmul.mubr.bf16.gmra.mrb[0].mxu0 %v500
        %v579 = vpop.f32.mrb[0].mxu0
        %v580 = vadd.f32 0.0, %v579
        %v581 = vpop.f32.mrb[0].mxu0
        %v582 = vpop.f32.mrb[0].mxu0
        %v583 = vadd.f32 0.0, %v582
        %v584 = vpop.f32.mrb[0].mxu0
        %585 = vmatprep.mubr.bf16.mxu0 0
        %586 = vmatmul.mubr.bf16.gmra.mrb[0].mxu0 %v503
        %v587 = vpop.f32.mrb[0].mxu0
        %v588 = vadd.f32 0.0, %v587
        %v589 = vpop.f32.mrb[0].mxu0
        %v590 = vpop.f32.mrb[0].mxu0
        %v591 = vadd.f32 0.0, %v590
        %v592 = vpop.f32.mrb[0].mxu0
        %593 = vmatprep.mubr.bf16.mxu0 0
        %594 = vmatmul.mubr.bf16.gmra.mrb[0].mxu0 %v506
        %v595 = vpop.f32.mrb[0].mxu0
        %v596 = vadd.f32 0.0, %v595
        %v597 = vpop.f32.mrb[0].mxu0
        %v598 = vpop.f32.mrb[0].mxu0
        %v599 = vadd.f32 0.0, %v598
        %v600 = vpop.f32.mrb[0].mxu0
        %601 = vmatprep.mubr.bf16.mxu0 0
        %602 = vmatmul.mubr.bf16.gmra.mrb[0].mxu0 %v509
        %v603 = vpop.f32.mrb[0].mxu0
        %v604 = vadd.f32 0.0, %v603
        %v605 = vpop.f32.mrb[0].mxu0
        %v606 = vpop.f32.mrb[0].mxu0
        %v607 = vadd.f32 0.0, %v606
        %v608 = vpop.f32.mrb[0].mxu0
        %609 = vmatprep.mubr.bf16.mxu0 0
        %610 = vmatmul.mubr.bf16.gmra.mrb[0].mxu0 %v512
        %v611 = vpop.f32.mrb[0].mxu0
        %v612 = vadd.f32 0.0, %v611
        %v613 = vpop.f32.mrb[0].mxu0
        %v614 = vpop.f32.mrb[0].mxu0
        %v615 = vadd.f32 0.0, %v614
        %v616 = vpop.f32.mrb[0].mxu0
        %617 = vmatprep.mubr.bf16.mxu0 0
        %618 = vmatmul.mubr.bf16.gmra.mrb[0].mxu0 %v515
        %v619 = vpop.f32.mrb[0].mxu0
        %v620 = vadd.f32 0.0, %v619
        %v621 = vpop.f32.mrb[0].mxu0
        %v622 = vpop.f32.mrb[0].mxu0
        %v623 = vadd.f32 0.0, %v622
        %v624 = vpop.f32.mrb[0].mxu0
        %625 = vmatprep.mubr.bf16.mxu0 0
        %626 = vmatmul.mubr.bf16.gmra.mrb[0].mxu0 %v518
        %v627 = vpop.f32.mrb[0].mxu0
        %v628 = vadd.f32 0.0, %v627
        %v629 = vpop.f32.mrb[0].mxu0
        %v630 = vpop.f32.mrb[0].mxu0
        %v631 = vadd.f32 0.0, %v630
        %v632 = vpop.f32.mrb[0].mxu0
        %633 = vmatprep.mubr.bf16.mxu0 0
        %634 = vmatmul.mubr.bf16.gmra.mrb[0].mxu0 %v521
        %v635 = vpop.f32.mrb[0].mxu0
        %v636 = vadd.f32 0.0, %v635
        %v637 = vpop.f32.mrb[0].mxu0
        %v638 = vpop.f32.mrb[0].mxu0
        %v639 = vadd.f32 0.0, %v638
        %v640 = vpop.f32.mrb[0].mxu0
        %641 = vmatprep.mubr.bf16.mxu0 0
        %642 = vmatmul.mubr.bf16.gmra.mrb[0].mxu0 %v524
        %v643 = vpop.f32.mrb[0].mxu0
        %v644 = vadd.f32 0.0, %v643
        %v645 = vpop.f32.mrb[0].mxu0
        %v646 = vpop.f32.mrb[0].mxu0
        %v647 = vadd.f32 0.0, %v646
        %v648 = vpop.f32.mrb[0].mxu0
        %649 = vmatprep.mubr.bf16.mxu0 0
        %650 = vmatmul.mubr.bf16.gmra.mrb[0].mxu0 %v527
        %v651 = vpop.f32.mrb[0].mxu0
        %v652 = vadd.f32 0.0, %v651
        %v653 = vpop.f32.mrb[0].mxu0
        %v654 = vpop.f32.mrb[0].mxu0
        %v655 = vadd.f32 0.0, %v654
        %v656 = vpop.f32.mrb[0].mxu0
        %657 = vdwg.mxu0
        %658 = vst.msk [vmem:[#allocation2] sm:$0xff] %vm492, %v564
        %659 = vst.msk [vmem:[#allocation2 + $0x8] sm:$0xff] %vm492, %v567
        %660 = vst.msk [vmem:[#allocation2 + $0x10] sm:$0xff] %vm492, %v572
        %661 = vst.msk [vmem:[#allocation2 + $0x18] sm:$0xff] %vm492, %v575
        %662 = vst.msk [vmem:[#allocation2 + $0x20] sm:$0xff] %vm492, %v580
        %663 = vst.msk [vmem:[#allocation2 + $0x28] sm:$0xff] %vm492, %v583
        %664 = vst.msk [vmem:[#allocation2 + $0x30] sm:$0xff] %vm492, %v588
        %665 = vst.msk [vmem:[#allocation2 + $0x38] sm:$0xff] %vm492, %v591
        %666 = vst.msk [vmem:[#allocation2 + $0x40] sm:$0xff] %vm492, %v596
        %667 = vst.msk [vmem:[#allocation2 + $0x48] sm:$0xff] %vm492, %v599
        %668 = vst.msk [vmem:[#allocation2 + $0x50] sm:$0xff] %vm492, %v604
        %669 = vst.msk [vmem:[#allocation2 + $0x58] sm:$0xff] %vm492, %v607
        %670 = vst.msk [vmem:[#allocation2 + $0x60] sm:$0xff] %vm492, %v612
        %671 = vst.msk [vmem:[#allocation2 + $0x68] sm:$0xff] %vm492, %v615
        %672 = vst.msk [vmem:[#allocation2 + $0x70] sm:$0xff] %vm492, %v620
        %673 = vst.msk [vmem:[#allocation2 + $0x78] sm:$0xff] %vm492, %v623
        %674 = vst.msk [vmem:[#allocation2 + $0x80] sm:$0xff] %vm492, %v628
        %675 = vst.msk [vmem:[#allocation2 + $0x88] sm:$0xff] %vm492, %v631
        %676 = vst.msk [vmem:[#allocation2 + $0x90] sm:$0xff] %vm492, %v636
        %677 = vst.msk [vmem:[#allocation2 + $0x98] sm:$0xff] %vm492, %v639
        %678 = vst.msk [vmem:[#allocation2 + $0xa0] sm:$0xff] %vm492, %v644
        %679 = vst.msk [vmem:[#allocation2 + $0xa8] sm:$0xff] %vm492, %v647
        %680 = vst.msk [vmem:[#allocation2 + $0xb0] sm:$0xff] %vm492, %v652
        %681 = vst.msk [vmem:[#allocation2 + $0xb8] sm:$0xff] %vm492, %v655
        %v682 = vrot.slane %v436, 1
        %v683 = vrot.slane %v437, 1
        %v684 = vrot.slane %v438, 1
        %v685 = vrot.slane %v439, 1
        %v686 = vrot.slane %v440, 1
        %v687 = vrot.slane %v441, 1
        %v688 = vrot.slane %v442, 1
        %v689 = vrot.slane %v443, 1
        %v690 = vrot.slane %v444, 1
        %v691 = vrot.slane %v445, 1
        %v692 = vrot.slane %v446, 1
        %v693 = vrot.slane %v447, 1
        %v694 = vrot.slane %v448, 1
        %v695 = vrot.slane %v449, 1
        %v696 = vrot.slane %v450, 1
        %v697 = vrot.slane %v451, 1
        %v698 = vrot.slane %v452, 1
        %v699 = vrot.slane %v453, 1
        %v700 = vrot.slane %v454, 1
        %v701 = vrot.slane %v455, 1
        %v702 = vrot.slane %v456, 1
        %v703 = vrot.slane %v457, 1
        %v704 = vrot.slane %v458, 1
        %v705 = vrot.slane %v459, 1
        %v706 = vrot.slane %v466, 1
        %v707 = vlaneseq
        %v708 = vshrl.u32 %v707, 7
        %vm709 = vcmp.lt.s32.totalorder %v708, 7
        %v710 = vsel %vm709, %v705, %v706
        %v711 = vsel %vm709, %v704, %v705
        %v712 = vsel %vm709, %v703, %v704
        %v713 = vsel %vm709, %v702, %v703
        %v714 = vsel %vm709, %v701, %v702
        %v715 = vsel %vm709, %v700, %v701
        %v716 = vsel %vm709, %v699, %v700
        %v717 = vsel %vm709, %v698, %v699
        %v718 = vsel %vm709, %v697, %v698
        %v719 = vsel %vm709, %v696, %v697
        %v720 = vsel %vm709, %v695, %v696
        %v721 = vsel %vm709, %v694, %v695
        %v722 = vsel %vm709, %v693, %v694
        %v723 = vsel %vm709, %v692, %v693
        %v724 = vsel %vm709, %v691, %v692
        %v725 = vsel %vm709, %v690, %v691
        %v726 = vsel %vm709, %v689, %v690
        %v727 = vsel %vm709, %v688, %v689
        %v728 = vsel %vm709, %v687, %v688
        %v729 = vsel %vm709, %v686, %v687
        %v730 = vsel %vm709, %v685, %v686
        %v731 = vsel %vm709, %v684, %v685
        %v732 = vsel %vm709, %v683, %v684
        %v733 = vsel %vm709, %v682, %v683
        %v734 = vpack.c.bf16 %v732, %v733
        %v735 = vpack.c.bf16 %v730, %v731
        %v736 = vpack.c.bf16 %v728, %v729
        %v737 = vpack.c.bf16 %v726, %v727
        %v738 = vpack.c.bf16 %v724, %v725
        %v739 = vpack.c.bf16 %v722, %v723
        %v740 = vpack.c.bf16 %v720, %v721
        %v741 = vpack.c.bf16 %v718, %v719
        %v742 = vpack.c.bf16 %v716, %v717
        %v743 = vpack.c.bf16 %v714, %v715
        %v744 = vpack.c.bf16 %v712, %v713
        %v745 = vpack.c.bf16 %v710, %v711
        %s746 = scalar_lea.vmem %s3, 8
        %v747 = vld [vmem:[%s746] sm:$0xf]
        %v748 = vld [vmem:[%s746 + $0x4] sm:$0xf]
        %v751 = vunpack.c.l.b16 %v747
        %v752 = vunpack.c.l.b16 %v748
        %v753 = vpack.c.b16 %v752, %v751
        %v756 = vsel %vm492, %v734, 0
        %v759 = vsel %vm492, %v735, 0
        %v762 = vsel %vm492, %v736, 0
        %v765 = vsel %vm492, %v737, 0
        %v768 = vsel %vm492, %v738, 0
        %v771 = vsel %vm492, %v739, 0
        %v774 = vsel %vm492, %v740, 0
        %v777 = vsel %vm492, %v741, 0
        %v780 = vsel %vm492, %v742, 0
        %v783 = vsel %vm492, %v743, 0
        %v786 = vsel %vm492, %v744, 0
        %v789 = vsel %vm492, %v745, 0
        %791 = vmatprep.subr.bf16.mxu0 0
        %792 = vmatpush1.bf16.msra.mxu0 %v753
        %793 = vmatprep.subr.bf16.mxu0 0
        %794 = vmatpush1.bf16.msra.mxu0 0
        %795 = vmatprep.subr.bf16.mxu0 0
        %796 = vmatpush1.bf16.msra.mxu0 0
        %797 = vmatprep.subr.bf16.mxu0 0
        %798 = vmatpush1.bf16.msra.mxu0 0
        %799 = vmatprep.subr.bf16.mxu0 0
        %800 = vmatpush1.bf16.msra.mxu0 0
        %801 = vmatprep.subr.bf16.mxu0 0
        %802 = vmatpush1.bf16.msra.mxu0 0
        %803 = vmatprep.subr.bf16.mxu0 0
        %804 = vmatpush1.bf16.msra.mxu0 0
        %805 = vmatprep.subr.bf16.mxu0 0
        %806 = vmatpush1.bf16.msra.mxu0 0
        %807 = vmatprep.subr.bf16.mxu0 0
        %808 = vmatpush1.bf16.msra.mxu0 0
        %809 = vmatprep.subr.bf16.mxu0 0
        %810 = vmatpush1.bf16.msra.mxu0 0
        %811 = vmatprep.subr.bf16.mxu0 0
        %812 = vmatpush1.bf16.msra.mxu0 0
        %813 = vmatprep.subr.bf16.mxu0 0
        %814 = vmatpush1.bf16.msra.mxu0 0
        %815 = vmatprep.subr.bf16.mxu0 0
        %816 = vmatpush1.bf16.msra.mxu0 0
        %817 = vmatprep.subr.bf16.mxu0 0
        %818 = vmatpush1.bf16.msra.mxu0 0
        %819 = vmatprep.subr.bf16.mxu0 0
        %820 = vmatpush1.bf16.msra.mxu0 0
        %821 = vmatprep.subr.bf16.mxu0 0
        %822 = vmatpush1.bf16.msra.mxu0 0
        %823 = vmatprep.mubr.bf16.mxu0 0
        %824 = vmatmul.mubr.bf16.gmra.mrb[0].mxu0 %v756
        %v825 = vpop.f32.mrb[0].mxu0
        %v826 = vadd.f32 0.0, %v825
        %v827 = vpop.f32.mrb[0].mxu0
        %v828 = vpop.f32.mrb[0].mxu0
        %v829 = vadd.f32 0.0, %v828
        %v830 = vpop.f32.mrb[0].mxu0
        %831 = vmatprep.mubr.bf16.mxu0 0
        %832 = vmatmul.mubr.bf16.gmra.mrb[0].mxu0 %v759
        %v833 = vpop.f32.mrb[0].mxu0
        %v834 = vadd.f32 0.0, %v833
        %v835 = vpop.f32.mrb[0].mxu0
        %v836 = vpop.f32.mrb[0].mxu0
        %v837 = vadd.f32 0.0, %v836
        %v838 = vpop.f32.mrb[0].mxu0
        %839 = vmatprep.mubr.bf16.mxu0 0
        %840 = vmatmul.mubr.bf16.gmra.mrb[0].mxu0 %v762
        %v841 = vpop.f32.mrb[0].mxu0
        %v842 = vadd.f32 0.0, %v841
        %v843 = vpop.f32.mrb[0].mxu0
        %v844 = vpop.f32.mrb[0].mxu0
        %v845 = vadd.f32 0.0, %v844
        %v846 = vpop.f32.mrb[0].mxu0
        %847 = vmatprep.mubr.bf16.mxu0 0
        %848 = vmatmul.mubr.bf16.gmra.mrb[0].mxu0 %v765
        %v849 = vpop.f32.mrb[0].mxu0
        %v850 = vadd.f32 0.0, %v849
        %v851 = vpop.f32.mrb[0].mxu0
        %v852 = vpop.f32.mrb[0].mxu0
        %v853 = vadd.f32 0.0, %v852
        %v854 = vpop.f32.mrb[0].mxu0
        %855 = vmatprep.mubr.bf16.mxu0 0
        %856 = vmatmul.mubr.bf16.gmra.mrb[0].mxu0 %v768
        %v857 = vpop.f32.mrb[0].mxu0
        %v858 = vadd.f32 0.0, %v857
        %v859 = vpop.f32.mrb[0].mxu0
        %v860 = vpop.f32.mrb[0].mxu0
        %v861 = vadd.f32 0.0, %v860
        %v862 = vpop.f32.mrb[0].mxu0
        %863 = vmatprep.mubr.bf16.mxu0 0
        %864 = vmatmul.mubr.bf16.gmra.mrb[0].mxu0 %v771
        %v865 = vpop.f32.mrb[0].mxu0
        %v866 = vadd.f32 0.0, %v865
        %v867 = vpop.f32.mrb[0].mxu0
        %v868 = vpop.f32.mrb[0].mxu0
        %v869 = vadd.f32 0.0, %v868
        %v870 = vpop.f32.mrb[0].mxu0
        %871 = vmatprep.mubr.bf16.mxu0 0
        %872 = vmatmul.mubr.bf16.gmra.mrb[0].mxu0 %v774
        %v873 = vpop.f32.mrb[0].mxu0
        %v874 = vadd.f32 0.0, %v873
        %v875 = vpop.f32.mrb[0].mxu0
        %v876 = vpop.f32.mrb[0].mxu0
        %v877 = vadd.f32 0.0, %v876
        %v878 = vpop.f32.mrb[0].mxu0
        %879 = vmatprep.mubr.bf16.mxu0 0
        %880 = vmatmul.mubr.bf16.gmra.mrb[0].mxu0 %v777
        %v881 = vpop.f32.mrb[0].mxu0
        %v882 = vadd.f32 0.0, %v881
        %v883 = vpop.f32.mrb[0].mxu0
        %v884 = vpop.f32.mrb[0].mxu0
        %v885 = vadd.f32 0.0, %v884
        %v886 = vpop.f32.mrb[0].mxu0
        %887 = vmatprep.mubr.bf16.mxu0 0
        %888 = vmatmul.mubr.bf16.gmra.mrb[0].mxu0 %v780
        %v889 = vpop.f32.mrb[0].mxu0
        %v890 = vadd.f32 0.0, %v889
        %v891 = vpop.f32.mrb[0].mxu0
        %v892 = vpop.f32.mrb[0].mxu0
        %v893 = vadd.f32 0.0, %v892
        %v894 = vpop.f32.mrb[0].mxu0
        %895 = vmatprep.mubr.bf16.mxu0 0
        %896 = vmatmul.mubr.bf16.gmra.mrb[0].mxu0 %v783
        %v897 = vpop.f32.mrb[0].mxu0
        %v898 = vadd.f32 0.0, %v897
        %v899 = vpop.f32.mrb[0].mxu0
        %v900 = vpop.f32.mrb[0].mxu0
        %v901 = vadd.f32 0.0, %v900
        %v902 = vpop.f32.mrb[0].mxu0
        %903 = vmatprep.mubr.bf16.mxu0 0
        %904 = vmatmul.mubr.bf16.gmra.mrb[0].mxu0 %v786
        %v905 = vpop.f32.mrb[0].mxu0
        %v906 = vadd.f32 0.0, %v905
        %v907 = vpop.f32.mrb[0].mxu0
        %v908 = vpop.f32.mrb[0].mxu0
        %v909 = vadd.f32 0.0, %v908
        %v910 = vpop.f32.mrb[0].mxu0
        %911 = vmatprep.mubr.bf16.mxu0 0
        %912 = vmatmul.mubr.bf16.gmra.mrb[0].mxu0 %v789
        %v913 = vpop.f32.mrb[0].mxu0
        %v914 = vadd.f32 0.0, %v913
        %v915 = vpop.f32.mrb[0].mxu0
        %v916 = vpop.f32.mrb[0].mxu0
        %v917 = vadd.f32 0.0, %v916
        %v918 = vpop.f32.mrb[0].mxu0
        %919 = vdwg.mxu0
        %v920 = vld [vmem:[#allocation2] sm:$0xff]
        %v921 = vld [vmem:[#allocation2 + $0x8] sm:$0xff]
        %v922 = vld [vmem:[#allocation2 + $0x10] sm:$0xff]
        %v923 = vld [vmem:[#allocation2 + $0x18] sm:$0xff]
        %v924 = vld [vmem:[#allocation2 + $0x20] sm:$0xff]
        %v925 = vld [vmem:[#allocation2 + $0x28] sm:$0xff]
        %v926 = vld [vmem:[#allocation2 + $0x30] sm:$0xff]
        %v927 = vld [vmem:[#allocation2 + $0x38] sm:$0xff]
        %v928 = vld [vmem:[#allocation2 + $0x40] sm:$0xff]
        %v929 = vld [vmem:[#allocation2 + $0x48] sm:$0xff]
        %v930 = vld [vmem:[#allocation2 + $0x50] sm:$0xff]
        %v931 = vld [vmem:[#allocation2 + $0x58] sm:$0xff]
        %v932 = vld [vmem:[#allocation2 + $0x60] sm:$0xff]
        %v933 = vld [vmem:[#allocation2 + $0x68] sm:$0xff]
        %v934 = vld [vmem:[#allocation2 + $0x70] sm:$0xff]
        %v935 = vld [vmem:[#allocation2 + $0x78] sm:$0xff]
        %v936 = vld [vmem:[#allocation2 + $0x80] sm:$0xff]
        %v937 = vld [vmem:[#allocation2 + $0x88] sm:$0xff]
        %v938 = vld [vmem:[#allocation2 + $0x90] sm:$0xff]
        %v939 = vld [vmem:[#allocation2 + $0x98] sm:$0xff]
        %v940 = vld [vmem:[#allocation2 + $0xa0] sm:$0xff]
        %v941 = vld [vmem:[#allocation2 + $0xa8] sm:$0xff]
        %v942 = vld [vmem:[#allocation2 + $0xb0] sm:$0xff]
        %v943 = vld [vmem:[#allocation2 + $0xb8] sm:$0xff]
        %v944 = vadd.f32 %v920, %v826
        %v945 = vadd.f32 %v921, %v829
        %v946 = vadd.f32 %v922, %v834
        %v947 = vadd.f32 %v923, %v837
        %v948 = vadd.f32 %v924, %v842
        %v949 = vadd.f32 %v925, %v845
        %v950 = vadd.f32 %v926, %v850
        %v951 = vadd.f32 %v927, %v853
        %v952 = vadd.f32 %v928, %v858
        %v953 = vadd.f32 %v929, %v861
        %v954 = vadd.f32 %v930, %v866
        %v955 = vadd.f32 %v931, %v869
        %v956 = vadd.f32 %v932, %v874
        %v957 = vadd.f32 %v933, %v877
        %v958 = vadd.f32 %v934, %v882
        %v959 = vadd.f32 %v935, %v885
        %v960 = vadd.f32 %v936, %v890
        %v961 = vadd.f32 %v937, %v893
        %v962 = vadd.f32 %v938, %v898
        %v963 = vadd.f32 %v939, %v901
        %v964 = vadd.f32 %v940, %v906
        %v965 = vadd.f32 %v941, %v909
        %v966 = vadd.f32 %v942, %v914
        %v967 = vadd.f32 %v943, %v917
        %968 = vst.msk [vmem:[#allocation2] sm:$0xff] %vm492, %v944
        %969 = vst.msk [vmem:[#allocation2 + $0x8] sm:$0xff] %vm492, %v945
        %970 = vst.msk [vmem:[#allocation2 + $0x10] sm:$0xff] %vm492, %v946
        %971 = vst.msk [vmem:[#allocation2 + $0x18] sm:$0xff] %vm492, %v947
        %972 = vst.msk [vmem:[#allocation2 + $0x20] sm:$0xff] %vm492, %v948
        %973 = vst.msk [vmem:[#allocation2 + $0x28] sm:$0xff] %vm492, %v949
        %974 = vst.msk [vmem:[#allocation2 + $0x30] sm:$0xff] %vm492, %v950
        %975 = vst.msk [vmem:[#allocation2 + $0x38] sm:$0xff] %vm492, %v951
        %976 = vst.msk [vmem:[#allocation2 + $0x40] sm:$0xff] %vm492, %v952
        %977 = vst.msk [vmem:[#allocation2 + $0x48] sm:$0xff] %vm492, %v953
        %978 = vst.msk [vmem:[#allocation2 + $0x50] sm:$0xff] %vm492, %v954
        %979 = vst.msk [vmem:[#allocation2 + $0x58] sm:$0xff] %vm492, %v955
        %980 = vst.msk [vmem:[#allocation2 + $0x60] sm:$0xff] %vm492, %v956
        %981 = vst.msk [vmem:[#allocation2 + $0x68] sm:$0xff] %vm492, %v957
        %982 = vst.msk [vmem:[#allocation2 + $0x70] sm:$0xff] %vm492, %v958
        %983 = vst.msk [vmem:[#allocation2 + $0x78] sm:$0xff] %vm492, %v959
        %984 = vst.msk [vmem:[#allocation2 + $0x80] sm:$0xff] %vm492, %v960
        %985 = vst.msk [vmem:[#allocation2 + $0x88] sm:$0xff] %vm492, %v961
        %986 = vst.msk [vmem:[#allocation2 + $0x90] sm:$0xff] %vm492, %v962
        %987 = vst.msk [vmem:[#allocation2 + $0x98] sm:$0xff] %vm492, %v963
        %988 = vst.msk [vmem:[#allocation2 + $0xa0] sm:$0xff] %vm492, %v964
        %989 = vst.msk [vmem:[#allocation2 + $0xa8] sm:$0xff] %vm492, %v965
        %990 = vst.msk [vmem:[#allocation2 + $0xb0] sm:$0xff] %vm492, %v966
        %991 = vst.msk [vmem:[#allocation2 + $0xb8] sm:$0xff] %vm492, %v967
        %v992 = vrot.slane %v436, 2
        %v993 = vrot.slane %v437, 2
        %v994 = vrot.slane %v438, 2
        %v995 = vrot.slane %v439, 2
        %v996 = vrot.slane %v440, 2
        %v997 = vrot.slane %v441, 2
        %v998 = vrot.slane %v442, 2
        %v999 = vrot.slane %v443, 2
        %v1000 = vrot.slane %v444, 2
        %v1001 = vrot.slane %v445, 2
        %v1002 = vrot.slane %v446, 2
        %v1003 = vrot.slane %v447, 2
        %v1004 = vrot.slane %v448, 2
        %v1005 = vrot.slane %v449, 2
        %v1006 = vrot.slane %v450, 2
        %v1007 = vrot.slane %v451, 2
        %v1008 = vrot.slane %v452, 2
        %v1009 = vrot.slane %v453, 2
        %v1010 = vrot.slane %v454, 2
        %v1011 = vrot.slane %v455, 2
        %v1012 = vrot.slane %v456, 2
        %v1013 = vrot.slane %v457, 2
        %v1014 = vrot.slane %v458, 2
        %v1015 = vrot.slane %v459, 2
        %v1016 = vrot.slane %v466, 2
        %vm1017 = vcmp.lt.s32.totalorder %v708, 6
        %v1018 = vsel %vm1017, %v1015, %v1016
        %v1019 = vsel %vm1017, %v1014, %v1015
        %v1020 = vsel %vm1017, %v1013, %v1014
        %v1021 = vsel %vm1017, %v1012, %v1013
        %v1022 = vsel %vm1017, %v1011, %v1012
        %v1023 = vsel %vm1017, %v1010, %v1011
        %v1024 = vsel %vm1017, %v1009, %v1010
        %v1025 = vsel %vm1017, %v1008, %v1009
        %v1026 = vsel %vm1017, %v1007, %v1008
        %v1027 = vsel %vm1017, %v1006, %v1007
        %v1028 = vsel %vm1017, %v1005, %v1006
        %v1029 = vsel %vm1017, %v1004, %v1005
        %v1030 = vsel %vm1017, %v1003, %v1004
        %v1031 = vsel %vm1017, %v1002, %v1003
        %v1032 = vsel %vm1017, %v1001, %v1002
        %v1033 = vsel %vm1017, %v1000, %v1001
        %v1034 = vsel %vm1017, %v999, %v1000
        %v1035 = vsel %vm1017, %v998, %v999
        %v1036 = vsel %vm1017, %v997, %v998
        %v1037 = vsel %vm1017, %v996, %v997
        %v1038 = vsel %vm1017, %v995, %v996
        %v1039 = vsel %vm1017, %v994, %v995
        %v1040 = vsel %vm1017, %v993, %v994
        %v1041 = vsel %vm1017, %v992, %v993
        %v1042 = vpack.c.bf16 %v1040, %v1041
        %v1043 = vpack.c.bf16 %v1038, %v1039
        %v1044 = vpack.c.bf16 %v1036, %v1037
        %v1045 = vpack.c.bf16 %v1034, %v1035
        %v1046 = vpack.c.bf16 %v1032, %v1033
        %v1047 = vpack.c.bf16 %v1030, %v1031
        %v1048 = vpack.c.bf16 %v1028, %v1029
        %v1049 = vpack.c.bf16 %v1026, %v1027
        %v1050 = vpack.c.bf16 %v1024, %v1025
        %v1051 = vpack.c.bf16 %v1022, %v1023
        %v1052 = vpack.c.bf16 %v1020, %v1021
        %v1053 = vpack.c.bf16 %v1018, %v1019
        %s1054 = scalar_lea.vmem %s3, 16
        %v1055 = vld [vmem:[%s1054] sm:$0xf]
        %v1056 = vld [vmem:[%s1054 + $0x4] sm:$0xf]
        %v1059 = vunpack.c.l.b16 %v1055
        %v1060 = vunpack.c.l.b16 %v1056
        %v1061 = vpack.c.b16 %v1060, %v1059
        %v1064 = vsel %vm492, %v1042, 0
        %v1067 = vsel %vm492, %v1043, 0
        %v1070 = vsel %vm492, %v1044, 0
        %v1073 = vsel %vm492, %v1045, 0
        %v1076 = vsel %vm492, %v1046, 0
        %v1079 = vsel %vm492, %v1047, 0
        %v1082 = vsel %vm492, %v1048, 0
        %v1085 = vsel %vm492, %v1049, 0
        %v1088 = vsel %vm492, %v1050, 0
        %v1091 = vsel %vm492, %v1051, 0
        %v1094 = vsel %vm492, %v1052, 0
        %v1097 = vsel %vm492, %v1053, 0
        %1099 = vmatprep.subr.bf16.mxu0 0
        %1100 = vmatpush1.bf16.msra.mxu0 %v1061
        %1101 = vmatprep.subr.bf16.mxu0 0
        %1102 = vmatpush1.bf16.msra.mxu0 0
        %1103 = vmatprep.subr.bf16.mxu0 0
        %1104 = vmatpush1.bf16.msra.mxu0 0
        %1105 = vmatprep.subr.bf16.mxu0 0
        %1106 = vmatpush1.bf16.msra.mxu0 0
        %1107 = vmatprep.subr.bf16.mxu0 0
        %1108 = vmatpush1.bf16.msra.mxu0 0
        %1109 = vmatprep.subr.bf16.mxu0 0
        %1110 = vmatpush1.bf16.msra.mxu0 0
        %1111 = vmatprep.subr.bf16.mxu0 0
        %1112 = vmatpush1.bf16.msra.mxu0 0
        %1113 = vmatprep.subr.bf16.mxu0 0
        %1114 = vmatpush1.bf16.msra.mxu0 0
        %1115 = vmatprep.subr.bf16.mxu0 0
        %1116 = vmatpush1.bf16.msra.mxu0 0
        %1117 = vmatprep.subr.bf16.mxu0 0
        %1118 = vmatpush1.bf16.msra.mxu0 0
        %1119 = vmatprep.subr.bf16.mxu0 0
        %1120 = vmatpush1.bf16.msra.mxu0 0
        %1121 = vmatprep.subr.bf16.mxu0 0
        %1122 = vmatpush1.bf16.msra.mxu0 0
        %1123 = vmatprep.subr.bf16.mxu0 0
        %1124 = vmatpush1.bf16.msra.mxu0 0
        %1125 = vmatprep.subr.bf16.mxu0 0
        %1126 = vmatpush1.bf16.msra.mxu0 0
        %1127 = vmatprep.subr.bf16.mxu0 0
        %1128 = vmatpush1.bf16.msra.mxu0 0
        %1129 = vmatprep.subr.bf16.mxu0 0
        %1130 = vmatpush1.bf16.msra.mxu0 0
        %1131 = vmatprep.mubr.bf16.mxu0 0
        %1132 = vmatmul.mubr.bf16.gmra.mrb[0].mxu0 %v1064
        %v1133 = vpop.f32.mrb[0].mxu0
        %v1134 = vadd.f32 0.0, %v1133
        %v1135 = vpop.f32.mrb[0].mxu0
        %v1136 = vpop.f32.mrb[0].mxu0
        %v1137 = vadd.f32 0.0, %v1136
        %v1138 = vpop.f32.mrb[0].mxu0
        %1139 = vmatprep.mubr.bf16.mxu0 0
        %1140 = vmatmul.mubr.bf16.gmra.mrb[0].mxu0 %v1067
        %v1141 = vpop.f32.mrb[0].mxu0
        %v1142 = vadd.f32 0.0, %v1141
        %v1143 = vpop.f32.mrb[0].mxu0
        %v1144 = vpop.f32.mrb[0].mxu0
        %v1145 = vadd.f32 0.0, %v1144
        %v1146 = vpop.f32.mrb[0].mxu0
        %1147 = vmatprep.mubr.bf16.mxu0 0
        %1148 = vmatmul.mubr.bf16.gmra.mrb[0].mxu0 %v1070
        %v1149 = vpop.f32.mrb[0].mxu0
        %v1150 = vadd.f32 0.0, %v1149
        %v1151 = vpop.f32.mrb[0].mxu0
        %v1152 = vpop.f32.mrb[0].mxu0
        %v1153 = vadd.f32 0.0, %v1152
        %v1154 = vpop.f32.mrb[0].mxu0
        %1155 = vmatprep.mubr.bf16.mxu0 0
        %1156 = vmatmul.mubr.bf16.gmra.mrb[0].mxu0 %v1073
        %v1157 = vpop.f32.mrb[0].mxu0
        %v1158 = vadd.f32 0.0, %v1157
        %v1159 = vpop.f32.mrb[0].mxu0
        %v1160 = vpop.f32.mrb[0].mxu0
        %v1161 = vadd.f32 0.0, %v1160
        %v1162 = vpop.f32.mrb[0].mxu0
        %1163 = vmatprep.mubr.bf16.mxu0 0
        %1164 = vmatmul.mubr.bf16.gmra.mrb[0].mxu0 %v1076
        %v1165 = vpop.f32.mrb[0].mxu0
        %v1166 = vadd.f32 0.0, %v1165
        %v1167 = vpop.f32.mrb[0].mxu0
        %v1168 = vpop.f32.mrb[0].mxu0
        %v1169 = vadd.f32 0.0, %v1168
        %v1170 = vpop.f32.mrb[0].mxu0
        %1171 = vmatprep.mubr.bf16.mxu0 0
        %1172 = vmatmul.mubr.bf16.gmra.mrb[0].mxu0 %v1079
        %v1173 = vpop.f32.mrb[0].mxu0
        %v1174 = vadd.f32 0.0, %v1173
        %v1175 = vpop.f32.mrb[0].mxu0
        %v1176 = vpop.f32.mrb[0].mxu0
        %v1177 = vadd.f32 0.0, %v1176
        %v1178 = vpop.f32.mrb[0].mxu0
        %1179 = vmatprep.mubr.bf16.mxu0 0
        %1180 = vmatmul.mubr.bf16.gmra.mrb[0].mxu0 %v1082
        %v1181 = vpop.f32.mrb[0].mxu0
        %v1182 = vadd.f32 0.0, %v1181
        %v1183 = vpop.f32.mrb[0].mxu0
        %v1184 = vpop.f32.mrb[0].mxu0
        %v1185 = vadd.f32 0.0, %v1184
        %v1186 = vpop.f32.mrb[0].mxu0
        %1187 = vmatprep.mubr.bf16.mxu0 0
        %1188 = vmatmul.mubr.bf16.gmra.mrb[0].mxu0 %v1085
        %v1189 = vpop.f32.mrb[0].mxu0
        %v1190 = vadd.f32 0.0, %v1189
        %v1191 = vpop.f32.mrb[0].mxu0
        %v1192 = vpop.f32.mrb[0].mxu0
        %v1193 = vadd.f32 0.0, %v1192
        %v1194 = vpop.f32.mrb[0].mxu0
        %1195 = vmatprep.mubr.bf16.mxu0 0
        %1196 = vmatmul.mubr.bf16.gmra.mrb[0].mxu0 %v1088
        %v1197 = vpop.f32.mrb[0].mxu0
        %v1198 = vadd.f32 0.0, %v1197
        %v1199 = vpop.f32.mrb[0].mxu0
        %v1200 = vpop.f32.mrb[0].mxu0
        %v1201 = vadd.f32 0.0, %v1200
        %v1202 = vpop.f32.mrb[0].mxu0
        %1203 = vmatprep.mubr.bf16.mxu0 0
        %1204 = vmatmul.mubr.bf16.gmra.mrb[0].mxu0 %v1091
        %v1205 = vpop.f32.mrb[0].mxu0
        %v1206 = vadd.f32 0.0, %v1205
        %v1207 = vpop.f32.mrb[0].mxu0
        %v1208 = vpop.f32.mrb[0].mxu0
        %v1209 = vadd.f32 0.0, %v1208
        %v1210 = vpop.f32.mrb[0].mxu0
        %1211 = vmatprep.mubr.bf16.mxu0 0
        %1212 = vmatmul.mubr.bf16.gmra.mrb[0].mxu0 %v1094
        %v1213 = vpop.f32.mrb[0].mxu0
        %v1214 = vadd.f32 0.0, %v1213
        %v1215 = vpop.f32.mrb[0].mxu0
        %v1216 = vpop.f32.mrb[0].mxu0
        %v1217 = vadd.f32 0.0, %v1216
        %v1218 = vpop.f32.mrb[0].mxu0
        %1219 = vmatprep.mubr.bf16.mxu0 0
        %1220 = vmatmul.mubr.bf16.gmra.mrb[0].mxu0 %v1097
        %v1221 = vpop.f32.mrb[0].mxu0
        %v1222 = vadd.f32 0.0, %v1221
        %v1223 = vpop.f32.mrb[0].mxu0
        %v1224 = vpop.f32.mrb[0].mxu0
        %v1225 = vadd.f32 0.0, %v1224
        %v1226 = vpop.f32.mrb[0].mxu0
        %1227 = vdwg.mxu0
        %v1228 = vld [vmem:[#allocation2] sm:$0xff]
        %v1229 = vld [vmem:[#allocation2 + $0x8] sm:$0xff]
        %v1230 = vld [vmem:[#allocation2 + $0x10] sm:$0xff]
        %v1231 = vld [vmem:[#allocation2 + $0x18] sm:$0xff]
        %v1232 = vld [vmem:[#allocation2 + $0x20] sm:$0xff]
        %v1233 = vld [vmem:[#allocation2 + $0x28] sm:$0xff]
        %v1234 = vld [vmem:[#allocation2 + $0x30] sm:$0xff]
        %v1235 = vld [vmem:[#allocation2 + $0x38] sm:$0xff]
        %v1236 = vld [vmem:[#allocation2 + $0x40] sm:$0xff]
        %v1237 = vld [vmem:[#allocation2 + $0x48] sm:$0xff]
        %v1238 = vld [vmem:[#allocation2 + $0x50] sm:$0xff]
        %v1239 = vld [vmem:[#allocation2 + $0x58] sm:$0xff]
        %v1240 = vld [vmem:[#allocation2 + $0x60] sm:$0xff]
        %v1241 = vld [vmem:[#allocation2 + $0x68] sm:$0xff]
        %v1242 = vld [vmem:[#allocation2 + $0x70] sm:$0xff]
        %v1243 = vld [vmem:[#allocation2 + $0x78] sm:$0xff]
        %v1244 = vld [vmem:[#allocation2 + $0x80] sm:$0xff]
        %v1245 = vld [vmem:[#allocation2 + $0x88] sm:$0xff]
        %v1246 = vld [vmem:[#allocation2 + $0x90] sm:$0xff]
        %v1247 = vld [vmem:[#allocation2 + $0x98] sm:$0xff]
        %v1248 = vld [vmem:[#allocation2 + $0xa0] sm:$0xff]
        %v1249 = vld [vmem:[#allocation2 + $0xa8] sm:$0xff]
        %v1250 = vld [vmem:[#allocation2 + $0xb0] sm:$0xff]
        %v1251 = vld [vmem:[#allocation2 + $0xb8] sm:$0xff]
        %v1252 = vadd.f32 %v1228, %v1134
        %v1253 = vadd.f32 %v1229, %v1137
        %v1254 = vadd.f32 %v1230, %v1142
        %v1255 = vadd.f32 %v1231, %v1145
        %v1256 = vadd.f32 %v1232, %v1150
        %v1257 = vadd.f32 %v1233, %v1153
        %v1258 = vadd.f32 %v1234, %v1158
        %v1259 = vadd.f32 %v1235, %v1161
        %v1260 = vadd.f32 %v1236, %v1166
        %v1261 = vadd.f32 %v1237, %v1169
        %v1262 = vadd.f32 %v1238, %v1174
        %v1263 = vadd.f32 %v1239, %v1177
        %v1264 = vadd.f32 %v1240, %v1182
        %v1265 = vadd.f32 %v1241, %v1185
        %v1266 = vadd.f32 %v1242, %v1190
        %v1267 = vadd.f32 %v1243, %v1193
        %v1268 = vadd.f32 %v1244, %v1198
        %v1269 = vadd.f32 %v1245, %v1201
        %v1270 = vadd.f32 %v1246, %v1206
        %v1271 = vadd.f32 %v1247, %v1209
        %v1272 = vadd.f32 %v1248, %v1214
        %v1273 = vadd.f32 %v1249, %v1217
        %v1274 = vadd.f32 %v1250, %v1222
        %v1275 = vadd.f32 %v1251, %v1225
        %1276 = vst.msk [vmem:[#allocation2] sm:$0xff] %vm492, %v1252
        %1277 = vst.msk [vmem:[#allocation2 + $0x8] sm:$0xff] %vm492, %v1253
        %1278 = vst.msk [vmem:[#allocation2 + $0x10] sm:$0xff] %vm492, %v1254
        %1279 = vst.msk [vmem:[#allocation2 + $0x18] sm:$0xff] %vm492, %v1255
        %1280 = vst.msk [vmem:[#allocation2 + $0x20] sm:$0xff] %vm492, %v1256
        %1281 = vst.msk [vmem:[#allocation2 + $0x28] sm:$0xff] %vm492, %v1257
        %1282 = vst.msk [vmem:[#allocation2 + $0x30] sm:$0xff] %vm492, %v1258
        %1283 = vst.msk [vmem:[#allocation2 + $0x38] sm:$0xff] %vm492, %v1259
        %1284 = vst.msk [vmem:[#allocation2 + $0x40] sm:$0xff] %vm492, %v1260
        %1285 = vst.msk [vmem:[#allocation2 + $0x48] sm:$0xff] %vm492, %v1261
        %1286 = vst.msk [vmem:[#allocation2 + $0x50] sm:$0xff] %vm492, %v1262
        %1287 = vst.msk [vmem:[#allocation2 + $0x58] sm:$0xff] %vm492, %v1263
        %1288 = vst.msk [vmem:[#allocation2 + $0x60] sm:$0xff] %vm492, %v1264
        %1289 = vst.msk [vmem:[#allocation2 + $0x68] sm:$0xff] %vm492, %v1265
        %1290 = vst.msk [vmem:[#allocation2 + $0x70] sm:$0xff] %vm492, %v1266
        %1291 = vst.msk [vmem:[#allocation2 + $0x78] sm:$0xff] %vm492, %v1267
        %1292 = vst.msk [vmem:[#allocation2 + $0x80] sm:$0xff] %vm492, %v1268
        %1293 = vst.msk [vmem:[#allocation2 + $0x88] sm:$0xff] %vm492, %v1269
        %1294 = vst.msk [vmem:[#allocation2 + $0x90] sm:$0xff] %vm492, %v1270
        %1295 = vst.msk [vmem:[#allocation2 + $0x98] sm:$0xff] %vm492, %v1271
        %1296 = vst.msk [vmem:[#allocation2 + $0xa0] sm:$0xff] %vm492, %v1272
        %1297 = vst.msk [vmem:[#allocation2 + $0xa8] sm:$0xff] %vm492, %v1273
        %1298 = vst.msk [vmem:[#allocation2 + $0xb0] sm:$0xff] %vm492, %v1274
        %1299 = vst.msk [vmem:[#allocation2 + $0xb8] sm:$0xff] %vm492, %v1275
        %v1300 = vpack.c.bf16 %v440, %v439
        %v1301 = vpack.c.bf16 %v442, %v441
        %v1302 = vpack.c.bf16 %v444, %v443
        %v1303 = vpack.c.bf16 %v446, %v445
        %v1304 = vpack.c.bf16 %v448, %v447
        %v1305 = vpack.c.bf16 %v450, %v449
        %v1306 = vpack.c.bf16 %v452, %v451
        %v1307 = vpack.c.bf16 %v454, %v453
        %v1308 = vpack.c.bf16 %v456, %v455
        %v1309 = vpack.c.bf16 %v458, %v457
        %v1310 = vpack.c.bf16 %v466, %v459
        %v1311 = vpack.c.bf16 %v468, %v467
        %s1312 = scalar_lea.vmem %s3, 24
        %v1313 = vld [vmem:[%s1312] sm:$0xf]
        %v1314 = vld [vmem:[%s1312 + $0x4] sm:$0xf]
        %v1317 = vunpack.c.l.b16 %v1313
        %v1318 = vunpack.c.l.b16 %v1314
        %v1319 = vpack.c.b16 %v1318, %v1317
        %v1322 = vsel %vm492, %v1300, 0
        %v1325 = vsel %vm492, %v1301, 0
        %v1328 = vsel %vm492, %v1302, 0
        %v1331 = vsel %vm492, %v1303, 0
        %v1334 = vsel %vm492, %v1304, 0
        %v1337 = vsel %vm492, %v1305, 0
        %v1340 = vsel %vm492, %v1306, 0
        %v1343 = vsel %vm492, %v1307, 0
        %v1346 = vsel %vm492, %v1308, 0
        %v1349 = vsel %vm492, %v1309, 0
        %v1352 = vsel %vm492, %v1310, 0
        %v1355 = vsel %vm492, %v1311, 0
        %1357 = vmatprep.subr.bf16.mxu0 0
        %1358 = vmatpush1.bf16.msra.mxu0 %v1319
        %1359 = vmatprep.subr.bf16.mxu0 0
        %1360 = vmatpush1.bf16.msra.mxu0 0
        %1361 = vmatprep.subr.bf16.mxu0 0
        %1362 = vmatpush1.bf16.msra.mxu0 0
        %1363 = vmatprep.subr.bf16.mxu0 0
        %1364 = vmatpush1.bf16.msra.mxu0 0
        %1365 = vmatprep.subr.bf16.mxu0 0
        %1366 = vmatpush1.bf16.msra.mxu0 0
        %1367 = vmatprep.subr.bf16.mxu0 0
        %1368 = vmatpush1.bf16.msra.mxu0 0
        %1369 = vmatprep.subr.bf16.mxu0 0
        %1370 = vmatpush1.bf16.msra.mxu0 0
        %1371 = vmatprep.subr.bf16.mxu0 0
        %1372 = vmatpush1.bf16.msra.mxu0 0
        %1373 = vmatprep.subr.bf16.mxu0 0
        %1374 = vmatpush1.bf16.msra.mxu0 0
        %1375 = vmatprep.subr.bf16.mxu0 0
        %1376 = vmatpush1.bf16.msra.mxu0 0
        %1377 = vmatprep.subr.bf16.mxu0 0
        %1378 = vmatpush1.bf16.msra.mxu0 0
        %1379 = vmatprep.subr.bf16.mxu0 0
        %1380 = vmatpush1.bf16.msra.mxu0 0
        %1381 = vmatprep.subr.bf16.mxu0 0
        %1382 = vmatpush1.bf16.msra.mxu0 0
        %1383 = vmatprep.subr.bf16.mxu0 0
        %1384 = vmatpush1.bf16.msra.mxu0 0
        %1385 = vmatprep.subr.bf16.mxu0 0
        %1386 = vmatpush1.bf16.msra.mxu0 0
        %1387 = vmatprep.subr.bf16.mxu0 0
        %1388 = vmatpush1.bf16.msra.mxu0 0
        %1389 = vmatprep.mubr.bf16.mxu0 0
        %1390 = vmatmul.mubr.bf16.gmra.mrb[0].mxu0 %v1322
        %v1391 = vpop.f32.mrb[0].mxu0
        %v1392 = vadd.f32 0.0, %v1391
        %v1393 = vpop.f32.mrb[0].mxu0
        %v1394 = vpop.f32.mrb[0].mxu0
        %v1395 = vadd.f32 0.0, %v1394
        %v1396 = vpop.f32.mrb[0].mxu0
        %1397 = vmatprep.mubr.bf16.mxu0 0
        %1398 = vmatmul.mubr.bf16.gmra.mrb[0].mxu0 %v1325
        %v1399 = vpop.f32.mrb[0].mxu0
        %v1400 = vadd.f32 0.0, %v1399
        %v1401 = vpop.f32.mrb[0].mxu0
        %v1402 = vpop.f32.mrb[0].mxu0
        %v1403 = vadd.f32 0.0, %v1402
        %v1404 = vpop.f32.mrb[0].mxu0
        %1405 = vmatprep.mubr.bf16.mxu0 0
        %1406 = vmatmul.mubr.bf16.gmra.mrb[0].mxu0 %v1328
        %v1407 = vpop.f32.mrb[0].mxu0
        %v1408 = vadd.f32 0.0, %v1407
        %v1409 = vpop.f32.mrb[0].mxu0
        %v1410 = vpop.f32.mrb[0].mxu0
        %v1411 = vadd.f32 0.0, %v1410
        %v1412 = vpop.f32.mrb[0].mxu0
        %1413 = vmatprep.mubr.bf16.mxu0 0
        %1414 = vmatmul.mubr.bf16.gmra.mrb[0].mxu0 %v1331
        %v1415 = vpop.f32.mrb[0].mxu0
        %v1416 = vadd.f32 0.0, %v1415
        %v1417 = vpop.f32.mrb[0].mxu0
        %v1418 = vpop.f32.mrb[0].mxu0
        %v1419 = vadd.f32 0.0, %v1418
        %v1420 = vpop.f32.mrb[0].mxu0
        %1421 = vmatprep.mubr.bf16.mxu0 0
        %1422 = vmatmul.mubr.bf16.gmra.mrb[0].mxu0 %v1334
        %v1423 = vpop.f32.mrb[0].mxu0
        %v1424 = vadd.f32 0.0, %v1423
        %v1425 = vpop.f32.mrb[0].mxu0
        %v1426 = vpop.f32.mrb[0].mxu0
        %v1427 = vadd.f32 0.0, %v1426
        %v1428 = vpop.f32.mrb[0].mxu0
        %1429 = vmatprep.mubr.bf16.mxu0 0
        %1430 = vmatmul.mubr.bf16.gmra.mrb[0].mxu0 %v1337
        %v1431 = vpop.f32.mrb[0].mxu0
        %v1432 = vadd.f32 0.0, %v1431
        %v1433 = vpop.f32.mrb[0].mxu0
        %v1434 = vpop.f32.mrb[0].mxu0
        %v1435 = vadd.f32 0.0, %v1434
        %v1436 = vpop.f32.mrb[0].mxu0
        %1437 = vmatprep.mubr.bf16.mxu0 0
        %1438 = vmatmul.mubr.bf16.gmra.mrb[0].mxu0 %v1340
        %v1439 = vpop.f32.mrb[0].mxu0
        %v1440 = vadd.f32 0.0, %v1439
        %v1441 = vpop.f32.mrb[0].mxu0
        %v1442 = vpop.f32.mrb[0].mxu0
        %v1443 = vadd.f32 0.0, %v1442
        %v1444 = vpop.f32.mrb[0].mxu0
        %1445 = vmatprep.mubr.bf16.mxu0 0
        %1446 = vmatmul.mubr.bf16.gmra.mrb[0].mxu0 %v1343
        %v1447 = vpop.f32.mrb[0].mxu0
        %v1448 = vadd.f32 0.0, %v1447
        %v1449 = vpop.f32.mrb[0].mxu0
        %v1450 = vpop.f32.mrb[0].mxu0
        %v1451 = vadd.f32 0.0, %v1450
        %v1452 = vpop.f32.mrb[0].mxu0
        %1453 = vmatprep.mubr.bf16.mxu0 0
        %1454 = vmatmul.mubr.bf16.gmra.mrb[0].mxu0 %v1346
        %v1455 = vpop.f32.mrb[0].mxu0
        %v1456 = vadd.f32 0.0, %v1455
        %v1457 = vpop.f32.mrb[0].mxu0
        %v1458 = vpop.f32.mrb[0].mxu0
        %v1459 = vadd.f32 0.0, %v1458
        %v1460 = vpop.f32.mrb[0].mxu0
        %1461 = vmatprep.mubr.bf16.mxu0 0
        %1462 = vmatmul.mubr.bf16.gmra.mrb[0].mxu0 %v1349
        %v1463 = vpop.f32.mrb[0].mxu0
        %v1464 = vadd.f32 0.0, %v1463
        %v1465 = vpop.f32.mrb[0].mxu0
        %v1466 = vpop.f32.mrb[0].mxu0
        %v1467 = vadd.f32 0.0, %v1466
        %v1468 = vpop.f32.mrb[0].mxu0
        %1469 = vmatprep.mubr.bf16.mxu0 0
        %1470 = vmatmul.mubr.bf16.gmra.mrb[0].mxu0 %v1352
        %v1471 = vpop.f32.mrb[0].mxu0
        %v1472 = vadd.f32 0.0, %v1471
        %v1473 = vpop.f32.mrb[0].mxu0
        %v1474 = vpop.f32.mrb[0].mxu0
        %v1475 = vadd.f32 0.0, %v1474
        %v1476 = vpop.f32.mrb[0].mxu0
        %1477 = vmatprep.mubr.bf16.mxu0 0
        %1478 = vmatmul.mubr.bf16.gmra.mrb[0].mxu0 %v1355
        %v1479 = vpop.f32.mrb[0].mxu0
        %v1480 = vadd.f32 0.0, %v1479
        %v1481 = vpop.f32.mrb[0].mxu0
        %v1482 = vpop.f32.mrb[0].mxu0
        %v1483 = vadd.f32 0.0, %v1482
        %v1484 = vpop.f32.mrb[0].mxu0
        %1485 = vdwg.mxu0
        %v1486 = vld [vmem:[#allocation2] sm:$0xff]
        %v1487 = vld [vmem:[#allocation2 + $0x8] sm:$0xff]
        %v1488 = vld [vmem:[#allocation2 + $0x10] sm:$0xff]
        %v1489 = vld [vmem:[#allocation2 + $0x18] sm:$0xff]
        %v1490 = vld [vmem:[#allocation2 + $0x20] sm:$0xff]
        %v1491 = vld [vmem:[#allocation2 + $0x28] sm:$0xff]
        %v1492 = vld [vmem:[#allocation2 + $0x30] sm:$0xff]
        %v1493 = vld [vmem:[#allocation2 + $0x38] sm:$0xff]
        %v1494 = vld [vmem:[#allocation2 + $0x40] sm:$0xff]
        %v1495 = vld [vmem:[#allocation2 + $0x48] sm:$0xff]
        %v1496 = vld [vmem:[#allocation2 + $0x50] sm:$0xff]
        %v1497 = vld [vmem:[#allocation2 + $0x58] sm:$0xff]
        %v1498 = vld [vmem:[#allocation2 + $0x60] sm:$0xff]
        %v1499 = vld [vmem:[#allocation2 + $0x68] sm:$0xff]
        %v1500 = vld [vmem:[#allocation2 + $0x70] sm:$0xff]
        %v1501 = vld [vmem:[#allocation2 + $0x78] sm:$0xff]
        %v1502 = vld [vmem:[#allocation2 + $0x80] sm:$0xff]
        %v1503 = vld [vmem:[#allocation2 + $0x88] sm:$0xff]
        %v1504 = vld [vmem:[#allocation2 + $0x90] sm:$0xff]
        %v1505 = vld [vmem:[#allocation2 + $0x98] sm:$0xff]
        %v1506 = vld [vmem:[#allocation2 + $0xa0] sm:$0xff]
        %v1507 = vld [vmem:[#allocation2 + $0xa8] sm:$0xff]
        %v1508 = vld [vmem:[#allocation2 + $0xb0] sm:$0xff]
        %v1509 = vld [vmem:[#allocation2 + $0xb8] sm:$0xff]
        %v1510 = vadd.f32 %v1486, %v1392
        %v1511 = vadd.f32 %v1487, %v1395
        %v1512 = vadd.f32 %v1488, %v1400
        %v1513 = vadd.f32 %v1489, %v1403
        %v1514 = vadd.f32 %v1490, %v1408
        %v1515 = vadd.f32 %v1491, %v1411
        %v1516 = vadd.f32 %v1492, %v1416
        %v1517 = vadd.f32 %v1493, %v1419
        %v1518 = vadd.f32 %v1494, %v1424
        %v1519 = vadd.f32 %v1495, %v1427
        %v1520 = vadd.f32 %v1496, %v1432
        %v1521 = vadd.f32 %v1497, %v1435
        %v1522 = vadd.f32 %v1498, %v1440
        %v1523 = vadd.f32 %v1499, %v1443
        %v1524 = vadd.f32 %v1500, %v1448
        %v1525 = vadd.f32 %v1501, %v1451
        %v1526 = vadd.f32 %v1502, %v1456
        %v1527 = vadd.f32 %v1503, %v1459
        %v1528 = vadd.f32 %v1504, %v1464
        %v1529 = vadd.f32 %v1505, %v1467
        %v1530 = vadd.f32 %v1506, %v1472
        %v1531 = vadd.f32 %v1507, %v1475
        %v1532 = vadd.f32 %v1508, %v1480
        %v1533 = vadd.f32 %v1509, %v1483
        %1534 = vst.msk [vmem:[#allocation2] sm:$0xff] %vm492, %v1510
        %1535 = vst.msk [vmem:[#allocation2 + $0x8] sm:$0xff] %vm492, %v1511
        %1536 = vst.msk [vmem:[#allocation2 + $0x10] sm:$0xff] %vm492, %v1512
        %1537 = vst.msk [vmem:[#allocation2 + $0x18] sm:$0xff] %vm492, %v1513
        %1538 = vst.msk [vmem:[#allocation2 + $0x20] sm:$0xff] %vm492, %v1514
        %1539 = vst.msk [vmem:[#allocation2 + $0x28] sm:$0xff] %vm492, %v1515
        %1540 = vst.msk [vmem:[#allocation2 + $0x30] sm:$0xff] %vm492, %v1516
        %1541 = vst.msk [vmem:[#allocation2 + $0x38] sm:$0xff] %vm492, %v1517
        %1542 = vst.msk [vmem:[#allocation2 + $0x40] sm:$0xff] %vm492, %v1518
        %1543 = vst.msk [vmem:[#allocation2 + $0x48] sm:$0xff] %vm492, %v1519
        %1544 = vst.msk [vmem:[#allocation2 + $0x50] sm:$0xff] %vm492, %v1520
        %1545 = vst.msk [vmem:[#allocation2 + $0x58] sm:$0xff] %vm492, %v1521
        %1546 = vst.msk [vmem:[#allocation2 + $0x60] sm:$0xff] %vm492, %v1522
        %1547 = vst.msk [vmem:[#allocation2 + $0x68] sm:$0xff] %vm492, %v1523
        %1548 = vst.msk [vmem:[#allocation2 + $0x70] sm:$0xff] %vm492, %v1524
        %1549 = vst.msk [vmem:[#allocation2 + $0x78] sm:$0xff] %vm492, %v1525
        %1550 = vst.msk [vmem:[#allocation2 + $0x80] sm:$0xff] %vm492, %v1526
        %1551 = vst.msk [vmem:[#allocation2 + $0x88] sm:$0xff] %vm492, %v1527
        %1552 = vst.msk [vmem:[#allocation2 + $0x90] sm:$0xff] %vm492, %v1528
        %1553 = vst.msk [vmem:[#allocation2 + $0x98] sm:$0xff] %vm492, %v1529
        %1554 = vst.msk [vmem:[#allocation2 + $0xa0] sm:$0xff] %vm492, %v1530
        %1555 = vst.msk [vmem:[#allocation2 + $0xa8] sm:$0xff] %vm492, %v1531
        %1556 = vst.msk [vmem:[#allocation2 + $0xb0] sm:$0xff] %vm492, %v1532
        %1557 = vst.msk [vmem:[#allocation2 + $0xb8] sm:$0xff] %vm492, %v1533
        %v1558 = vrot.slane %v467, 1
        %v1559 = vrot.slane %v468, 1
        %v1560 = vrot.slane %v469, 1
        %v1561 = vsel %vm709, %v1559, %v1560
        %v1562 = vsel %vm709, %v1558, %v1559
        %v1563 = vsel %vm709, %v706, %v1558
        %v1564 = vpack.c.bf16 %v729, %v730
        %v1565 = vpack.c.bf16 %v727, %v728
        %v1566 = vpack.c.bf16 %v725, %v726
        %v1567 = vpack.c.bf16 %v723, %v724
        %v1568 = vpack.c.bf16 %v721, %v722
        %v1569 = vpack.c.bf16 %v719, %v720
        %v1570 = vpack.c.bf16 %v717, %v718
        %v1571 = vpack.c.bf16 %v715, %v716
        %v1572 = vpack.c.bf16 %v713, %v714
        %v1573 = vpack.c.bf16 %v711, %v712
        %v1574 = vpack.c.bf16 %v1563, %v710
        %v1575 = vpack.c.bf16 %v1561, %v1562
        %s1576 = scalar_lea.vmem %s3, 32
        %v1577 = vld [vmem:[%s1576] sm:$0xf]
        %v1578 = vld [vmem:[%s1576 + $0x4] sm:$0xf]
        %v1581 = vunpack.c.l.b16 %v1577
        %v1582 = vunpack.c.l.b16 %v1578
        %v1583 = vpack.c.b16 %v1582, %v1581
        %v1586 = vsel %vm492, %v1564, 0
        %v1589 = vsel %vm492, %v1565, 0
        %v1592 = vsel %vm492, %v1566, 0
        %v1595 = vsel %vm492, %v1567, 0
        %v1598 = vsel %vm492, %v1568, 0
        %v1601 = vsel %vm492, %v1569, 0
        %v1604 = vsel %vm492, %v1570, 0
        %v1607 = vsel %vm492, %v1571, 0
        %v1610 = vsel %vm492, %v1572, 0
        %v1613 = vsel %vm492, %v1573, 0
        %v1616 = vsel %vm492, %v1574, 0
        %v1619 = vsel %vm492, %v1575, 0
        %1621 = vmatprep.subr.bf16.mxu0 0
        %1622 = vmatpush1.bf16.msra.mxu0 %v1583
        %1623 = vmatprep.subr.bf16.mxu0 0
        %1624 = vmatpush1.bf16.msra.mxu0 0
        %1625 = vmatprep.subr.bf16.mxu0 0
        %1626 = vmatpush1.bf16.msra.mxu0 0
        %1627 = vmatprep.subr.bf16.mxu0 0
        %1628 = vmatpush1.bf16.msra.mxu0 0
        %1629 = vmatprep.subr.bf16.mxu0 0
        %1630 = vmatpush1.bf16.msra.mxu0 0
        %1631 = vmatprep.subr.bf16.mxu0 0
        %1632 = vmatpush1.bf16.msra.mxu0 0
        %1633 = vmatprep.subr.bf16.mxu0 0
        %1634 = vmatpush1.bf16.msra.mxu0 0
        %1635 = vmatprep.subr.bf16.mxu0 0
        %1636 = vmatpush1.bf16.msra.mxu0 0
        %1637 = vmatprep.subr.bf16.mxu0 0
        %1638 = vmatpush1.bf16.msra.mxu0 0
        %1639 = vmatprep.subr.bf16.mxu0 0
        %1640 = vmatpush1.bf16.msra.mxu0 0
        %1641 = vmatprep.subr.bf16.mxu0 0
        %1642 = vmatpush1.bf16.msra.mxu0 0
        %1643 = vmatprep.subr.bf16.mxu0 0
        %1644 = vmatpush1.bf16.msra.mxu0 0
        %1645 = vmatprep.subr.bf16.mxu0 0
        %1646 = vmatpush1.bf16.msra.mxu0 0
        %1647 = vmatprep.subr.bf16.mxu0 0
        %1648 = vmatpush1.bf16.msra.mxu0 0
        %1649 = vmatprep.subr.bf16.mxu0 0
        %1650 = vmatpush1.bf16.msra.mxu0 0
        %1651 = vmatprep.subr.bf16.mxu0 0
        %1652 = vmatpush1.bf16.msra.mxu0 0
        %1653 = vmatprep.mubr.bf16.mxu0 0
        %1654 = vmatmul.mubr.bf16.gmra.mrb[0].mxu0 %v1586
        %v1655 = vpop.f32.mrb[0].mxu0
        %v1656 = vadd.f32 0.0, %v1655
        %v1657 = vpop.f32.mrb[0].mxu0
        %v1658 = vpop.f32.mrb[0].mxu0
        %v1659 = vadd.f32 0.0, %v1658
        %v1660 = vpop.f32.mrb[0].mxu0
        %1661 = vmatprep.mubr.bf16.mxu0 0
        %1662 = vmatmul.mubr.bf16.gmra.mrb[0].mxu0 %v1589
        %v1663 = vpop.f32.mrb[0].mxu0
        %v1664 = vadd.f32 0.0, %v1663
        %v1665 = vpop.f32.mrb[0].mxu0
        %v1666 = vpop.f32.mrb[0].mxu0
        %v1667 = vadd.f32 0.0, %v1666
        %v1668 = vpop.f32.mrb[0].mxu0
        %1669 = vmatprep.mubr.bf16.mxu0 0
        %1670 = vmatmul.mubr.bf16.gmra.mrb[0].mxu0 %v1592
        %v1671 = vpop.f32.mrb[0].mxu0
        %v1672 = vadd.f32 0.0, %v1671
        %v1673 = vpop.f32.mrb[0].mxu0
        %v1674 = vpop.f32.mrb[0].mxu0
        %v1675 = vadd.f32 0.0, %v1674
        %v1676 = vpop.f32.mrb[0].mxu0
        %1677 = vmatprep.mubr.bf16.mxu0 0
        %1678 = vmatmul.mubr.bf16.gmra.mrb[0].mxu0 %v1595
        %v1679 = vpop.f32.mrb[0].mxu0
        %v1680 = vadd.f32 0.0, %v1679
        %v1681 = vpop.f32.mrb[0].mxu0
        %v1682 = vpop.f32.mrb[0].mxu0
        %v1683 = vadd.f32 0.0, %v1682
        %v1684 = vpop.f32.mrb[0].mxu0
        %1685 = vmatprep.mubr.bf16.mxu0 0
        %1686 = vmatmul.mubr.bf16.gmra.mrb[0].mxu0 %v1598
        %v1687 = vpop.f32.mrb[0].mxu0
        %v1688 = vadd.f32 0.0, %v1687
        %v1689 = vpop.f32.mrb[0].mxu0
        %v1690 = vpop.f32.mrb[0].mxu0
        %v1691 = vadd.f32 0.0, %v1690
        %v1692 = vpop.f32.mrb[0].mxu0
        %1693 = vmatprep.mubr.bf16.mxu0 0
        %1694 = vmatmul.mubr.bf16.gmra.mrb[0].mxu0 %v1601
        %v1695 = vpop.f32.mrb[0].mxu0
        %v1696 = vadd.f32 0.0, %v1695
        %v1697 = vpop.f32.mrb[0].mxu0
        %v1698 = vpop.f32.mrb[0].mxu0
        %v1699 = vadd.f32 0.0, %v1698
        %v1700 = vpop.f32.mrb[0].mxu0
        %1701 = vmatprep.mubr.bf16.mxu0 0
        %1702 = vmatmul.mubr.bf16.gmra.mrb[0].mxu0 %v1604
        %v1703 = vpop.f32.mrb[0].mxu0
        %v1704 = vadd.f32 0.0, %v1703
        %v1705 = vpop.f32.mrb[0].mxu0
        %v1706 = vpop.f32.mrb[0].mxu0
        %v1707 = vadd.f32 0.0, %v1706
        %v1708 = vpop.f32.mrb[0].mxu0
        %1709 = vmatprep.mubr.bf16.mxu0 0
        %1710 = vmatmul.mubr.bf16.gmra.mrb[0].mxu0 %v1607
        %v1711 = vpop.f32.mrb[0].mxu0
        %v1712 = vadd.f32 0.0, %v1711
        %v1713 = vpop.f32.mrb[0].mxu0
        %v1714 = vpop.f32.mrb[0].mxu0
        %v1715 = vadd.f32 0.0, %v1714
        %v1716 = vpop.f32.mrb[0].mxu0
        %1717 = vmatprep.mubr.bf16.mxu0 0
        %1718 = vmatmul.mubr.bf16.gmra.mrb[0].mxu0 %v1610
        %v1719 = vpop.f32.mrb[0].mxu0
        %v1720 = vadd.f32 0.0, %v1719
        %v1721 = vpop.f32.mrb[0].mxu0
        %v1722 = vpop.f32.mrb[0].mxu0
        %v1723 = vadd.f32 0.0, %v1722
        %v1724 = vpop.f32.mrb[0].mxu0
        %1725 = vmatprep.mubr.bf16.mxu0 0
        %1726 = vmatmul.mubr.bf16.gmra.mrb[0].mxu0 %v1613
        %v1727 = vpop.f32.mrb[0].mxu0
        %v1728 = vadd.f32 0.0, %v1727
        %v1729 = vpop.f32.mrb[0].mxu0
        %v1730 = vpop.f32.mrb[0].mxu0
        %v1731 = vadd.f32 0.0, %v1730
        %v1732 = vpop.f32.mrb[0].mxu0
        %1733 = vmatprep.mubr.bf16.mxu0 0
        %1734 = vmatmul.mubr.bf16.gmra.mrb[0].mxu0 %v1616
        %v1735 = vpop.f32.mrb[0].mxu0
        %v1736 = vadd.f32 0.0, %v1735
        %v1737 = vpop.f32.mrb[0].mxu0
        %v1738 = vpop.f32.mrb[0].mxu0
        %v1739 = vadd.f32 0.0, %v1738
        %v1740 = vpop.f32.mrb[0].mxu0
        %1741 = vmatprep.mubr.bf16.mxu0 0
        %1742 = vmatmul.mubr.bf16.gmra.mrb[0].mxu0 %v1619
        %v1743 = vpop.f32.mrb[0].mxu0
        %v1744 = vadd.f32 0.0, %v1743
        %v1745 = vpop.f32.mrb[0].mxu0
        %v1746 = vpop.f32.mrb[0].mxu0
        %v1747 = vadd.f32 0.0, %v1746
        %v1748 = vpop.f32.mrb[0].mxu0
        %1749 = vdwg.mxu0
        %v1750 = vld [vmem:[#allocation2] sm:$0xff]
        %v1751 = vld [vmem:[#allocation2 + $0x8] sm:$0xff]
        %v1752 = vld [vmem:[#allocation2 + $0x10] sm:$0xff]
        %v1753 = vld [vmem:[#allocation2 + $0x18] sm:$0xff]
        %v1754 = vld [vmem:[#allocation2 + $0x20] sm:$0xff]
        %v1755 = vld [vmem:[#allocation2 + $0x28] sm:$0xff]
        %v1756 = vld [vmem:[#allocation2 + $0x30] sm:$0xff]
        %v1757 = vld [vmem:[#allocation2 + $0x38] sm:$0xff]
        %v1758 = vld [vmem:[#allocation2 + $0x40] sm:$0xff]
        %v1759 = vld [vmem:[#allocation2 + $0x48] sm:$0xff]
        %v1760 = vld [vmem:[#allocation2 + $0x50] sm:$0xff]
        %v1761 = vld [vmem:[#allocation2 + $0x58] sm:$0xff]
        %v1762 = vld [vmem:[#allocation2 + $0x60] sm:$0xff]
        %v1763 = vld [vmem:[#allocation2 + $0x68] sm:$0xff]
        %v1764 = vld [vmem:[#allocation2 + $0x70] sm:$0xff]
        %v1765 = vld [vmem:[#allocation2 + $0x78] sm:$0xff]
        %v1766 = vld [vmem:[#allocation2 + $0x80] sm:$0xff]
        %v1767 = vld [vmem:[#allocation2 + $0x88] sm:$0xff]
        %v1768 = vld [vmem:[#allocation2 + $0x90] sm:$0xff]
        %v1769 = vld [vmem:[#allocation2 + $0x98] sm:$0xff]
        %v1770 = vld [vmem:[#allocation2 + $0xa0] sm:$0xff]
        %v1771 = vld [vmem:[#allocation2 + $0xa8] sm:$0xff]
        %v1772 = vld [vmem:[#allocation2 + $0xb0] sm:$0xff]
        %v1773 = vld [vmem:[#allocation2 + $0xb8] sm:$0xff]
        %v1774 = vadd.f32 %v1750, %v1656
        %v1775 = vadd.f32 %v1751, %v1659
        %v1776 = vadd.f32 %v1752, %v1664
        %v1777 = vadd.f32 %v1753, %v1667
        %v1778 = vadd.f32 %v1754, %v1672
        %v1779 = vadd.f32 %v1755, %v1675
        %v1780 = vadd.f32 %v1756, %v1680
        %v1781 = vadd.f32 %v1757, %v1683
        %v1782 = vadd.f32 %v1758, %v1688
        %v1783 = vadd.f32 %v1759, %v1691
        %v1784 = vadd.f32 %v1760, %v1696
        %v1785 = vadd.f32 %v1761, %v1699
        %v1786 = vadd.f32 %v1762, %v1704
        %v1787 = vadd.f32 %v1763, %v1707
        %v1788 = vadd.f32 %v1764, %v1712
        %v1789 = vadd.f32 %v1765, %v1715
        %v1790 = vadd.f32 %v1766, %v1720
        %v1791 = vadd.f32 %v1767, %v1723
        %v1792 = vadd.f32 %v1768, %v1728
        %v1793 = vadd.f32 %v1769, %v1731
        %v1794 = vadd.f32 %v1770, %v1736
        %v1795 = vadd.f32 %v1771, %v1739
        %v1796 = vadd.f32 %v1772, %v1744
        %v1797 = vadd.f32 %v1773, %v1747
        %1798 = vst.msk [vmem:[#allocation2] sm:$0xff] %vm492, %v1774
        %1799 = vst.msk [vmem:[#allocation2 + $0x8] sm:$0xff] %vm492, %v1775
        %1800 = vst.msk [vmem:[#allocation2 + $0x10] sm:$0xff] %vm492, %v1776
        %1801 = vst.msk [vmem:[#allocation2 + $0x18] sm:$0xff] %vm492, %v1777
        %1802 = vst.msk [vmem:[#allocation2 + $0x20] sm:$0xff] %vm492, %v1778
        %1803 = vst.msk [vmem:[#allocation2 + $0x28] sm:$0xff] %vm492, %v1779
        %1804 = vst.msk [vmem:[#allocation2 + $0x30] sm:$0xff] %vm492, %v1780
        %1805 = vst.msk [vmem:[#allocation2 + $0x38] sm:$0xff] %vm492, %v1781
        %1806 = vst.msk [vmem:[#allocation2 + $0x40] sm:$0xff] %vm492, %v1782
        %1807 = vst.msk [vmem:[#allocation2 + $0x48] sm:$0xff] %vm492, %v1783
        %1808 = vst.msk [vmem:[#allocation2 + $0x50] sm:$0xff] %vm492, %v1784
        %1809 = vst.msk [vmem:[#allocation2 + $0x58] sm:$0xff] %vm492, %v1785
        %1810 = vst.msk [vmem:[#allocation2 + $0x60] sm:$0xff] %vm492, %v1786
        %1811 = vst.msk [vmem:[#allocation2 + $0x68] sm:$0xff] %vm492, %v1787
        %1812 = vst.msk [vmem:[#allocation2 + $0x70] sm:$0xff] %vm492, %v1788
        %1813 = vst.msk [vmem:[#allocation2 + $0x78] sm:$0xff] %vm492, %v1789
        %1814 = vst.msk [vmem:[#allocation2 + $0x80] sm:$0xff] %vm492, %v1790
        %1815 = vst.msk [vmem:[#allocation2 + $0x88] sm:$0xff] %vm492, %v1791
        %1816 = vst.msk [vmem:[#allocation2 + $0x90] sm:$0xff] %vm492, %v1792
        %1817 = vst.msk [vmem:[#allocation2 + $0x98] sm:$0xff] %vm492, %v1793
        %1818 = vst.msk [vmem:[#allocation2 + $0xa0] sm:$0xff] %vm492, %v1794
        %1819 = vst.msk [vmem:[#allocation2 + $0xa8] sm:$0xff] %vm492, %v1795
        %1820 = vst.msk [vmem:[#allocation2 + $0xb0] sm:$0xff] %vm492, %v1796
        %1821 = vst.msk [vmem:[#allocation2 + $0xb8] sm:$0xff] %vm492, %v1797
        %v1822 = vrot.slane %v467, 2
        %v1823 = vrot.slane %v468, 2
        %v1824 = vrot.slane %v469, 2
        %v1825 = vsel %vm1017, %v1823, %v1824
        %v1826 = vsel %vm1017, %v1822, %v1823
        %v1827 = vsel %vm1017, %v1016, %v1822
        %v1828 = vpack.c.bf16 %v1037, %v1038
        %v1829 = vpack.c.bf16 %v1035, %v1036
        %v1830 = vpack.c.bf16 %v1033, %v1034
        %v1831 = vpack.c.bf16 %v1031, %v1032
        %v1832 = vpack.c.bf16 %v1029, %v1030
        %v1833 = vpack.c.bf16 %v1027, %v1028
        %v1834 = vpack.c.bf16 %v1025, %v1026
        %v1835 = vpack.c.bf16 %v1023, %v1024
        %v1836 = vpack.c.bf16 %v1021, %v1022
        %v1837 = vpack.c.bf16 %v1019, %v1020
        %v1838 = vpack.c.bf16 %v1827, %v1018
        %v1839 = vpack.c.bf16 %v1825, %v1826
        %s1840 = scalar_lea.vmem %s3, 40
        %v1841 = vld [vmem:[%s1840] sm:$0xf]
        %v1842 = vld [vmem:[%s1840 + $0x4] sm:$0xf]
        %v1845 = vunpack.c.l.b16 %v1841
        %v1846 = vunpack.c.l.b16 %v1842
        %v1847 = vpack.c.b16 %v1846, %v1845
        %v1850 = vsel %vm492, %v1828, 0
        %v1853 = vsel %vm492, %v1829, 0
        %v1856 = vsel %vm492, %v1830, 0
        %v1859 = vsel %vm492, %v1831, 0
        %v1862 = vsel %vm492, %v1832, 0
        %v1865 = vsel %vm492, %v1833, 0
        %v1868 = vsel %vm492, %v1834, 0
        %v1871 = vsel %vm492, %v1835, 0
        %v1874 = vsel %vm492, %v1836, 0
        %v1877 = vsel %vm492, %v1837, 0
        %v1880 = vsel %vm492, %v1838, 0
        %v1883 = vsel %vm492, %v1839, 0
        %1885 = vmatprep.subr.bf16.mxu0 0
        %1886 = vmatpush1.bf16.msra.mxu0 %v1847
        %1887 = vmatprep.subr.bf16.mxu0 0
        %1888 = vmatpush1.bf16.msra.mxu0 0
        %1889 = vmatprep.subr.bf16.mxu0 0
        %1890 = vmatpush1.bf16.msra.mxu0 0
        %1891 = vmatprep.subr.bf16.mxu0 0
        %1892 = vmatpush1.bf16.msra.mxu0 0
        %1893 = vmatprep.subr.bf16.mxu0 0
        %1894 = vmatpush1.bf16.msra.mxu0 0
        %1895 = vmatprep.subr.bf16.mxu0 0
        %1896 = vmatpush1.bf16.msra.mxu0 0
        %1897 = vmatprep.subr.bf16.mxu0 0
        %1898 = vmatpush1.bf16.msra.mxu0 0
        %1899 = vmatprep.subr.bf16.mxu0 0
        %1900 = vmatpush1.bf16.msra.mxu0 0
        %1901 = vmatprep.subr.bf16.mxu0 0
        %1902 = vmatpush1.bf16.msra.mxu0 0
        %1903 = vmatprep.subr.bf16.mxu0 0
        %1904 = vmatpush1.bf16.msra.mxu0 0
        %1905 = vmatprep.subr.bf16.mxu0 0
        %1906 = vmatpush1.bf16.msra.mxu0 0
        %1907 = vmatprep.subr.bf16.mxu0 0
        %1908 = vmatpush1.bf16.msra.mxu0 0
        %1909 = vmatprep.subr.bf16.mxu0 0
        %1910 = vmatpush1.bf16.msra.mxu0 0
        %1911 = vmatprep.subr.bf16.mxu0 0
        %1912 = vmatpush1.bf16.msra.mxu0 0
        %1913 = vmatprep.subr.bf16.mxu0 0
        %1914 = vmatpush1.bf16.msra.mxu0 0
        %1915 = vmatprep.subr.bf16.mxu0 0
        %1916 = vmatpush1.bf16.msra.mxu0 0
        %1917 = vmatprep.mubr.bf16.mxu0 0
        %1918 = vmatmul.mubr.bf16.gmra.mrb[0].mxu0 %v1850
        %v1919 = vpop.f32.mrb[0].mxu0
        %v1920 = vadd.f32 0.0, %v1919
        %v1921 = vpop.f32.mrb[0].mxu0
        %v1922 = vpop.f32.mrb[0].mxu0
        %v1923 = vadd.f32 0.0, %v1922
        %v1924 = vpop.f32.mrb[0].mxu0
        %1925 = vmatprep.mubr.bf16.mxu0 0
        %1926 = vmatmul.mubr.bf16.gmra.mrb[0].mxu0 %v1853
        %v1927 = vpop.f32.mrb[0].mxu0
        %v1928 = vadd.f32 0.0, %v1927
        %v1929 = vpop.f32.mrb[0].mxu0
        %v1930 = vpop.f32.mrb[0].mxu0
        %v1931 = vadd.f32 0.0, %v1930
        %v1932 = vpop.f32.mrb[0].mxu0
        %1933 = vmatprep.mubr.bf16.mxu0 0
        %1934 = vmatmul.mubr.bf16.gmra.mrb[0].mxu0 %v1856
        %v1935 = vpop.f32.mrb[0].mxu0
        %v1936 = vadd.f32 0.0, %v1935
        %v1937 = vpop.f32.mrb[0].mxu0
        %v1938 = vpop.f32.mrb[0].mxu0
        %v1939 = vadd.f32 0.0, %v1938
        %v1940 = vpop.f32.mrb[0].mxu0
        %1941 = vmatprep.mubr.bf16.mxu0 0
        %1942 = vmatmul.mubr.bf16.gmra.mrb[0].mxu0 %v1859
        %v1943 = vpop.f32.mrb[0].mxu0
        %v1944 = vadd.f32 0.0, %v1943
        %v1945 = vpop.f32.mrb[0].mxu0
        %v1946 = vpop.f32.mrb[0].mxu0
        %v1947 = vadd.f32 0.0, %v1946
        %v1948 = vpop.f32.mrb[0].mxu0
        %1949 = vmatprep.mubr.bf16.mxu0 0
        %1950 = vmatmul.mubr.bf16.gmra.mrb[0].mxu0 %v1862
        %v1951 = vpop.f32.mrb[0].mxu0
        %v1952 = vadd.f32 0.0, %v1951
        %v1953 = vpop.f32.mrb[0].mxu0
        %v1954 = vpop.f32.mrb[0].mxu0
        %v1955 = vadd.f32 0.0, %v1954
        %v1956 = vpop.f32.mrb[0].mxu0
        %1957 = vmatprep.mubr.bf16.mxu0 0
        %1958 = vmatmul.mubr.bf16.gmra.mrb[0].mxu0 %v1865
        %v1959 = vpop.f32.mrb[0].mxu0
        %v1960 = vadd.f32 0.0, %v1959
        %v1961 = vpop.f32.mrb[0].mxu0
        %v1962 = vpop.f32.mrb[0].mxu0
        %v1963 = vadd.f32 0.0, %v1962
        %v1964 = vpop.f32.mrb[0].mxu0
        %1965 = vmatprep.mubr.bf16.mxu0 0
        %1966 = vmatmul.mubr.bf16.gmra.mrb[0].mxu0 %v1868
        %v1967 = vpop.f32.mrb[0].mxu0
        %v1968 = vadd.f32 0.0, %v1967
        %v1969 = vpop.f32.mrb[0].mxu0
        %v1970 = vpop.f32.mrb[0].mxu0
        %v1971 = vadd.f32 0.0, %v1970
        %v1972 = vpop.f32.mrb[0].mxu0
        %1973 = vmatprep.mubr.bf16.mxu0 0
        %1974 = vmatmul.mubr.bf16.gmra.mrb[0].mxu0 %v1871
        %v1975 = vpop.f32.mrb[0].mxu0
        %v1976 = vadd.f32 0.0, %v1975
        %v1977 = vpop.f32.mrb[0].mxu0
        %v1978 = vpop.f32.mrb[0].mxu0
        %v1979 = vadd.f32 0.0, %v1978
        %v1980 = vpop.f32.mrb[0].mxu0
        %1981 = vmatprep.mubr.bf16.mxu0 0
        %1982 = vmatmul.mubr.bf16.gmra.mrb[0].mxu0 %v1874
        %v1983 = vpop.f32.mrb[0].mxu0
        %v1984 = vadd.f32 0.0, %v1983
        %v1985 = vpop.f32.mrb[0].mxu0
        %v1986 = vpop.f32.mrb[0].mxu0
        %v1987 = vadd.f32 0.0, %v1986
        %v1988 = vpop.f32.mrb[0].mxu0
        %1989 = vmatprep.mubr.bf16.mxu0 0
        %1990 = vmatmul.mubr.bf16.gmra.mrb[0].mxu0 %v1877
        %v1991 = vpop.f32.mrb[0].mxu0
        %v1992 = vadd.f32 0.0, %v1991
        %v1993 = vpop.f32.mrb[0].mxu0
        %v1994 = vpop.f32.mrb[0].mxu0
        %v1995 = vadd.f32 0.0, %v1994
        %v1996 = vpop.f32.mrb[0].mxu0
        %1997 = vmatprep.mubr.bf16.mxu0 0
        %1998 = vmatmul.mubr.bf16.gmra.mrb[0].mxu0 %v1880
        %v1999 = vpop.f32.mrb[0].mxu0
        %v2000 = vadd.f32 0.0, %v1999
        %v2001 = vpop.f32.mrb[0].mxu0
        %v2002 = vpop.f32.mrb[0].mxu0
        %v2003 = vadd.f32 0.0, %v2002
        %v2004 = vpop.f32.mrb[0].mxu0
        %2005 = vmatprep.mubr.bf16.mxu0 0
        %2006 = vmatmul.mubr.bf16.gmra.mrb[0].mxu0 %v1883
        %v2007 = vpop.f32.mrb[0].mxu0
        %v2008 = vadd.f32 0.0, %v2007
        %v2009 = vpop.f32.mrb[0].mxu0
        %v2010 = vpop.f32.mrb[0].mxu0
        %v2011 = vadd.f32 0.0, %v2010
        %v2012 = vpop.f32.mrb[0].mxu0
        %2013 = vdwg.mxu0
        %v2014 = vld [vmem:[#allocation2] sm:$0xff]
        %v2015 = vld [vmem:[#allocation2 + $0x8] sm:$0xff]
        %v2016 = vld [vmem:[#allocation2 + $0x10] sm:$0xff]
        %v2017 = vld [vmem:[#allocation2 + $0x18] sm:$0xff]
        %v2018 = vld [vmem:[#allocation2 + $0x20] sm:$0xff]
        %v2019 = vld [vmem:[#allocation2 + $0x28] sm:$0xff]
        %v2020 = vld [vmem:[#allocation2 + $0x30] sm:$0xff]
        %v2021 = vld [vmem:[#allocation2 + $0x38] sm:$0xff]
        %v2022 = vld [vmem:[#allocation2 + $0x40] sm:$0xff]
        %v2023 = vld [vmem:[#allocation2 + $0x48] sm:$0xff]
        %v2024 = vld [vmem:[#allocation2 + $0x50] sm:$0xff]
        %v2025 = vld [vmem:[#allocation2 + $0x58] sm:$0xff]
        %v2026 = vld [vmem:[#allocation2 + $0x60] sm:$0xff]
        %v2027 = vld [vmem:[#allocation2 + $0x68] sm:$0xff]
        %v2028 = vld [vmem:[#allocation2 + $0x70] sm:$0xff]
        %v2029 = vld [vmem:[#allocation2 + $0x78] sm:$0xff]
        %v2030 = vld [vmem:[#allocation2 + $0x80] sm:$0xff]
        %v2031 = vld [vmem:[#allocation2 + $0x88] sm:$0xff]
        %v2032 = vld [vmem:[#allocation2 + $0x90] sm:$0xff]
        %v2033 = vld [vmem:[#allocation2 + $0x98] sm:$0xff]
        %v2034 = vld [vmem:[#allocation2 + $0xa0] sm:$0xff]
        %v2035 = vld [vmem:[#allocation2 + $0xa8] sm:$0xff]
        %v2036 = vld [vmem:[#allocation2 + $0xb0] sm:$0xff]
        %v2037 = vld [vmem:[#allocation2 + $0xb8] sm:$0xff]
        %v2038 = vadd.f32 %v2014, %v1920
        %v2039 = vadd.f32 %v2015, %v1923
        %v2040 = vadd.f32 %v2016, %v1928
        %v2041 = vadd.f32 %v2017, %v1931
        %v2042 = vadd.f32 %v2018, %v1936
        %v2043 = vadd.f32 %v2019, %v1939
        %v2044 = vadd.f32 %v2020, %v1944
        %v2045 = vadd.f32 %v2021, %v1947
        %v2046 = vadd.f32 %v2022, %v1952
        %v2047 = vadd.f32 %v2023, %v1955
        %v2048 = vadd.f32 %v2024, %v1960
        %v2049 = vadd.f32 %v2025, %v1963
        %v2050 = vadd.f32 %v2026, %v1968
        %v2051 = vadd.f32 %v2027, %v1971
        %v2052 = vadd.f32 %v2028, %v1976
        %v2053 = vadd.f32 %v2029, %v1979
        %v2054 = vadd.f32 %v2030, %v1984
        %v2055 = vadd.f32 %v2031, %v1987
        %v2056 = vadd.f32 %v2032, %v1992
        %v2057 = vadd.f32 %v2033, %v1995
        %v2058 = vadd.f32 %v2034, %v2000
        %v2059 = vadd.f32 %v2035, %v2003
        %v2060 = vadd.f32 %v2036, %v2008
        %v2061 = vadd.f32 %v2037, %v2011
        %2062 = vst.msk [vmem:[#allocation2] sm:$0xff] %vm492, %v2038
        %2063 = vst.msk [vmem:[#allocation2 + $0x8] sm:$0xff] %vm492, %v2039
        %2064 = vst.msk [vmem:[#allocation2 + $0x10] sm:$0xff] %vm492, %v2040
        %2065 = vst.msk [vmem:[#allocation2 + $0x18] sm:$0xff] %vm492, %v2041
        %2066 = vst.msk [vmem:[#allocation2 + $0x20] sm:$0xff] %vm492, %v2042
        %2067 = vst.msk [vmem:[#allocation2 + $0x28] sm:$0xff] %vm492, %v2043
        %2068 = vst.msk [vmem:[#allocation2 + $0x30] sm:$0xff] %vm492, %v2044
        %2069 = vst.msk [vmem:[#allocation2 + $0x38] sm:$0xff] %vm492, %v2045
        %2070 = vst.msk [vmem:[#allocation2 + $0x40] sm:$0xff] %vm492, %v2046
        %2071 = vst.msk [vmem:[#allocation2 + $0x48] sm:$0xff] %vm492, %v2047
        %2072 = vst.msk [vmem:[#allocation2 + $0x50] sm:$0xff] %vm492, %v2048
        %2073 = vst.msk [vmem:[#allocation2 + $0x58] sm:$0xff] %vm492, %v2049
        %2074 = vst.msk [vmem:[#allocation2 + $0x60] sm:$0xff] %vm492, %v2050
        %2075 = vst.msk [vmem:[#allocation2 + $0x68] sm:$0xff] %vm492, %v2051
        %2076 = vst.msk [vmem:[#allocation2 + $0x70] sm:$0xff] %vm492, %v2052
        %2077 = vst.msk [vmem:[#allocation2 + $0x78] sm:$0xff] %vm492, %v2053
        %2078 = vst.msk [vmem:[#allocation2 + $0x80] sm:$0xff] %vm492, %v2054
        %2079 = vst.msk [vmem:[#allocation2 + $0x88] sm:$0xff] %vm492, %v2055
        %2080 = vst.msk [vmem:[#allocation2 + $0x90] sm:$0xff] %vm492, %v2056
        %2081 = vst.msk [vmem:[#allocation2 + $0x98] sm:$0xff] %vm492, %v2057
        %2082 = vst.msk [vmem:[#allocation2 + $0xa0] sm:$0xff] %vm492, %v2058
        %2083 = vst.msk [vmem:[#allocation2 + $0xa8] sm:$0xff] %vm492, %v2059
        %2084 = vst.msk [vmem:[#allocation2 + $0xb0] sm:$0xff] %vm492, %v2060
        %2085 = vst.msk [vmem:[#allocation2 + $0xb8] sm:$0xff] %vm492, %v2061
        %v2086 = vpack.c.bf16 %v467, %v466
        %v2087 = vpack.c.bf16 %v469, %v468
        %v2088 = vpack.c.bf16 %v471, %v470
        %s2089 = scalar_lea.vmem %s3, 48
        %v2090 = vld [vmem:[%s2089] sm:$0xf]
        %v2091 = vld [vmem:[%s2089 + $0x4] sm:$0xf]
        %v2094 = vunpack.c.l.b16 %v2090
        %v2095 = vunpack.c.l.b16 %v2091
        %v2096 = vpack.c.b16 %v2095, %v2094
        %v2099 = vsel %vm492, %v2086, 0
        %v2102 = vsel %vm492, %v2087, 0
        %v2105 = vsel %vm492, %v2088, 0
        %2107 = vmatprep.subr.bf16.mxu0 0
        %2108 = vmatpush1.bf16.msra.mxu0 %v2096
        %2109 = vmatprep.subr.bf16.mxu0 0
        %2110 = vmatpush1.bf16.msra.mxu0 0
        %2111 = vmatprep.subr.bf16.mxu0 0
        %2112 = vmatpush1.bf16.msra.mxu0 0
        %2113 = vmatprep.subr.bf16.mxu0 0
        %2114 = vmatpush1.bf16.msra.mxu0 0
        %2115 = vmatprep.subr.bf16.mxu0 0
        %2116 = vmatpush1.bf16.msra.mxu0 0
        %2117 = vmatprep.subr.bf16.mxu0 0
        %2118 = vmatpush1.bf16.msra.mxu0 0
        %2119 = vmatprep.subr.bf16.mxu0 0
        %2120 = vmatpush1.bf16.msra.mxu0 0
        %2121 = vmatprep.subr.bf16.mxu0 0
        %2122 = vmatpush1.bf16.msra.mxu0 0
        %2123 = vmatprep.subr.bf16.mxu0 0
        %2124 = vmatpush1.bf16.msra.mxu0 0
        %2125 = vmatprep.subr.bf16.mxu0 0
        %2126 = vmatpush1.bf16.msra.mxu0 0
        %2127 = vmatprep.subr.bf16.mxu0 0
        %2128 = vmatpush1.bf16.msra.mxu0 0
        %2129 = vmatprep.subr.bf16.mxu0 0
        %2130 = vmatpush1.bf16.msra.mxu0 0
        %2131 = vmatprep.subr.bf16.mxu0 0
        %2132 = vmatpush1.bf16.msra.mxu0 0
        %2133 = vmatprep.subr.bf16.mxu0 0
        %2134 = vmatpush1.bf16.msra.mxu0 0
        %2135 = vmatprep.subr.bf16.mxu0 0
        %2136 = vmatpush1.bf16.msra.mxu0 0
        %2137 = vmatprep.subr.bf16.mxu0 0
        %2138 = vmatpush1.bf16.msra.mxu0 0
        %2139 = vmatprep.mubr.bf16.mxu0 0
        %2140 = vmatmul.mubr.bf16.gmra.mrb[0].mxu0 %v503
        %v2141 = vpop.f32.mrb[0].mxu0
        %v2142 = vadd.f32 0.0, %v2141
        %v2143 = vpop.f32.mrb[0].mxu0
        %v2144 = vpop.f32.mrb[0].mxu0
        %v2145 = vadd.f32 0.0, %v2144
        %v2146 = vpop.f32.mrb[0].mxu0
        %2147 = vmatprep.mubr.bf16.mxu0 0
        %2148 = vmatmul.mubr.bf16.gmra.mrb[0].mxu0 %v506
        %v2149 = vpop.f32.mrb[0].mxu0
        %v2150 = vadd.f32 0.0, %v2149
        %v2151 = vpop.f32.mrb[0].mxu0
        %v2152 = vpop.f32.mrb[0].mxu0
        %v2153 = vadd.f32 0.0, %v2152
        %v2154 = vpop.f32.mrb[0].mxu0
        %2155 = vmatprep.mubr.bf16.mxu0 0
        %2156 = vmatmul.mubr.bf16.gmra.mrb[0].mxu0 %v509
        %v2157 = vpop.f32.mrb[0].mxu0
        %v2158 = vadd.f32 0.0, %v2157
        %v2159 = vpop.f32.mrb[0].mxu0
        %v2160 = vpop.f32.mrb[0].mxu0
        %v2161 = vadd.f32 0.0, %v2160
        %v2162 = vpop.f32.mrb[0].mxu0
        %2163 = vmatprep.mubr.bf16.mxu0 0
        %2164 = vmatmul.mubr.bf16.gmra.mrb[0].mxu0 %v512
        %v2165 = vpop.f32.mrb[0].mxu0
        %v2166 = vadd.f32 0.0, %v2165
        %v2167 = vpop.f32.mrb[0].mxu0
        %v2168 = vpop.f32.mrb[0].mxu0
        %v2169 = vadd.f32 0.0, %v2168
        %v2170 = vpop.f32.mrb[0].mxu0
        %2171 = vmatprep.mubr.bf16.mxu0 0
        %2172 = vmatmul.mubr.bf16.gmra.mrb[0].mxu0 %v515
        %v2173 = vpop.f32.mrb[0].mxu0
        %v2174 = vadd.f32 0.0, %v2173
        %v2175 = vpop.f32.mrb[0].mxu0
        %v2176 = vpop.f32.mrb[0].mxu0
        %v2177 = vadd.f32 0.0, %v2176
        %v2178 = vpop.f32.mrb[0].mxu0
        %2179 = vmatprep.mubr.bf16.mxu0 0
        %2180 = vmatmul.mubr.bf16.gmra.mrb[0].mxu0 %v518
        %v2181 = vpop.f32.mrb[0].mxu0
        %v2182 = vadd.f32 0.0, %v2181
        %v2183 = vpop.f32.mrb[0].mxu0
        %v2184 = vpop.f32.mrb[0].mxu0
        %v2185 = vadd.f32 0.0, %v2184
        %v2186 = vpop.f32.mrb[0].mxu0
        %2187 = vmatprep.mubr.bf16.mxu0 0
        %2188 = vmatmul.mubr.bf16.gmra.mrb[0].mxu0 %v521
        %v2189 = vpop.f32.mrb[0].mxu0
        %v2190 = vadd.f32 0.0, %v2189
        %v2191 = vpop.f32.mrb[0].mxu0
        %v2192 = vpop.f32.mrb[0].mxu0
        %v2193 = vadd.f32 0.0, %v2192
        %v2194 = vpop.f32.mrb[0].mxu0
        %2195 = vmatprep.mubr.bf16.mxu0 0
        %2196 = vmatmul.mubr.bf16.gmra.mrb[0].mxu0 %v524
        %v2197 = vpop.f32.mrb[0].mxu0
        %v2198 = vadd.f32 0.0, %v2197
        %v2199 = vpop.f32.mrb[0].mxu0
        %v2200 = vpop.f32.mrb[0].mxu0
        %v2201 = vadd.f32 0.0, %v2200
        %v2202 = vpop.f32.mrb[0].mxu0
        %2203 = vmatprep.mubr.bf16.mxu0 0
        %2204 = vmatmul.mubr.bf16.gmra.mrb[0].mxu0 %v527
        %v2205 = vpop.f32.mrb[0].mxu0
        %v2206 = vadd.f32 0.0, %v2205
        %v2207 = vpop.f32.mrb[0].mxu0
        %v2208 = vpop.f32.mrb[0].mxu0
        %v2209 = vadd.f32 0.0, %v2208
        %v2210 = vpop.f32.mrb[0].mxu0
        %2211 = vmatprep.mubr.bf16.mxu0 0
        %2212 = vmatmul.mubr.bf16.gmra.mrb[0].mxu0 %v2099
        %v2213 = vpop.f32.mrb[0].mxu0
        %v2214 = vadd.f32 0.0, %v2213
        %v2215 = vpop.f32.mrb[0].mxu0
        %v2216 = vpop.f32.mrb[0].mxu0
        %v2217 = vadd.f32 0.0, %v2216
        %v2218 = vpop.f32.mrb[0].mxu0
        %2219 = vmatprep.mubr.bf16.mxu0 0
        %2220 = vmatmul.mubr.bf16.gmra.mrb[0].mxu0 %v2102
        %v2221 = vpop.f32.mrb[0].mxu0
        %v2222 = vadd.f32 0.0, %v2221
        %v2223 = vpop.f32.mrb[0].mxu0
        %v2224 = vpop.f32.mrb[0].mxu0
        %v2225 = vadd.f32 0.0, %v2224
        %v2226 = vpop.f32.mrb[0].mxu0
        %2227 = vmatprep.mubr.bf16.mxu0 0
        %2228 = vmatmul.mubr.bf16.gmra.mrb[0].mxu0 %v2105
        %v2229 = vpop.f32.mrb[0].mxu0
        %v2230 = vadd.f32 0.0, %v2229
        %v2231 = vpop.f32.mrb[0].mxu0
        %v2232 = vpop.f32.mrb[0].mxu0
        %v2233 = vadd.f32 0.0, %v2232
        %v2234 = vpop.f32.mrb[0].mxu0
        %2235 = vdwg.mxu0
        %v2236 = vld [vmem:[#allocation2] sm:$0xff]
        %v2237 = vld [vmem:[#allocation2 + $0x8] sm:$0xff]
        %v2238 = vld [vmem:[#allocation2 + $0x10] sm:$0xff]
        %v2239 = vld [vmem:[#allocation2 + $0x18] sm:$0xff]
        %v2240 = vld [vmem:[#allocation2 + $0x20] sm:$0xff]
        %v2241 = vld [vmem:[#allocation2 + $0x28] sm:$0xff]
        %v2242 = vld [vmem:[#allocation2 + $0x30] sm:$0xff]
        %v2243 = vld [vmem:[#allocation2 + $0x38] sm:$0xff]
        %v2244 = vld [vmem:[#allocation2 + $0x40] sm:$0xff]
        %v2245 = vld [vmem:[#allocation2 + $0x48] sm:$0xff]
        %v2246 = vld [vmem:[#allocation2 + $0x50] sm:$0xff]
        %v2247 = vld [vmem:[#allocation2 + $0x58] sm:$0xff]
        %v2248 = vld [vmem:[#allocation2 + $0x60] sm:$0xff]
        %v2249 = vld [vmem:[#allocation2 + $0x68] sm:$0xff]
        %v2250 = vld [vmem:[#allocation2 + $0x70] sm:$0xff]
        %v2251 = vld [vmem:[#allocation2 + $0x78] sm:$0xff]
        %v2252 = vld [vmem:[#allocation2 + $0x80] sm:$0xff]
        %v2253 = vld [vmem:[#allocation2 + $0x88] sm:$0xff]
        %v2254 = vld [vmem:[#allocation2 + $0x90] sm:$0xff]
        %v2255 = vld [vmem:[#allocation2 + $0x98] sm:$0xff]
        %v2256 = vld [vmem:[#allocation2 + $0xa0] sm:$0xff]
        %v2257 = vld [vmem:[#allocation2 + $0xa8] sm:$0xff]
        %v2258 = vld [vmem:[#allocation2 + $0xb0] sm:$0xff]
        %v2259 = vld [vmem:[#allocation2 + $0xb8] sm:$0xff]
        %v2260 = vadd.f32 %v2236, %v2142
        %v2261 = vadd.f32 %v2237, %v2145
        %v2262 = vadd.f32 %v2238, %v2150
        %v2263 = vadd.f32 %v2239, %v2153
        %v2264 = vadd.f32 %v2240, %v2158
        %v2265 = vadd.f32 %v2241, %v2161
        %v2266 = vadd.f32 %v2242, %v2166
        %v2267 = vadd.f32 %v2243, %v2169
        %v2268 = vadd.f32 %v2244, %v2174
        %v2269 = vadd.f32 %v2245, %v2177
        %v2270 = vadd.f32 %v2246, %v2182
        %v2271 = vadd.f32 %v2247, %v2185
        %v2272 = vadd.f32 %v2248, %v2190
        %v2273 = vadd.f32 %v2249, %v2193
        %v2274 = vadd.f32 %v2250, %v2198
        %v2275 = vadd.f32 %v2251, %v2201
        %v2276 = vadd.f32 %v2252, %v2206
        %v2277 = vadd.f32 %v2253, %v2209
        %v2278 = vadd.f32 %v2254, %v2214
        %v2279 = vadd.f32 %v2255, %v2217
        %v2280 = vadd.f32 %v2256, %v2222
        %v2281 = vadd.f32 %v2257, %v2225
        %v2282 = vadd.f32 %v2258, %v2230
        %v2283 = vadd.f32 %v2259, %v2233
        %2284 = vst.msk [vmem:[#allocation2] sm:$0xff] %vm492, %v2260
        %2285 = vst.msk [vmem:[#allocation2 + $0x8] sm:$0xff] %vm492, %v2261
        %2286 = vst.msk [vmem:[#allocation2 + $0x10] sm:$0xff] %vm492, %v2262
        %2287 = vst.msk [vmem:[#allocation2 + $0x18] sm:$0xff] %vm492, %v2263
        %2288 = vst.msk [vmem:[#allocation2 + $0x20] sm:$0xff] %vm492, %v2264
        %2289 = vst.msk [vmem:[#allocation2 + $0x28] sm:$0xff] %vm492, %v2265
        %2290 = vst.msk [vmem:[#allocation2 + $0x30] sm:$0xff] %vm492, %v2266
        %2291 = vst.msk [vmem:[#allocation2 + $0x38] sm:$0xff] %vm492, %v2267
        %2292 = vst.msk [vmem:[#allocation2 + $0x40] sm:$0xff] %vm492, %v2268
        %2293 = vst.msk [vmem:[#allocation2 + $0x48] sm:$0xff] %vm492, %v2269
        %2294 = vst.msk [vmem:[#allocation2 + $0x50] sm:$0xff] %vm492, %v2270
        %2295 = vst.msk [vmem:[#allocation2 + $0x58] sm:$0xff] %vm492, %v2271
        %2296 = vst.msk [vmem:[#allocation2 + $0x60] sm:$0xff] %vm492, %v2272
        %2297 = vst.msk [vmem:[#allocation2 + $0x68] sm:$0xff] %vm492, %v2273
        %2298 = vst.msk [vmem:[#allocation2 + $0x70] sm:$0xff] %vm492, %v2274
        %2299 = vst.msk [vmem:[#allocation2 + $0x78] sm:$0xff] %vm492, %v2275
        %2300 = vst.msk [vmem:[#allocation2 + $0x80] sm:$0xff] %vm492, %v2276
        %2301 = vst.msk [vmem:[#allocation2 + $0x88] sm:$0xff] %vm492, %v2277
        %2302 = vst.msk [vmem:[#allocation2 + $0x90] sm:$0xff] %vm492, %v2278
        %2303 = vst.msk [vmem:[#allocation2 + $0x98] sm:$0xff] %vm492, %v2279
        %2304 = vst.msk [vmem:[#allocation2 + $0xa0] sm:$0xff] %vm492, %v2280
        %2305 = vst.msk [vmem:[#allocation2 + $0xa8] sm:$0xff] %vm492, %v2281
        %2306 = vst.msk [vmem:[#allocation2 + $0xb0] sm:$0xff] %vm492, %v2282
        %2307 = vst.msk [vmem:[#allocation2 + $0xb8] sm:$0xff] %vm492, %v2283
        %v2308 = vrot.slane %v470, 1
        %v2309 = vrot.slane %v471, 1
        %v2310 = vsel %vm709, %v2309, 0.0
        %v2311 = vsel %vm709, %v2308, %v2309
        %v2312 = vsel %vm709, %v1560, %v2308
        %v2313 = vpack.c.bf16 %v1562, %v1563
        %v2314 = vpack.c.bf16 %v2312, %v1561
        %v2315 = vpack.c.bf16 %v2310, %v2311
        %s2316 = scalar_lea.vmem %s3, 56
        %v2317 = vld [vmem:[%s2316] sm:$0xf]
        %v2318 = vld [vmem:[%s2316 + $0x4] sm:$0xf]
        %v2321 = vunpack.c.l.b16 %v2317
        %v2322 = vunpack.c.l.b16 %v2318
        %v2323 = vpack.c.b16 %v2322, %v2321
        %v2326 = vsel %vm492, %v2313, 0
        %v2329 = vsel %vm492, %v2314, 0
        %v2332 = vsel %vm492, %v2315, 0
        %2334 = vmatprep.subr.bf16.mxu0 0
        %2335 = vmatpush1.bf16.msra.mxu0 %v2323
        %2336 = vmatprep.subr.bf16.mxu0 0
        %2337 = vmatpush1.bf16.msra.mxu0 0
        %2338 = vmatprep.subr.bf16.mxu0 0
        %2339 = vmatpush1.bf16.msra.mxu0 0
        %2340 = vmatprep.subr.bf16.mxu0 0
        %2341 = vmatpush1.bf16.msra.mxu0 0
        %2342 = vmatprep.subr.bf16.mxu0 0
        %2343 = vmatpush1.bf16.msra.mxu0 0
        %2344 = vmatprep.subr.bf16.mxu0 0
        %2345 = vmatpush1.bf16.msra.mxu0 0
        %2346 = vmatprep.subr.bf16.mxu0 0
        %2347 = vmatpush1.bf16.msra.mxu0 0
        %2348 = vmatprep.subr.bf16.mxu0 0
        %2349 = vmatpush1.bf16.msra.mxu0 0
        %2350 = vmatprep.subr.bf16.mxu0 0
        %2351 = vmatpush1.bf16.msra.mxu0 0
        %2352 = vmatprep.subr.bf16.mxu0 0
        %2353 = vmatpush1.bf16.msra.mxu0 0
        %2354 = vmatprep.subr.bf16.mxu0 0
        %2355 = vmatpush1.bf16.msra.mxu0 0
        %2356 = vmatprep.subr.bf16.mxu0 0
        %2357 = vmatpush1.bf16.msra.mxu0 0
        %2358 = vmatprep.subr.bf16.mxu0 0
        %2359 = vmatpush1.bf16.msra.mxu0 0
        %2360 = vmatprep.subr.bf16.mxu0 0
        %2361 = vmatpush1.bf16.msra.mxu0 0
        %2362 = vmatprep.subr.bf16.mxu0 0
        %2363 = vmatpush1.bf16.msra.mxu0 0
        %2364 = vmatprep.subr.bf16.mxu0 0
        %2365 = vmatpush1.bf16.msra.mxu0 0
        %2366 = vmatprep.mubr.bf16.mxu0 0
        %2367 = vmatmul.mubr.bf16.gmra.mrb[0].mxu0 %v765
        %v2368 = vpop.f32.mrb[0].mxu0
        %v2369 = vadd.f32 0.0, %v2368
        %v2370 = vpop.f32.mrb[0].mxu0
        %v2371 = vpop.f32.mrb[0].mxu0
        %v2372 = vadd.f32 0.0, %v2371
        %v2373 = vpop.f32.mrb[0].mxu0
        %2374 = vmatprep.mubr.bf16.mxu0 0
        %2375 = vmatmul.mubr.bf16.gmra.mrb[0].mxu0 %v768
        %v2376 = vpop.f32.mrb[0].mxu0
        %v2377 = vadd.f32 0.0, %v2376
        %v2378 = vpop.f32.mrb[0].mxu0
        %v2379 = vpop.f32.mrb[0].mxu0
        %v2380 = vadd.f32 0.0, %v2379
        %v2381 = vpop.f32.mrb[0].mxu0
        %2382 = vmatprep.mubr.bf16.mxu0 0
        %2383 = vmatmul.mubr.bf16.gmra.mrb[0].mxu0 %v771
        %v2384 = vpop.f32.mrb[0].mxu0
        %v2385 = vadd.f32 0.0, %v2384
        %v2386 = vpop.f32.mrb[0].mxu0
        %v2387 = vpop.f32.mrb[0].mxu0
        %v2388 = vadd.f32 0.0, %v2387
        %v2389 = vpop.f32.mrb[0].mxu0
        %2390 = vmatprep.mubr.bf16.mxu0 0
        %2391 = vmatmul.mubr.bf16.gmra.mrb[0].mxu0 %v774
        %v2392 = vpop.f32.mrb[0].mxu0
        %v2393 = vadd.f32 0.0, %v2392
        %v2394 = vpop.f32.mrb[0].mxu0
        %v2395 = vpop.f32.mrb[0].mxu0
        %v2396 = vadd.f32 0.0, %v2395
        %v2397 = vpop.f32.mrb[0].mxu0
        %2398 = vmatprep.mubr.bf16.mxu0 0
        %2399 = vmatmul.mubr.bf16.gmra.mrb[0].mxu0 %v777
        %v2400 = vpop.f32.mrb[0].mxu0
        %v2401 = vadd.f32 0.0, %v2400
        %v2402 = vpop.f32.mrb[0].mxu0
        %v2403 = vpop.f32.mrb[0].mxu0
        %v2404 = vadd.f32 0.0, %v2403
        %v2405 = vpop.f32.mrb[0].mxu0
        %2406 = vmatprep.mubr.bf16.mxu0 0
        %2407 = vmatmul.mubr.bf16.gmra.mrb[0].mxu0 %v780
        %v2408 = vpop.f32.mrb[0].mxu0
        %v2409 = vadd.f32 0.0, %v2408
        %v2410 = vpop.f32.mrb[0].mxu0
        %v2411 = vpop.f32.mrb[0].mxu0
        %v2412 = vadd.f32 0.0, %v2411
        %v2413 = vpop.f32.mrb[0].mxu0
        %2414 = vmatprep.mubr.bf16.mxu0 0
        %2415 = vmatmul.mubr.bf16.gmra.mrb[0].mxu0 %v783
        %v2416 = vpop.f32.mrb[0].mxu0
        %v2417 = vadd.f32 0.0, %v2416
        %v2418 = vpop.f32.mrb[0].mxu0
        %v2419 = vpop.f32.mrb[0].mxu0
        %v2420 = vadd.f32 0.0, %v2419
        %v2421 = vpop.f32.mrb[0].mxu0
        %2422 = vmatprep.mubr.bf16.mxu0 0
        %2423 = vmatmul.mubr.bf16.gmra.mrb[0].mxu0 %v786
        %v2424 = vpop.f32.mrb[0].mxu0
        %v2425 = vadd.f32 0.0, %v2424
        %v2426 = vpop.f32.mrb[0].mxu0
        %v2427 = vpop.f32.mrb[0].mxu0
        %v2428 = vadd.f32 0.0, %v2427
        %v2429 = vpop.f32.mrb[0].mxu0
        %2430 = vmatprep.mubr.bf16.mxu0 0
        %2431 = vmatmul.mubr.bf16.gmra.mrb[0].mxu0 %v789
        %v2432 = vpop.f32.mrb[0].mxu0
        %v2433 = vadd.f32 0.0, %v2432
        %v2434 = vpop.f32.mrb[0].mxu0
        %v2435 = vpop.f32.mrb[0].mxu0
        %v2436 = vadd.f32 0.0, %v2435
        %v2437 = vpop.f32.mrb[0].mxu0
        %2438 = vmatprep.mubr.bf16.mxu0 0
        %2439 = vmatmul.mubr.bf16.gmra.mrb[0].mxu0 %v2326
        %v2440 = vpop.f32.mrb[0].mxu0
        %v2441 = vadd.f32 0.0, %v2440
        %v2442 = vpop.f32.mrb[0].mxu0
        %v2443 = vpop.f32.mrb[0].mxu0
        %v2444 = vadd.f32 0.0, %v2443
        %v2445 = vpop.f32.mrb[0].mxu0
        %2446 = vmatprep.mubr.bf16.mxu0 0
        %2447 = vmatmul.mubr.bf16.gmra.mrb[0].mxu0 %v2329
        %v2448 = vpop.f32.mrb[0].mxu0
        %v2449 = vadd.f32 0.0, %v2448
        %v2450 = vpop.f32.mrb[0].mxu0
        %v2451 = vpop.f32.mrb[0].mxu0
        %v2452 = vadd.f32 0.0, %v2451
        %v2453 = vpop.f32.mrb[0].mxu0
        %2454 = vmatprep.mubr.bf16.mxu0 0
        %2455 = vmatmul.mubr.bf16.gmra.mrb[0].mxu0 %v2332
        %v2456 = vpop.f32.mrb[0].mxu0
        %v2457 = vadd.f32 0.0, %v2456
        %v2458 = vpop.f32.mrb[0].mxu0
        %v2459 = vpop.f32.mrb[0].mxu0
        %v2460 = vadd.f32 0.0, %v2459
        %v2461 = vpop.f32.mrb[0].mxu0
        %2462 = vdwg.mxu0
        %v2463 = vld [vmem:[#allocation2] sm:$0xff]
        %v2464 = vld [vmem:[#allocation2 + $0x8] sm:$0xff]
        %v2465 = vld [vmem:[#allocation2 + $0x10] sm:$0xff]
        %v2466 = vld [vmem:[#allocation2 + $0x18] sm:$0xff]
        %v2467 = vld [vmem:[#allocation2 + $0x20] sm:$0xff]
        %v2468 = vld [vmem:[#allocation2 + $0x28] sm:$0xff]
        %v2469 = vld [vmem:[#allocation2 + $0x30] sm:$0xff]
        %v2470 = vld [vmem:[#allocation2 + $0x38] sm:$0xff]
        %v2471 = vld [vmem:[#allocation2 + $0x40] sm:$0xff]
        %v2472 = vld [vmem:[#allocation2 + $0x48] sm:$0xff]
        %v2473 = vld [vmem:[#allocation2 + $0x50] sm:$0xff]
        %v2474 = vld [vmem:[#allocation2 + $0x58] sm:$0xff]
        %v2475 = vld [vmem:[#allocation2 + $0x60] sm:$0xff]
        %v2476 = vld [vmem:[#allocation2 + $0x68] sm:$0xff]
        %v2477 = vld [vmem:[#allocation2 + $0x70] sm:$0xff]
        %v2478 = vld [vmem:[#allocation2 + $0x78] sm:$0xff]
        %v2479 = vld [vmem:[#allocation2 + $0x80] sm:$0xff]
        %v2480 = vld [vmem:[#allocation2 + $0x88] sm:$0xff]
        %v2481 = vld [vmem:[#allocation2 + $0x90] sm:$0xff]
        %v2482 = vld [vmem:[#allocation2 + $0x98] sm:$0xff]
        %v2483 = vld [vmem:[#allocation2 + $0xa0] sm:$0xff]
        %v2484 = vld [vmem:[#allocation2 + $0xa8] sm:$0xff]
        %v2485 = vld [vmem:[#allocation2 + $0xb0] sm:$0xff]
        %v2486 = vld [vmem:[#allocation2 + $0xb8] sm:$0xff]
        %v2487 = vadd.f32 %v2463, %v2369
        %v2488 = vadd.f32 %v2464, %v2372
        %v2489 = vadd.f32 %v2465, %v2377
        %v2490 = vadd.f32 %v2466, %v2380
        %v2491 = vadd.f32 %v2467, %v2385
        %v2492 = vadd.f32 %v2468, %v2388
        %v2493 = vadd.f32 %v2469, %v2393
        %v2494 = vadd.f32 %v2470, %v2396
        %v2495 = vadd.f32 %v2471, %v2401
        %v2496 = vadd.f32 %v2472, %v2404
        %v2497 = vadd.f32 %v2473, %v2409
        %v2498 = vadd.f32 %v2474, %v2412
        %v2499 = vadd.f32 %v2475, %v2417
        %v2500 = vadd.f32 %v2476, %v2420
        %v2501 = vadd.f32 %v2477, %v2425
        %v2502 = vadd.f32 %v2478, %v2428
        %v2503 = vadd.f32 %v2479, %v2433
        %v2504 = vadd.f32 %v2480, %v2436
        %v2505 = vadd.f32 %v2481, %v2441
        %v2506 = vadd.f32 %v2482, %v2444
        %v2507 = vadd.f32 %v2483, %v2449
        %v2508 = vadd.f32 %v2484, %v2452
        %v2509 = vadd.f32 %v2485, %v2457
        %v2510 = vadd.f32 %v2486, %v2460
        %2511 = vst.msk [vmem:[#allocation2] sm:$0xff] %vm492, %v2487
        %2512 = vst.msk [vmem:[#allocation2 + $0x8] sm:$0xff] %vm492, %v2488
        %2513 = vst.msk [vmem:[#allocation2 + $0x10] sm:$0xff] %vm492, %v2489
        %2514 = vst.msk [vmem:[#allocation2 + $0x18] sm:$0xff] %vm492, %v2490
        %2515 = vst.msk [vmem:[#allocation2 + $0x20] sm:$0xff] %vm492, %v2491
        %2516 = vst.msk [vmem:[#allocation2 + $0x28] sm:$0xff] %vm492, %v2492
        %2517 = vst.msk [vmem:[#allocation2 + $0x30] sm:$0xff] %vm492, %v2493
        %2518 = vst.msk [vmem:[#allocation2 + $0x38] sm:$0xff] %vm492, %v2494
        %2519 = vst.msk [vmem:[#allocation2 + $0x40] sm:$0xff] %vm492, %v2495
        %2520 = vst.msk [vmem:[#allocation2 + $0x48] sm:$0xff] %vm492, %v2496
        %2521 = vst.msk [vmem:[#allocation2 + $0x50] sm:$0xff] %vm492, %v2497
        %2522 = vst.msk [vmem:[#allocation2 + $0x58] sm:$0xff] %vm492, %v2498
        %2523 = vst.msk [vmem:[#allocation2 + $0x60] sm:$0xff] %vm492, %v2499
        %2524 = vst.msk [vmem:[#allocation2 + $0x68] sm:$0xff] %vm492, %v2500
        %2525 = vst.msk [vmem:[#allocation2 + $0x70] sm:$0xff] %vm492, %v2501
        %2526 = vst.msk [vmem:[#allocation2 + $0x78] sm:$0xff] %vm492, %v2502
        %2527 = vst.msk [vmem:[#allocation2 + $0x80] sm:$0xff] %vm492, %v2503
        %2528 = vst.msk [vmem:[#allocation2 + $0x88] sm:$0xff] %vm492, %v2504
        %2529 = vst.msk [vmem:[#allocation2 + $0x90] sm:$0xff] %vm492, %v2505
        %2530 = vst.msk [vmem:[#allocation2 + $0x98] sm:$0xff] %vm492, %v2506
        %2531 = vst.msk [vmem:[#allocation2 + $0xa0] sm:$0xff] %vm492, %v2507
        %2532 = vst.msk [vmem:[#allocation2 + $0xa8] sm:$0xff] %vm492, %v2508
        %2533 = vst.msk [vmem:[#allocation2 + $0xb0] sm:$0xff] %vm492, %v2509
        %2534 = vst.msk [vmem:[#allocation2 + $0xb8] sm:$0xff] %vm492, %v2510
        %v2535 = vrot.slane %v470, 2
        %v2536 = vrot.slane %v471, 2
        %v2537 = vsel %vm1017, %v2536, 0.0
        %v2538 = vsel %vm1017, %v2535, %v2536
        %v2539 = vsel %vm1017, %v1824, %v2535
        %v2540 = vpack.c.bf16 %v1826, %v1827
        %v2541 = vpack.c.bf16 %v2539, %v1825
        %v2542 = vpack.c.bf16 %v2537, %v2538
        %s2543 = scalar_lea.vmem %s3, 64
        %v2544 = vld [vmem:[%s2543] sm:$0xf]
        %v2545 = vld [vmem:[%s2543 + $0x4] sm:$0xf]
        %v2548 = vunpack.c.l.b16 %v2544
        %v2549 = vunpack.c.l.b16 %v2545
        %v2550 = vpack.c.b16 %v2549, %v2548
        %v2553 = vsel %vm492, %v2540, 0
        %v2556 = vsel %vm492, %v2541, 0
        %v2559 = vsel %vm492, %v2542, 0
        %2561 = vmatprep.subr.bf16.mxu0 0
        %2562 = vmatpush1.bf16.msra.mxu0 %v2550
        %2563 = vmatprep.subr.bf16.mxu0 0
        %2564 = vmatpush1.bf16.msra.mxu0 0
        %2565 = vmatprep.subr.bf16.mxu0 0
        %2566 = vmatpush1.bf16.msra.mxu0 0
        %2567 = vmatprep.subr.bf16.mxu0 0
        %2568 = vmatpush1.bf16.msra.mxu0 0
        %2569 = vmatprep.subr.bf16.mxu0 0
        %2570 = vmatpush1.bf16.msra.mxu0 0
        %2571 = vmatprep.subr.bf16.mxu0 0
        %2572 = vmatpush1.bf16.msra.mxu0 0
        %2573 = vmatprep.subr.bf16.mxu0 0
        %2574 = vmatpush1.bf16.msra.mxu0 0
        %2575 = vmatprep.subr.bf16.mxu0 0
        %2576 = vmatpush1.bf16.msra.mxu0 0
        %2577 = vmatprep.subr.bf16.mxu0 0
        %2578 = vmatpush1.bf16.msra.mxu0 0
        %2579 = vmatprep.subr.bf16.mxu0 0
        %2580 = vmatpush1.bf16.msra.mxu0 0
        %2581 = vmatprep.subr.bf16.mxu0 0
        %2582 = vmatpush1.bf16.msra.mxu0 0
        %2583 = vmatprep.subr.bf16.mxu0 0
        %2584 = vmatpush1.bf16.msra.mxu0 0
        %2585 = vmatprep.subr.bf16.mxu0 0
        %2586 = vmatpush1.bf16.msra.mxu0 0
        %2587 = vmatprep.subr.bf16.mxu0 0
        %2588 = vmatpush1.bf16.msra.mxu0 0
        %2589 = vmatprep.subr.bf16.mxu0 0
        %2590 = vmatpush1.bf16.msra.mxu0 0
        %2591 = vmatprep.subr.bf16.mxu0 0
        %2592 = vmatpush1.bf16.msra.mxu0 0
        %2593 = vmatprep.mubr.bf16.mxu0 0
        %2594 = vmatmul.mubr.bf16.gmra.mrb[0].mxu0 %v1073
        %v2595 = vpop.f32.mrb[0].mxu0
        %v2596 = vadd.f32 0.0, %v2595
        %v2597 = vpop.f32.mrb[0].mxu0
        %v2598 = vpop.f32.mrb[0].mxu0
        %v2599 = vadd.f32 0.0, %v2598
        %v2600 = vpop.f32.mrb[0].mxu0
        %2601 = vmatprep.mubr.bf16.mxu0 0
        %2602 = vmatmul.mubr.bf16.gmra.mrb[0].mxu0 %v1076
        %v2603 = vpop.f32.mrb[0].mxu0
        %v2604 = vadd.f32 0.0, %v2603
        %v2605 = vpop.f32.mrb[0].mxu0
        %v2606 = vpop.f32.mrb[0].mxu0
        %v2607 = vadd.f32 0.0, %v2606
        %v2608 = vpop.f32.mrb[0].mxu0
        %2609 = vmatprep.mubr.bf16.mxu0 0
        %2610 = vmatmul.mubr.bf16.gmra.mrb[0].mxu0 %v1079
        %v2611 = vpop.f32.mrb[0].mxu0
        %v2612 = vadd.f32 0.0, %v2611
        %v2613 = vpop.f32.mrb[0].mxu0
        %v2614 = vpop.f32.mrb[0].mxu0
        %v2615 = vadd.f32 0.0, %v2614
        %v2616 = vpop.f32.mrb[0].mxu0
        %2617 = vmatprep.mubr.bf16.mxu0 0
        %2618 = vmatmul.mubr.bf16.gmra.mrb[0].mxu0 %v1082
        %v2619 = vpop.f32.mrb[0].mxu0
        %v2620 = vadd.f32 0.0, %v2619
        %v2621 = vpop.f32.mrb[0].mxu0
        %v2622 = vpop.f32.mrb[0].mxu0
        %v2623 = vadd.f32 0.0, %v2622
        %v2624 = vpop.f32.mrb[0].mxu0
        %2625 = vmatprep.mubr.bf16.mxu0 0
        %2626 = vmatmul.mubr.bf16.gmra.mrb[0].mxu0 %v1085
        %v2627 = vpop.f32.mrb[0].mxu0
        %v2628 = vadd.f32 0.0, %v2627
        %v2629 = vpop.f32.mrb[0].mxu0
        %v2630 = vpop.f32.mrb[0].mxu0
        %v2631 = vadd.f32 0.0, %v2630
        %v2632 = vpop.f32.mrb[0].mxu0
        %2633 = vmatprep.mubr.bf16.mxu0 0
        %2634 = vmatmul.mubr.bf16.gmra.mrb[0].mxu0 %v1088
        %v2635 = vpop.f32.mrb[0].mxu0
        %v2636 = vadd.f32 0.0, %v2635
        %v2637 = vpop.f32.mrb[0].mxu0
        %v2638 = vpop.f32.mrb[0].mxu0
        %v2639 = vadd.f32 0.0, %v2638
        %v2640 = vpop.f32.mrb[0].mxu0
        %2641 = vmatprep.mubr.bf16.mxu0 0
        %2642 = vmatmul.mubr.bf16.gmra.mrb[0].mxu0 %v1091
        %v2643 = vpop.f32.mrb[0].mxu0
        %v2644 = vadd.f32 0.0, %v2643
        %v2645 = vpop.f32.mrb[0].mxu0
        %v2646 = vpop.f32.mrb[0].mxu0
        %v2647 = vadd.f32 0.0, %v2646
        %v2648 = vpop.f32.mrb[0].mxu0
        %2649 = vmatprep.mubr.bf16.mxu0 0
        %2650 = vmatmul.mubr.bf16.gmra.mrb[0].mxu0 %v1094
        %v2651 = vpop.f32.mrb[0].mxu0
        %v2652 = vadd.f32 0.0, %v2651
        %v2653 = vpop.f32.mrb[0].mxu0
        %v2654 = vpop.f32.mrb[0].mxu0
        %v2655 = vadd.f32 0.0, %v2654
        %v2656 = vpop.f32.mrb[0].mxu0
        %2657 = vmatprep.mubr.bf16.mxu0 0
        %2658 = vmatmul.mubr.bf16.gmra.mrb[0].mxu0 %v1097
        %v2659 = vpop.f32.mrb[0].mxu0
        %v2660 = vadd.f32 0.0, %v2659
        %v2661 = vpop.f32.mrb[0].mxu0
        %v2662 = vpop.f32.mrb[0].mxu0
        %v2663 = vadd.f32 0.0, %v2662
        %v2664 = vpop.f32.mrb[0].mxu0
        %2665 = vmatprep.mubr.bf16.mxu0 0
        %2666 = vmatmul.mubr.bf16.gmra.mrb[0].mxu0 %v2553
        %v2667 = vpop.f32.mrb[0].mxu0
        %v2668 = vadd.f32 0.0, %v2667
        %v2669 = vpop.f32.mrb[0].mxu0
        %v2670 = vpop.f32.mrb[0].mxu0
        %v2671 = vadd.f32 0.0, %v2670
        %v2672 = vpop.f32.mrb[0].mxu0
        %2673 = vmatprep.mubr.bf16.mxu0 0
        %2674 = vmatmul.mubr.bf16.gmra.mrb[0].mxu0 %v2556
        %v2675 = vpop.f32.mrb[0].mxu0
        %v2676 = vadd.f32 0.0, %v2675
        %v2677 = vpop.f32.mrb[0].mxu0
        %v2678 = vpop.f32.mrb[0].mxu0
        %v2679 = vadd.f32 0.0, %v2678
        %v2680 = vpop.f32.mrb[0].mxu0
        %2681 = vmatprep.mubr.bf16.mxu0 0
        %2682 = vmatmul.mubr.bf16.gmra.mrb[0].mxu0 %v2559
        %v2683 = vpop.f32.mrb[0].mxu0
        %v2684 = vadd.f32 0.0, %v2683
        %v2685 = vpop.f32.mrb[0].mxu0
        %v2686 = vpop.f32.mrb[0].mxu0
        %v2687 = vadd.f32 0.0, %v2686
        %v2688 = vpop.f32.mrb[0].mxu0
        %2689 = vdwg.mxu0
        %v2690 = vld [vmem:[#allocation2] sm:$0xff]
        %v2691 = vld [vmem:[#allocation2 + $0x8] sm:$0xff]
        %v2692 = vld [vmem:[#allocation2 + $0x10] sm:$0xff]
        %v2693 = vld [vmem:[#allocation2 + $0x18] sm:$0xff]
        %v2694 = vld [vmem:[#allocation2 + $0x20] sm:$0xff]
        %v2695 = vld [vmem:[#allocation2 + $0x28] sm:$0xff]
        %v2696 = vld [vmem:[#allocation2 + $0x30] sm:$0xff]
        %v2697 = vld [vmem:[#allocation2 + $0x38] sm:$0xff]
        %v2698 = vld [vmem:[#allocation2 + $0x40] sm:$0xff]
        %v2699 = vld [vmem:[#allocation2 + $0x48] sm:$0xff]
        %v2700 = vld [vmem:[#allocation2 + $0x50] sm:$0xff]
        %v2701 = vld [vmem:[#allocation2 + $0x58] sm:$0xff]
        %v2702 = vld [vmem:[#allocation2 + $0x60] sm:$0xff]
        %v2703 = vld [vmem:[#allocation2 + $0x68] sm:$0xff]
        %v2704 = vld [vmem:[#allocation2 + $0x70] sm:$0xff]
        %v2705 = vld [vmem:[#allocation2 + $0x78] sm:$0xff]
        %v2706 = vld [vmem:[#allocation2 + $0x80] sm:$0xff]
        %v2707 = vld [vmem:[#allocation2 + $0x88] sm:$0xff]
        %v2708 = vld [vmem:[#allocation2 + $0x90] sm:$0xff]
        %v2709 = vld [vmem:[#allocation2 + $0x98] sm:$0xff]
        %v2710 = vld [vmem:[#allocation2 + $0xa0] sm:$0xff]
        %v2711 = vld [vmem:[#allocation2 + $0xa8] sm:$0xff]
        %v2712 = vld [vmem:[#allocation2 + $0xb0] sm:$0xff]
        %v2713 = vld [vmem:[#allocation2 + $0xb8] sm:$0xff]
        %v2714 = vadd.f32 %v2690, %v2596
        %v2715 = vadd.f32 %v2691, %v2599
        %v2716 = vadd.f32 %v2692, %v2604
        %v2717 = vadd.f32 %v2693, %v2607
        %v2718 = vadd.f32 %v2694, %v2612
        %v2719 = vadd.f32 %v2695, %v2615
        %v2720 = vadd.f32 %v2696, %v2620
        %v2721 = vadd.f32 %v2697, %v2623
        %v2722 = vadd.f32 %v2698, %v2628
        %v2723 = vadd.f32 %v2699, %v2631
        %v2724 = vadd.f32 %v2700, %v2636
        %v2725 = vadd.f32 %v2701, %v2639
        %v2726 = vadd.f32 %v2702, %v2644
        %v2727 = vadd.f32 %v2703, %v2647
        %v2728 = vadd.f32 %v2704, %v2652
        %v2729 = vadd.f32 %v2705, %v2655
        %v2730 = vadd.f32 %v2706, %v2660
        %v2731 = vadd.f32 %v2707, %v2663
        %v2732 = vadd.f32 %v2708, %v2668
        %v2733 = vadd.f32 %v2709, %v2671
        %v2734 = vadd.f32 %v2710, %v2676
        %v2735 = vadd.f32 %v2711, %v2679
        %v2736 = vadd.f32 %v2712, %v2684
        %v2737 = vadd.f32 %v2713, %v2687
        %2738 = vst.msk [vmem:[#allocation2] sm:$0xff] %vm492, %v2714
        %2739 = vst.msk [vmem:[#allocation2 + $0x8] sm:$0xff] %vm492, %v2715
        %2740 = vst.msk [vmem:[#allocation2 + $0x10] sm:$0xff] %vm492, %v2716
        %2741 = vst.msk [vmem:[#allocation2 + $0x18] sm:$0xff] %vm492, %v2717
        %2742 = vst.msk [vmem:[#allocation2 + $0x20] sm:$0xff] %vm492, %v2718
        %2743 = vst.msk [vmem:[#allocation2 + $0x28] sm:$0xff] %vm492, %v2719
        %2744 = vst.msk [vmem:[#allocation2 + $0x30] sm:$0xff] %vm492, %v2720
        %2745 = vst.msk [vmem:[#allocation2 + $0x38] sm:$0xff] %vm492, %v2721
        %2746 = vst.msk [vmem:[#allocation2 + $0x40] sm:$0xff] %vm492, %v2722
        %2747 = vst.msk [vmem:[#allocation2 + $0x48] sm:$0xff] %vm492, %v2723
        %2748 = vst.msk [vmem:[#allocation2 + $0x50] sm:$0xff] %vm492, %v2724
        %2749 = vst.msk [vmem:[#allocation2 + $0x58] sm:$0xff] %vm492, %v2725
        %2750 = vst.msk [vmem:[#allocation2 + $0x60] sm:$0xff] %vm492, %v2726
        %2751 = vst.msk [vmem:[#allocation2 + $0x68] sm:$0xff] %vm492, %v2727
        %2752 = vst.msk [vmem:[#allocation2 + $0x70] sm:$0xff] %vm492, %v2728
        %2753 = vst.msk [vmem:[#allocation2 + $0x78] sm:$0xff] %vm492, %v2729
        %2754 = vst.msk [vmem:[#allocation2 + $0x80] sm:$0xff] %vm492, %v2730
        %2755 = vst.msk [vmem:[#allocation2 + $0x88] sm:$0xff] %vm492, %v2731
        %2756 = vst.msk [vmem:[#allocation2 + $0x90] sm:$0xff] %vm492, %v2732
        %2757 = vst.msk [vmem:[#allocation2 + $0x98] sm:$0xff] %vm492, %v2733
        %2758 = vst.msk [vmem:[#allocation2 + $0xa0] sm:$0xff] %vm492, %v2734
        %2759 = vst.msk [vmem:[#allocation2 + $0xa8] sm:$0xff] %vm492, %v2735
        %2760 = vst.msk [vmem:[#allocation2 + $0xb0] sm:$0xff] %vm492, %v2736
        %2761 = vst.msk [vmem:[#allocation2 + $0xb8] sm:$0xff] %vm492, %v2737
        %v2762 = vld [vmem:[#allocation2] sm:$0xff]
        %v2763 = vld [vmem:[#allocation2 + $0x8] sm:$0xff]
        %v2764 = vld [vmem:[#allocation2 + $0x10] sm:$0xff]
        %v2765 = vld [vmem:[#allocation2 + $0x18] sm:$0xff]
        %v2766 = vld [vmem:[#allocation2 + $0x20] sm:$0xff]
        %v2767 = vld [vmem:[#allocation2 + $0x28] sm:$0xff]
        %v2768 = vld [vmem:[#allocation2 + $0x30] sm:$0xff]
        %v2769 = vld [vmem:[#allocation2 + $0x38] sm:$0xff]
        %v2770 = vld [vmem:[#allocation2 + $0x40] sm:$0xff]
        %v2771 = vld [vmem:[#allocation2 + $0x48] sm:$0xff]
        %v2772 = vld [vmem:[#allocation2 + $0x50] sm:$0xff]
        %v2773 = vld [vmem:[#allocation2 + $0x58] sm:$0xff]
        %v2774 = vld [vmem:[#allocation2 + $0x60] sm:$0xff]
        %v2775 = vld [vmem:[#allocation2 + $0x68] sm:$0xff]
        %v2776 = vld [vmem:[#allocation2 + $0x70] sm:$0xff]
        %v2777 = vld [vmem:[#allocation2 + $0x78] sm:$0xff]
        %v2778 = vld [vmem:[#allocation2 + $0x80] sm:$0xff]
        %v2779 = vld [vmem:[#allocation2 + $0x88] sm:$0xff]
        %v2780 = vld [vmem:[#allocation2 + $0x90] sm:$0xff]
        %v2781 = vld [vmem:[#allocation2 + $0x98] sm:$0xff]
        %v2782 = vld [vmem:[#allocation2 + $0xa0] sm:$0xff]
        %v2783 = vld [vmem:[#allocation2 + $0xa8] sm:$0xff]
        %v2784 = vld [vmem:[#allocation2 + $0xb0] sm:$0xff]
        %v2785 = vld [vmem:[#allocation2 + $0xb8] sm:$0xff]
        %v2786 = vld [vmem:[%s4] sm:$0x1]
        %v2788 = vlaneseq
        %v2789 = vshrl.u32 %v2788, 7
        %v2790 = vsub.s32 0, %v2789
        %v2791 = vrot.slane %v2786, %v2790
        %v2793 = vadd.f32 %v2762, %v2791
        %v2794 = vadd.f32 %v2763, %v2791
        %v2795 = vadd.f32 %v2764, %v2791
        %v2796 = vadd.f32 %v2765, %v2791
        %v2797 = vadd.f32 %v2766, %v2791
        %v2798 = vadd.f32 %v2767, %v2791
        %v2799 = vadd.f32 %v2768, %v2791
        %v2800 = vadd.f32 %v2769, %v2791
        %v2801 = vadd.f32 %v2770, %v2791
        %v2802 = vadd.f32 %v2771, %v2791
        %v2803 = vadd.f32 %v2772, %v2791
        %v2804 = vadd.f32 %v2773, %v2791
        %v2805 = vadd.f32 %v2774, %v2791
        %v2806 = vadd.f32 %v2775, %v2791
        %v2807 = vadd.f32 %v2776, %v2791
        %v2808 = vadd.f32 %v2777, %v2791
        %v2809 = vadd.f32 %v2778, %v2791
        %v2810 = vadd.f32 %v2779, %v2791
        %v2811 = vadd.f32 %v2780, %v2791
        %v2812 = vadd.f32 %v2781, %v2791
        %v2813 = vadd.f32 %v2782, %v2791
        %v2814 = vadd.f32 %v2783, %v2791
        %v2815 = vadd.f32 %v2784, %v2791
        %v2816 = vadd.f32 %v2785, %v2791
        %v2817 = vmax.f32 %v2793, 0.0
        %v2818 = vmax.f32 %v2794, 0.0
        %v2819 = vmax.f32 %v2795, 0.0
        %v2820 = vmax.f32 %v2796, 0.0
        %v2821 = vmax.f32 %v2797, 0.0
        %v2822 = vmax.f32 %v2798, 0.0
        %v2823 = vmax.f32 %v2799, 0.0
        %v2824 = vmax.f32 %v2800, 0.0
        %v2825 = vmax.f32 %v2801, 0.0
        %v2826 = vmax.f32 %v2802, 0.0
        %v2827 = vmax.f32 %v2803, 0.0
        %v2828 = vmax.f32 %v2804, 0.0
        %v2829 = vmax.f32 %v2805, 0.0
        %v2830 = vmax.f32 %v2806, 0.0
        %v2831 = vmax.f32 %v2807, 0.0
        %v2832 = vmax.f32 %v2808, 0.0
        %v2833 = vmax.f32 %v2809, 0.0
        %v2834 = vmax.f32 %v2810, 0.0
        %v2835 = vmax.f32 %v2811, 0.0
        %v2836 = vmax.f32 %v2812, 0.0
        %v2837 = vmax.f32 %v2813, 0.0
        %v2838 = vmax.f32 %v2814, 0.0
        %v2839 = vmax.f32 %v2815, 0.0
        %v2840 = vmax.f32 %v2816, 0.0
        %v2841 = vpack.c.bf16 %v2818, %v2817
        %v2842 = vpack.c.bf16 %v2820, %v2819
        %v2843 = vpack.c.bf16 %v2822, %v2821
        %v2844 = vpack.c.bf16 %v2824, %v2823
        %v2845 = vpack.c.bf16 %v2826, %v2825
        %v2846 = vpack.c.bf16 %v2828, %v2827
        %v2847 = vpack.c.bf16 %v2830, %v2829
        %v2848 = vpack.c.bf16 %v2832, %v2831
        %v2849 = vpack.c.bf16 %v2834, %v2833
        %v2850 = vpack.c.bf16 %v2836, %v2835
        %v2851 = vpack.c.bf16 %v2838, %v2837
        %v2852 = vpack.c.bf16 %v2840, %v2839
        %v2853 = vld [vmem:[%s5] sm:$0xf]
        %v2854 = vld [vmem:[%s5 + $0x4] sm:$0xf]
        %v2855 = vld [vmem:[%s6] sm:$0x1]
        %v2857 = vlaneseq
        %v2858 = vshrl.u32 %v2857, 7
        %v2859 = vsub.s32 0, %v2858
        %v2860 = vrot.slane %v2855, %v2859
        %v2864 = vunpack.c.l.b16 %v2853
        %v2865 = vunpack.c.l.b16 %v2854
        %v2866 = vpack.c.b16 %v2865, %v2864
        %v2869 = vsel %vm492, %v2841, 0
        %v2872 = vsel %vm492, %v2842, 0
        %v2875 = vsel %vm492, %v2843, 0
        %v2878 = vsel %vm492, %v2844, 0
        %v2881 = vsel %vm492, %v2845, 0
        %v2884 = vsel %vm492, %v2846, 0
        %v2887 = vsel %vm492, %v2847, 0
        %v2890 = vsel %vm492, %v2848, 0
        %v2893 = vsel %vm492, %v2849, 0
        %v2896 = vsel %vm492, %v2850, 0
        %v2899 = vsel %vm492, %v2851, 0
        %v2902 = vsel %vm492, %v2852, 0
        %2904 = vmatprep.subr.bf16.mxu0 0
        %2905 = vmatpush1.bf16.msra.mxu0 %v2866
        %2906 = vmatprep.subr.bf16.mxu0 0
        %2907 = vmatpush1.bf16.msra.mxu0 0
        %2908 = vmatprep.subr.bf16.mxu0 0
        %2909 = vmatpush1.bf16.msra.mxu0 0
        %2910 = vmatprep.subr.bf16.mxu0 0
        %2911 = vmatpush1.bf16.msra.mxu0 0
        %2912 = vmatprep.subr.bf16.mxu0 0
        %2913 = vmatpush1.bf16.msra.mxu0 0
        %2914 = vmatprep.subr.bf16.mxu0 0
        %2915 = vmatpush1.bf16.msra.mxu0 0
        %2916 = vmatprep.subr.bf16.mxu0 0
        %2917 = vmatpush1.bf16.msra.mxu0 0
        %2918 = vmatprep.subr.bf16.mxu0 0
        %2919 = vmatpush1.bf16.msra.mxu0 0
        %2920 = vmatprep.subr.bf16.mxu0 0
        %2921 = vmatpush1.bf16.msra.mxu0 0
        %2922 = vmatprep.subr.bf16.mxu0 0
        %2923 = vmatpush1.bf16.msra.mxu0 0
        %2924 = vmatprep.subr.bf16.mxu0 0
        %2925 = vmatpush1.bf16.msra.mxu0 0
        %2926 = vmatprep.subr.bf16.mxu0 0
        %2927 = vmatpush1.bf16.msra.mxu0 0
        %2928 = vmatprep.subr.bf16.mxu0 0
        %2929 = vmatpush1.bf16.msra.mxu0 0
        %2930 = vmatprep.subr.bf16.mxu0 0
        %2931 = vmatpush1.bf16.msra.mxu0 0
        %2932 = vmatprep.subr.bf16.mxu0 0
        %2933 = vmatpush1.bf16.msra.mxu0 0
        %2934 = vmatprep.subr.bf16.mxu0 0
        %2935 = vmatpush1.bf16.msra.mxu0 0
        %2936 = vmatprep.mubr.bf16.mxu0 0
        %2937 = vmatmul.mubr.bf16.gmra.mrb[0].mxu0 %v2869
        %v2938 = vpop.f32.mrb[0].mxu0
        %v2939 = vadd.f32 %v2860, %v2938
        %v2940 = vpop.f32.mrb[0].mxu0
        %v2941 = vpop.f32.mrb[0].mxu0
        %v2942 = vadd.f32 %v2860, %v2941
        %v2943 = vpop.f32.mrb[0].mxu0
        %2944 = vmatprep.mubr.bf16.mxu0 0
        %2945 = vmatmul.mubr.bf16.gmra.mrb[0].mxu0 %v2872
        %v2946 = vpop.f32.mrb[0].mxu0
        %v2947 = vadd.f32 %v2860, %v2946
        %v2948 = vpop.f32.mrb[0].mxu0
        %v2949 = vpop.f32.mrb[0].mxu0
        %v2950 = vadd.f32 %v2860, %v2949
        %v2951 = vpop.f32.mrb[0].mxu0
        %2952 = vmatprep.mubr.bf16.mxu0 0
        %2953 = vmatmul.mubr.bf16.gmra.mrb[0].mxu0 %v2875
        %v2954 = vpop.f32.mrb[0].mxu0
        %v2955 = vadd.f32 %v2860, %v2954
        %v2956 = vpop.f32.mrb[0].mxu0
        %v2957 = vpop.f32.mrb[0].mxu0
        %v2958 = vadd.f32 %v2860, %v2957
        %v2959 = vpop.f32.mrb[0].mxu0
        %2960 = vmatprep.mubr.bf16.mxu0 0
        %2961 = vmatmul.mubr.bf16.gmra.mrb[0].mxu0 %v2878
        %v2962 = vpop.f32.mrb[0].mxu0
        %v2963 = vadd.f32 %v2860, %v2962
        %v2964 = vpop.f32.mrb[0].mxu0
        %v2965 = vpop.f32.mrb[0].mxu0
        %v2966 = vadd.f32 %v2860, %v2965
        %v2967 = vpop.f32.mrb[0].mxu0
        %2968 = vmatprep.mubr.bf16.mxu0 0
        %2969 = vmatmul.mubr.bf16.gmra.mrb[0].mxu0 %v2881
        %v2970 = vpop.f32.mrb[0].mxu0
        %v2971 = vadd.f32 %v2860, %v2970
        %v2972 = vpop.f32.mrb[0].mxu0
        %v2973 = vpop.f32.mrb[0].mxu0
        %v2974 = vadd.f32 %v2860, %v2973
        %v2975 = vpop.f32.mrb[0].mxu0
        %2976 = vmatprep.mubr.bf16.mxu0 0
        %2977 = vmatmul.mubr.bf16.gmra.mrb[0].mxu0 %v2884
        %v2978 = vpop.f32.mrb[0].mxu0
        %v2979 = vadd.f32 %v2860, %v2978
        %v2980 = vpop.f32.mrb[0].mxu0
        %v2981 = vpop.f32.mrb[0].mxu0
        %v2982 = vadd.f32 %v2860, %v2981
        %v2983 = vpop.f32.mrb[0].mxu0
        %2984 = vmatprep.mubr.bf16.mxu0 0
        %2985 = vmatmul.mubr.bf16.gmra.mrb[0].mxu0 %v2887
        %v2986 = vpop.f32.mrb[0].mxu0
        %v2987 = vadd.f32 %v2860, %v2986
        %v2988 = vpop.f32.mrb[0].mxu0
        %v2989 = vpop.f32.mrb[0].mxu0
        %v2990 = vadd.f32 %v2860, %v2989
        %v2991 = vpop.f32.mrb[0].mxu0
        %2992 = vmatprep.mubr.bf16.mxu0 0
        %2993 = vmatmul.mubr.bf16.gmra.mrb[0].mxu0 %v2890
        %v2994 = vpop.f32.mrb[0].mxu0
        %v2995 = vadd.f32 %v2860, %v2994
        %v2996 = vpop.f32.mrb[0].mxu0
        %v2997 = vpop.f32.mrb[0].mxu0
        %v2998 = vadd.f32 %v2860, %v2997
        %v2999 = vpop.f32.mrb[0].mxu0
        %3000 = vmatprep.mubr.bf16.mxu0 0
        %3001 = vmatmul.mubr.bf16.gmra.mrb[0].mxu0 %v2893
        %v3002 = vpop.f32.mrb[0].mxu0
        %v3003 = vadd.f32 %v2860, %v3002
        %v3004 = vpop.f32.mrb[0].mxu0
        %v3005 = vpop.f32.mrb[0].mxu0
        %v3006 = vadd.f32 %v2860, %v3005
        %v3007 = vpop.f32.mrb[0].mxu0
        %3008 = vmatprep.mubr.bf16.mxu0 0
        %3009 = vmatmul.mubr.bf16.gmra.mrb[0].mxu0 %v2896
        %v3010 = vpop.f32.mrb[0].mxu0
        %v3011 = vadd.f32 %v2860, %v3010
        %v3012 = vpop.f32.mrb[0].mxu0
        %v3013 = vpop.f32.mrb[0].mxu0
        %v3014 = vadd.f32 %v2860, %v3013
        %v3015 = vpop.f32.mrb[0].mxu0
        %3016 = vmatprep.mubr.bf16.mxu0 0
        %3017 = vmatmul.mubr.bf16.gmra.mrb[0].mxu0 %v2899
        %v3018 = vpop.f32.mrb[0].mxu0
        %v3019 = vadd.f32 %v2860, %v3018
        %v3020 = vpop.f32.mrb[0].mxu0
        %v3021 = vpop.f32.mrb[0].mxu0
        %v3022 = vadd.f32 %v2860, %v3021
        %v3023 = vpop.f32.mrb[0].mxu0
        %3024 = vmatprep.mubr.bf16.mxu0 0
        %3025 = vmatmul.mubr.bf16.gmra.mrb[0].mxu0 %v2902
        %v3026 = vpop.f32.mrb[0].mxu0
        %v3027 = vadd.f32 %v2860, %v3026
        %v3028 = vpop.f32.mrb[0].mxu0
        %v3029 = vpop.f32.mrb[0].mxu0
        %v3030 = vadd.f32 %v2860, %v3029
        %v3031 = vpop.f32.mrb[0].mxu0
        %3032 = vdwg.mxu0
        %v3033 = vmin.f32 %v2939, 4.1351666
        %v3034 = vmin.f32 %v2942, 4.1351666
        %v3035 = vmin.f32 %v2947, 4.1351666
        %v3036 = vmin.f32 %v2950, 4.1351666
        %v3037 = vmin.f32 %v2955, 4.1351666
        %v3038 = vmin.f32 %v2958, 4.1351666
        %v3039 = vmin.f32 %v2963, 4.1351666
        %v3040 = vmin.f32 %v2966, 4.1351666
        %v3041 = vmin.f32 %v2971, 4.1351666
        %v3042 = vmin.f32 %v2974, 4.1351666
        %v3043 = vmin.f32 %v2979, 4.1351666
        %v3044 = vmin.f32 %v2982, 4.1351666
        %v3045 = vmin.f32 %v2987, 4.1351666
        %v3046 = vmin.f32 %v2990, 4.1351666
        %v3047 = vmin.f32 %v2995, 4.1351666
        %v3048 = vmin.f32 %v2998, 4.1351666
        %v3049 = vmin.f32 %v3003, 4.1351666
        %v3050 = vmin.f32 %v3006, 4.1351666
        %v3051 = vmin.f32 %v3011, 4.1351666
        %v3052 = vmin.f32 %v3014, 4.1351666
        %v3053 = vmin.f32 %v3019, 4.1351666
        %v3054 = vmin.f32 %v3022, 4.1351666
        %v3055 = vmin.f32 %v3027, 4.1351666
        %v3056 = vmin.f32 %v3030, 4.1351666
        %v3057 = vld [vmem:[%s408] sm:$0xff]
        %v3058 = vld [vmem:[%s408 + $0x8] sm:$0xff]
        %v3059 = vld [vmem:[%s408 + $0x10] sm:$0xff]
        %v3060 = vld [vmem:[%s408 + $0x18] sm:$0xff]
        %v3061 = vld [vmem:[%s408 + $0x20] sm:$0xff]
        %v3062 = vld [vmem:[%s408 + $0x28] sm:$0xff]
        %v3063 = vld [vmem:[%s408 + $0x30] sm:$0xff]
        %v3064 = vld [vmem:[%s408 + $0x38] sm:$0xff]
        %v3065 = vld [vmem:[%s408 + $0x40] sm:$0xff]
        %v3066 = vld [vmem:[%s408 + $0x48] sm:$0xff]
        %v3067 = vld [vmem:[%s408 + $0x50] sm:$0xff]
        %v3068 = vld [vmem:[%s408 + $0x58] sm:$0xff]
        %v3069 = vld [vmem:[%s408 + $0x60] sm:$0xff]
        %v3070 = vld [vmem:[%s408 + $0x68] sm:$0xff]
        %v3071 = vld [vmem:[%s408 + $0x70] sm:$0xff]
        %v3072 = vld [vmem:[%s408 + $0x78] sm:$0xff]
        %v3073 = vld [vmem:[%s408 + $0x80] sm:$0xff]
        %v3074 = vld [vmem:[%s408 + $0x88] sm:$0xff]
        %v3075 = vld [vmem:[%s408 + $0x90] sm:$0xff]
        %v3076 = vld [vmem:[%s408 + $0x98] sm:$0xff]
        %v3077 = vld [vmem:[%s408 + $0xa0] sm:$0xff]
        %v3078 = vld [vmem:[%s408 + $0xa8] sm:$0xff]
        %v3079 = vld [vmem:[%s408 + $0xb0] sm:$0xff]
        %v3080 = vld [vmem:[%s408 + $0xb8] sm:$0xff]
        %3105 = vrot.lane.b32.xlu0 %v3057, 6
        %v3106 = vpop.permute.xlu0 %3105
        %3107 = vrot.lane.b32.xlu0 %v3058, 6
        %v3108 = vpop.permute.xlu0 %3107
        %3109 = vrot.lane.b32.xlu0 %v3059, 6
        %v3110 = vpop.permute.xlu0 %3109
        %3111 = vrot.lane.b32.xlu0 %v3060, 6
        %v3112 = vpop.permute.xlu0 %3111
        %3113 = vrot.lane.b32.xlu0 %v3061, 6
        %v3114 = vpop.permute.xlu0 %3113
        %3115 = vrot.lane.b32.xlu0 %v3062, 6
        %v3116 = vpop.permute.xlu0 %3115
        %3117 = vrot.lane.b32.xlu0 %v3063, 6
        %v3118 = vpop.permute.xlu0 %3117
        %3119 = vrot.lane.b32.xlu0 %v3064, 6
        %v3120 = vpop.permute.xlu0 %3119
        %3121 = vrot.lane.b32.xlu0 %v3065, 6
        %v3122 = vpop.permute.xlu0 %3121
        %3123 = vrot.lane.b32.xlu0 %v3066, 6
        %v3124 = vpop.permute.xlu0 %3123
        %3125 = vrot.lane.b32.xlu0 %v3067, 6
        %v3126 = vpop.permute.xlu0 %3125
        %3127 = vrot.lane.b32.xlu0 %v3068, 6
        %v3128 = vpop.permute.xlu0 %3127
        %3129 = vrot.lane.b32.xlu0 %v3069, 6
        %v3130 = vpop.permute.xlu0 %3129
        %3131 = vrot.lane.b32.xlu0 %v3070, 6
        %v3132 = vpop.permute.xlu0 %3131
        %3133 = vrot.lane.b32.xlu0 %v3071, 6
        %v3134 = vpop.permute.xlu0 %3133
        %3135 = vrot.lane.b32.xlu0 %v3072, 6
        %v3136 = vpop.permute.xlu0 %3135
        %3137 = vrot.lane.b32.xlu0 %v3073, 6
        %v3138 = vpop.permute.xlu0 %3137
        %3139 = vrot.lane.b32.xlu0 %v3074, 6
        %v3140 = vpop.permute.xlu0 %3139
        %3141 = vrot.lane.b32.xlu0 %v3075, 6
        %v3142 = vpop.permute.xlu0 %3141
        %3143 = vrot.lane.b32.xlu0 %v3076, 6
        %v3144 = vpop.permute.xlu0 %3143
        %3145 = vrot.lane.b32.xlu0 %v3077, 6
        %v3146 = vpop.permute.xlu0 %3145
        %3147 = vrot.lane.b32.xlu0 %v3078, 6
        %v3148 = vpop.permute.xlu0 %3147
        %3149 = vrot.lane.b32.xlu0 %v3079, 6
        %v3150 = vpop.permute.xlu0 %3149
        %3151 = vrot.lane.b32.xlu0 %v3080, 6
        %v3152 = vpop.permute.xlu0 %3151
        %v3177 = vsub.f32 %v3057, %v3106
        %v3178 = vsub.f32 %v3058, %v3108
        %v3179 = vsub.f32 %v3059, %v3110
        %v3180 = vsub.f32 %v3060, %v3112
        %v3181 = vsub.f32 %v3061, %v3114
        %v3182 = vsub.f32 %v3062, %v3116
        %v3183 = vsub.f32 %v3063, %v3118
        %v3184 = vsub.f32 %v3064, %v3120
        %v3185 = vsub.f32 %v3065, %v3122
        %v3186 = vsub.f32 %v3066, %v3124
        %v3187 = vsub.f32 %v3067, %v3126
        %v3188 = vsub.f32 %v3068, %v3128
        %v3189 = vsub.f32 %v3069, %v3130
        %v3190 = vsub.f32 %v3070, %v3132
        %v3191 = vsub.f32 %v3071, %v3134
        %v3192 = vsub.f32 %v3072, %v3136
        %v3193 = vsub.f32 %v3073, %v3138
        %v3194 = vsub.f32 %v3074, %v3140
        %v3195 = vsub.f32 %v3075, %v3142
        %v3196 = vsub.f32 %v3076, %v3144
        %v3197 = vsub.f32 %v3077, %v3146
        %v3198 = vsub.f32 %v3078, %v3148
        %v3199 = vsub.f32 %v3079, %v3150
        %v3200 = vsub.f32 %v3080, %v3152
        %v3201 = vadd.f32 %v3177, 1.0
        %v3202 = vadd.f32 %v3178, 1.0
        %v3203 = vadd.f32 %v3179, 1.0
        %v3204 = vadd.f32 %v3180, 1.0
        %v3205 = vadd.f32 %v3181, 1.0
        %v3206 = vadd.f32 %v3182, 1.0
        %v3207 = vadd.f32 %v3183, 1.0
        %v3208 = vadd.f32 %v3184, 1.0
        %v3209 = vadd.f32 %v3185, 1.0
        %v3210 = vadd.f32 %v3186, 1.0
        %v3211 = vadd.f32 %v3187, 1.0
        %v3212 = vadd.f32 %v3188, 1.0
        %v3213 = vadd.f32 %v3189, 1.0
        %v3214 = vadd.f32 %v3190, 1.0
        %v3215 = vadd.f32 %v3191, 1.0
        %v3216 = vadd.f32 %v3192, 1.0
        %v3217 = vadd.f32 %v3193, 1.0
        %v3218 = vadd.f32 %v3194, 1.0
        %v3219 = vadd.f32 %v3195, 1.0
        %v3220 = vadd.f32 %v3196, 1.0
        %v3221 = vadd.f32 %v3197, 1.0
        %v3222 = vadd.f32 %v3198, 1.0
        %v3223 = vadd.f32 %v3199, 1.0
        %v3224 = vadd.f32 %v3200, 1.0
        %v3225 = vmul.f32 %v3201, 0.5
        %v3226 = vmul.f32 %v3202, 0.5
        %v3227 = vmul.f32 %v3203, 0.5
        %v3228 = vmul.f32 %v3204, 0.5
        %v3229 = vmul.f32 %v3205, 0.5
        %v3230 = vmul.f32 %v3206, 0.5
        %v3231 = vmul.f32 %v3207, 0.5
        %v3232 = vmul.f32 %v3208, 0.5
        %v3233 = vmul.f32 %v3209, 0.5
        %v3234 = vmul.f32 %v3210, 0.5
        %v3235 = vmul.f32 %v3211, 0.5
        %v3236 = vmul.f32 %v3212, 0.5
        %v3237 = vmul.f32 %v3213, 0.5
        %v3238 = vmul.f32 %v3214, 0.5
        %v3239 = vmul.f32 %v3215, 0.5
        %v3240 = vmul.f32 %v3216, 0.5
        %v3241 = vmul.f32 %v3217, 0.5
        %v3242 = vmul.f32 %v3218, 0.5
        %v3243 = vmul.f32 %v3219, 0.5
        %v3244 = vmul.f32 %v3220, 0.5
        %v3245 = vmul.f32 %v3221, 0.5
        %v3246 = vmul.f32 %v3222, 0.5
        %v3247 = vmul.f32 %v3223, 0.5
        %v3248 = vmul.f32 %v3224, 0.5
        %3273 = vrot.lane.b32.xlu0 %v3225, 122
        %v3274 = vpop.permute.xlu0 %3273
        %3275 = vrot.lane.b32.xlu0 %v3226, 122
        %v3276 = vpop.permute.xlu0 %3275
        %3277 = vrot.lane.b32.xlu0 %v3227, 122
        %v3278 = vpop.permute.xlu0 %3277
        %3279 = vrot.lane.b32.xlu0 %v3228, 122
        %v3280 = vpop.permute.xlu0 %3279
        %3281 = vrot.lane.b32.xlu0 %v3229, 122
        %v3282 = vpop.permute.xlu0 %3281
        %3283 = vrot.lane.b32.xlu0 %v3230, 122
        %v3284 = vpop.permute.xlu0 %3283
        %3285 = vrot.lane.b32.xlu0 %v3231, 122
        %v3286 = vpop.permute.xlu0 %3285
        %3287 = vrot.lane.b32.xlu0 %v3232, 122
        %v3288 = vpop.permute.xlu0 %3287
        %3289 = vrot.lane.b32.xlu0 %v3233, 122
        %v3290 = vpop.permute.xlu0 %3289
        %3291 = vrot.lane.b32.xlu0 %v3234, 122
        %v3292 = vpop.permute.xlu0 %3291
        %3293 = vrot.lane.b32.xlu0 %v3235, 122
        %v3294 = vpop.permute.xlu0 %3293
        %3295 = vrot.lane.b32.xlu0 %v3236, 122
        %v3296 = vpop.permute.xlu0 %3295
        %3297 = vrot.lane.b32.xlu0 %v3237, 122
        %v3298 = vpop.permute.xlu0 %3297
        %3299 = vrot.lane.b32.xlu0 %v3238, 122
        %v3300 = vpop.permute.xlu0 %3299
        %3301 = vrot.lane.b32.xlu0 %v3239, 122
        %v3302 = vpop.permute.xlu0 %3301
        %3303 = vrot.lane.b32.xlu0 %v3240, 122
        %v3304 = vpop.permute.xlu0 %3303
        %3305 = vrot.lane.b32.xlu0 %v3241, 122
        %v3306 = vpop.permute.xlu0 %3305
        %3307 = vrot.lane.b32.xlu0 %v3242, 122
        %v3308 = vpop.permute.xlu0 %3307
        %3309 = vrot.lane.b32.xlu0 %v3243, 122
        %v3310 = vpop.permute.xlu0 %3309
        %3311 = vrot.lane.b32.xlu0 %v3244, 122
        %v3312 = vpop.permute.xlu0 %3311
        %3313 = vrot.lane.b32.xlu0 %v3245, 122
        %v3314 = vpop.permute.xlu0 %3313
        %3315 = vrot.lane.b32.xlu0 %v3246, 122
        %v3316 = vpop.permute.xlu0 %3315
        %3317 = vrot.lane.b32.xlu0 %v3247, 122
        %v3318 = vpop.permute.xlu0 %3317
        %3319 = vrot.lane.b32.xlu0 %v3248, 122
        %v3320 = vpop.permute.xlu0 %3319
        %v3345 = vadd.f32 %v3057, %v3274
        %v3346 = vadd.f32 %v3058, %v3276
        %v3347 = vadd.f32 %v3059, %v3278
        %v3348 = vadd.f32 %v3060, %v3280
        %v3349 = vadd.f32 %v3061, %v3282
        %v3350 = vadd.f32 %v3062, %v3284
        %v3351 = vadd.f32 %v3063, %v3286
        %v3352 = vadd.f32 %v3064, %v3288
        %v3353 = vadd.f32 %v3065, %v3290
        %v3354 = vadd.f32 %v3066, %v3292
        %v3355 = vadd.f32 %v3067, %v3294
        %v3356 = vadd.f32 %v3068, %v3296
        %v3357 = vadd.f32 %v3069, %v3298
        %v3358 = vadd.f32 %v3070, %v3300
        %v3359 = vadd.f32 %v3071, %v3302
        %v3360 = vadd.f32 %v3072, %v3304
        %v3361 = vadd.f32 %v3073, %v3306
        %v3362 = vadd.f32 %v3074, %v3308
        %v3363 = vadd.f32 %v3075, %v3310
        %v3364 = vadd.f32 %v3076, %v3312
        %v3365 = vadd.f32 %v3077, %v3314
        %v3366 = vadd.f32 %v3078, %v3316
        %v3367 = vadd.f32 %v3079, %v3318
        %v3368 = vadd.f32 %v3080, %v3320
        %3393 = vrot.lane.b32.xlu0 %v3201, 125
        %v3394 = vpop.permute.xlu0 %3393
        %3395 = vrot.lane.b32.xlu0 %v3202, 125
        %v3396 = vpop.permute.xlu0 %3395
        %3397 = vrot.lane.b32.xlu0 %v3203, 125
        %v3398 = vpop.permute.xlu0 %3397
        %3399 = vrot.lane.b32.xlu0 %v3204, 125
        %v3400 = vpop.permute.xlu0 %3399
        %3401 = vrot.lane.b32.xlu0 %v3205, 125
        %v3402 = vpop.permute.xlu0 %3401
        %3403 = vrot.lane.b32.xlu0 %v3206, 125
        %v3404 = vpop.permute.xlu0 %3403
        %3405 = vrot.lane.b32.xlu0 %v3207, 125
        %v3406 = vpop.permute.xlu0 %3405
        %3407 = vrot.lane.b32.xlu0 %v3208, 125
        %v3408 = vpop.permute.xlu0 %3407
        %3409 = vrot.lane.b32.xlu0 %v3209, 125
        %v3410 = vpop.permute.xlu0 %3409
        %3411 = vrot.lane.b32.xlu0 %v3210, 125
        %v3412 = vpop.permute.xlu0 %3411
        %3413 = vrot.lane.b32.xlu0 %v3211, 125
        %v3414 = vpop.permute.xlu0 %3413
        %3415 = vrot.lane.b32.xlu0 %v3212, 125
        %v3416 = vpop.permute.xlu0 %3415
        %3417 = vrot.lane.b32.xlu0 %v3213, 125
        %v3418 = vpop.permute.xlu0 %3417
        %3419 = vrot.lane.b32.xlu0 %v3214, 125
        %v3420 = vpop.permute.xlu0 %3419
        %3421 = vrot.lane.b32.xlu0 %v3215, 125
        %v3422 = vpop.permute.xlu0 %3421
        %3423 = vrot.lane.b32.xlu0 %v3216, 125
        %v3424 = vpop.permute.xlu0 %3423
        %3425 = vrot.lane.b32.xlu0 %v3217, 125
        %v3426 = vpop.permute.xlu0 %3425
        %3427 = vrot.lane.b32.xlu0 %v3218, 125
        %v3428 = vpop.permute.xlu0 %3427
        %3429 = vrot.lane.b32.xlu0 %v3219, 125
        %v3430 = vpop.permute.xlu0 %3429
        %3431 = vrot.lane.b32.xlu0 %v3220, 125
        %v3432 = vpop.permute.xlu0 %3431
        %3433 = vrot.lane.b32.xlu0 %v3221, 125
        %v3434 = vpop.permute.xlu0 %3433
        %3435 = vrot.lane.b32.xlu0 %v3222, 125
        %v3436 = vpop.permute.xlu0 %3435
        %3437 = vrot.lane.b32.xlu0 %v3223, 125
        %v3438 = vpop.permute.xlu0 %3437
        %3439 = vrot.lane.b32.xlu0 %v3224, 125
        %v3440 = vpop.permute.xlu0 %3439
        %v3465 = vmul.f32 %v2939, %v3394
        %v3466 = vmul.f32 %v2942, %v3396
        %v3467 = vmul.f32 %v2947, %v3398
        %v3468 = vmul.f32 %v2950, %v3400
        %v3469 = vmul.f32 %v2955, %v3402
        %v3470 = vmul.f32 %v2958, %v3404
        %v3471 = vmul.f32 %v2963, %v3406
        %v3472 = vmul.f32 %v2966, %v3408
        %v3473 = vmul.f32 %v2971, %v3410
        %v3474 = vmul.f32 %v2974, %v3412
        %v3475 = vmul.f32 %v2979, %v3414
        %v3476 = vmul.f32 %v2982, %v3416
        %v3477 = vmul.f32 %v2987, %v3418
        %v3478 = vmul.f32 %v2990, %v3420
        %v3479 = vmul.f32 %v2995, %v3422
        %v3480 = vmul.f32 %v2998, %v3424
        %v3481 = vmul.f32 %v3003, %v3426
        %v3482 = vmul.f32 %v3006, %v3428
        %v3483 = vmul.f32 %v3011, %v3430
        %v3484 = vmul.f32 %v3014, %v3432
        %v3485 = vmul.f32 %v3019, %v3434
        %v3486 = vmul.f32 %v3022, %v3436
        %v3487 = vmul.f32 %v3027, %v3438
        %v3488 = vmul.f32 %v3030, %v3440
        %3513 = vrot.lane.b32.xlu0 %v3345, 3
        %v3514 = vpop.permute.xlu0 %3513
        %3515 = vrot.lane.b32.xlu0 %v3346, 3
        %v3516 = vpop.permute.xlu0 %3515
        %3517 = vrot.lane.b32.xlu0 %v3347, 3
        %v3518 = vpop.permute.xlu0 %3517
        %3519 = vrot.lane.b32.xlu0 %v3348, 3
        %v3520 = vpop.permute.xlu0 %3519
        %3521 = vrot.lane.b32.xlu0 %v3349, 3
        %v3522 = vpop.permute.xlu0 %3521
        %3523 = vrot.lane.b32.xlu0 %v3350, 3
        %v3524 = vpop.permute.xlu0 %3523
        %3525 = vrot.lane.b32.xlu0 %v3351, 3
        %v3526 = vpop.permute.xlu0 %3525
        %3527 = vrot.lane.b32.xlu0 %v3352, 3
        %v3528 = vpop.permute.xlu0 %3527
        %3529 = vrot.lane.b32.xlu0 %v3353, 3
        %v3530 = vpop.permute.xlu0 %3529
        %3531 = vrot.lane.b32.xlu0 %v3354, 3
        %v3532 = vpop.permute.xlu0 %3531
        %3533 = vrot.lane.b32.xlu0 %v3355, 3
        %v3534 = vpop.permute.xlu0 %3533
        %3535 = vrot.lane.b32.xlu0 %v3356, 3
        %v3536 = vpop.permute.xlu0 %3535
        %3537 = vrot.lane.b32.xlu0 %v3357, 3
        %v3538 = vpop.permute.xlu0 %3537
        %3539 = vrot.lane.b32.xlu0 %v3358, 3
        %v3540 = vpop.permute.xlu0 %3539
        %3541 = vrot.lane.b32.xlu0 %v3359, 3
        %v3542 = vpop.permute.xlu0 %3541
        %3543 = vrot.lane.b32.xlu0 %v3360, 3
        %v3544 = vpop.permute.xlu0 %3543
        %3545 = vrot.lane.b32.xlu0 %v3361, 3
        %v3546 = vpop.permute.xlu0 %3545
        %3547 = vrot.lane.b32.xlu0 %v3362, 3
        %v3548 = vpop.permute.xlu0 %3547
        %3549 = vrot.lane.b32.xlu0 %v3363, 3
        %v3550 = vpop.permute.xlu0 %3549
        %3551 = vrot.lane.b32.xlu0 %v3364, 3
        %v3552 = vpop.permute.xlu0 %3551
        %3553 = vrot.lane.b32.xlu0 %v3365, 3
        %v3554 = vpop.permute.xlu0 %3553
        %3555 = vrot.lane.b32.xlu0 %v3366, 3
        %v3556 = vpop.permute.xlu0 %3555
        %3557 = vrot.lane.b32.xlu0 %v3367, 3
        %v3558 = vpop.permute.xlu0 %3557
        %3559 = vrot.lane.b32.xlu0 %v3368, 3
        %v3560 = vpop.permute.xlu0 %3559
        %v3585 = vadd.f32 %v3465, %v3514
        %v3586 = vadd.f32 %v3466, %v3516
        %v3587 = vadd.f32 %v3467, %v3518
        %v3588 = vadd.f32 %v3468, %v3520
        %v3589 = vadd.f32 %v3469, %v3522
        %v3590 = vadd.f32 %v3470, %v3524
        %v3591 = vadd.f32 %v3471, %v3526
        %v3592 = vadd.f32 %v3472, %v3528
        %v3593 = vadd.f32 %v3473, %v3530
        %v3594 = vadd.f32 %v3474, %v3532
        %v3595 = vadd.f32 %v3475, %v3534
        %v3596 = vadd.f32 %v3476, %v3536
        %v3597 = vadd.f32 %v3477, %v3538
        %v3598 = vadd.f32 %v3478, %v3540
        %v3599 = vadd.f32 %v3479, %v3542
        %v3600 = vadd.f32 %v3480, %v3544
        %v3601 = vadd.f32 %v3481, %v3546
        %v3602 = vadd.f32 %v3482, %v3548
        %v3603 = vadd.f32 %v3483, %v3550
        %v3604 = vadd.f32 %v3484, %v3552
        %v3605 = vadd.f32 %v3485, %v3554
        %v3606 = vadd.f32 %v3486, %v3556
        %v3607 = vadd.f32 %v3487, %v3558
        %v3608 = vadd.f32 %v3488, %v3560
        %v3609 = vmul.f32 %v3033, 1.442695
        %v3610 = vpow.pop %v3609
        %v3611 = vmul.f32 %v3034, 1.442695
        %v3612 = vpow.pop %v3611
        %v3613 = vmul.f32 %v3035, 1.442695
        %v3614 = vpow.pop %v3613
        %v3615 = vmul.f32 %v3036, 1.442695
        %v3616 = vpow.pop %v3615
        %v3617 = vmul.f32 %v3037, 1.442695
        %v3618 = vpow.pop %v3617
        %v3619 = vmul.f32 %v3038, 1.442695
        %v3620 = vpow.pop %v3619
        %v3621 = vmul.f32 %v3039, 1.442695
        %v3622 = vpow.pop %v3621
        %v3623 = vmul.f32 %v3040, 1.442695
        %v3624 = vpow.pop %v3623
        %v3625 = vmul.f32 %v3041, 1.442695
        %v3626 = vpow.pop %v3625
        %v3627 = vmul.f32 %v3042, 1.442695
        %v3628 = vpow.pop %v3627
        %v3629 = vmul.f32 %v3043, 1.442695
        %v3630 = vpow.pop %v3629
        %v3631 = vmul.f32 %v3044, 1.442695
        %v3632 = vpow.pop %v3631
        %v3633 = vmul.f32 %v3045, 1.442695
        %v3634 = vpow.pop %v3633
        %v3635 = vmul.f32 %v3046, 1.442695
        %v3636 = vpow.pop %v3635
        %v3637 = vmul.f32 %v3047, 1.442695
        %v3638 = vpow.pop %v3637
        %v3639 = vmul.f32 %v3048, 1.442695
        %v3640 = vpow.pop %v3639
        %v3641 = vmul.f32 %v3049, 1.442695
        %v3642 = vpow.pop %v3641
        %v3643 = vmul.f32 %v3050, 1.442695
        %v3644 = vpow.pop %v3643
        %v3645 = vmul.f32 %v3051, 1.442695
        %v3646 = vpow.pop %v3645
        %v3647 = vmul.f32 %v3052, 1.442695
        %v3648 = vpow.pop %v3647
        %v3649 = vmul.f32 %v3053, 1.442695
        %v3650 = vpow.pop %v3649
        %v3651 = vmul.f32 %v3054, 1.442695
        %v3652 = vpow.pop %v3651
        %v3653 = vmul.f32 %v3055, 1.442695
        %v3654 = vpow.pop %v3653
        %v3655 = vmul.f32 %v3056, 1.442695
        %v3656 = vpow.pop %v3655
        %3657 = vrot.lane.b32.xlu0 %v3201, 3
        %v3658 = vpop.permute.xlu0 %3657
        %3659 = vrot.lane.b32.xlu0 %v3202, 3
        %v3660 = vpop.permute.xlu0 %3659
        %3661 = vrot.lane.b32.xlu0 %v3203, 3
        %v3662 = vpop.permute.xlu0 %3661
        %3663 = vrot.lane.b32.xlu0 %v3204, 3
        %v3664 = vpop.permute.xlu0 %3663
        %3665 = vrot.lane.b32.xlu0 %v3205, 3
        %v3666 = vpop.permute.xlu0 %3665
        %3667 = vrot.lane.b32.xlu0 %v3206, 3
        %v3668 = vpop.permute.xlu0 %3667
        %3669 = vrot.lane.b32.xlu0 %v3207, 3
        %v3670 = vpop.permute.xlu0 %3669
        %3671 = vrot.lane.b32.xlu0 %v3208, 3
        %v3672 = vpop.permute.xlu0 %3671
        %3673 = vrot.lane.b32.xlu0 %v3209, 3
        %v3674 = vpop.permute.xlu0 %3673
        %3675 = vrot.lane.b32.xlu0 %v3210, 3
        %v3676 = vpop.permute.xlu0 %3675
        %3677 = vrot.lane.b32.xlu0 %v3211, 3
        %v3678 = vpop.permute.xlu0 %3677
        %3679 = vrot.lane.b32.xlu0 %v3212, 3
        %v3680 = vpop.permute.xlu0 %3679
        %3681 = vrot.lane.b32.xlu0 %v3213, 3
        %v3682 = vpop.permute.xlu0 %3681
        %3683 = vrot.lane.b32.xlu0 %v3214, 3
        %v3684 = vpop.permute.xlu0 %3683
        %3685 = vrot.lane.b32.xlu0 %v3215, 3
        %v3686 = vpop.permute.xlu0 %3685
        %3687 = vrot.lane.b32.xlu0 %v3216, 3
        %v3688 = vpop.permute.xlu0 %3687
        %3689 = vrot.lane.b32.xlu0 %v3217, 3
        %v3690 = vpop.permute.xlu0 %3689
        %3691 = vrot.lane.b32.xlu0 %v3218, 3
        %v3692 = vpop.permute.xlu0 %3691
        %3693 = vrot.lane.b32.xlu0 %v3219, 3
        %v3694 = vpop.permute.xlu0 %3693
        %3695 = vrot.lane.b32.xlu0 %v3220, 3
        %v3696 = vpop.permute.xlu0 %3695
        %3697 = vrot.lane.b32.xlu0 %v3221, 3
        %v3698 = vpop.permute.xlu0 %3697
        %3699 = vrot.lane.b32.xlu0 %v3222, 3
        %v3700 = vpop.permute.xlu0 %3699
        %3701 = vrot.lane.b32.xlu0 %v3223, 3
        %v3702 = vpop.permute.xlu0 %3701
        %3703 = vrot.lane.b32.xlu0 %v3224, 3
        %v3704 = vpop.permute.xlu0 %3703
        %v3729 = vmul.f32 %v3610, %v3658
        %v3730 = vmul.f32 %v3612, %v3660
        %v3731 = vmul.f32 %v3614, %v3662
        %v3732 = vmul.f32 %v3616, %v3664
        %v3733 = vmul.f32 %v3618, %v3666
        %v3734 = vmul.f32 %v3620, %v3668
        %v3735 = vmul.f32 %v3622, %v3670
        %v3736 = vmul.f32 %v3624, %v3672
        %v3737 = vmul.f32 %v3626, %v3674
        %v3738 = vmul.f32 %v3628, %v3676
        %v3739 = vmul.f32 %v3630, %v3678
        %v3740 = vmul.f32 %v3632, %v3680
        %v3741 = vmul.f32 %v3634, %v3682
        %v3742 = vmul.f32 %v3636, %v3684
        %v3743 = vmul.f32 %v3638, %v3686
        %v3744 = vmul.f32 %v3640, %v3688
        %v3745 = vmul.f32 %v3642, %v3690
        %v3746 = vmul.f32 %v3644, %v3692
        %v3747 = vmul.f32 %v3646, %v3694
        %v3748 = vmul.f32 %v3648, %v3696
        %v3749 = vmul.f32 %v3650, %v3698
        %v3750 = vmul.f32 %v3652, %v3700
        %v3751 = vmul.f32 %v3654, %v3702
        %v3752 = vmul.f32 %v3656, %v3704
        %v3753 = vmul.f32 %v3729, 0.5
        %v3754 = vmul.f32 %v3730, 0.5
        %v3755 = vmul.f32 %v3731, 0.5
        %v3756 = vmul.f32 %v3732, 0.5
        %v3757 = vmul.f32 %v3733, 0.5
        %v3758 = vmul.f32 %v3734, 0.5
        %v3759 = vmul.f32 %v3735, 0.5
        %v3760 = vmul.f32 %v3736, 0.5
        %v3761 = vmul.f32 %v3737, 0.5
        %v3762 = vmul.f32 %v3738, 0.5
        %v3763 = vmul.f32 %v3739, 0.5
        %v3764 = vmul.f32 %v3740, 0.5
        %v3765 = vmul.f32 %v3741, 0.5
        %v3766 = vmul.f32 %v3742, 0.5
        %v3767 = vmul.f32 %v3743, 0.5
        %v3768 = vmul.f32 %v3744, 0.5
        %v3769 = vmul.f32 %v3745, 0.5
        %v3770 = vmul.f32 %v3746, 0.5
        %v3771 = vmul.f32 %v3747, 0.5
        %v3772 = vmul.f32 %v3748, 0.5
        %v3773 = vmul.f32 %v3749, 0.5
        %v3774 = vmul.f32 %v3750, 0.5
        %v3775 = vmul.f32 %v3751, 0.5
        %v3776 = vmul.f32 %v3752, 0.5
        %3801 = vrot.lane.b32.xlu0 %v3753, 122
        %v3802 = vpop.permute.xlu0 %3801
        %3803 = vrot.lane.b32.xlu0 %v3754, 122
        %v3804 = vpop.permute.xlu0 %3803
        %3805 = vrot.lane.b32.xlu0 %v3755, 122
        %v3806 = vpop.permute.xlu0 %3805
        %3807 = vrot.lane.b32.xlu0 %v3756, 122
        %v3808 = vpop.permute.xlu0 %3807
        %3809 = vrot.lane.b32.xlu0 %v3757, 122
        %v3810 = vpop.permute.xlu0 %3809
        %3811 = vrot.lane.b32.xlu0 %v3758, 122
        %v3812 = vpop.permute.xlu0 %3811
        %3813 = vrot.lane.b32.xlu0 %v3759, 122
        %v3814 = vpop.permute.xlu0 %3813
        %3815 = vrot.lane.b32.xlu0 %v3760, 122
        %v3816 = vpop.permute.xlu0 %3815
        %3817 = vrot.lane.b32.xlu0 %v3761, 122
        %v3818 = vpop.permute.xlu0 %3817
        %3819 = vrot.lane.b32.xlu0 %v3762, 122
        %v3820 = vpop.permute.xlu0 %3819
        %3821 = vrot.lane.b32.xlu0 %v3763, 122
        %v3822 = vpop.permute.xlu0 %3821
        %3823 = vrot.lane.b32.xlu0 %v3764, 122
        %v3824 = vpop.permute.xlu0 %3823
        %3825 = vrot.lane.b32.xlu0 %v3765, 122
        %v3826 = vpop.permute.xlu0 %3825
        %3827 = vrot.lane.b32.xlu0 %v3766, 122
        %v3828 = vpop.permute.xlu0 %3827
        %3829 = vrot.lane.b32.xlu0 %v3767, 122
        %v3830 = vpop.permute.xlu0 %3829
        %3831 = vrot.lane.b32.xlu0 %v3768, 122
        %v3832 = vpop.permute.xlu0 %3831
        %3833 = vrot.lane.b32.xlu0 %v3769, 122
        %v3834 = vpop.permute.xlu0 %3833
        %3835 = vrot.lane.b32.xlu0 %v3770, 122
        %v3836 = vpop.permute.xlu0 %3835
        %3837 = vrot.lane.b32.xlu0 %v3771, 122
        %v3838 = vpop.permute.xlu0 %3837
        %3839 = vrot.lane.b32.xlu0 %v3772, 122
        %v3840 = vpop.permute.xlu0 %3839
        %3841 = vrot.lane.b32.xlu0 %v3773, 122
        %v3842 = vpop.permute.xlu0 %3841
        %3843 = vrot.lane.b32.xlu0 %v3774, 122
        %v3844 = vpop.permute.xlu0 %3843
        %3845 = vrot.lane.b32.xlu0 %v3775, 122
        %v3846 = vpop.permute.xlu0 %3845
        %3847 = vrot.lane.b32.xlu0 %v3776, 122
        %v3848 = vpop.permute.xlu0 %3847
        %v3873 = vsub.f32 %v3585, %v3802
        %v3874 = vsub.f32 %v3586, %v3804
        %v3875 = vsub.f32 %v3587, %v3806
        %v3876 = vsub.f32 %v3588, %v3808
        %v3877 = vsub.f32 %v3589, %v3810
        %v3878 = vsub.f32 %v3590, %v3812
        %v3879 = vsub.f32 %v3591, %v3814
        %v3880 = vsub.f32 %v3592, %v3816
        %v3881 = vsub.f32 %v3593, %v3818
        %v3882 = vsub.f32 %v3594, %v3820
        %v3883 = vsub.f32 %v3595, %v3822
        %v3884 = vsub.f32 %v3596, %v3824
        %v3885 = vsub.f32 %v3597, %v3826
        %v3886 = vsub.f32 %v3598, %v3828
        %v3887 = vsub.f32 %v3599, %v3830
        %v3888 = vsub.f32 %v3600, %v3832
        %v3889 = vsub.f32 %v3601, %v3834
        %v3890 = vsub.f32 %v3602, %v3836
        %v3891 = vsub.f32 %v3603, %v3838
        %v3892 = vsub.f32 %v3604, %v3840
        %v3893 = vsub.f32 %v3605, %v3842
        %v3894 = vsub.f32 %v3606, %v3844
        %v3895 = vsub.f32 %v3607, %v3846
        %v3896 = vsub.f32 %v3608, %v3848
        %v3897 = vmax.f32 %v3873, 0.0
        %v3898 = vmax.f32 %v3874, 0.0
        %v3899 = vmax.f32 %v3875, 0.0
        %v3900 = vmax.f32 %v3876, 0.0
        %v3901 = vmax.f32 %v3877, 0.0
        %v3902 = vmax.f32 %v3878, 0.0
        %v3903 = vmax.f32 %v3879, 0.0
        %v3904 = vmax.f32 %v3880, 0.0
        %v3905 = vmax.f32 %v3881, 0.0
        %v3906 = vmax.f32 %v3882, 0.0
        %v3907 = vmax.f32 %v3883, 0.0
        %v3908 = vmax.f32 %v3884, 0.0
        %v3909 = vmax.f32 %v3885, 0.0
        %v3910 = vmax.f32 %v3886, 0.0
        %v3911 = vmax.f32 %v3887, 0.0
        %v3912 = vmax.f32 %v3888, 0.0
        %v3913 = vmax.f32 %v3889, 0.0
        %v3914 = vmax.f32 %v3890, 0.0
        %v3915 = vmax.f32 %v3891, 0.0
        %v3916 = vmax.f32 %v3892, 0.0
        %v3917 = vmax.f32 %v3893, 0.0
        %v3918 = vmax.f32 %v3894, 0.0
        %v3919 = vmax.f32 %v3895, 0.0
        %v3920 = vmax.f32 %v3896, 0.0
        %v3921 = vmin.f32 %v3897, 127.0
        %v3922 = vmin.f32 %v3898, 127.0
        %v3923 = vmin.f32 %v3899, 127.0
        %v3924 = vmin.f32 %v3900, 127.0
        %v3925 = vmin.f32 %v3901, 127.0
        %v3926 = vmin.f32 %v3902, 127.0
        %v3927 = vmin.f32 %v3903, 127.0
        %v3928 = vmin.f32 %v3904, 127.0
        %v3929 = vmin.f32 %v3905, 127.0
        %v3930 = vmin.f32 %v3906, 127.0
        %v3931 = vmin.f32 %v3907, 127.0
        %v3932 = vmin.f32 %v3908, 127.0
        %v3933 = vmin.f32 %v3909, 127.0
        %v3934 = vmin.f32 %v3910, 127.0
        %v3935 = vmin.f32 %v3911, 127.0
        %v3936 = vmin.f32 %v3912, 127.0
        %v3937 = vmin.f32 %v3913, 127.0
        %v3938 = vmin.f32 %v3914, 127.0
        %v3939 = vmin.f32 %v3915, 127.0
        %v3940 = vmin.f32 %v3916, 127.0
        %v3941 = vmin.f32 %v3917, 127.0
        %v3942 = vmin.f32 %v3918, 127.0
        %v3943 = vmin.f32 %v3919, 127.0
        %v3944 = vmin.f32 %v3920, 127.0
        %v3945 = vadd.f32 %v3585, %v3802
        %v3946 = vadd.f32 %v3586, %v3804
        %v3947 = vadd.f32 %v3587, %v3806
        %v3948 = vadd.f32 %v3588, %v3808
        %v3949 = vadd.f32 %v3589, %v3810
        %v3950 = vadd.f32 %v3590, %v3812
        %v3951 = vadd.f32 %v3591, %v3814
        %v3952 = vadd.f32 %v3592, %v3816
        %v3953 = vadd.f32 %v3593, %v3818
        %v3954 = vadd.f32 %v3594, %v3820
        %v3955 = vadd.f32 %v3595, %v3822
        %v3956 = vadd.f32 %v3596, %v3824
        %v3957 = vadd.f32 %v3597, %v3826
        %v3958 = vadd.f32 %v3598, %v3828
        %v3959 = vadd.f32 %v3599, %v3830
        %v3960 = vadd.f32 %v3600, %v3832
        %v3961 = vadd.f32 %v3601, %v3834
        %v3962 = vadd.f32 %v3602, %v3836
        %v3963 = vadd.f32 %v3603, %v3838
        %v3964 = vadd.f32 %v3604, %v3840
        %v3965 = vadd.f32 %v3605, %v3842
        %v3966 = vadd.f32 %v3606, %v3844
        %v3967 = vadd.f32 %v3607, %v3846
        %v3968 = vadd.f32 %v3608, %v3848
        %v3969 = vsub.f32 %v3945, 1.0
        %v3970 = vsub.f32 %v3946, 1.0
        %v3971 = vsub.f32 %v3947, 1.0
        %v3972 = vsub.f32 %v3948, 1.0
        %v3973 = vsub.f32 %v3949, 1.0
        %v3974 = vsub.f32 %v3950, 1.0
        %v3975 = vsub.f32 %v3951, 1.0
        %v3976 = vsub.f32 %v3952, 1.0
        %v3977 = vsub.f32 %v3953, 1.0
        %v3978 = vsub.f32 %v3954, 1.0
        %v3979 = vsub.f32 %v3955, 1.0
        %v3980 = vsub.f32 %v3956, 1.0
        %v3981 = vsub.f32 %v3957, 1.0
        %v3982 = vsub.f32 %v3958, 1.0
        %v3983 = vsub.f32 %v3959, 1.0
        %v3984 = vsub.f32 %v3960, 1.0
        %v3985 = vsub.f32 %v3961, 1.0
        %v3986 = vsub.f32 %v3962, 1.0
        %v3987 = vsub.f32 %v3963, 1.0
        %v3988 = vsub.f32 %v3964, 1.0
        %v3989 = vsub.f32 %v3965, 1.0
        %v3990 = vsub.f32 %v3966, 1.0
        %v3991 = vsub.f32 %v3967, 1.0
        %v3992 = vsub.f32 %v3968, 1.0
        %v3993 = vmax.f32 %v3969, 0.0
        %v3994 = vmax.f32 %v3970, 0.0
        %v3995 = vmax.f32 %v3971, 0.0
        %v3996 = vmax.f32 %v3972, 0.0
        %v3997 = vmax.f32 %v3973, 0.0
        %v3998 = vmax.f32 %v3974, 0.0
        %v3999 = vmax.f32 %v3975, 0.0
        %v4000 = vmax.f32 %v3976, 0.0
        %v4001 = vmax.f32 %v3977, 0.0
        %v4002 = vmax.f32 %v3978, 0.0
        %v4003 = vmax.f32 %v3979, 0.0
        %v4004 = vmax.f32 %v3980, 0.0
        %v4005 = vmax.f32 %v3981, 0.0
        %v4006 = vmax.f32 %v3982, 0.0
        %v4007 = vmax.f32 %v3983, 0.0
        %v4008 = vmax.f32 %v3984, 0.0
        %v4009 = vmax.f32 %v3985, 0.0
        %v4010 = vmax.f32 %v3986, 0.0
        %v4011 = vmax.f32 %v3987, 0.0
        %v4012 = vmax.f32 %v3988, 0.0
        %v4013 = vmax.f32 %v3989, 0.0
        %v4014 = vmax.f32 %v3990, 0.0
        %v4015 = vmax.f32 %v3991, 0.0
        %v4016 = vmax.f32 %v3992, 0.0
        %v4017 = vmin.f32 %v3993, 127.0
        %v4018 = vmin.f32 %v3994, 127.0
        %v4019 = vmin.f32 %v3995, 127.0
        %v4020 = vmin.f32 %v3996, 127.0
        %v4021 = vmin.f32 %v3997, 127.0
        %v4022 = vmin.f32 %v3998, 127.0
        %v4023 = vmin.f32 %v3999, 127.0
        %v4024 = vmin.f32 %v4000, 127.0
        %v4025 = vmin.f32 %v4001, 127.0
        %v4026 = vmin.f32 %v4002, 127.0
        %v4027 = vmin.f32 %v4003, 127.0
        %v4028 = vmin.f32 %v4004, 127.0
        %v4029 = vmin.f32 %v4005, 127.0
        %v4030 = vmin.f32 %v4006, 127.0
        %v4031 = vmin.f32 %v4007, 127.0
        %v4032 = vmin.f32 %v4008, 127.0
        %v4033 = vmin.f32 %v4009, 127.0
        %v4034 = vmin.f32 %v4010, 127.0
        %v4035 = vmin.f32 %v4011, 127.0
        %v4036 = vmin.f32 %v4012, 127.0
        %v4037 = vmin.f32 %v4013, 127.0
        %v4038 = vmin.f32 %v4014, 127.0
        %v4039 = vmin.f32 %v4015, 127.0
        %v4040 = vmin.f32 %v4016, 127.0
        %v4041 = vxor.u32 %v2939, 2147483648
        %v4042 = vxor.u32 %v2942, 2147483648
        %v4043 = vxor.u32 %v2947, 2147483648
        %v4044 = vxor.u32 %v2950, 2147483648
        %v4045 = vxor.u32 %v2955, 2147483648
        %v4046 = vxor.u32 %v2958, 2147483648
        %v4047 = vxor.u32 %v2963, 2147483648
        %v4048 = vxor.u32 %v2966, 2147483648
        %v4049 = vxor.u32 %v2971, 2147483648
        %v4050 = vxor.u32 %v2974, 2147483648
        %v4051 = vxor.u32 %v2979, 2147483648
        %v4052 = vxor.u32 %v2982, 2147483648
        %v4053 = vxor.u32 %v2987, 2147483648
        %v4054 = vxor.u32 %v2990, 2147483648
        %v4055 = vxor.u32 %v2995, 2147483648
        %v4056 = vxor.u32 %v2998, 2147483648
        %v4057 = vxor.u32 %v3003, 2147483648
        %v4058 = vxor.u32 %v3006, 2147483648
        %v4059 = vxor.u32 %v3011, 2147483648
        %v4060 = vxor.u32 %v3014, 2147483648
        %v4061 = vxor.u32 %v3019, 2147483648
        %v4062 = vxor.u32 %v3022, 2147483648
        %v4063 = vxor.u32 %v3027, 2147483648
        %v4064 = vxor.u32 %v3030, 2147483648
        %v4065 = vmul.f32 %v4041, 1.442695
        %v4066 = vpow.pop %v4065
        %v4067 = vmul.f32 %v4042, 1.442695
        %v4068 = vpow.pop %v4067
        %v4069 = vmul.f32 %v4043, 1.442695
        %v4070 = vpow.pop %v4069
        %v4071 = vmul.f32 %v4044, 1.442695
        %v4072 = vpow.pop %v4071
        %v4073 = vmul.f32 %v4045, 1.442695
        %v4074 = vpow.pop %v4073
        %v4075 = vmul.f32 %v4046, 1.442695
        %v4076 = vpow.pop %v4075
        %v4077 = vmul.f32 %v4047, 1.442695
        %v4078 = vpow.pop %v4077
        %v4079 = vmul.f32 %v4048, 1.442695
        %v4080 = vpow.pop %v4079
        %v4081 = vmul.f32 %v4049, 1.442695
        %v4082 = vpow.pop %v4081
        %v4083 = vmul.f32 %v4050, 1.442695
        %v4084 = vpow.pop %v4083
        %v4085 = vmul.f32 %v4051, 1.442695
        %v4086 = vpow.pop %v4085
        %v4087 = vmul.f32 %v4052, 1.442695
        %v4088 = vpow.pop %v4087
        %v4089 = vmul.f32 %v4053, 1.442695
        %v4090 = vpow.pop %v4089
        %v4091 = vmul.f32 %v4054, 1.442695
        %v4092 = vpow.pop %v4091
        %v4093 = vmul.f32 %v4055, 1.442695
        %v4094 = vpow.pop %v4093
        %v4095 = vmul.f32 %v4056, 1.442695
        %v4096 = vpow.pop %v4095
        %v4097 = vmul.f32 %v4057, 1.442695
        %v4098 = vpow.pop %v4097
        %v4099 = vmul.f32 %v4058, 1.442695
        %v4100 = vpow.pop %v4099
        %v4101 = vmul.f32 %v4059, 1.442695
        %v4102 = vpow.pop %v4101
        %v4103 = vmul.f32 %v4060, 1.442695
        %v4104 = vpow.pop %v4103
        %v4105 = vmul.f32 %v4061, 1.442695
        %v4106 = vpow.pop %v4105
        %v4107 = vmul.f32 %v4062, 1.442695
        %v4108 = vpow.pop %v4107
        %v4109 = vmul.f32 %v4063, 1.442695
        %v4110 = vpow.pop %v4109
        %v4111 = vmul.f32 %v4064, 1.442695
        %v4112 = vpow.pop %v4111
        %v4113 = vadd.f32 %v4066, 1.0
        %v4114 = vadd.f32 %v4068, 1.0
        %v4115 = vadd.f32 %v4070, 1.0
        %v4116 = vadd.f32 %v4072, 1.0
        %v4117 = vadd.f32 %v4074, 1.0
        %v4118 = vadd.f32 %v4076, 1.0
        %v4119 = vadd.f32 %v4078, 1.0
        %v4120 = vadd.f32 %v4080, 1.0
        %v4121 = vadd.f32 %v4082, 1.0
        %v4122 = vadd.f32 %v4084, 1.0
        %v4123 = vadd.f32 %v4086, 1.0
        %v4124 = vadd.f32 %v4088, 1.0
        %v4125 = vadd.f32 %v4090, 1.0
        %v4126 = vadd.f32 %v4092, 1.0
        %v4127 = vadd.f32 %v4094, 1.0
        %v4128 = vadd.f32 %v4096, 1.0
        %v4129 = vadd.f32 %v4098, 1.0
        %v4130 = vadd.f32 %v4100, 1.0
        %v4131 = vadd.f32 %v4102, 1.0
        %v4132 = vadd.f32 %v4104, 1.0
        %v4133 = vadd.f32 %v4106, 1.0
        %v4134 = vadd.f32 %v4108, 1.0
        %v4135 = vadd.f32 %v4110, 1.0
        %v4136 = vadd.f32 %v4112, 1.0
        %v4137 = vrcp.pop %v4113
        %v4138 = vmul.f32 1.0, %v4137
        %v4139 = vrcp.pop %v4114
        %v4140 = vmul.f32 1.0, %v4139
        %v4141 = vrcp.pop %v4115
        %v4142 = vmul.f32 1.0, %v4141
        %v4143 = vrcp.pop %v4116
        %v4144 = vmul.f32 1.0, %v4143
        %v4145 = vrcp.pop %v4117
        %v4146 = vmul.f32 1.0, %v4145
        %v4147 = vrcp.pop %v4118
        %v4148 = vmul.f32 1.0, %v4147
        %v4149 = vrcp.pop %v4119
        %v4150 = vmul.f32 1.0, %v4149
        %v4151 = vrcp.pop %v4120
        %v4152 = vmul.f32 1.0, %v4151
        %v4153 = vrcp.pop %v4121
        %v4154 = vmul.f32 1.0, %v4153
        %v4155 = vrcp.pop %v4122
        %v4156 = vmul.f32 1.0, %v4155
        %v4157 = vrcp.pop %v4123
        %v4158 = vmul.f32 1.0, %v4157
        %v4159 = vrcp.pop %v4124
        %v4160 = vmul.f32 1.0, %v4159
        %v4161 = vrcp.pop %v4125
        %v4162 = vmul.f32 1.0, %v4161
        %v4163 = vrcp.pop %v4126
        %v4164 = vmul.f32 1.0, %v4163
        %v4165 = vrcp.pop %v4127
        %v4166 = vmul.f32 1.0, %v4165
        %v4167 = vrcp.pop %v4128
        %v4168 = vmul.f32 1.0, %v4167
        %v4169 = vrcp.pop %v4129
        %v4170 = vmul.f32 1.0, %v4169
        %v4171 = vrcp.pop %v4130
        %v4172 = vmul.f32 1.0, %v4171
        %v4173 = vrcp.pop %v4131
        %v4174 = vmul.f32 1.0, %v4173
        %v4175 = vrcp.pop %v4132
        %v4176 = vmul.f32 1.0, %v4175
        %v4177 = vrcp.pop %v4133
        %v4178 = vmul.f32 1.0, %v4177
        %v4179 = vrcp.pop %v4134
        %v4180 = vmul.f32 1.0, %v4179
        %v4181 = vrcp.pop %v4135
        %v4182 = vmul.f32 1.0, %v4181
        %v4183 = vrcp.pop %v4136
        %v4184 = vmul.f32 1.0, %v4183
        %4209 = vrot.lane.b32.xlu0 %v4017, 6
        %v4210 = vpop.permute.xlu0 %4209
        %4211 = vrot.lane.b32.xlu0 %v4018, 6
        %v4212 = vpop.permute.xlu0 %4211
        %4213 = vrot.lane.b32.xlu0 %v4019, 6
        %v4214 = vpop.permute.xlu0 %4213
        %4215 = vrot.lane.b32.xlu0 %v4020, 6
        %v4216 = vpop.permute.xlu0 %4215
        %4217 = vrot.lane.b32.xlu0 %v4021, 6
        %v4218 = vpop.permute.xlu0 %4217
        %4219 = vrot.lane.b32.xlu0 %v4022, 6
        %v4220 = vpop.permute.xlu0 %4219
        %4221 = vrot.lane.b32.xlu0 %v4023, 6
        %v4222 = vpop.permute.xlu0 %4221
        %4223 = vrot.lane.b32.xlu0 %v4024, 6
        %v4224 = vpop.permute.xlu0 %4223
        %4225 = vrot.lane.b32.xlu0 %v4025, 6
        %v4226 = vpop.permute.xlu0 %4225
        %4227 = vrot.lane.b32.xlu0 %v4026, 6
        %v4228 = vpop.permute.xlu0 %4227
        %4229 = vrot.lane.b32.xlu0 %v4027, 6
        %v4230 = vpop.permute.xlu0 %4229
        %4231 = vrot.lane.b32.xlu0 %v4028, 6
        %v4232 = vpop.permute.xlu0 %4231
        %4233 = vrot.lane.b32.xlu0 %v4029, 6
        %v4234 = vpop.permute.xlu0 %4233
        %4235 = vrot.lane.b32.xlu0 %v4030, 6
        %v4236 = vpop.permute.xlu0 %4235
        %4237 = vrot.lane.b32.xlu0 %v4031, 6
        %v4238 = vpop.permute.xlu0 %4237
        %4239 = vrot.lane.b32.xlu0 %v4032, 6
        %v4240 = vpop.permute.xlu0 %4239
        %4241 = vrot.lane.b32.xlu0 %v4033, 6
        %v4242 = vpop.permute.xlu0 %4241
        %4243 = vrot.lane.b32.xlu0 %v4034, 6
        %v4244 = vpop.permute.xlu0 %4243
        %4245 = vrot.lane.b32.xlu0 %v4035, 6
        %v4246 = vpop.permute.xlu0 %4245
        %4247 = vrot.lane.b32.xlu0 %v4036, 6
        %v4248 = vpop.permute.xlu0 %4247
        %4249 = vrot.lane.b32.xlu0 %v4037, 6
        %v4250 = vpop.permute.xlu0 %4249
        %4251 = vrot.lane.b32.xlu0 %v4038, 6
        %v4252 = vpop.permute.xlu0 %4251
        %4253 = vrot.lane.b32.xlu0 %v4039, 6
        %v4254 = vpop.permute.xlu0 %4253
        %4255 = vrot.lane.b32.xlu0 %v4040, 6
        %v4256 = vpop.permute.xlu0 %4255
        %vm4281 = vcmask 23552
        %v4282 = vsel %vm4281, %v4138, %v3921
        %v4283 = vsel %vm4281, %v4140, %v3922
        %v4284 = vsel %vm4281, %v4142, %v3923
        %v4285 = vsel %vm4281, %v4144, %v3924
        %v4286 = vsel %vm4281, %v4146, %v3925
        %v4287 = vsel %vm4281, %v4148, %v3926
        %v4288 = vsel %vm4281, %v4150, %v3927
        %v4289 = vsel %vm4281, %v4152, %v3928
        %v4290 = vsel %vm4281, %v4154, %v3929
        %v4291 = vsel %vm4281, %v4156, %v3930
        %v4292 = vsel %vm4281, %v4158, %v3931
        %v4293 = vsel %vm4281, %v4160, %v3932
        %v4294 = vsel %vm4281, %v4162, %v3933
        %v4295 = vsel %vm4281, %v4164, %v3934
        %v4296 = vsel %vm4281, %v4166, %v3935
        %v4297 = vsel %vm4281, %v4168, %v3936
        %v4298 = vsel %vm4281, %v4170, %v3937
        %v4299 = vsel %vm4281, %v4172, %v3938
        %v4300 = vsel %vm4281, %v4174, %v3939
        %v4301 = vsel %vm4281, %v4176, %v3940
        %v4302 = vsel %vm4281, %v4178, %v3941
        %v4303 = vsel %vm4281, %v4180, %v3942
        %v4304 = vsel %vm4281, %v4182, %v3943
        %v4305 = vsel %vm4281, %v4184, %v3944
        %vm4306 = vcmask 48128
        %v4307 = vsel %vm4306, %v4282, %v3921
        %v4308 = vsel %vm4306, %v4283, %v3922
        %v4309 = vsel %vm4306, %v4284, %v3923
        %v4310 = vsel %vm4306, %v4285, %v3924
        %v4311 = vsel %vm4306, %v4286, %v3925
        %v4312 = vsel %vm4306, %v4287, %v3926
        %v4313 = vsel %vm4306, %v4288, %v3927
        %v4314 = vsel %vm4306, %v4289, %v3928
        %v4315 = vsel %vm4306, %v4290, %v3929
        %v4316 = vsel %vm4306, %v4291, %v3930
        %v4317 = vsel %vm4306, %v4292, %v3931
        %v4318 = vsel %vm4306, %v4293, %v3932
        %v4319 = vsel %vm4306, %v4294, %v3933
        %v4320 = vsel %vm4306, %v4295, %v3934
        %v4321 = vsel %vm4306, %v4296, %v3935
        %v4322 = vsel %vm4306, %v4297, %v3936
        %v4323 = vsel %vm4306, %v4298, %v3937
        %v4324 = vsel %vm4306, %v4299, %v3938
        %v4325 = vsel %vm4306, %v4300, %v3939
        %v4326 = vsel %vm4306, %v4301, %v3940
        %v4327 = vsel %vm4306, %v4302, %v3941
        %v4328 = vsel %vm4306, %v4303, %v3942
        %v4329 = vsel %vm4306, %v4304, %v3943
        %v4330 = vsel %vm4306, %v4305, %v3944
        %vm4331 = vcmask 72704
        %v4332 = vsel %vm4331, %v4307, %v4210
        %v4333 = vsel %vm4331, %v4308, %v4212
        %v4334 = vsel %vm4331, %v4309, %v4214
        %v4335 = vsel %vm4331, %v4310, %v4216
        %v4336 = vsel %vm4331, %v4311, %v4218
        %v4337 = vsel %vm4331, %v4312, %v4220
        %v4338 = vsel %vm4331, %v4313, %v4222
        %v4339 = vsel %vm4331, %v4314, %v4224
        %v4340 = vsel %vm4331, %v4315, %v4226
        %v4341 = vsel %vm4331, %v4316, %v4228
        %v4342 = vsel %vm4331, %v4317, %v4230
        %v4343 = vsel %vm4331, %v4318, %v4232
        %v4344 = vsel %vm4331, %v4319, %v4234
        %v4345 = vsel %vm4331, %v4320, %v4236
        %v4346 = vsel %vm4331, %v4321, %v4238
        %v4347 = vsel %vm4331, %v4322, %v4240
        %v4348 = vsel %vm4331, %v4323, %v4242
        %v4349 = vsel %vm4331, %v4324, %v4244
        %v4350 = vsel %vm4331, %v4325, %v4246
        %v4351 = vsel %vm4331, %v4326, %v4248
        %v4352 = vsel %vm4331, %v4327, %v4250
        %v4353 = vsel %vm4331, %v4328, %v4252
        %v4354 = vsel %vm4331, %v4329, %v4254
        %v4355 = vsel %vm4331, %v4330, %v4256
        %vm4356 = vcmask 97280
        %v4357 = vsel %vm4356, %v4332, %v4210
        %v4358 = vsel %vm4356, %v4333, %v4212
        %v4359 = vsel %vm4356, %v4334, %v4214
        %v4360 = vsel %vm4356, %v4335, %v4216
        %v4361 = vsel %vm4356, %v4336, %v4218
        %v4362 = vsel %vm4356, %v4337, %v4220
        %v4363 = vsel %vm4356, %v4338, %v4222
        %v4364 = vsel %vm4356, %v4339, %v4224
        %v4365 = vsel %vm4356, %v4340, %v4226
        %v4366 = vsel %vm4356, %v4341, %v4228
        %v4367 = vsel %vm4356, %v4342, %v4230
        %v4368 = vsel %vm4356, %v4343, %v4232
        %v4369 = vsel %vm4356, %v4344, %v4234
        %v4370 = vsel %vm4356, %v4345, %v4236
        %v4371 = vsel %vm4356, %v4346, %v4238
        %v4372 = vsel %vm4356, %v4347, %v4240
        %v4373 = vsel %vm4356, %v4348, %v4242
        %v4374 = vsel %vm4356, %v4349, %v4244
        %v4375 = vsel %vm4356, %v4350, %v4246
        %v4376 = vsel %vm4356, %v4351, %v4248
        %v4377 = vsel %vm4356, %v4352, %v4250
        %v4378 = vsel %vm4356, %v4353, %v4252
        %v4379 = vsel %vm4356, %v4354, %v4254
        %v4380 = vsel %vm4356, %v4355, %v4256
        %vm4381 = vcmask 121856
        %v4382 = vsel %vm4381, %v4357, 0.0
        %v4383 = vsel %vm4381, %v4358, 0.0
        %v4384 = vsel %vm4381, %v4359, 0.0
        %v4385 = vsel %vm4381, %v4360, 0.0
        %v4386 = vsel %vm4381, %v4361, 0.0
        %v4387 = vsel %vm4381, %v4362, 0.0
        %v4388 = vsel %vm4381, %v4363, 0.0
        %v4389 = vsel %vm4381, %v4364, 0.0
        %v4390 = vsel %vm4381, %v4365, 0.0
        %v4391 = vsel %vm4381, %v4366, 0.0
        %v4392 = vsel %vm4381, %v4367, 0.0
        %v4393 = vsel %vm4381, %v4368, 0.0
        %v4394 = vsel %vm4381, %v4369, 0.0
        %v4395 = vsel %vm4381, %v4370, 0.0
        %v4396 = vsel %vm4381, %v4371, 0.0
        %v4397 = vsel %vm4381, %v4372, 0.0
        %v4398 = vsel %vm4381, %v4373, 0.0
        %v4399 = vsel %vm4381, %v4374, 0.0
        %v4400 = vsel %vm4381, %v4375, 0.0
        %v4401 = vsel %vm4381, %v4376, 0.0
        %v4402 = vsel %vm4381, %v4377, 0.0
        %v4403 = vsel %vm4381, %v4378, 0.0
        %v4404 = vsel %vm4381, %v4379, 0.0
        %v4405 = vsel %vm4381, %v4380, 0.0
        %4406 = vst [vmem:[%s367] sm:$0xff] %v4382
        %4407 = vst [vmem:[%s367 + $0x8] sm:$0xff] %v4383
        %4408 = vst [vmem:[%s367 + $0x10] sm:$0xff] %v4384
        %4409 = vst [vmem:[%s367 + $0x18] sm:$0xff] %v4385
        %4410 = vst [vmem:[%s367 + $0x20] sm:$0xff] %v4386
        %4411 = vst [vmem:[%s367 + $0x28] sm:$0xff] %v4387
        %4412 = vst [vmem:[%s367 + $0x30] sm:$0xff] %v4388
        %4413 = vst [vmem:[%s367 + $0x38] sm:$0xff] %v4389
        %4414 = vst [vmem:[%s367 + $0x40] sm:$0xff] %v4390
        %4415 = vst [vmem:[%s367 + $0x48] sm:$0xff] %v4391
        %4416 = vst [vmem:[%s367 + $0x50] sm:$0xff] %v4392
        %4417 = vst [vmem:[%s367 + $0x58] sm:$0xff] %v4393
        %4418 = vst [vmem:[%s367 + $0x60] sm:$0xff] %v4394
        %4419 = vst [vmem:[%s367 + $0x68] sm:$0xff] %v4395
        %4420 = vst [vmem:[%s367 + $0x70] sm:$0xff] %v4396
        %4421 = vst [vmem:[%s367 + $0x78] sm:$0xff] %v4397
        %4422 = vst [vmem:[%s367 + $0x80] sm:$0xff] %v4398
        %4423 = vst [vmem:[%s367 + $0x88] sm:$0xff] %v4399
        %4424 = vst [vmem:[%s367 + $0x90] sm:$0xff] %v4400
        %4425 = vst [vmem:[%s367 + $0x98] sm:$0xff] %v4401
        %4426 = vst [vmem:[%s367 + $0xa0] sm:$0xff] %v4402
        %4427 = vst [vmem:[%s367 + $0xa8] sm:$0xff] %v4403
        %4428 = vst [vmem:[%s367 + $0xb0] sm:$0xff] %v4404
        %4429 = vst [vmem:[%s367 + $0xb8] sm:$0xff] %v4405
        %s4430 = sand.u32 %s213, 1
        %s4431 = scalar_lea.sflag [#allocation4], %s4430
        %s4432 = sand.u32 %s213, 1
        %s4433 = smul.addr %s4432, 192
        %s4434 = scalar_lea.vmem [#allocation3], %s4433
        // Predicated region
        $region49: #{tpu_custom_call.1} parent=47 // pred_check
          %p4435 = pneg %p223
        $region50: #{tpu_custom_call.1} parent=47 // pred_check_branch
          %4437 = sbr.rel (%p4435) target = $region52
        $region51: #{tpu_custom_call.1} parent=47 // pred_region
          %s4438 = smul.u32 24, %s26
          %s4440 = ssub.s32 3072, 3072
          %4441 = vsyncadd %s4431, %s4440
          %s4442 = smul.addr %s25, 48
          %s4443 = sadd.s32 %s4438, %s4442
          %s4444 = smul.addr %s4443, 128
          %s4445 = scalar_lea.hbm %s7, %s4444
          %s4446 = sshll.u32 %s4434, 4
          %s4447 = int_to_ptr.vmem [resolvable:$true] %s4446
          %4452 = dma.vmem_to_hbm [thread:$0]  %s4447, 3072, %s4445, %s4431, 128, 128, 8
        $region52: #{tpu_custom_call.1} parent=47 // pred_fallthru
          _
      $region48: #{tpu_custom_call.1} parent=5 // pred_fallthru
        _
      %p4453 = scmp.le.s32.totalorder 2, %s16
      // Predicated region
      $region53: #{tpu_custom_call.1} parent=5 // pred_check
        %p4454 = pneg %p4453
      $region54: #{tpu_custom_call.1} parent=5 // pred_check_branch
        %4456 = sbr.rel (%p4454) target = $region56
      $region55: #{tpu_custom_call.1} parent=5 // pred_region
        %s4457 = ssub.s32 %s16, 2
        // Predicated region
        $region57: #{tpu_custom_call.1} parent=55 // pred_check
          %p4458 = pneg %p229
        $region58: #{tpu_custom_call.1} parent=55 // pred_check_branch
          %4460 = sbr.rel (%p4458) target = $region60
        $region59: #{tpu_custom_call.1} parent=55 // pred_region
          %s4461 = sand.u32 %s214, 1
          %s4462 = scalar_lea.sflag [#allocation4], %s4461
          %s4463 = sand.u32 %s214, 1
          %s4464 = smul.addr %s4463, 192
          %s4465 = scalar_lea.vmem [#allocation3], %s4464
          %4466 = dma.done %s4462, 3072
        $region60: #{tpu_custom_call.1} parent=55 // pred_fallthru
          _
      $region56: #{tpu_custom_call.1} parent=5 // pred_fallthru
        _
    $region6: #{tpu_custom_call.1} parent=1 // loop_footer
      %s20 = sadd.s32 1, %s16
    $region7: #{tpu_custom_call.1} parent=1 // loop_footer_branch
      %15 = sbr.rel target = $region3
    $region8: #{tpu_custom_call.1} parent=1 // loop_exit
      _
    %4467 = vsyncpa [#allocation4], 1
    %s4468 = scalar_lea.sflag [#allocation4], 1
    %4469 = vsyncpa %s4468, 1

// kernel: tpu_custom_call.1
$region0: #{tpu_custom_call.1}
  #allocation0 [shape = 'u32[]', space=smem, size = 0x4, offset = 0x4, fixed_abs, tag = 'smem constant byte address 0x4 - core index']
  #allocation1 [shape = 'u32[144,128]{1,0:T(1,128)}', space=vmem, size = 0x12000, scoped, tag = 'internal scratch']
  #allocation2 [shape = 'f32[192,16]{1,0:T(8,128)}', space=vmem, size = 0x18000, scoped, tag = 'scratch operand']
  %s0 = inlined_call_operand.vmem [shape: bf16[2,18,24,16], index: 0, kind: input, shape index: {}]
  %s1 = inlined_call_operand.vmem [shape: bf16[2,18,24,16], index: 1, kind: input, shape index: {}]
  %s2 = inlined_call_operand.vmem [shape: f32[384,12], index: 2, kind: input, shape index: {}]
  %s3 = inlined_call_operand.vmem [shape: bf16[9,16,16], index: 3, kind: input, shape index: {}]
  %s4 = inlined_call_operand.vmem [shape: f32[1,16], index: 4, kind: input, shape index: {}]
  %s5 = inlined_call_operand.vmem [shape: bf16[16,128], index: 5, kind: input, shape index: {}]
  %s6 = inlined_call_operand.vmem [shape: f32[1,128], index: 6, kind: input, shape index: {}]
  %s7 = inlined_call_operand.hbm [shape: f32[2,384,128], index: 7, kind: output, shape index: {}]
  %s8 = sld [smem:[#allocation0]]
  $region61: #{tpu_custom_call.1} parent=0
    _
  %s10 = ssub.s32 1, %s8
  %s11 = scalar_select 0, %s10, %s8
  $region1: #{tpu_custom_call.1} parent=0
    #allocation3 [shape = 'u8[196608]{0}', space=vmem, size = 0x30000, scoped, tag = 'output window, operand 0']
    #allocation4 [shape = 's32[2]{0}', space=sflag, size = 0x8, scoped, tag = 'scoped memory for tpu_custom_call.1']
    %12 = vsyncpa [#allocation4], 0
    %s13 = scalar_lea.sflag [#allocation4], 1
    %14 = vsyncpa %s13, 0
    loop: start=0, step=1, limit=6
    $region2: #{tpu_custom_call.1} parent=1 // loop_pre_header
      _
    $region3: #{tpu_custom_call.1} parent=1 // loop_header
      %s16 = sphi 0, %s20
      %p17 = scmp.ge.s32.totalorder %s16, 6
      %s23 = sphi 0, %s35
      %s24 = sphi 0, %s31
      %s25 = sphi 0, %s23
      %s26 = sphi 0, %s24
      %s27 = sphi 0, %s25
      %s28 = sphi 0, %s26
      %s40 = sphi 0, %s42
      %s43 = sphi 0, %s40
      %s44 = sphi 0, %s43
      %s60 = sphi 0, %s44
      %s72 = sphi 0, %s74
      %s75 = sphi 0, %s72
      %s76 = sphi 0, %s75
      %s92 = sphi 0, %s76
      %s98 = sphi 0, %s100
      %s101 = sphi 0, %s98
      %s102 = sphi 0, %s101
      %s118 = sphi 0, %s102
      %s122 = sphi 0, %s122
      %s124 = sphi 0, %s122
      %s125 = sphi 0, %s124
      %s139 = sphi 0, %s125
      %s143 = sphi 0, %s143
      %s145 = sphi 0, %s143
      %s146 = sphi 0, %s145
      %s160 = sphi 0, %s146
      %s164 = sphi 0, %s164
      %s166 = sphi 0, %s164
      %s167 = sphi 0, %s166
      %s181 = sphi 0, %s167
      %s185 = sphi 0, %s185
      %s187 = sphi 0, %s185
      %s188 = sphi 0, %s187
      %s202 = sphi 0, %s188
      %s210 = sphi 0, %s212
      %s213 = sphi 0, %s210
      %s214 = sphi 0, %s213
      %s230 = sphi 0, %s214
    $region4: #{tpu_custom_call.1} parent=1 // loop_header_branch
      %19 = sbr.rel (%p17) target = $region8
    $region5: #{tpu_custom_call.1} parent=1 // loop_body
      %s21 = ssub.s32 %s16, 1
      %s22 = ssub.s32 %s16, 2
      %s29 = sadd.s32 1, %s24
      %p30 = scmp.ge.s32.totalorder %s29, 2
      %s31 = scalar_select %p30, 0, %s29
      %s32 = sadd.s32 1, %s23
      %s33 = scalar_select %p30, %s32, %s23
      %p34 = scmp.ge.s32.totalorder %s33, 2
      %s35 = scalar_select %p34, 0, %s33
      %s36 = ssub.s32 %s23, %s35
      %s37 = ssub.s32 %s24, %s31
      %s38 = sor.u32 %s36, %s37
      %p39 = scmp.eq.s32.totalorder %s38, 0
      %s41 = sadd.s32 %s40, 1
      %s42 = scalar_select %p39, %s40, %s41
      %p45 = pneg %p39
      %p46 = scmp.eq.s32.totalorder %s16, 3
      %p47 = por %p45, %p46
      %p48 = scmp.ne.s32.totalorder %s40, %s43
      %p49 = scmp.eq.s32.totalorder %s16, 0
      %p50 = por %p48, %p49
      %p51 = scmp.ne.s32.totalorder %s40, %s43
      %p52 = scmp.eq.s32.totalorder %s21, 3
      %p53 = por %p51, %p52
      %p54 = scmp.ne.s32.totalorder %s43, %s44
      %p55 = scmp.eq.s32.totalorder %s21, 0
      %p56 = por %p54, %p55
      %p57 = scmp.ne.s32.totalorder %s43, %s44
      %p58 = scmp.eq.s32.totalorder %s22, 3
      %p59 = por %p57, %p58
      %p61 = scmp.ne.s32.totalorder %s44, %s60
      %p62 = scmp.eq.s32.totalorder %s22, 0
      %p63 = por %p61, %p62
      %s64 = sadd.s32 %s24, 1
      %s65 = smul.u32 %s64, 4
      %s66 = sadd.s32 %s31, 1
      %s67 = smul.u32 %s66, 4
      %s68 = ssub.s32 %s23, %s35
      %s69 = ssub.s32 %s65, %s67
      %s70 = sor.u32 %s68, %s69
      %p71 = scmp.eq.s32.totalorder %s70, 0
      %s73 = sadd.s32 %s72, 1
      %s74 = scalar_select %p71, %s72, %s73
      %p77 = pneg %p71
      %p78 = scmp.eq.s32.totalorder %s16, 3
      %p79 = por %p77, %p78
      %p80 = scmp.ne.s32.totalorder %s72, %s75
      %p81 = scmp.eq.s32.totalorder %s16, 0
      %p82 = por %p80, %p81
      %p83 = scmp.ne.s32.totalorder %s72, %s75
      %p84 = scmp.eq.s32.totalorder %s21, 3
      %p85 = por %p83, %p84
      %p86 = scmp.ne.s32.totalorder %s75, %s76
      %p87 = scmp.eq.s32.totalorder %s21, 0
      %p88 = por %p86, %p87
      %p89 = scmp.ne.s32.totalorder %s75, %s76
      %p90 = scmp.eq.s32.totalorder %s22, 3
      %p91 = por %p89, %p90
      %p93 = scmp.ne.s32.totalorder %s76, %s92
      %p94 = scmp.eq.s32.totalorder %s22, 0
      %p95 = por %p93, %p94
      %s96 = ssub.s32 %s24, %s31
      %p97 = scmp.eq.s32.totalorder %s96, 0
      %s99 = sadd.s32 %s98, 1
      %s100 = scalar_select %p97, %s98, %s99
      %p103 = pneg %p97
      %p104 = scmp.eq.s32.totalorder %s16, 3
      %p105 = por %p103, %p104
      %p106 = scmp.ne.s32.totalorder %s98, %s101
      %p107 = scmp.eq.s32.totalorder %s16, 0
      %p108 = por %p106, %p107
      %p109 = scmp.ne.s32.totalorder %s98, %s101
      %p110 = scmp.eq.s32.totalorder %s21, 3
      %p111 = por %p109, %p110
      %p112 = scmp.ne.s32.totalorder %s101, %s102
      %p113 = scmp.eq.s32.totalorder %s21, 0
      %p114 = por %p112, %p113
      %p115 = scmp.ne.s32.totalorder %s101, %s102
      %p116 = scmp.eq.s32.totalorder %s22, 3
      %p117 = por %p115, %p116
      %p119 = scmp.ne.s32.totalorder %s102, %s118
      %p120 = scmp.eq.s32.totalorder %s22, 0
      %p121 = por %p119, %p120
      %s123 = sadd.s32 %s122, 1
      %p126 = scmp.eq.s32.totalorder %s16, 3
      %p127 = scmp.ne.s32.totalorder %s122, %s124
      %p128 = scmp.eq.s32.totalorder %s16, 0
      %p129 = por %p127, %p128
      %p130 = scmp.ne.s32.totalorder %s122, %s124
      %p131 = scmp.eq.s32.totalorder %s21, 3
      %p132 = por %p130, %p131
      %p133 = scmp.ne.s32.totalorder %s124, %s125
      %p134 = scmp.eq.s32.totalorder %s21, 0
      %p135 = por %p133, %p134
      %p136 = scmp.ne.s32.totalorder %s124, %s125
      %p137 = scmp.eq.s32.totalorder %s22, 3
      %p138 = por %p136, %p137
      %p140 = scmp.ne.s32.totalorder %s125, %s139
      %p141 = scmp.eq.s32.totalorder %s22, 0
      %p142 = por %p140, %p141
      %s144 = sadd.s32 %s143, 1
      %p147 = scmp.eq.s32.totalorder %s16, 3
      %p148 = scmp.ne.s32.totalorder %s143, %s145
      %p149 = scmp.eq.s32.totalorder %s16, 0
      %p150 = por %p148, %p149
      %p151 = scmp.ne.s32.totalorder %s143, %s145
      %p152 = scmp.eq.s32.totalorder %s21, 3
      %p153 = por %p151, %p152
      %p154 = scmp.ne.s32.totalorder %s145, %s146
      %p155 = scmp.eq.s32.totalorder %s21, 0
      %p156 = por %p154, %p155
      %p157 = scmp.ne.s32.totalorder %s145, %s146
      %p158 = scmp.eq.s32.totalorder %s22, 3
      %p159 = por %p157, %p158
      %p161 = scmp.ne.s32.totalorder %s146, %s160
      %p162 = scmp.eq.s32.totalorder %s22, 0
      %p163 = por %p161, %p162
      %s165 = sadd.s32 %s164, 1
      %p168 = scmp.eq.s32.totalorder %s16, 3
      %p169 = scmp.ne.s32.totalorder %s164, %s166
      %p170 = scmp.eq.s32.totalorder %s16, 0
      %p171 = por %p169, %p170
      %p172 = scmp.ne.s32.totalorder %s164, %s166
      %p173 = scmp.eq.s32.totalorder %s21, 3
      %p174 = por %p172, %p173
      %p175 = scmp.ne.s32.totalorder %s166, %s167
      %p176 = scmp.eq.s32.totalorder %s21, 0
      %p177 = por %p175, %p176
      %p178 = scmp.ne.s32.totalorder %s166, %s167
      %p179 = scmp.eq.s32.totalorder %s22, 3
      %p180 = por %p178, %p179
      %p182 = scmp.ne.s32.totalorder %s167, %s181
      %p183 = scmp.eq.s32.totalorder %s22, 0
      %p184 = por %p182, %p183
      %s186 = sadd.s32 %s185, 1
      %p189 = scmp.eq.s32.totalorder %s16, 3
      %p190 = scmp.ne.s32.totalorder %s185, %s187
      %p191 = scmp.eq.s32.totalorder %s16, 0
      %p192 = por %p190, %p191
      %p193 = scmp.ne.s32.totalorder %s185, %s187
      %p194 = scmp.eq.s32.totalorder %s21, 3
      %p195 = por %p193, %p194
      %p196 = scmp.ne.s32.totalorder %s187, %s188
      %p197 = scmp.eq.s32.totalorder %s21, 0
      %p198 = por %p196, %p197
      %p199 = scmp.ne.s32.totalorder %s187, %s188
      %p200 = scmp.eq.s32.totalorder %s22, 3
      %p201 = por %p199, %p200
      %p203 = scmp.ne.s32.totalorder %s188, %s202
      %p204 = scmp.eq.s32.totalorder %s22, 0
      %p205 = por %p203, %p204
      %s206 = ssub.s32 %s23, %s35
      %s207 = ssub.s32 %s24, %s31
      %s208 = sor.u32 %s206, %s207
      %p209 = scmp.eq.s32.totalorder %s208, 0
      %s211 = sadd.s32 %s210, 1
      %s212 = scalar_select %p209, %s210, %s211
      %p215 = pneg %p209
      %p216 = scmp.eq.s32.totalorder %s16, 3
      %p217 = por %p215, %p216
      %p218 = scmp.ne.s32.totalorder %s210, %s213
      %p219 = scmp.eq.s32.totalorder %s16, 0
      %p220 = por %p218, %p219
      %p221 = scmp.ne.s32.totalorder %s210, %s213
      %p222 = scmp.eq.s32.totalorder %s21, 3
      %p223 = por %p221, %p222
      %p224 = scmp.ne.s32.totalorder %s213, %s214
      %p225 = scmp.eq.s32.totalorder %s21, 0
      %p226 = por %p224, %p225
      %p227 = scmp.ne.s32.totalorder %s213, %s214
      %p228 = scmp.eq.s32.totalorder %s22, 3
      %p229 = por %p227, %p228
      %p231 = scmp.ne.s32.totalorder %s214, %s230
      %p232 = scmp.eq.s32.totalorder %s22, 0
      %p233 = por %p231, %p232
      %p234 = scmp.le.s32.totalorder 1, %s16
      %p235 = scmp.lt.s32.totalorder %s16, 5
      %p236 = pnand %p234, %p235
      %p237 = pneg %p236
      // Predicated region
      $region9: #{tpu_custom_call.1} parent=5 // pred_check
        _
      $region10: #{tpu_custom_call.1} parent=5 // pred_check_branch
        %239 = sbr.rel (%p236) target = $region12
      $region11: #{tpu_custom_call.1} parent=5 // pred_region
        %s240 = ssub.s32 %s16, 1
        // Predicated region
        $region13: #{tpu_custom_call.1} parent=11 // pred_check
          %p241 = pneg %p135
        $region14: #{tpu_custom_call.1} parent=11 // pred_check_branch
          %243 = sbr.rel (%p241) target = $region16
        $region15: #{tpu_custom_call.1} parent=11 // pred_region
          _
        $region16: #{tpu_custom_call.1} parent=11 // pred_fallthru
          _
        // Predicated region
        $region17: #{tpu_custom_call.1} parent=11 // pred_check
          %p244 = pneg %p156
        $region18: #{tpu_custom_call.1} parent=11 // pred_check_branch
          %246 = sbr.rel (%p244) target = $region20
        $region19: #{tpu_custom_call.1} parent=11 // pred_region
          _
        $region20: #{tpu_custom_call.1} parent=11 // pred_fallthru
          _
        // Predicated region
        $region21: #{tpu_custom_call.1} parent=11 // pred_check
          %p247 = pneg %p177
        $region22: #{tpu_custom_call.1} parent=11 // pred_check_branch
          %249 = sbr.rel (%p247) target = $region24
        $region23: #{tpu_custom_call.1} parent=11 // pred_region
          _
        $region24: #{tpu_custom_call.1} parent=11 // pred_fallthru
          _
        // Predicated region
        $region25: #{tpu_custom_call.1} parent=11 // pred_check
          %p250 = pneg %p198
        $region26: #{tpu_custom_call.1} parent=11 // pred_check_branch
          %252 = sbr.rel (%p250) target = $region28
        $region27: #{tpu_custom_call.1} parent=11 // pred_region
          _
        $region28: #{tpu_custom_call.1} parent=11 // pred_fallthru
          _
      $region12: #{tpu_custom_call.1} parent=5 // pred_fallthru
        _
      %p253 = scmp.lt.s32.totalorder %s16, 4
      // Predicated region
      $region29: #{tpu_custom_call.1} parent=5 // pred_check
        %p254 = pneg %p253
      $region30: #{tpu_custom_call.1} parent=5 // pred_check_branch
        %256 = sbr.rel (%p254) target = $region32
      $region31: #{tpu_custom_call.1} parent=5 // pred_region
        // Predicated region
        $region33: #{tpu_custom_call.1} parent=31 // pred_check
          %p257 = pneg %p50
        $region34: #{tpu_custom_call.1} parent=31 // pred_check_branch
          %259 = sbr.rel (%p257) target = $region36
        $region35: #{tpu_custom_call.1} parent=31 // pred_region
          %s260 = smul.u32 8, %s24
          %s261 = ssub.s32 18, %s260
          %p262 = scmp.lt.s32.totalorder %s261, 8
          %s263 = scalar_select %p262, %s261, 8
          %s264 = smul.u32 64, %s263
          %s265 = smul.u32 %s264, 3
          %p266 = scmp.lt.s32.totalorder %s23, 1
          %s267 = scalar_select %p266, %s23, 1
          %p268 = scmp.lt.s32.totalorder %s260, 17
          %s269 = scalar_select %p268, %s260, 17
          %s270 = smul.addr %s269, 3
          %s271 = smul.addr %s267, 54
          %s272 = sadd.s32 %s270, %s271
          %s273 = smul.addr %s272, 4
          %s274 = scalar_lea.vmem %s0, %s273
          %s275 = smul.u32 8, %s24
          %s276 = ssub.s32 18, %s275
          %p277 = scmp.lt.s32.totalorder %s276, 8
          %s278 = scalar_select %p277, %s276, 8
          %s279 = smul.u32 64, %s278
          %s280 = smul.u32 %s279, 3
        $region36: #{tpu_custom_call.1} parent=31 // pred_fallthru
          _
        // Predicated region
        $region37: #{tpu_custom_call.1} parent=31 // pred_check
          %p281 = pneg %p82
        $region38: #{tpu_custom_call.1} parent=31 // pred_check_branch
          %283 = sbr.rel (%p281) target = $region40
        $region39: #{tpu_custom_call.1} parent=31 // pred_region
          %s284 = sadd.s32 %s24, 1
          %s285 = smul.u32 %s284, 4
          %s286 = smul.u32 2, %s285
          %p287 = scmp.lt.s32.totalorder %s23, 1
          %s288 = scalar_select %p287, %s23, 1
          %p289 = scmp.lt.s32.totalorder %s286, 17
          %s290 = scalar_select %p289, %s286, 17
          %s291 = smul.addr %s290, 3
          %s292 = smul.addr %s288, 54
          %s293 = sadd.s32 %s291, %s292
          %s294 = smul.addr %s293, 4
          %s295 = scalar_lea.vmem %s1, %s294
          %s296 = sadd.s32 %s24, 1
          %s297 = smul.u32 %s296, 4
          %s298 = smul.u32 2, %s297
        $region40: #{tpu_custom_call.1} parent=31 // pred_fallthru
          _
        // Predicated region
        $region41: #{tpu_custom_call.1} parent=31 // pred_check
          %p299 = pneg %p108
        $region42: #{tpu_custom_call.1} parent=31 // pred_check_branch
          %301 = sbr.rel (%p299) target = $region44
        $region43: #{tpu_custom_call.1} parent=31 // pred_region
          %s302 = smul.u32 24, %s24
          %p303 = scmp.lt.s32.totalorder %s302, 47
          %s304 = scalar_select %p303, %s302, 47
          %s305 = smul.addr %s304, 8
          %s306 = scalar_lea.vmem %s2, %s305
          %s307 = smul.u32 24, %s24
        $region44: #{tpu_custom_call.1} parent=31 // pred_fallthru
          _
      $region32: #{tpu_custom_call.1} parent=5 // pred_fallthru
        _
      %p308 = scmp.le.s32.totalorder 1, %s16
      %p309 = scmp.lt.s32.totalorder %s16, 5
      %p310 = pnand %p308, %p309
      %p311 = pneg %p310
      // Predicated region
      $region45: #{tpu_custom_call.1} parent=5 // pred_check
        _
      $region46: #{tpu_custom_call.1} parent=5 // pred_check_branch
        %313 = sbr.rel (%p310) target = $region48
      $region47: #{tpu_custom_call.1} parent=5 // pred_region
        %s314 = ssub.s32 %s16, 1
        %s315 = smul.u32 8, %s26
        %s316 = ssub.s32 18, %s315
        %p317 = scmp.lt.s32.totalorder %s316, 8
        %s318 = scalar_select %p317, %s316, 8
        %s319 = smul.u32 64, %s318
        %s320 = smul.u32 %s319, 3
        %p321 = scmp.lt.s32.totalorder %s25, 1
        %s322 = scalar_select %p321, %s25, 1
        %p323 = scmp.lt.s32.totalorder %s315, 17
        %s324 = scalar_select %p323, %s315, 17
        %s325 = smul.addr %s324, 3
        %s326 = smul.addr %s322, 54
        %s327 = sadd.s32 %s325, %s326
        %s328 = smul.addr %s327, 4
        %s329 = scalar_lea.vmem %s0, %s328
        %p330 = pneg %p56
        %p331 = pneg %p53
        %s332 = sadd.s32 %s26, 1
        %s333 = smul.u32 %s332, 4
        %s334 = smul.u32 2, %s333
        %p335 = scmp.lt.s32.totalorder %s25, 1
        %s336 = scalar_select %p335, %s25, 1
        %p337 = scmp.lt.s32.totalorder %s334, 17
        %s338 = scalar_select %p337, %s334, 17
        %s339 = smul.addr %s338, 3
        %s340 = smul.addr %s336, 54
        %s341 = sadd.s32 %s339, %s340
        %s342 = smul.addr %s341, 4
        %s343 = scalar_lea.vmem %s1, %s342
        %p344 = pneg %p88
        %p345 = pneg %p85
        %s346 = smul.u32 24, %s26
        %p347 = scmp.lt.s32.totalorder %s346, 47
        %s348 = scalar_select %p347, %s346, 47
        %s349 = smul.addr %s348, 8
        %s350 = scalar_lea.vmem %s2, %s349
        %p351 = pneg %p114
        %p352 = pneg %p111
        %p353 = pneg %p135
        %p354 = pneg %p132
        %p355 = pneg %p156
        %p356 = pneg %p153
        %p357 = pneg %p177
        %p358 = pneg %p174
        %p359 = pneg %p198
        %p360 = pneg %p195
        %p361 = pneg %p226
        %p362 = pneg %p223
        %s363 = sand.u32 %s213, 1
        %s364 = scalar_lea.sflag [#allocation4], %s363
        %s365 = sand.u32 %s213, 1
        %s366 = smul.addr %s365, 192
        %s367 = scalar_lea.vmem [#allocation3], %s366
        %s368 = smul.u32 8, %s26
        %s369 = ssub.s32 18, %s368
        %p370 = scmp.lt.s32.totalorder %s369, 8
        %s371 = scalar_select %p370, %s369, 8
        %s372 = smul.u32 64, %s371
        %s373 = smul.u32 %s372, 3
        %p374 = scmp.lt.s32.totalorder %s25, 1
        %s375 = scalar_select %p374, %s25, 1
        %p376 = scmp.lt.s32.totalorder %s368, 17
        %s377 = scalar_select %p376, %s368, 17
        %s378 = smul.addr %s377, 3
        %s379 = smul.addr %s375, 54
        %s380 = sadd.s32 %s378, %s379
        %s381 = smul.addr %s380, 4
        %s382 = scalar_lea.vmem %s0, %s381
        %s383 = smul.u32 8, %s26
        %s384 = ssub.s32 18, %s383
        %p385 = scmp.lt.s32.totalorder %s384, 8
        %s386 = scalar_select %p385, %s384, 8
        %s387 = smul.u32 64, %s386
        %s388 = smul.u32 %s387, 3
        %s389 = sadd.s32 %s26, 1
        %s390 = smul.u32 %s389, 4
        %s391 = smul.u32 2, %s390
        %p392 = scmp.lt.s32.totalorder %s25, 1
        %s393 = scalar_select %p392, %s25, 1
        %p394 = scmp.lt.s32.totalorder %s391, 17
        %s395 = scalar_select %p394, %s391, 17
        %s396 = smul.addr %s395, 3
        %s397 = smul.addr %s393, 54
        %s398 = sadd.s32 %s396, %s397
        %s399 = smul.addr %s398, 4
        %s400 = scalar_lea.vmem %s1, %s399
        %s401 = sadd.s32 %s26, 1
        %s402 = smul.u32 %s401, 4
        %s403 = smul.u32 2, %s402
        %s404 = smul.u32 24, %s26
        %p405 = scmp.lt.s32.totalorder %s404, 47
        %s406 = scalar_select %p405, %s404, 47
        %s407 = smul.addr %s406, 8
        %s408 = scalar_lea.vmem %s2, %s407
        %s409 = smul.u32 24, %s26
        %s410 = smul.u32 24, %s26
        %v412 = vld [vmem:[%s382] sm:$0xf]
        %v413 = vld [vmem:[%s382 + $0x4] sm:$0xf]
        %v414 = vld [vmem:[%s382 + $0x8] sm:$0xf]
        %v415 = vld [vmem:[%s382 + $0xc] sm:$0xf]
        %v416 = vld [vmem:[%s382 + $0x10] sm:$0xf]
        %v417 = vld [vmem:[%s382 + $0x14] sm:$0xf]
        %v418 = vld [vmem:[%s382 + $0x18] sm:$0xf]
        %v419 = vld [vmem:[%s382 + $0x1c] sm:$0xf]
        %v420 = vld [vmem:[%s382 + $0x20] sm:$0xf]
        %v421 = vld [vmem:[%s382 + $0x24] sm:$0xf]
        %v422 = vld [vmem:[%s382 + $0x28] sm:$0xf]
        %v423 = vld [vmem:[%s382 + $0x2c] sm:$0xf]
        %v424 = vld [vmem:[%s382 + $0x30] sm:$0xf]
        %v425 = vld [vmem:[%s382 + $0x34] sm:$0xf]
        %v426 = vld [vmem:[%s382 + $0x38] sm:$0xf]
        %v427 = vld [vmem:[%s382 + $0x3c] sm:$0xf]
        %v428 = vld [vmem:[%s382 + $0x40] sm:$0xf]
        %v429 = vld [vmem:[%s382 + $0x44] sm:$0xf]
        %v430 = vld [vmem:[%s382 + $0x48] sm:$0xf]
        %v431 = vld [vmem:[%s382 + $0x4c] sm:$0xf]
        %v432 = vld [vmem:[%s382 + $0x50] sm:$0xf]
        %v433 = vld [vmem:[%s382 + $0x54] sm:$0xf]
        %v434 = vld [vmem:[%s382 + $0x58] sm:$0xf]
        %v435 = vld [vmem:[%s382 + $0x5c] sm:$0xf]
        %v436 = vunpack.c.l.bf16 %v412
        %v437 = vunpack.c.l.bf16 %v413
        %v438 = vunpack.c.l.bf16 %v414
        %v439 = vunpack.c.l.bf16 %v415
        %v440 = vunpack.c.l.bf16 %v416
        %v441 = vunpack.c.l.bf16 %v417
        %v442 = vunpack.c.l.bf16 %v418
        %v443 = vunpack.c.l.bf16 %v419
        %v444 = vunpack.c.l.bf16 %v420
        %v445 = vunpack.c.l.bf16 %v421
        %v446 = vunpack.c.l.bf16 %v422
        %v447 = vunpack.c.l.bf16 %v423
        %v448 = vunpack.c.l.bf16 %v424
        %v449 = vunpack.c.l.bf16 %v425
        %v450 = vunpack.c.l.bf16 %v426
        %v451 = vunpack.c.l.bf16 %v427
        %v452 = vunpack.c.l.bf16 %v428
        %v453 = vunpack.c.l.bf16 %v429
        %v454 = vunpack.c.l.bf16 %v430
        %v455 = vunpack.c.l.bf16 %v431
        %v456 = vunpack.c.l.bf16 %v432
        %v457 = vunpack.c.l.bf16 %v433
        %v458 = vunpack.c.l.bf16 %v434
        %v459 = vunpack.c.l.bf16 %v435
        %v460 = vld [vmem:[%s400] sm:$0xf]
        %v461 = vld [vmem:[%s400 + $0x4] sm:$0xf]
        %v462 = vld [vmem:[%s400 + $0x8] sm:$0xf]
        %v463 = vld [vmem:[%s400 + $0xc] sm:$0xf]
        %v464 = vld [vmem:[%s400 + $0x10] sm:$0xf]
        %v465 = vld [vmem:[%s400 + $0x14] sm:$0xf]
        %v466 = vunpack.c.l.bf16 %v460
        %v467 = vunpack.c.l.bf16 %v461
        %v468 = vunpack.c.l.bf16 %v462
        %v469 = vunpack.c.l.bf16 %v463
        %v470 = vunpack.c.l.bf16 %v464
        %v471 = vunpack.c.l.bf16 %v465
        %v472 = vpack.c.bf16 %v437, %v436
        %v473 = vpack.c.bf16 %v439, %v438
        %v474 = vpack.c.bf16 %v441, %v440
        %v475 = vpack.c.bf16 %v443, %v442
        %v476 = vpack.c.bf16 %v445, %v444
        %v477 = vpack.c.bf16 %v447, %v446
        %v478 = vpack.c.bf16 %v449, %v448
        %v479 = vpack.c.bf16 %v451, %v450
        %v480 = vpack.c.bf16 %v453, %v452
        %v481 = vpack.c.bf16 %v455, %v454
        %v482 = vpack.c.bf16 %v457, %v456
        %v483 = vpack.c.bf16 %v459, %v458
        %v484 = vld [vmem:[%s3] sm:$0xf]
        %v485 = vld [vmem:[%s3 + $0x4] sm:$0xf]
        %v488 = vunpack.c.l.b16 %v484
        %v489 = vunpack.c.l.b16 %v485
        %v490 = vpack.c.b16 %v489, %v488
        %vm492 = vcmask 130048
        %v494 = vsel %vm492, %v472, 0
        %v497 = vsel %vm492, %v473, 0
        %v500 = vsel %vm492, %v474, 0
        %v503 = vsel %vm492, %v475, 0
        %v506 = vsel %vm492, %v476, 0
        %v509 = vsel %vm492, %v477, 0
        %v512 = vsel %vm492, %v478, 0
        %v515 = vsel %vm492, %v479, 0
        %v518 = vsel %vm492, %v480, 0
        %v521 = vsel %vm492, %v481, 0
        %v524 = vsel %vm492, %v482, 0
        %v527 = vsel %vm492, %v483, 0
        %529 = vmatprep.subr.bf16.mxu0 0
        %530 = vmatpush1.bf16.msra.mxu0 %v490
        %531 = vmatprep.subr.bf16.mxu0 0
        %532 = vmatpush1.bf16.msra.mxu0 0
        %533 = vmatprep.subr.bf16.mxu0 0
        %534 = vmatpush1.bf16.msra.mxu0 0
        %535 = vmatprep.subr.bf16.mxu0 0
        %536 = vmatpush1.bf16.msra.mxu0 0
        %537 = vmatprep.subr.bf16.mxu0 0
        %538 = vmatpush1.bf16.msra.mxu0 0
        %539 = vmatprep.subr.bf16.mxu0 0
        %540 = vmatpush1.bf16.msra.mxu0 0
        %541 = vmatprep.subr.bf16.mxu0 0
        %542 = vmatpush1.bf16.msra.mxu0 0
        %543 = vmatprep.subr.bf16.mxu0 0
        %544 = vmatpush1.bf16.msra.mxu0 0
        %545 = vmatprep.subr.bf16.mxu0 0
        %546 = vmatpush1.bf16.msra.mxu0 0
        %547 = vmatprep.subr.bf16.mxu0 0
        %548 = vmatpush1.bf16.msra.mxu0 0
        %549 = vmatprep.subr.bf16.mxu0 0
        %550 = vmatpush1.bf16.msra.mxu0 0
        %551 = vmatprep.subr.bf16.mxu0 0
        %552 = vmatpush1.bf16.msra.mxu0 0
        %553 = vmatprep.subr.bf16.mxu0 0
        %554 = vmatpush1.bf16.msra.mxu0 0
        %555 = vmatprep.subr.bf16.mxu0 0
        %556 = vmatpush1.bf16.msra.mxu0 0
        %557 = vmatprep.subr.bf16.mxu0 0
        %558 = vmatpush1.bf16.msra.mxu0 0
        %559 = vmatprep.subr.bf16.mxu0 0
        %560 = vmatpush1.bf16.msra.mxu0 0
        %561 = vmatprep.mubr.bf16.mxu0 0
        %562 = vmatmul.mubr.bf16.gmra.mrb[0].mxu0 %v494
        %v563 = vpop.f32.mrb[0].mxu0
        %v564 = vadd.f32 0.0, %v563
        %v565 = vpop.f32.mrb[0].mxu0
        %v566 = vpop.f32.mrb[0].mxu0
        %v567 = vadd.f32 0.0, %v566
        %v568 = vpop.f32.mrb[0].mxu0
        %569 = vmatprep.mubr.bf16.mxu0 0
        %570 = vmatmul.mubr.bf16.gmra.mrb[0].mxu0 %v497
        %v571 = vpop.f32.mrb[0].mxu0
        %v572 = vadd.f32 0.0, %v571
        %v573 = vpop.f32.mrb[0].mxu0
        %v574 = vpop.f32.mrb[0].mxu0
        %v575 = vadd.f32 0.0, %v574
        %v576 = vpop.f32.mrb[0].mxu0
        %577 = vmatprep.mubr.bf16.mxu0 0
        %578 = vmatmul.mubr.bf16.gmra.mrb[0].mxu0 %v500
        %v579 = vpop.f32.mrb[0].mxu0
        %v580 = vadd.f32 0.0, %v579
        %v581 = vpop.f32.mrb[0].mxu0
        %v582 = vpop.f32.mrb[0].mxu0
        %v583 = vadd.f32 0.0, %v582
        %v584 = vpop.f32.mrb[0].mxu0
        %585 = vmatprep.mubr.bf16.mxu0 0
        %586 = vmatmul.mubr.bf16.gmra.mrb[0].mxu0 %v503
        %v587 = vpop.f32.mrb[0].mxu0
        %v588 = vadd.f32 0.0, %v587
        %v589 = vpop.f32.mrb[0].mxu0
        %v590 = vpop.f32.mrb[0].mxu0
        %v591 = vadd.f32 0.0, %v590
        %v592 = vpop.f32.mrb[0].mxu0
        %593 = vmatprep.mubr.bf16.mxu0 0
        %594 = vmatmul.mubr.bf16.gmra.mrb[0].mxu0 %v506
        %v595 = vpop.f32.mrb[0].mxu0
        %v596 = vadd.f32 0.0, %v595
        %v597 = vpop.f32.mrb[0].mxu0
        %v598 = vpop.f32.mrb[0].mxu0
        %v599 = vadd.f32 0.0, %v598
        %v600 = vpop.f32.mrb[0].mxu0
        %601 = vmatprep.mubr.bf16.mxu0 0
        %602 = vmatmul.mubr.bf16.gmra.mrb[0].mxu0 %v509
        %v603 = vpop.f32.mrb[0].mxu0
        %v604 = vadd.f32 0.0, %v603
        %v605 = vpop.f32.mrb[0].mxu0
        %v606 = vpop.f32.mrb[0].mxu0
        %v607 = vadd.f32 0.0, %v606
        %v608 = vpop.f32.mrb[0].mxu0
        %609 = vmatprep.mubr.bf16.mxu0 0
        %610 = vmatmul.mubr.bf16.gmra.mrb[0].mxu0 %v512
        %v611 = vpop.f32.mrb[0].mxu0
        %v612 = vadd.f32 0.0, %v611
        %v613 = vpop.f32.mrb[0].mxu0
        %v614 = vpop.f32.mrb[0].mxu0
        %v615 = vadd.f32 0.0, %v614
        %v616 = vpop.f32.mrb[0].mxu0
        %617 = vmatprep.mubr.bf16.mxu0 0
        %618 = vmatmul.mubr.bf16.gmra.mrb[0].mxu0 %v515
        %v619 = vpop.f32.mrb[0].mxu0
        %v620 = vadd.f32 0.0, %v619
        %v621 = vpop.f32.mrb[0].mxu0
        %v622 = vpop.f32.mrb[0].mxu0
        %v623 = vadd.f32 0.0, %v622
        %v624 = vpop.f32.mrb[0].mxu0
        %625 = vmatprep.mubr.bf16.mxu0 0
        %626 = vmatmul.mubr.bf16.gmra.mrb[0].mxu0 %v518
        %v627 = vpop.f32.mrb[0].mxu0
        %v628 = vadd.f32 0.0, %v627
        %v629 = vpop.f32.mrb[0].mxu0
        %v630 = vpop.f32.mrb[0].mxu0
        %v631 = vadd.f32 0.0, %v630
        %v632 = vpop.f32.mrb[0].mxu0
        %633 = vmatprep.mubr.bf16.mxu0 0
        %634 = vmatmul.mubr.bf16.gmra.mrb[0].mxu0 %v521
        %v635 = vpop.f32.mrb[0].mxu0
        %v636 = vadd.f32 0.0, %v635
        %v637 = vpop.f32.mrb[0].mxu0
        %v638 = vpop.f32.mrb[0].mxu0
        %v639 = vadd.f32 0.0, %v638
        %v640 = vpop.f32.mrb[0].mxu0
        %641 = vmatprep.mubr.bf16.mxu0 0
        %642 = vmatmul.mubr.bf16.gmra.mrb[0].mxu0 %v524
        %v643 = vpop.f32.mrb[0].mxu0
        %v644 = vadd.f32 0.0, %v643
        %v645 = vpop.f32.mrb[0].mxu0
        %v646 = vpop.f32.mrb[0].mxu0
        %v647 = vadd.f32 0.0, %v646
        %v648 = vpop.f32.mrb[0].mxu0
        %649 = vmatprep.mubr.bf16.mxu0 0
        %650 = vmatmul.mubr.bf16.gmra.mrb[0].mxu0 %v527
        %v651 = vpop.f32.mrb[0].mxu0
        %v652 = vadd.f32 0.0, %v651
        %v653 = vpop.f32.mrb[0].mxu0
        %v654 = vpop.f32.mrb[0].mxu0
        %v655 = vadd.f32 0.0, %v654
        %v656 = vpop.f32.mrb[0].mxu0
        %657 = vdwg.mxu0
        %658 = vst.msk [vmem:[#allocation2] sm:$0xff] %vm492, %v564
        %659 = vst.msk [vmem:[#allocation2 + $0x8] sm:$0xff] %vm492, %v567
        %660 = vst.msk [vmem:[#allocation2 + $0x10] sm:$0xff] %vm492, %v572
        %661 = vst.msk [vmem:[#allocation2 + $0x18] sm:$0xff] %vm492, %v575
        %662 = vst.msk [vmem:[#allocation2 + $0x20] sm:$0xff] %vm492, %v580
        %663 = vst.msk [vmem:[#allocation2 + $0x28] sm:$0xff] %vm492, %v583
        %664 = vst.msk [vmem:[#allocation2 + $0x30] sm:$0xff] %vm492, %v588
        %665 = vst.msk [vmem:[#allocation2 + $0x38] sm:$0xff] %vm492, %v591
        %666 = vst.msk [vmem:[#allocation2 + $0x40] sm:$0xff] %vm492, %v596
        %667 = vst.msk [vmem:[#allocation2 + $0x48] sm:$0xff] %vm492, %v599
        %668 = vst.msk [vmem:[#allocation2 + $0x50] sm:$0xff] %vm492, %v604
        %669 = vst.msk [vmem:[#allocation2 + $0x58] sm:$0xff] %vm492, %v607
        %670 = vst.msk [vmem:[#allocation2 + $0x60] sm:$0xff] %vm492, %v612
        %671 = vst.msk [vmem:[#allocation2 + $0x68] sm:$0xff] %vm492, %v615
        %672 = vst.msk [vmem:[#allocation2 + $0x70] sm:$0xff] %vm492, %v620
        %673 = vst.msk [vmem:[#allocation2 + $0x78] sm:$0xff] %vm492, %v623
        %674 = vst.msk [vmem:[#allocation2 + $0x80] sm:$0xff] %vm492, %v628
        %675 = vst.msk [vmem:[#allocation2 + $0x88] sm:$0xff] %vm492, %v631
        %676 = vst.msk [vmem:[#allocation2 + $0x90] sm:$0xff] %vm492, %v636
        %677 = vst.msk [vmem:[#allocation2 + $0x98] sm:$0xff] %vm492, %v639
        %678 = vst.msk [vmem:[#allocation2 + $0xa0] sm:$0xff] %vm492, %v644
        %679 = vst.msk [vmem:[#allocation2 + $0xa8] sm:$0xff] %vm492, %v647
        %680 = vst.msk [vmem:[#allocation2 + $0xb0] sm:$0xff] %vm492, %v652
        %681 = vst.msk [vmem:[#allocation2 + $0xb8] sm:$0xff] %vm492, %v655
        %v682 = vpack.c.bf16 %v466, %v466
        %s683 = scalar_lea.vmem %s3, 8
        %v684 = vld [vmem:[%s683] sm:$0xf]
        %v685 = vld [vmem:[%s683 + $0x4] sm:$0xf]
        %vm686 = vsmask.f32 7424
        %v687 = vshrl.u32 %v472, 16
        %v689 = vshll.u32 %v472, 16
        %v691 = vrot.slane %v689, 1
        %v692 = vor.u32 %v687, %v691
        %v693 = vshll.u32 %v473, 16
        %v695 = vrot.slane %v693, 1
        %v696 = vsel %vm686, %v692, %v695
        %v697 = vshrl.u32 %v473, 16
        %v699 = vor.u32 %v697, %v695
        %v700 = vshll.u32 %v474, 16
        %v702 = vrot.slane %v700, 1
        %v703 = vsel %vm686, %v699, %v702
        %v704 = vshrl.u32 %v474, 16
        %v706 = vor.u32 %v704, %v702
        %v707 = vshll.u32 %v475, 16
        %v709 = vrot.slane %v707, 1
        %v710 = vsel %vm686, %v706, %v709
        %v711 = vshrl.u32 %v475, 16
        %v713 = vor.u32 %v711, %v709
        %v714 = vshll.u32 %v476, 16
        %v716 = vrot.slane %v714, 1
        %v717 = vsel %vm686, %v713, %v716
        %v718 = vshrl.u32 %v476, 16
        %v720 = vor.u32 %v718, %v716
        %v721 = vshll.u32 %v477, 16
        %v723 = vrot.slane %v721, 1
        %v724 = vsel %vm686, %v720, %v723
        %v725 = vshrl.u32 %v477, 16
        %v727 = vor.u32 %v725, %v723
        %v728 = vshll.u32 %v478, 16
        %v730 = vrot.slane %v728, 1
        %v731 = vsel %vm686, %v727, %v730
        %v732 = vshrl.u32 %v478, 16
        %v734 = vor.u32 %v732, %v730
        %v735 = vshll.u32 %v479, 16
        %v737 = vrot.slane %v735, 1
        %v738 = vsel %vm686, %v734, %v737
        %v739 = vshrl.u32 %v479, 16
        %v741 = vor.u32 %v739, %v737
        %v742 = vshll.u32 %v480, 16
        %v744 = vrot.slane %v742, 1
        %v745 = vsel %vm686, %v741, %v744
        %v746 = vshrl.u32 %v480, 16
        %v748 = vor.u32 %v746, %v744
        %v749 = vshll.u32 %v481, 16
        %v751 = vrot.slane %v749, 1
        %v752 = vsel %vm686, %v748, %v751
        %v753 = vshrl.u32 %v481, 16
        %v755 = vor.u32 %v753, %v751
        %v756 = vshll.u32 %v482, 16
        %v758 = vrot.slane %v756, 1
        %v759 = vsel %vm686, %v755, %v758
        %v760 = vshrl.u32 %v482, 16
        %v762 = vor.u32 %v760, %v758
        %v763 = vshll.u32 %v483, 16
        %v765 = vrot.slane %v763, 1
        %v766 = vsel %vm686, %v762, %v765
        %v767 = vshrl.u32 %v483, 16
        %v769 = vor.u32 %v767, %v765
        %v771 = vshll.u32 %v682, 16
        %v773 = vrot.slane %v771, 1
        %v774 = vsel %vm686, %v769, %v773
        %v777 = vunpack.c.l.b16 %v684
        %v778 = vunpack.c.l.b16 %v685
        %v779 = vpack.c.b16 %v778, %v777
        %v782 = vsel %vm492, %v696, 0
        %v785 = vsel %vm492, %v703, 0
        %v788 = vsel %vm492, %v710, 0
        %v791 = vsel %vm492, %v717, 0
        %v794 = vsel %vm492, %v724, 0
        %v797 = vsel %vm492, %v731, 0
        %v800 = vsel %vm492, %v738, 0
        %v803 = vsel %vm492, %v745, 0
        %v806 = vsel %vm492, %v752, 0
        %v809 = vsel %vm492, %v759, 0
        %v812 = vsel %vm492, %v766, 0
        %v815 = vsel %vm492, %v774, 0
        %817 = vmatprep.subr.bf16.mxu0 0
        %818 = vmatpush1.bf16.msra.mxu0 %v779
        %819 = vmatprep.subr.bf16.mxu0 0
        %820 = vmatpush1.bf16.msra.mxu0 0
        %821 = vmatprep.subr.bf16.mxu0 0
        %822 = vmatpush1.bf16.msra.mxu0 0
        %823 = vmatprep.subr.bf16.mxu0 0
        %824 = vmatpush1.bf16.msra.mxu0 0
        %825 = vmatprep.subr.bf16.mxu0 0
        %826 = vmatpush1.bf16.msra.mxu0 0
        %827 = vmatprep.subr.bf16.mxu0 0
        %828 = vmatpush1.bf16.msra.mxu0 0
        %829 = vmatprep.subr.bf16.mxu0 0
        %830 = vmatpush1.bf16.msra.mxu0 0
        %831 = vmatprep.subr.bf16.mxu0 0
        %832 = vmatpush1.bf16.msra.mxu0 0
        %833 = vmatprep.subr.bf16.mxu0 0
        %834 = vmatpush1.bf16.msra.mxu0 0
        %835 = vmatprep.subr.bf16.mxu0 0
        %836 = vmatpush1.bf16.msra.mxu0 0
        %837 = vmatprep.subr.bf16.mxu0 0
        %838 = vmatpush1.bf16.msra.mxu0 0
        %839 = vmatprep.subr.bf16.mxu0 0
        %840 = vmatpush1.bf16.msra.mxu0 0
        %841 = vmatprep.subr.bf16.mxu0 0
        %842 = vmatpush1.bf16.msra.mxu0 0
        %843 = vmatprep.subr.bf16.mxu0 0
        %844 = vmatpush1.bf16.msra.mxu0 0
        %845 = vmatprep.subr.bf16.mxu0 0
        %846 = vmatpush1.bf16.msra.mxu0 0
        %847 = vmatprep.subr.bf16.mxu0 0
        %848 = vmatpush1.bf16.msra.mxu0 0
        %849 = vmatprep.mubr.bf16.mxu0 0
        %850 = vmatmul.mubr.bf16.gmra.mrb[0].mxu0 %v782
        %v851 = vpop.f32.mrb[0].mxu0
        %v852 = vadd.f32 0.0, %v851
        %v853 = vpop.f32.mrb[0].mxu0
        %v854 = vpop.f32.mrb[0].mxu0
        %v855 = vadd.f32 0.0, %v854
        %v856 = vpop.f32.mrb[0].mxu0
        %857 = vmatprep.mubr.bf16.mxu0 0
        %858 = vmatmul.mubr.bf16.gmra.mrb[0].mxu0 %v785
        %v859 = vpop.f32.mrb[0].mxu0
        %v860 = vadd.f32 0.0, %v859
        %v861 = vpop.f32.mrb[0].mxu0
        %v862 = vpop.f32.mrb[0].mxu0
        %v863 = vadd.f32 0.0, %v862
        %v864 = vpop.f32.mrb[0].mxu0
        %865 = vmatprep.mubr.bf16.mxu0 0
        %866 = vmatmul.mubr.bf16.gmra.mrb[0].mxu0 %v788
        %v867 = vpop.f32.mrb[0].mxu0
        %v868 = vadd.f32 0.0, %v867
        %v869 = vpop.f32.mrb[0].mxu0
        %v870 = vpop.f32.mrb[0].mxu0
        %v871 = vadd.f32 0.0, %v870
        %v872 = vpop.f32.mrb[0].mxu0
        %873 = vmatprep.mubr.bf16.mxu0 0
        %874 = vmatmul.mubr.bf16.gmra.mrb[0].mxu0 %v791
        %v875 = vpop.f32.mrb[0].mxu0
        %v876 = vadd.f32 0.0, %v875
        %v877 = vpop.f32.mrb[0].mxu0
        %v878 = vpop.f32.mrb[0].mxu0
        %v879 = vadd.f32 0.0, %v878
        %v880 = vpop.f32.mrb[0].mxu0
        %881 = vmatprep.mubr.bf16.mxu0 0
        %882 = vmatmul.mubr.bf16.gmra.mrb[0].mxu0 %v794
        %v883 = vpop.f32.mrb[0].mxu0
        %v884 = vadd.f32 0.0, %v883
        %v885 = vpop.f32.mrb[0].mxu0
        %v886 = vpop.f32.mrb[0].mxu0
        %v887 = vadd.f32 0.0, %v886
        %v888 = vpop.f32.mrb[0].mxu0
        %889 = vmatprep.mubr.bf16.mxu0 0
        %890 = vmatmul.mubr.bf16.gmra.mrb[0].mxu0 %v797
        %v891 = vpop.f32.mrb[0].mxu0
        %v892 = vadd.f32 0.0, %v891
        %v893 = vpop.f32.mrb[0].mxu0
        %v894 = vpop.f32.mrb[0].mxu0
        %v895 = vadd.f32 0.0, %v894
        %v896 = vpop.f32.mrb[0].mxu0
        %897 = vmatprep.mubr.bf16.mxu0 0
        %898 = vmatmul.mubr.bf16.gmra.mrb[0].mxu0 %v800
        %v899 = vpop.f32.mrb[0].mxu0
        %v900 = vadd.f32 0.0, %v899
        %v901 = vpop.f32.mrb[0].mxu0
        %v902 = vpop.f32.mrb[0].mxu0
        %v903 = vadd.f32 0.0, %v902
        %v904 = vpop.f32.mrb[0].mxu0
        %905 = vmatprep.mubr.bf16.mxu0 0
        %906 = vmatmul.mubr.bf16.gmra.mrb[0].mxu0 %v803
        %v907 = vpop.f32.mrb[0].mxu0
        %v908 = vadd.f32 0.0, %v907
        %v909 = vpop.f32.mrb[0].mxu0
        %v910 = vpop.f32.mrb[0].mxu0
        %v911 = vadd.f32 0.0, %v910
        %v912 = vpop.f32.mrb[0].mxu0
        %913 = vmatprep.mubr.bf16.mxu0 0
        %914 = vmatmul.mubr.bf16.gmra.mrb[0].mxu0 %v806
        %v915 = vpop.f32.mrb[0].mxu0
        %v916 = vadd.f32 0.0, %v915
        %v917 = vpop.f32.mrb[0].mxu0
        %v918 = vpop.f32.mrb[0].mxu0
        %v919 = vadd.f32 0.0, %v918
        %v920 = vpop.f32.mrb[0].mxu0
        %921 = vmatprep.mubr.bf16.mxu0 0
        %922 = vmatmul.mubr.bf16.gmra.mrb[0].mxu0 %v809
        %v923 = vpop.f32.mrb[0].mxu0
        %v924 = vadd.f32 0.0, %v923
        %v925 = vpop.f32.mrb[0].mxu0
        %v926 = vpop.f32.mrb[0].mxu0
        %v927 = vadd.f32 0.0, %v926
        %v928 = vpop.f32.mrb[0].mxu0
        %929 = vmatprep.mubr.bf16.mxu0 0
        %930 = vmatmul.mubr.bf16.gmra.mrb[0].mxu0 %v812
        %v931 = vpop.f32.mrb[0].mxu0
        %v932 = vadd.f32 0.0, %v931
        %v933 = vpop.f32.mrb[0].mxu0
        %v934 = vpop.f32.mrb[0].mxu0
        %v935 = vadd.f32 0.0, %v934
        %v936 = vpop.f32.mrb[0].mxu0
        %937 = vmatprep.mubr.bf16.mxu0 0
        %938 = vmatmul.mubr.bf16.gmra.mrb[0].mxu0 %v815
        %v939 = vpop.f32.mrb[0].mxu0
        %v940 = vadd.f32 0.0, %v939
        %v941 = vpop.f32.mrb[0].mxu0
        %v942 = vpop.f32.mrb[0].mxu0
        %v943 = vadd.f32 0.0, %v942
        %v944 = vpop.f32.mrb[0].mxu0
        %945 = vdwg.mxu0
        %v946 = vld [vmem:[#allocation2] sm:$0xff]
        %v947 = vld [vmem:[#allocation2 + $0x8] sm:$0xff]
        %v948 = vld [vmem:[#allocation2 + $0x10] sm:$0xff]
        %v949 = vld [vmem:[#allocation2 + $0x18] sm:$0xff]
        %v950 = vld [vmem:[#allocation2 + $0x20] sm:$0xff]
        %v951 = vld [vmem:[#allocation2 + $0x28] sm:$0xff]
        %v952 = vld [vmem:[#allocation2 + $0x30] sm:$0xff]
        %v953 = vld [vmem:[#allocation2 + $0x38] sm:$0xff]
        %v954 = vld [vmem:[#allocation2 + $0x40] sm:$0xff]
        %v955 = vld [vmem:[#allocation2 + $0x48] sm:$0xff]
        %v956 = vld [vmem:[#allocation2 + $0x50] sm:$0xff]
        %v957 = vld [vmem:[#allocation2 + $0x58] sm:$0xff]
        %v958 = vld [vmem:[#allocation2 + $0x60] sm:$0xff]
        %v959 = vld [vmem:[#allocation2 + $0x68] sm:$0xff]
        %v960 = vld [vmem:[#allocation2 + $0x70] sm:$0xff]
        %v961 = vld [vmem:[#allocation2 + $0x78] sm:$0xff]
        %v962 = vld [vmem:[#allocation2 + $0x80] sm:$0xff]
        %v963 = vld [vmem:[#allocation2 + $0x88] sm:$0xff]
        %v964 = vld [vmem:[#allocation2 + $0x90] sm:$0xff]
        %v965 = vld [vmem:[#allocation2 + $0x98] sm:$0xff]
        %v966 = vld [vmem:[#allocation2 + $0xa0] sm:$0xff]
        %v967 = vld [vmem:[#allocation2 + $0xa8] sm:$0xff]
        %v968 = vld [vmem:[#allocation2 + $0xb0] sm:$0xff]
        %v969 = vld [vmem:[#allocation2 + $0xb8] sm:$0xff]
        %v970 = vadd.f32 %v946, %v852
        %v971 = vadd.f32 %v947, %v855
        %v972 = vadd.f32 %v948, %v860
        %v973 = vadd.f32 %v949, %v863
        %v974 = vadd.f32 %v950, %v868
        %v975 = vadd.f32 %v951, %v871
        %v976 = vadd.f32 %v952, %v876
        %v977 = vadd.f32 %v953, %v879
        %v978 = vadd.f32 %v954, %v884
        %v979 = vadd.f32 %v955, %v887
        %v980 = vadd.f32 %v956, %v892
        %v981 = vadd.f32 %v957, %v895
        %v982 = vadd.f32 %v958, %v900
        %v983 = vadd.f32 %v959, %v903
        %v984 = vadd.f32 %v960, %v908
        %v985 = vadd.f32 %v961, %v911
        %v986 = vadd.f32 %v962, %v916
        %v987 = vadd.f32 %v963, %v919
        %v988 = vadd.f32 %v964, %v924
        %v989 = vadd.f32 %v965, %v927
        %v990 = vadd.f32 %v966, %v932
        %v991 = vadd.f32 %v967, %v935
        %v992 = vadd.f32 %v968, %v940
        %v993 = vadd.f32 %v969, %v943
        %994 = vst.msk [vmem:[#allocation2] sm:$0xff] %vm492, %v970
        %995 = vst.msk [vmem:[#allocation2 + $0x8] sm:$0xff] %vm492, %v971
        %996 = vst.msk [vmem:[#allocation2 + $0x10] sm:$0xff] %vm492, %v972
        %997 = vst.msk [vmem:[#allocation2 + $0x18] sm:$0xff] %vm492, %v973
        %998 = vst.msk [vmem:[#allocation2 + $0x20] sm:$0xff] %vm492, %v974
        %999 = vst.msk [vmem:[#allocation2 + $0x28] sm:$0xff] %vm492, %v975
        %1000 = vst.msk [vmem:[#allocation2 + $0x30] sm:$0xff] %vm492, %v976
        %1001 = vst.msk [vmem:[#allocation2 + $0x38] sm:$0xff] %vm492, %v977
        %1002 = vst.msk [vmem:[#allocation2 + $0x40] sm:$0xff] %vm492, %v978
        %1003 = vst.msk [vmem:[#allocation2 + $0x48] sm:$0xff] %vm492, %v979
        %1004 = vst.msk [vmem:[#allocation2 + $0x50] sm:$0xff] %vm492, %v980
        %1005 = vst.msk [vmem:[#allocation2 + $0x58] sm:$0xff] %vm492, %v981
        %1006 = vst.msk [vmem:[#allocation2 + $0x60] sm:$0xff] %vm492, %v982
        %1007 = vst.msk [vmem:[#allocation2 + $0x68] sm:$0xff] %vm492, %v983
        %1008 = vst.msk [vmem:[#allocation2 + $0x70] sm:$0xff] %vm492, %v984
        %1009 = vst.msk [vmem:[#allocation2 + $0x78] sm:$0xff] %vm492, %v985
        %1010 = vst.msk [vmem:[#allocation2 + $0x80] sm:$0xff] %vm492, %v986
        %1011 = vst.msk [vmem:[#allocation2 + $0x88] sm:$0xff] %vm492, %v987
        %1012 = vst.msk [vmem:[#allocation2 + $0x90] sm:$0xff] %vm492, %v988
        %1013 = vst.msk [vmem:[#allocation2 + $0x98] sm:$0xff] %vm492, %v989
        %1014 = vst.msk [vmem:[#allocation2 + $0xa0] sm:$0xff] %vm492, %v990
        %1015 = vst.msk [vmem:[#allocation2 + $0xa8] sm:$0xff] %vm492, %v991
        %1016 = vst.msk [vmem:[#allocation2 + $0xb0] sm:$0xff] %vm492, %v992
        %1017 = vst.msk [vmem:[#allocation2 + $0xb8] sm:$0xff] %vm492, %v993
        %s1018 = scalar_lea.vmem %s3, 16
        %v1019 = vld [vmem:[%s1018] sm:$0xf]
        %v1020 = vld [vmem:[%s1018 + $0x4] sm:$0xf]
        %vm1034 = vcmask 1046528
        %v1035 = vrot.slane %v472, 1
        %v1036 = vrot.slane %v473, 1
        %v1037 = vsel %vm1034, %v1035, %v1036
        %v1038 = vrot.slane %v474, 1
        %v1039 = vsel %vm1034, %v1036, %v1038
        %v1040 = vrot.slane %v475, 1
        %v1041 = vsel %vm1034, %v1038, %v1040
        %v1042 = vrot.slane %v476, 1
        %v1043 = vsel %vm1034, %v1040, %v1042
        %v1044 = vrot.slane %v477, 1
        %v1045 = vsel %vm1034, %v1042, %v1044
        %v1046 = vrot.slane %v478, 1
        %v1047 = vsel %vm1034, %v1044, %v1046
        %v1048 = vrot.slane %v479, 1
        %v1049 = vsel %vm1034, %v1046, %v1048
        %v1050 = vrot.slane %v480, 1
        %v1051 = vsel %vm1034, %v1048, %v1050
        %v1052 = vrot.slane %v481, 1
        %v1053 = vsel %vm1034, %v1050, %v1052
        %v1054 = vrot.slane %v482, 1
        %v1055 = vsel %vm1034, %v1052, %v1054
        %v1056 = vrot.slane %v483, 1
        %v1057 = vsel %vm1034, %v1054, %v1056
        %v1058 = vrot.slane %v682, 1
        %v1059 = vsel %vm1034, %v1056, %v1058
        %v1062 = vunpack.c.l.b16 %v1019
        %v1063 = vunpack.c.l.b16 %v1020
        %v1064 = vpack.c.b16 %v1063, %v1062
        %v1067 = vsel %vm492, %v1037, 0
        %v1070 = vsel %vm492, %v1039, 0
        %v1073 = vsel %vm492, %v1041, 0
        %v1076 = vsel %vm492, %v1043, 0
        %v1079 = vsel %vm492, %v1045, 0
        %v1082 = vsel %vm492, %v1047, 0
        %v1085 = vsel %vm492, %v1049, 0
        %v1088 = vsel %vm492, %v1051, 0
        %v1091 = vsel %vm492, %v1053, 0
        %v1094 = vsel %vm492, %v1055, 0
        %v1097 = vsel %vm492, %v1057, 0
        %v1100 = vsel %vm492, %v1059, 0
        %1102 = vmatprep.subr.bf16.mxu0 0
        %1103 = vmatpush1.bf16.msra.mxu0 %v1064
        %1104 = vmatprep.subr.bf16.mxu0 0
        %1105 = vmatpush1.bf16.msra.mxu0 0
        %1106 = vmatprep.subr.bf16.mxu0 0
        %1107 = vmatpush1.bf16.msra.mxu0 0
        %1108 = vmatprep.subr.bf16.mxu0 0
        %1109 = vmatpush1.bf16.msra.mxu0 0
        %1110 = vmatprep.subr.bf16.mxu0 0
        %1111 = vmatpush1.bf16.msra.mxu0 0
        %1112 = vmatprep.subr.bf16.mxu0 0
        %1113 = vmatpush1.bf16.msra.mxu0 0
        %1114 = vmatprep.subr.bf16.mxu0 0
        %1115 = vmatpush1.bf16.msra.mxu0 0
        %1116 = vmatprep.subr.bf16.mxu0 0
        %1117 = vmatpush1.bf16.msra.mxu0 0
        %1118 = vmatprep.subr.bf16.mxu0 0
        %1119 = vmatpush1.bf16.msra.mxu0 0
        %1120 = vmatprep.subr.bf16.mxu0 0
        %1121 = vmatpush1.bf16.msra.mxu0 0
        %1122 = vmatprep.subr.bf16.mxu0 0
        %1123 = vmatpush1.bf16.msra.mxu0 0
        %1124 = vmatprep.subr.bf16.mxu0 0
        %1125 = vmatpush1.bf16.msra.mxu0 0
        %1126 = vmatprep.subr.bf16.mxu0 0
        %1127 = vmatpush1.bf16.msra.mxu0 0
        %1128 = vmatprep.subr.bf16.mxu0 0
        %1129 = vmatpush1.bf16.msra.mxu0 0
        %1130 = vmatprep.subr.bf16.mxu0 0
        %1131 = vmatpush1.bf16.msra.mxu0 0
        %1132 = vmatprep.subr.bf16.mxu0 0
        %1133 = vmatpush1.bf16.msra.mxu0 0
        %1134 = vmatprep.mubr.bf16.mxu0 0
        %1135 = vmatmul.mubr.bf16.gmra.mrb[0].mxu0 %v1067
        %v1136 = vpop.f32.mrb[0].mxu0
        %v1137 = vadd.f32 0.0, %v1136
        %v1138 = vpop.f32.mrb[0].mxu0
        %v1139 = vpop.f32.mrb[0].mxu0
        %v1140 = vadd.f32 0.0, %v1139
        %v1141 = vpop.f32.mrb[0].mxu0
        %1142 = vmatprep.mubr.bf16.mxu0 0
        %1143 = vmatmul.mubr.bf16.gmra.mrb[0].mxu0 %v1070
        %v1144 = vpop.f32.mrb[0].mxu0
        %v1145 = vadd.f32 0.0, %v1144
        %v1146 = vpop.f32.mrb[0].mxu0
        %v1147 = vpop.f32.mrb[0].mxu0
        %v1148 = vadd.f32 0.0, %v1147
        %v1149 = vpop.f32.mrb[0].mxu0
        %1150 = vmatprep.mubr.bf16.mxu0 0
        %1151 = vmatmul.mubr.bf16.gmra.mrb[0].mxu0 %v1073
        %v1152 = vpop.f32.mrb[0].mxu0
        %v1153 = vadd.f32 0.0, %v1152
        %v1154 = vpop.f32.mrb[0].mxu0
        %v1155 = vpop.f32.mrb[0].mxu0
        %v1156 = vadd.f32 0.0, %v1155
        %v1157 = vpop.f32.mrb[0].mxu0
        %1158 = vmatprep.mubr.bf16.mxu0 0
        %1159 = vmatmul.mubr.bf16.gmra.mrb[0].mxu0 %v1076
        %v1160 = vpop.f32.mrb[0].mxu0
        %v1161 = vadd.f32 0.0, %v1160
        %v1162 = vpop.f32.mrb[0].mxu0
        %v1163 = vpop.f32.mrb[0].mxu0
        %v1164 = vadd.f32 0.0, %v1163
        %v1165 = vpop.f32.mrb[0].mxu0
        %1166 = vmatprep.mubr.bf16.mxu0 0
        %1167 = vmatmul.mubr.bf16.gmra.mrb[0].mxu0 %v1079
        %v1168 = vpop.f32.mrb[0].mxu0
        %v1169 = vadd.f32 0.0, %v1168
        %v1170 = vpop.f32.mrb[0].mxu0
        %v1171 = vpop.f32.mrb[0].mxu0
        %v1172 = vadd.f32 0.0, %v1171
        %v1173 = vpop.f32.mrb[0].mxu0
        %1174 = vmatprep.mubr.bf16.mxu0 0
        %1175 = vmatmul.mubr.bf16.gmra.mrb[0].mxu0 %v1082
        %v1176 = vpop.f32.mrb[0].mxu0
        %v1177 = vadd.f32 0.0, %v1176
        %v1178 = vpop.f32.mrb[0].mxu0
        %v1179 = vpop.f32.mrb[0].mxu0
        %v1180 = vadd.f32 0.0, %v1179
        %v1181 = vpop.f32.mrb[0].mxu0
        %1182 = vmatprep.mubr.bf16.mxu0 0
        %1183 = vmatmul.mubr.bf16.gmra.mrb[0].mxu0 %v1085
        %v1184 = vpop.f32.mrb[0].mxu0
        %v1185 = vadd.f32 0.0, %v1184
        %v1186 = vpop.f32.mrb[0].mxu0
        %v1187 = vpop.f32.mrb[0].mxu0
        %v1188 = vadd.f32 0.0, %v1187
        %v1189 = vpop.f32.mrb[0].mxu0
        %1190 = vmatprep.mubr.bf16.mxu0 0
        %1191 = vmatmul.mubr.bf16.gmra.mrb[0].mxu0 %v1088
        %v1192 = vpop.f32.mrb[0].mxu0
        %v1193 = vadd.f32 0.0, %v1192
        %v1194 = vpop.f32.mrb[0].mxu0
        %v1195 = vpop.f32.mrb[0].mxu0
        %v1196 = vadd.f32 0.0, %v1195
        %v1197 = vpop.f32.mrb[0].mxu0
        %1198 = vmatprep.mubr.bf16.mxu0 0
        %1199 = vmatmul.mubr.bf16.gmra.mrb[0].mxu0 %v1091
        %v1200 = vpop.f32.mrb[0].mxu0
        %v1201 = vadd.f32 0.0, %v1200
        %v1202 = vpop.f32.mrb[0].mxu0
        %v1203 = vpop.f32.mrb[0].mxu0
        %v1204 = vadd.f32 0.0, %v1203
        %v1205 = vpop.f32.mrb[0].mxu0
        %1206 = vmatprep.mubr.bf16.mxu0 0
        %1207 = vmatmul.mubr.bf16.gmra.mrb[0].mxu0 %v1094
        %v1208 = vpop.f32.mrb[0].mxu0
        %v1209 = vadd.f32 0.0, %v1208
        %v1210 = vpop.f32.mrb[0].mxu0
        %v1211 = vpop.f32.mrb[0].mxu0
        %v1212 = vadd.f32 0.0, %v1211
        %v1213 = vpop.f32.mrb[0].mxu0
        %1214 = vmatprep.mubr.bf16.mxu0 0
        %1215 = vmatmul.mubr.bf16.gmra.mrb[0].mxu0 %v1097
        %v1216 = vpop.f32.mrb[0].mxu0
        %v1217 = vadd.f32 0.0, %v1216
        %v1218 = vpop.f32.mrb[0].mxu0
        %v1219 = vpop.f32.mrb[0].mxu0
        %v1220 = vadd.f32 0.0, %v1219
        %v1221 = vpop.f32.mrb[0].mxu0
        %1222 = vmatprep.mubr.bf16.mxu0 0
        %1223 = vmatmul.mubr.bf16.gmra.mrb[0].mxu0 %v1100
        %v1224 = vpop.f32.mrb[0].mxu0
        %v1225 = vadd.f32 0.0, %v1224
        %v1226 = vpop.f32.mrb[0].mxu0
        %v1227 = vpop.f32.mrb[0].mxu0
        %v1228 = vadd.f32 0.0, %v1227
        %v1229 = vpop.f32.mrb[0].mxu0
        %1230 = vdwg.mxu0
        %v1231 = vld [vmem:[#allocation2] sm:$0xff]
        %v1232 = vld [vmem:[#allocation2 + $0x8] sm:$0xff]
        %v1233 = vld [vmem:[#allocation2 + $0x10] sm:$0xff]
        %v1234 = vld [vmem:[#allocation2 + $0x18] sm:$0xff]
        %v1235 = vld [vmem:[#allocation2 + $0x20] sm:$0xff]
        %v1236 = vld [vmem:[#allocation2 + $0x28] sm:$0xff]
        %v1237 = vld [vmem:[#allocation2 + $0x30] sm:$0xff]
        %v1238 = vld [vmem:[#allocation2 + $0x38] sm:$0xff]
        %v1239 = vld [vmem:[#allocation2 + $0x40] sm:$0xff]
        %v1240 = vld [vmem:[#allocation2 + $0x48] sm:$0xff]
        %v1241 = vld [vmem:[#allocation2 + $0x50] sm:$0xff]
        %v1242 = vld [vmem:[#allocation2 + $0x58] sm:$0xff]
        %v1243 = vld [vmem:[#allocation2 + $0x60] sm:$0xff]
        %v1244 = vld [vmem:[#allocation2 + $0x68] sm:$0xff]
        %v1245 = vld [vmem:[#allocation2 + $0x70] sm:$0xff]
        %v1246 = vld [vmem:[#allocation2 + $0x78] sm:$0xff]
        %v1247 = vld [vmem:[#allocation2 + $0x80] sm:$0xff]
        %v1248 = vld [vmem:[#allocation2 + $0x88] sm:$0xff]
        %v1249 = vld [vmem:[#allocation2 + $0x90] sm:$0xff]
        %v1250 = vld [vmem:[#allocation2 + $0x98] sm:$0xff]
        %v1251 = vld [vmem:[#allocation2 + $0xa0] sm:$0xff]
        %v1252 = vld [vmem:[#allocation2 + $0xa8] sm:$0xff]
        %v1253 = vld [vmem:[#allocation2 + $0xb0] sm:$0xff]
        %v1254 = vld [vmem:[#allocation2 + $0xb8] sm:$0xff]
        %v1255 = vadd.f32 %v1231, %v1137
        %v1256 = vadd.f32 %v1232, %v1140
        %v1257 = vadd.f32 %v1233, %v1145
        %v1258 = vadd.f32 %v1234, %v1148
        %v1259 = vadd.f32 %v1235, %v1153
        %v1260 = vadd.f32 %v1236, %v1156
        %v1261 = vadd.f32 %v1237, %v1161
        %v1262 = vadd.f32 %v1238, %v1164
        %v1263 = vadd.f32 %v1239, %v1169
        %v1264 = vadd.f32 %v1240, %v1172
        %v1265 = vadd.f32 %v1241, %v1177
        %v1266 = vadd.f32 %v1242, %v1180
        %v1267 = vadd.f32 %v1243, %v1185
        %v1268 = vadd.f32 %v1244, %v1188
        %v1269 = vadd.f32 %v1245, %v1193
        %v1270 = vadd.f32 %v1246, %v1196
        %v1271 = vadd.f32 %v1247, %v1201
        %v1272 = vadd.f32 %v1248, %v1204
        %v1273 = vadd.f32 %v1249, %v1209
        %v1274 = vadd.f32 %v1250, %v1212
        %v1275 = vadd.f32 %v1251, %v1217
        %v1276 = vadd.f32 %v1252, %v1220
        %v1277 = vadd.f32 %v1253, %v1225
        %v1278 = vadd.f32 %v1254, %v1228
        %1279 = vst.msk [vmem:[#allocation2] sm:$0xff] %vm492, %v1255
        %1280 = vst.msk [vmem:[#allocation2 + $0x8] sm:$0xff] %vm492, %v1256
        %1281 = vst.msk [vmem:[#allocation2 + $0x10] sm:$0xff] %vm492, %v1257
        %1282 = vst.msk [vmem:[#allocation2 + $0x18] sm:$0xff] %vm492, %v1258
        %1283 = vst.msk [vmem:[#allocation2 + $0x20] sm:$0xff] %vm492, %v1259
        %1284 = vst.msk [vmem:[#allocation2 + $0x28] sm:$0xff] %vm492, %v1260
        %1285 = vst.msk [vmem:[#allocation2 + $0x30] sm:$0xff] %vm492, %v1261
        %1286 = vst.msk [vmem:[#allocation2 + $0x38] sm:$0xff] %vm492, %v1262
        %1287 = vst.msk [vmem:[#allocation2 + $0x40] sm:$0xff] %vm492, %v1263
        %1288 = vst.msk [vmem:[#allocation2 + $0x48] sm:$0xff] %vm492, %v1264
        %1289 = vst.msk [vmem:[#allocation2 + $0x50] sm:$0xff] %vm492, %v1265
        %1290 = vst.msk [vmem:[#allocation2 + $0x58] sm:$0xff] %vm492, %v1266
        %1291 = vst.msk [vmem:[#allocation2 + $0x60] sm:$0xff] %vm492, %v1267
        %1292 = vst.msk [vmem:[#allocation2 + $0x68] sm:$0xff] %vm492, %v1268
        %1293 = vst.msk [vmem:[#allocation2 + $0x70] sm:$0xff] %vm492, %v1269
        %1294 = vst.msk [vmem:[#allocation2 + $0x78] sm:$0xff] %vm492, %v1270
        %1295 = vst.msk [vmem:[#allocation2 + $0x80] sm:$0xff] %vm492, %v1271
        %1296 = vst.msk [vmem:[#allocation2 + $0x88] sm:$0xff] %vm492, %v1272
        %1297 = vst.msk [vmem:[#allocation2 + $0x90] sm:$0xff] %vm492, %v1273
        %1298 = vst.msk [vmem:[#allocation2 + $0x98] sm:$0xff] %vm492, %v1274
        %1299 = vst.msk [vmem:[#allocation2 + $0xa0] sm:$0xff] %vm492, %v1275
        %1300 = vst.msk [vmem:[#allocation2 + $0xa8] sm:$0xff] %vm492, %v1276
        %1301 = vst.msk [vmem:[#allocation2 + $0xb0] sm:$0xff] %vm492, %v1277
        %1302 = vst.msk [vmem:[#allocation2 + $0xb8] sm:$0xff] %vm492, %v1278
        %v1303 = vpack.c.bf16 %v440, %v439
        %v1304 = vpack.c.bf16 %v442, %v441
        %v1305 = vpack.c.bf16 %v444, %v443
        %v1306 = vpack.c.bf16 %v446, %v445
        %v1307 = vpack.c.bf16 %v448, %v447
        %v1308 = vpack.c.bf16 %v450, %v449
        %v1309 = vpack.c.bf16 %v452, %v451
        %v1310 = vpack.c.bf16 %v454, %v453
        %v1311 = vpack.c.bf16 %v456, %v455
        %v1312 = vpack.c.bf16 %v458, %v457
        %v1313 = vpack.c.bf16 %v466, %v459
        %v1314 = vpack.c.bf16 %v468, %v467
        %s1315 = scalar_lea.vmem %s3, 24
        %v1316 = vld [vmem:[%s1315] sm:$0xf]
        %v1317 = vld [vmem:[%s1315 + $0x4] sm:$0xf]
        %v1320 = vunpack.c.l.b16 %v1316
        %v1321 = vunpack.c.l.b16 %v1317
        %v1322 = vpack.c.b16 %v1321, %v1320
        %v1325 = vsel %vm492, %v1303, 0
        %v1328 = vsel %vm492, %v1304, 0
        %v1331 = vsel %vm492, %v1305, 0
        %v1334 = vsel %vm492, %v1306, 0
        %v1337 = vsel %vm492, %v1307, 0
        %v1340 = vsel %vm492, %v1308, 0
        %v1343 = vsel %vm492, %v1309, 0
        %v1346 = vsel %vm492, %v1310, 0
        %v1349 = vsel %vm492, %v1311, 0
        %v1352 = vsel %vm492, %v1312, 0
        %v1355 = vsel %vm492, %v1313, 0
        %v1358 = vsel %vm492, %v1314, 0
        %1360 = vmatprep.subr.bf16.mxu0 0
        %1361 = vmatpush1.bf16.msra.mxu0 %v1322
        %1362 = vmatprep.subr.bf16.mxu0 0
        %1363 = vmatpush1.bf16.msra.mxu0 0
        %1364 = vmatprep.subr.bf16.mxu0 0
        %1365 = vmatpush1.bf16.msra.mxu0 0
        %1366 = vmatprep.subr.bf16.mxu0 0
        %1367 = vmatpush1.bf16.msra.mxu0 0
        %1368 = vmatprep.subr.bf16.mxu0 0
        %1369 = vmatpush1.bf16.msra.mxu0 0
        %1370 = vmatprep.subr.bf16.mxu0 0
        %1371 = vmatpush1.bf16.msra.mxu0 0
        %1372 = vmatprep.subr.bf16.mxu0 0
        %1373 = vmatpush1.bf16.msra.mxu0 0
        %1374 = vmatprep.subr.bf16.mxu0 0
        %1375 = vmatpush1.bf16.msra.mxu0 0
        %1376 = vmatprep.subr.bf16.mxu0 0
        %1377 = vmatpush1.bf16.msra.mxu0 0
        %1378 = vmatprep.subr.bf16.mxu0 0
        %1379 = vmatpush1.bf16.msra.mxu0 0
        %1380 = vmatprep.subr.bf16.mxu0 0
        %1381 = vmatpush1.bf16.msra.mxu0 0
        %1382 = vmatprep.subr.bf16.mxu0 0
        %1383 = vmatpush1.bf16.msra.mxu0 0
        %1384 = vmatprep.subr.bf16.mxu0 0
        %1385 = vmatpush1.bf16.msra.mxu0 0
        %1386 = vmatprep.subr.bf16.mxu0 0
        %1387 = vmatpush1.bf16.msra.mxu0 0
        %1388 = vmatprep.subr.bf16.mxu0 0
        %1389 = vmatpush1.bf16.msra.mxu0 0
        %1390 = vmatprep.subr.bf16.mxu0 0
        %1391 = vmatpush1.bf16.msra.mxu0 0
        %1392 = vmatprep.mubr.bf16.mxu0 0
        %1393 = vmatmul.mubr.bf16.gmra.mrb[0].mxu0 %v1325
        %v1394 = vpop.f32.mrb[0].mxu0
        %v1395 = vadd.f32 0.0, %v1394
        %v1396 = vpop.f32.mrb[0].mxu0
        %v1397 = vpop.f32.mrb[0].mxu0
        %v1398 = vadd.f32 0.0, %v1397
        %v1399 = vpop.f32.mrb[0].mxu0
        %1400 = vmatprep.mubr.bf16.mxu0 0
        %1401 = vmatmul.mubr.bf16.gmra.mrb[0].mxu0 %v1328
        %v1402 = vpop.f32.mrb[0].mxu0
        %v1403 = vadd.f32 0.0, %v1402
        %v1404 = vpop.f32.mrb[0].mxu0
        %v1405 = vpop.f32.mrb[0].mxu0
        %v1406 = vadd.f32 0.0, %v1405
        %v1407 = vpop.f32.mrb[0].mxu0
        %1408 = vmatprep.mubr.bf16.mxu0 0
        %1409 = vmatmul.mubr.bf16.gmra.mrb[0].mxu0 %v1331
        %v1410 = vpop.f32.mrb[0].mxu0
        %v1411 = vadd.f32 0.0, %v1410
        %v1412 = vpop.f32.mrb[0].mxu0
        %v1413 = vpop.f32.mrb[0].mxu0
        %v1414 = vadd.f32 0.0, %v1413
        %v1415 = vpop.f32.mrb[0].mxu0
        %1416 = vmatprep.mubr.bf16.mxu0 0
        %1417 = vmatmul.mubr.bf16.gmra.mrb[0].mxu0 %v1334
        %v1418 = vpop.f32.mrb[0].mxu0
        %v1419 = vadd.f32 0.0, %v1418
        %v1420 = vpop.f32.mrb[0].mxu0
        %v1421 = vpop.f32.mrb[0].mxu0
        %v1422 = vadd.f32 0.0, %v1421
        %v1423 = vpop.f32.mrb[0].mxu0
        %1424 = vmatprep.mubr.bf16.mxu0 0
        %1425 = vmatmul.mubr.bf16.gmra.mrb[0].mxu0 %v1337
        %v1426 = vpop.f32.mrb[0].mxu0
        %v1427 = vadd.f32 0.0, %v1426
        %v1428 = vpop.f32.mrb[0].mxu0
        %v1429 = vpop.f32.mrb[0].mxu0
        %v1430 = vadd.f32 0.0, %v1429
        %v1431 = vpop.f32.mrb[0].mxu0
        %1432 = vmatprep.mubr.bf16.mxu0 0
        %1433 = vmatmul.mubr.bf16.gmra.mrb[0].mxu0 %v1340
        %v1434 = vpop.f32.mrb[0].mxu0
        %v1435 = vadd.f32 0.0, %v1434
        %v1436 = vpop.f32.mrb[0].mxu0
        %v1437 = vpop.f32.mrb[0].mxu0
        %v1438 = vadd.f32 0.0, %v1437
        %v1439 = vpop.f32.mrb[0].mxu0
        %1440 = vmatprep.mubr.bf16.mxu0 0
        %1441 = vmatmul.mubr.bf16.gmra.mrb[0].mxu0 %v1343
        %v1442 = vpop.f32.mrb[0].mxu0
        %v1443 = vadd.f32 0.0, %v1442
        %v1444 = vpop.f32.mrb[0].mxu0
        %v1445 = vpop.f32.mrb[0].mxu0
        %v1446 = vadd.f32 0.0, %v1445
        %v1447 = vpop.f32.mrb[0].mxu0
        %1448 = vmatprep.mubr.bf16.mxu0 0
        %1449 = vmatmul.mubr.bf16.gmra.mrb[0].mxu0 %v1346
        %v1450 = vpop.f32.mrb[0].mxu0
        %v1451 = vadd.f32 0.0, %v1450
        %v1452 = vpop.f32.mrb[0].mxu0
        %v1453 = vpop.f32.mrb[0].mxu0
        %v1454 = vadd.f32 0.0, %v1453
        %v1455 = vpop.f32.mrb[0].mxu0
        %1456 = vmatprep.mubr.bf16.mxu0 0
        %1457 = vmatmul.mubr.bf16.gmra.mrb[0].mxu0 %v1349
        %v1458 = vpop.f32.mrb[0].mxu0
        %v1459 = vadd.f32 0.0, %v1458
        %v1460 = vpop.f32.mrb[0].mxu0
        %v1461 = vpop.f32.mrb[0].mxu0
        %v1462 = vadd.f32 0.0, %v1461
        %v1463 = vpop.f32.mrb[0].mxu0
        %1464 = vmatprep.mubr.bf16.mxu0 0
        %1465 = vmatmul.mubr.bf16.gmra.mrb[0].mxu0 %v1352
        %v1466 = vpop.f32.mrb[0].mxu0
        %v1467 = vadd.f32 0.0, %v1466
        %v1468 = vpop.f32.mrb[0].mxu0
        %v1469 = vpop.f32.mrb[0].mxu0
        %v1470 = vadd.f32 0.0, %v1469
        %v1471 = vpop.f32.mrb[0].mxu0
        %1472 = vmatprep.mubr.bf16.mxu0 0
        %1473 = vmatmul.mubr.bf16.gmra.mrb[0].mxu0 %v1355
        %v1474 = vpop.f32.mrb[0].mxu0
        %v1475 = vadd.f32 0.0, %v1474
        %v1476 = vpop.f32.mrb[0].mxu0
        %v1477 = vpop.f32.mrb[0].mxu0
        %v1478 = vadd.f32 0.0, %v1477
        %v1479 = vpop.f32.mrb[0].mxu0
        %1480 = vmatprep.mubr.bf16.mxu0 0
        %1481 = vmatmul.mubr.bf16.gmra.mrb[0].mxu0 %v1358
        %v1482 = vpop.f32.mrb[0].mxu0
        %v1483 = vadd.f32 0.0, %v1482
        %v1484 = vpop.f32.mrb[0].mxu0
        %v1485 = vpop.f32.mrb[0].mxu0
        %v1486 = vadd.f32 0.0, %v1485
        %v1487 = vpop.f32.mrb[0].mxu0
        %1488 = vdwg.mxu0
        %v1489 = vld [vmem:[#allocation2] sm:$0xff]
        %v1490 = vld [vmem:[#allocation2 + $0x8] sm:$0xff]
        %v1491 = vld [vmem:[#allocation2 + $0x10] sm:$0xff]
        %v1492 = vld [vmem:[#allocation2 + $0x18] sm:$0xff]
        %v1493 = vld [vmem:[#allocation2 + $0x20] sm:$0xff]
        %v1494 = vld [vmem:[#allocation2 + $0x28] sm:$0xff]
        %v1495 = vld [vmem:[#allocation2 + $0x30] sm:$0xff]
        %v1496 = vld [vmem:[#allocation2 + $0x38] sm:$0xff]
        %v1497 = vld [vmem:[#allocation2 + $0x40] sm:$0xff]
        %v1498 = vld [vmem:[#allocation2 + $0x48] sm:$0xff]
        %v1499 = vld [vmem:[#allocation2 + $0x50] sm:$0xff]
        %v1500 = vld [vmem:[#allocation2 + $0x58] sm:$0xff]
        %v1501 = vld [vmem:[#allocation2 + $0x60] sm:$0xff]
        %v1502 = vld [vmem:[#allocation2 + $0x68] sm:$0xff]
        %v1503 = vld [vmem:[#allocation2 + $0x70] sm:$0xff]
        %v1504 = vld [vmem:[#allocation2 + $0x78] sm:$0xff]
        %v1505 = vld [vmem:[#allocation2 + $0x80] sm:$0xff]
        %v1506 = vld [vmem:[#allocation2 + $0x88] sm:$0xff]
        %v1507 = vld [vmem:[#allocation2 + $0x90] sm:$0xff]
        %v1508 = vld [vmem:[#allocation2 + $0x98] sm:$0xff]
        %v1509 = vld [vmem:[#allocation2 + $0xa0] sm:$0xff]
        %v1510 = vld [vmem:[#allocation2 + $0xa8] sm:$0xff]
        %v1511 = vld [vmem:[#allocation2 + $0xb0] sm:$0xff]
        %v1512 = vld [vmem:[#allocation2 + $0xb8] sm:$0xff]
        %v1513 = vadd.f32 %v1489, %v1395
        %v1514 = vadd.f32 %v1490, %v1398
        %v1515 = vadd.f32 %v1491, %v1403
        %v1516 = vadd.f32 %v1492, %v1406
        %v1517 = vadd.f32 %v1493, %v1411
        %v1518 = vadd.f32 %v1494, %v1414
        %v1519 = vadd.f32 %v1495, %v1419
        %v1520 = vadd.f32 %v1496, %v1422
        %v1521 = vadd.f32 %v1497, %v1427
        %v1522 = vadd.f32 %v1498, %v1430
        %v1523 = vadd.f32 %v1499, %v1435
        %v1524 = vadd.f32 %v1500, %v1438
        %v1525 = vadd.f32 %v1501, %v1443
        %v1526 = vadd.f32 %v1502, %v1446
        %v1527 = vadd.f32 %v1503, %v1451
        %v1528 = vadd.f32 %v1504, %v1454
        %v1529 = vadd.f32 %v1505, %v1459
        %v1530 = vadd.f32 %v1506, %v1462
        %v1531 = vadd.f32 %v1507, %v1467
        %v1532 = vadd.f32 %v1508, %v1470
        %v1533 = vadd.f32 %v1509, %v1475
        %v1534 = vadd.f32 %v1510, %v1478
        %v1535 = vadd.f32 %v1511, %v1483
        %v1536 = vadd.f32 %v1512, %v1486
        %1537 = vst.msk [vmem:[#allocation2] sm:$0xff] %vm492, %v1513
        %1538 = vst.msk [vmem:[#allocation2 + $0x8] sm:$0xff] %vm492, %v1514
        %1539 = vst.msk [vmem:[#allocation2 + $0x10] sm:$0xff] %vm492, %v1515
        %1540 = vst.msk [vmem:[#allocation2 + $0x18] sm:$0xff] %vm492, %v1516
        %1541 = vst.msk [vmem:[#allocation2 + $0x20] sm:$0xff] %vm492, %v1517
        %1542 = vst.msk [vmem:[#allocation2 + $0x28] sm:$0xff] %vm492, %v1518
        %1543 = vst.msk [vmem:[#allocation2 + $0x30] sm:$0xff] %vm492, %v1519
        %1544 = vst.msk [vmem:[#allocation2 + $0x38] sm:$0xff] %vm492, %v1520
        %1545 = vst.msk [vmem:[#allocation2 + $0x40] sm:$0xff] %vm492, %v1521
        %1546 = vst.msk [vmem:[#allocation2 + $0x48] sm:$0xff] %vm492, %v1522
        %1547 = vst.msk [vmem:[#allocation2 + $0x50] sm:$0xff] %vm492, %v1523
        %1548 = vst.msk [vmem:[#allocation2 + $0x58] sm:$0xff] %vm492, %v1524
        %1549 = vst.msk [vmem:[#allocation2 + $0x60] sm:$0xff] %vm492, %v1525
        %1550 = vst.msk [vmem:[#allocation2 + $0x68] sm:$0xff] %vm492, %v1526
        %1551 = vst.msk [vmem:[#allocation2 + $0x70] sm:$0xff] %vm492, %v1527
        %1552 = vst.msk [vmem:[#allocation2 + $0x78] sm:$0xff] %vm492, %v1528
        %1553 = vst.msk [vmem:[#allocation2 + $0x80] sm:$0xff] %vm492, %v1529
        %1554 = vst.msk [vmem:[#allocation2 + $0x88] sm:$0xff] %vm492, %v1530
        %1555 = vst.msk [vmem:[#allocation2 + $0x90] sm:$0xff] %vm492, %v1531
        %1556 = vst.msk [vmem:[#allocation2 + $0x98] sm:$0xff] %vm492, %v1532
        %1557 = vst.msk [vmem:[#allocation2 + $0xa0] sm:$0xff] %vm492, %v1533
        %1558 = vst.msk [vmem:[#allocation2 + $0xa8] sm:$0xff] %vm492, %v1534
        %1559 = vst.msk [vmem:[#allocation2 + $0xb0] sm:$0xff] %vm492, %v1535
        %1560 = vst.msk [vmem:[#allocation2 + $0xb8] sm:$0xff] %vm492, %v1536
        %v1561 = vpack.c.bf16 %v469, %v469
        %s1562 = scalar_lea.vmem %s3, 32
        %v1563 = vld [vmem:[%s1562] sm:$0xf]
        %v1564 = vld [vmem:[%s1562 + $0x4] sm:$0xf]
        %v1565 = vshrl.u32 %v1303, 16
        %v1567 = vshll.u32 %v1303, 16
        %v1569 = vrot.slane %v1567, 1
        %v1570 = vor.u32 %v1565, %v1569
        %v1571 = vshll.u32 %v1304, 16
        %v1573 = vrot.slane %v1571, 1
        %v1574 = vsel %vm686, %v1570, %v1573
        %v1575 = vshrl.u32 %v1304, 16
        %v1577 = vor.u32 %v1575, %v1573
        %v1578 = vshll.u32 %v1305, 16
        %v1580 = vrot.slane %v1578, 1
        %v1581 = vsel %vm686, %v1577, %v1580
        %v1582 = vshrl.u32 %v1305, 16
        %v1584 = vor.u32 %v1582, %v1580
        %v1585 = vshll.u32 %v1306, 16
        %v1587 = vrot.slane %v1585, 1
        %v1588 = vsel %vm686, %v1584, %v1587
        %v1589 = vshrl.u32 %v1306, 16
        %v1591 = vor.u32 %v1589, %v1587
        %v1592 = vshll.u32 %v1307, 16
        %v1594 = vrot.slane %v1592, 1
        %v1595 = vsel %vm686, %v1591, %v1594
        %v1596 = vshrl.u32 %v1307, 16
        %v1598 = vor.u32 %v1596, %v1594
        %v1599 = vshll.u32 %v1308, 16
        %v1601 = vrot.slane %v1599, 1
        %v1602 = vsel %vm686, %v1598, %v1601
        %v1603 = vshrl.u32 %v1308, 16
        %v1605 = vor.u32 %v1603, %v1601
        %v1606 = vshll.u32 %v1309, 16
        %v1608 = vrot.slane %v1606, 1
        %v1609 = vsel %vm686, %v1605, %v1608
        %v1610 = vshrl.u32 %v1309, 16
        %v1612 = vor.u32 %v1610, %v1608
        %v1613 = vshll.u32 %v1310, 16
        %v1615 = vrot.slane %v1613, 1
        %v1616 = vsel %vm686, %v1612, %v1615
        %v1617 = vshrl.u32 %v1310, 16
        %v1619 = vor.u32 %v1617, %v1615
        %v1620 = vshll.u32 %v1311, 16
        %v1622 = vrot.slane %v1620, 1
        %v1623 = vsel %vm686, %v1619, %v1622
        %v1624 = vshrl.u32 %v1311, 16
        %v1626 = vor.u32 %v1624, %v1622
        %v1627 = vshll.u32 %v1312, 16
        %v1629 = vrot.slane %v1627, 1
        %v1630 = vsel %vm686, %v1626, %v1629
        %v1631 = vshrl.u32 %v1312, 16
        %v1633 = vor.u32 %v1631, %v1629
        %v1634 = vshll.u32 %v1313, 16
        %v1636 = vrot.slane %v1634, 1
        %v1637 = vsel %vm686, %v1633, %v1636
        %v1638 = vshrl.u32 %v1313, 16
        %v1640 = vor.u32 %v1638, %v1636
        %v1641 = vshll.u32 %v1314, 16
        %v1643 = vrot.slane %v1641, 1
        %v1644 = vsel %vm686, %v1640, %v1643
        %v1645 = vshrl.u32 %v1314, 16
        %v1647 = vor.u32 %v1645, %v1643
        %v1649 = vshll.u32 %v1561, 16
        %v1651 = vrot.slane %v1649, 1
        %v1652 = vsel %vm686, %v1647, %v1651
        %v1655 = vunpack.c.l.b16 %v1563
        %v1656 = vunpack.c.l.b16 %v1564
        %v1657 = vpack.c.b16 %v1656, %v1655
        %v1660 = vsel %vm492, %v1574, 0
        %v1663 = vsel %vm492, %v1581, 0
        %v1666 = vsel %vm492, %v1588, 0
        %v1669 = vsel %vm492, %v1595, 0
        %v1672 = vsel %vm492, %v1602, 0
        %v1675 = vsel %vm492, %v1609, 0
        %v1678 = vsel %vm492, %v1616, 0
        %v1681 = vsel %vm492, %v1623, 0
        %v1684 = vsel %vm492, %v1630, 0
        %v1687 = vsel %vm492, %v1637, 0
        %v1690 = vsel %vm492, %v1644, 0
        %v1693 = vsel %vm492, %v1652, 0
        %1695 = vmatprep.subr.bf16.mxu0 0
        %1696 = vmatpush1.bf16.msra.mxu0 %v1657
        %1697 = vmatprep.subr.bf16.mxu0 0
        %1698 = vmatpush1.bf16.msra.mxu0 0
        %1699 = vmatprep.subr.bf16.mxu0 0
        %1700 = vmatpush1.bf16.msra.mxu0 0
        %1701 = vmatprep.subr.bf16.mxu0 0
        %1702 = vmatpush1.bf16.msra.mxu0 0
        %1703 = vmatprep.subr.bf16.mxu0 0
        %1704 = vmatpush1.bf16.msra.mxu0 0
        %1705 = vmatprep.subr.bf16.mxu0 0
        %1706 = vmatpush1.bf16.msra.mxu0 0
        %1707 = vmatprep.subr.bf16.mxu0 0
        %1708 = vmatpush1.bf16.msra.mxu0 0
        %1709 = vmatprep.subr.bf16.mxu0 0
        %1710 = vmatpush1.bf16.msra.mxu0 0
        %1711 = vmatprep.subr.bf16.mxu0 0
        %1712 = vmatpush1.bf16.msra.mxu0 0
        %1713 = vmatprep.subr.bf16.mxu0 0
        %1714 = vmatpush1.bf16.msra.mxu0 0
        %1715 = vmatprep.subr.bf16.mxu0 0
        %1716 = vmatpush1.bf16.msra.mxu0 0
        %1717 = vmatprep.subr.bf16.mxu0 0
        %1718 = vmatpush1.bf16.msra.mxu0 0
        %1719 = vmatprep.subr.bf16.mxu0 0
        %1720 = vmatpush1.bf16.msra.mxu0 0
        %1721 = vmatprep.subr.bf16.mxu0 0
        %1722 = vmatpush1.bf16.msra.mxu0 0
        %1723 = vmatprep.subr.bf16.mxu0 0
        %1724 = vmatpush1.bf16.msra.mxu0 0
        %1725 = vmatprep.subr.bf16.mxu0 0
        %1726 = vmatpush1.bf16.msra.mxu0 0
        %1727 = vmatprep.mubr.bf16.mxu0 0
        %1728 = vmatmul.mubr.bf16.gmra.mrb[0].mxu0 %v1660
        %v1729 = vpop.f32.mrb[0].mxu0
        %v1730 = vadd.f32 0.0, %v1729
        %v1731 = vpop.f32.mrb[0].mxu0
        %v1732 = vpop.f32.mrb[0].mxu0
        %v1733 = vadd.f32 0.0, %v1732
        %v1734 = vpop.f32.mrb[0].mxu0
        %1735 = vmatprep.mubr.bf16.mxu0 0
        %1736 = vmatmul.mubr.bf16.gmra.mrb[0].mxu0 %v1663
        %v1737 = vpop.f32.mrb[0].mxu0
        %v1738 = vadd.f32 0.0, %v1737
        %v1739 = vpop.f32.mrb[0].mxu0
        %v1740 = vpop.f32.mrb[0].mxu0
        %v1741 = vadd.f32 0.0, %v1740
        %v1742 = vpop.f32.mrb[0].mxu0
        %1743 = vmatprep.mubr.bf16.mxu0 0
        %1744 = vmatmul.mubr.bf16.gmra.mrb[0].mxu0 %v1666
        %v1745 = vpop.f32.mrb[0].mxu0
        %v1746 = vadd.f32 0.0, %v1745
        %v1747 = vpop.f32.mrb[0].mxu0
        %v1748 = vpop.f32.mrb[0].mxu0
        %v1749 = vadd.f32 0.0, %v1748
        %v1750 = vpop.f32.mrb[0].mxu0
        %1751 = vmatprep.mubr.bf16.mxu0 0
        %1752 = vmatmul.mubr.bf16.gmra.mrb[0].mxu0 %v1669
        %v1753 = vpop.f32.mrb[0].mxu0
        %v1754 = vadd.f32 0.0, %v1753
        %v1755 = vpop.f32.mrb[0].mxu0
        %v1756 = vpop.f32.mrb[0].mxu0
        %v1757 = vadd.f32 0.0, %v1756
        %v1758 = vpop.f32.mrb[0].mxu0
        %1759 = vmatprep.mubr.bf16.mxu0 0
        %1760 = vmatmul.mubr.bf16.gmra.mrb[0].mxu0 %v1672
        %v1761 = vpop.f32.mrb[0].mxu0
        %v1762 = vadd.f32 0.0, %v1761
        %v1763 = vpop.f32.mrb[0].mxu0
        %v1764 = vpop.f32.mrb[0].mxu0
        %v1765 = vadd.f32 0.0, %v1764
        %v1766 = vpop.f32.mrb[0].mxu0
        %1767 = vmatprep.mubr.bf16.mxu0 0
        %1768 = vmatmul.mubr.bf16.gmra.mrb[0].mxu0 %v1675
        %v1769 = vpop.f32.mrb[0].mxu0
        %v1770 = vadd.f32 0.0, %v1769
        %v1771 = vpop.f32.mrb[0].mxu0
        %v1772 = vpop.f32.mrb[0].mxu0
        %v1773 = vadd.f32 0.0, %v1772
        %v1774 = vpop.f32.mrb[0].mxu0
        %1775 = vmatprep.mubr.bf16.mxu0 0
        %1776 = vmatmul.mubr.bf16.gmra.mrb[0].mxu0 %v1678
        %v1777 = vpop.f32.mrb[0].mxu0
        %v1778 = vadd.f32 0.0, %v1777
        %v1779 = vpop.f32.mrb[0].mxu0
        %v1780 = vpop.f32.mrb[0].mxu0
        %v1781 = vadd.f32 0.0, %v1780
        %v1782 = vpop.f32.mrb[0].mxu0
        %1783 = vmatprep.mubr.bf16.mxu0 0
        %1784 = vmatmul.mubr.bf16.gmra.mrb[0].mxu0 %v1681
        %v1785 = vpop.f32.mrb[0].mxu0
        %v1786 = vadd.f32 0.0, %v1785
        %v1787 = vpop.f32.mrb[0].mxu0
        %v1788 = vpop.f32.mrb[0].mxu0
        %v1789 = vadd.f32 0.0, %v1788
        %v1790 = vpop.f32.mrb[0].mxu0
        %1791 = vmatprep.mubr.bf16.mxu0 0
        %1792 = vmatmul.mubr.bf16.gmra.mrb[0].mxu0 %v1684
        %v1793 = vpop.f32.mrb[0].mxu0
        %v1794 = vadd.f32 0.0, %v1793
        %v1795 = vpop.f32.mrb[0].mxu0
        %v1796 = vpop.f32.mrb[0].mxu0
        %v1797 = vadd.f32 0.0, %v1796
        %v1798 = vpop.f32.mrb[0].mxu0
        %1799 = vmatprep.mubr.bf16.mxu0 0
        %1800 = vmatmul.mubr.bf16.gmra.mrb[0].mxu0 %v1687
        %v1801 = vpop.f32.mrb[0].mxu0
        %v1802 = vadd.f32 0.0, %v1801
        %v1803 = vpop.f32.mrb[0].mxu0
        %v1804 = vpop.f32.mrb[0].mxu0
        %v1805 = vadd.f32 0.0, %v1804
        %v1806 = vpop.f32.mrb[0].mxu0
        %1807 = vmatprep.mubr.bf16.mxu0 0
        %1808 = vmatmul.mubr.bf16.gmra.mrb[0].mxu0 %v1690
        %v1809 = vpop.f32.mrb[0].mxu0
        %v1810 = vadd.f32 0.0, %v1809
        %v1811 = vpop.f32.mrb[0].mxu0
        %v1812 = vpop.f32.mrb[0].mxu0
        %v1813 = vadd.f32 0.0, %v1812
        %v1814 = vpop.f32.mrb[0].mxu0
        %1815 = vmatprep.mubr.bf16.mxu0 0
        %1816 = vmatmul.mubr.bf16.gmra.mrb[0].mxu0 %v1693
        %v1817 = vpop.f32.mrb[0].mxu0
        %v1818 = vadd.f32 0.0, %v1817
        %v1819 = vpop.f32.mrb[0].mxu0
        %v1820 = vpop.f32.mrb[0].mxu0
        %v1821 = vadd.f32 0.0, %v1820
        %v1822 = vpop.f32.mrb[0].mxu0
        %1823 = vdwg.mxu0
        %v1824 = vld [vmem:[#allocation2] sm:$0xff]
        %v1825 = vld [vmem:[#allocation2 + $0x8] sm:$0xff]
        %v1826 = vld [vmem:[#allocation2 + $0x10] sm:$0xff]
        %v1827 = vld [vmem:[#allocation2 + $0x18] sm:$0xff]
        %v1828 = vld [vmem:[#allocation2 + $0x20] sm:$0xff]
        %v1829 = vld [vmem:[#allocation2 + $0x28] sm:$0xff]
        %v1830 = vld [vmem:[#allocation2 + $0x30] sm:$0xff]
        %v1831 = vld [vmem:[#allocation2 + $0x38] sm:$0xff]
        %v1832 = vld [vmem:[#allocation2 + $0x40] sm:$0xff]
        %v1833 = vld [vmem:[#allocation2 + $0x48] sm:$0xff]
        %v1834 = vld [vmem:[#allocation2 + $0x50] sm:$0xff]
        %v1835 = vld [vmem:[#allocation2 + $0x58] sm:$0xff]
        %v1836 = vld [vmem:[#allocation2 + $0x60] sm:$0xff]
        %v1837 = vld [vmem:[#allocation2 + $0x68] sm:$0xff]
        %v1838 = vld [vmem:[#allocation2 + $0x70] sm:$0xff]
        %v1839 = vld [vmem:[#allocation2 + $0x78] sm:$0xff]
        %v1840 = vld [vmem:[#allocation2 + $0x80] sm:$0xff]
        %v1841 = vld [vmem:[#allocation2 + $0x88] sm:$0xff]
        %v1842 = vld [vmem:[#allocation2 + $0x90] sm:$0xff]
        %v1843 = vld [vmem:[#allocation2 + $0x98] sm:$0xff]
        %v1844 = vld [vmem:[#allocation2 + $0xa0] sm:$0xff]
        %v1845 = vld [vmem:[#allocation2 + $0xa8] sm:$0xff]
        %v1846 = vld [vmem:[#allocation2 + $0xb0] sm:$0xff]
        %v1847 = vld [vmem:[#allocation2 + $0xb8] sm:$0xff]
        %v1848 = vadd.f32 %v1824, %v1730
        %v1849 = vadd.f32 %v1825, %v1733
        %v1850 = vadd.f32 %v1826, %v1738
        %v1851 = vadd.f32 %v1827, %v1741
        %v1852 = vadd.f32 %v1828, %v1746
        %v1853 = vadd.f32 %v1829, %v1749
        %v1854 = vadd.f32 %v1830, %v1754
        %v1855 = vadd.f32 %v1831, %v1757
        %v1856 = vadd.f32 %v1832, %v1762
        %v1857 = vadd.f32 %v1833, %v1765
        %v1858 = vadd.f32 %v1834, %v1770
        %v1859 = vadd.f32 %v1835, %v1773
        %v1860 = vadd.f32 %v1836, %v1778
        %v1861 = vadd.f32 %v1837, %v1781
        %v1862 = vadd.f32 %v1838, %v1786
        %v1863 = vadd.f32 %v1839, %v1789
        %v1864 = vadd.f32 %v1840, %v1794
        %v1865 = vadd.f32 %v1841, %v1797
        %v1866 = vadd.f32 %v1842, %v1802
        %v1867 = vadd.f32 %v1843, %v1805
        %v1868 = vadd.f32 %v1844, %v1810
        %v1869 = vadd.f32 %v1845, %v1813
        %v1870 = vadd.f32 %v1846, %v1818
        %v1871 = vadd.f32 %v1847, %v1821
        %1872 = vst.msk [vmem:[#allocation2] sm:$0xff] %vm492, %v1848
        %1873 = vst.msk [vmem:[#allocation2 + $0x8] sm:$0xff] %vm492, %v1849
        %1874 = vst.msk [vmem:[#allocation2 + $0x10] sm:$0xff] %vm492, %v1850
        %1875 = vst.msk [vmem:[#allocation2 + $0x18] sm:$0xff] %vm492, %v1851
        %1876 = vst.msk [vmem:[#allocation2 + $0x20] sm:$0xff] %vm492, %v1852
        %1877 = vst.msk [vmem:[#allocation2 + $0x28] sm:$0xff] %vm492, %v1853
        %1878 = vst.msk [vmem:[#allocation2 + $0x30] sm:$0xff] %vm492, %v1854
        %1879 = vst.msk [vmem:[#allocation2 + $0x38] sm:$0xff] %vm492, %v1855
        %1880 = vst.msk [vmem:[#allocation2 + $0x40] sm:$0xff] %vm492, %v1856
        %1881 = vst.msk [vmem:[#allocation2 + $0x48] sm:$0xff] %vm492, %v1857
        %1882 = vst.msk [vmem:[#allocation2 + $0x50] sm:$0xff] %vm492, %v1858
        %1883 = vst.msk [vmem:[#allocation2 + $0x58] sm:$0xff] %vm492, %v1859
        %1884 = vst.msk [vmem:[#allocation2 + $0x60] sm:$0xff] %vm492, %v1860
        %1885 = vst.msk [vmem:[#allocation2 + $0x68] sm:$0xff] %vm492, %v1861
        %1886 = vst.msk [vmem:[#allocation2 + $0x70] sm:$0xff] %vm492, %v1862
        %1887 = vst.msk [vmem:[#allocation2 + $0x78] sm:$0xff] %vm492, %v1863
        %1888 = vst.msk [vmem:[#allocation2 + $0x80] sm:$0xff] %vm492, %v1864
        %1889 = vst.msk [vmem:[#allocation2 + $0x88] sm:$0xff] %vm492, %v1865
        %1890 = vst.msk [vmem:[#allocation2 + $0x90] sm:$0xff] %vm492, %v1866
        %1891 = vst.msk [vmem:[#allocation2 + $0x98] sm:$0xff] %vm492, %v1867
        %1892 = vst.msk [vmem:[#allocation2 + $0xa0] sm:$0xff] %vm492, %v1868
        %1893 = vst.msk [vmem:[#allocation2 + $0xa8] sm:$0xff] %vm492, %v1869
        %1894 = vst.msk [vmem:[#allocation2 + $0xb0] sm:$0xff] %vm492, %v1870
        %1895 = vst.msk [vmem:[#allocation2 + $0xb8] sm:$0xff] %vm492, %v1871
        %s1896 = scalar_lea.vmem %s3, 40
        %v1897 = vld [vmem:[%s1896] sm:$0xf]
        %v1898 = vld [vmem:[%s1896 + $0x4] sm:$0xf]
        %v1912 = vrot.slane %v1303, 1
        %v1913 = vrot.slane %v1304, 1
        %v1914 = vsel %vm1034, %v1912, %v1913
        %v1915 = vrot.slane %v1305, 1
        %v1916 = vsel %vm1034, %v1913, %v1915
        %v1917 = vrot.slane %v1306, 1
        %v1918 = vsel %vm1034, %v1915, %v1917
        %v1919 = vrot.slane %v1307, 1
        %v1920 = vsel %vm1034, %v1917, %v1919
        %v1921 = vrot.slane %v1308, 1
        %v1922 = vsel %vm1034, %v1919, %v1921
        %v1923 = vrot.slane %v1309, 1
        %v1924 = vsel %vm1034, %v1921, %v1923
        %v1925 = vrot.slane %v1310, 1
        %v1926 = vsel %vm1034, %v1923, %v1925
        %v1927 = vrot.slane %v1311, 1
        %v1928 = vsel %vm1034, %v1925, %v1927
        %v1929 = vrot.slane %v1312, 1
        %v1930 = vsel %vm1034, %v1927, %v1929
        %v1931 = vrot.slane %v1313, 1
        %v1932 = vsel %vm1034, %v1929, %v1931
        %v1933 = vrot.slane %v1314, 1
        %v1934 = vsel %vm1034, %v1931, %v1933
        %v1935 = vrot.slane %v1561, 1
        %v1936 = vsel %vm1034, %v1933, %v1935
        %v1939 = vunpack.c.l.b16 %v1897
        %v1940 = vunpack.c.l.b16 %v1898
        %v1941 = vpack.c.b16 %v1940, %v1939
        %v1944 = vsel %vm492, %v1914, 0
        %v1947 = vsel %vm492, %v1916, 0
        %v1950 = vsel %vm492, %v1918, 0
        %v1953 = vsel %vm492, %v1920, 0
        %v1956 = vsel %vm492, %v1922, 0
        %v1959 = vsel %vm492, %v1924, 0
        %v1962 = vsel %vm492, %v1926, 0
        %v1965 = vsel %vm492, %v1928, 0
        %v1968 = vsel %vm492, %v1930, 0
        %v1971 = vsel %vm492, %v1932, 0
        %v1974 = vsel %vm492, %v1934, 0
        %v1977 = vsel %vm492, %v1936, 0
        %1979 = vmatprep.subr.bf16.mxu0 0
        %1980 = vmatpush1.bf16.msra.mxu0 %v1941
        %1981 = vmatprep.subr.bf16.mxu0 0
        %1982 = vmatpush1.bf16.msra.mxu0 0
        %1983 = vmatprep.subr.bf16.mxu0 0
        %1984 = vmatpush1.bf16.msra.mxu0 0
        %1985 = vmatprep.subr.bf16.mxu0 0
        %1986 = vmatpush1.bf16.msra.mxu0 0
        %1987 = vmatprep.subr.bf16.mxu0 0
        %1988 = vmatpush1.bf16.msra.mxu0 0
        %1989 = vmatprep.subr.bf16.mxu0 0
        %1990 = vmatpush1.bf16.msra.mxu0 0
        %1991 = vmatprep.subr.bf16.mxu0 0
        %1992 = vmatpush1.bf16.msra.mxu0 0
        %1993 = vmatprep.subr.bf16.mxu0 0
        %1994 = vmatpush1.bf16.msra.mxu0 0
        %1995 = vmatprep.subr.bf16.mxu0 0
        %1996 = vmatpush1.bf16.msra.mxu0 0
        %1997 = vmatprep.subr.bf16.mxu0 0
        %1998 = vmatpush1.bf16.msra.mxu0 0
        %1999 = vmatprep.subr.bf16.mxu0 0
        %2000 = vmatpush1.bf16.msra.mxu0 0
        %2001 = vmatprep.subr.bf16.mxu0 0
        %2002 = vmatpush1.bf16.msra.mxu0 0
        %2003 = vmatprep.subr.bf16.mxu0 0
        %2004 = vmatpush1.bf16.msra.mxu0 0
        %2005 = vmatprep.subr.bf16.mxu0 0
        %2006 = vmatpush1.bf16.msra.mxu0 0
        %2007 = vmatprep.subr.bf16.mxu0 0
        %2008 = vmatpush1.bf16.msra.mxu0 0
        %2009 = vmatprep.subr.bf16.mxu0 0
        %2010 = vmatpush1.bf16.msra.mxu0 0
        %2011 = vmatprep.mubr.bf16.mxu0 0
        %2012 = vmatmul.mubr.bf16.gmra.mrb[0].mxu0 %v1944
        %v2013 = vpop.f32.mrb[0].mxu0
        %v2014 = vadd.f32 0.0, %v2013
        %v2015 = vpop.f32.mrb[0].mxu0
        %v2016 = vpop.f32.mrb[0].mxu0
        %v2017 = vadd.f32 0.0, %v2016
        %v2018 = vpop.f32.mrb[0].mxu0
        %2019 = vmatprep.mubr.bf16.mxu0 0
        %2020 = vmatmul.mubr.bf16.gmra.mrb[0].mxu0 %v1947
        %v2021 = vpop.f32.mrb[0].mxu0
        %v2022 = vadd.f32 0.0, %v2021
        %v2023 = vpop.f32.mrb[0].mxu0
        %v2024 = vpop.f32.mrb[0].mxu0
        %v2025 = vadd.f32 0.0, %v2024
        %v2026 = vpop.f32.mrb[0].mxu0
        %2027 = vmatprep.mubr.bf16.mxu0 0
        %2028 = vmatmul.mubr.bf16.gmra.mrb[0].mxu0 %v1950
        %v2029 = vpop.f32.mrb[0].mxu0
        %v2030 = vadd.f32 0.0, %v2029
        %v2031 = vpop.f32.mrb[0].mxu0
        %v2032 = vpop.f32.mrb[0].mxu0
        %v2033 = vadd.f32 0.0, %v2032
        %v2034 = vpop.f32.mrb[0].mxu0
        %2035 = vmatprep.mubr.bf16.mxu0 0
        %2036 = vmatmul.mubr.bf16.gmra.mrb[0].mxu0 %v1953
        %v2037 = vpop.f32.mrb[0].mxu0
        %v2038 = vadd.f32 0.0, %v2037
        %v2039 = vpop.f32.mrb[0].mxu0
        %v2040 = vpop.f32.mrb[0].mxu0
        %v2041 = vadd.f32 0.0, %v2040
        %v2042 = vpop.f32.mrb[0].mxu0
        %2043 = vmatprep.mubr.bf16.mxu0 0
        %2044 = vmatmul.mubr.bf16.gmra.mrb[0].mxu0 %v1956
        %v2045 = vpop.f32.mrb[0].mxu0
        %v2046 = vadd.f32 0.0, %v2045
        %v2047 = vpop.f32.mrb[0].mxu0
        %v2048 = vpop.f32.mrb[0].mxu0
        %v2049 = vadd.f32 0.0, %v2048
        %v2050 = vpop.f32.mrb[0].mxu0
        %2051 = vmatprep.mubr.bf16.mxu0 0
        %2052 = vmatmul.mubr.bf16.gmra.mrb[0].mxu0 %v1959
        %v2053 = vpop.f32.mrb[0].mxu0
        %v2054 = vadd.f32 0.0, %v2053
        %v2055 = vpop.f32.mrb[0].mxu0
        %v2056 = vpop.f32.mrb[0].mxu0
        %v2057 = vadd.f32 0.0, %v2056
        %v2058 = vpop.f32.mrb[0].mxu0
        %2059 = vmatprep.mubr.bf16.mxu0 0
        %2060 = vmatmul.mubr.bf16.gmra.mrb[0].mxu0 %v1962
        %v2061 = vpop.f32.mrb[0].mxu0
        %v2062 = vadd.f32 0.0, %v2061
        %v2063 = vpop.f32.mrb[0].mxu0
        %v2064 = vpop.f32.mrb[0].mxu0
        %v2065 = vadd.f32 0.0, %v2064
        %v2066 = vpop.f32.mrb[0].mxu0
        %2067 = vmatprep.mubr.bf16.mxu0 0
        %2068 = vmatmul.mubr.bf16.gmra.mrb[0].mxu0 %v1965
        %v2069 = vpop.f32.mrb[0].mxu0
        %v2070 = vadd.f32 0.0, %v2069
        %v2071 = vpop.f32.mrb[0].mxu0
        %v2072 = vpop.f32.mrb[0].mxu0
        %v2073 = vadd.f32 0.0, %v2072
        %v2074 = vpop.f32.mrb[0].mxu0
        %2075 = vmatprep.mubr.bf16.mxu0 0
        %2076 = vmatmul.mubr.bf16.gmra.mrb[0].mxu0 %v1968
        %v2077 = vpop.f32.mrb[0].mxu0
        %v2078 = vadd.f32 0.0, %v2077
        %v2079 = vpop.f32.mrb[0].mxu0
        %v2080 = vpop.f32.mrb[0].mxu0
        %v2081 = vadd.f32 0.0, %v2080
        %v2082 = vpop.f32.mrb[0].mxu0
        %2083 = vmatprep.mubr.bf16.mxu0 0
        %2084 = vmatmul.mubr.bf16.gmra.mrb[0].mxu0 %v1971
        %v2085 = vpop.f32.mrb[0].mxu0
        %v2086 = vadd.f32 0.0, %v2085
        %v2087 = vpop.f32.mrb[0].mxu0
        %v2088 = vpop.f32.mrb[0].mxu0
        %v2089 = vadd.f32 0.0, %v2088
        %v2090 = vpop.f32.mrb[0].mxu0
        %2091 = vmatprep.mubr.bf16.mxu0 0
        %2092 = vmatmul.mubr.bf16.gmra.mrb[0].mxu0 %v1974
        %v2093 = vpop.f32.mrb[0].mxu0
        %v2094 = vadd.f32 0.0, %v2093
        %v2095 = vpop.f32.mrb[0].mxu0
        %v2096 = vpop.f32.mrb[0].mxu0
        %v2097 = vadd.f32 0.0, %v2096
        %v2098 = vpop.f32.mrb[0].mxu0
        %2099 = vmatprep.mubr.bf16.mxu0 0
        %2100 = vmatmul.mubr.bf16.gmra.mrb[0].mxu0 %v1977
        %v2101 = vpop.f32.mrb[0].mxu0
        %v2102 = vadd.f32 0.0, %v2101
        %v2103 = vpop.f32.mrb[0].mxu0
        %v2104 = vpop.f32.mrb[0].mxu0
        %v2105 = vadd.f32 0.0, %v2104
        %v2106 = vpop.f32.mrb[0].mxu0
        %2107 = vdwg.mxu0
        %v2108 = vld [vmem:[#allocation2] sm:$0xff]
        %v2109 = vld [vmem:[#allocation2 + $0x8] sm:$0xff]
        %v2110 = vld [vmem:[#allocation2 + $0x10] sm:$0xff]
        %v2111 = vld [vmem:[#allocation2 + $0x18] sm:$0xff]
        %v2112 = vld [vmem:[#allocation2 + $0x20] sm:$0xff]
        %v2113 = vld [vmem:[#allocation2 + $0x28] sm:$0xff]
        %v2114 = vld [vmem:[#allocation2 + $0x30] sm:$0xff]
        %v2115 = vld [vmem:[#allocation2 + $0x38] sm:$0xff]
        %v2116 = vld [vmem:[#allocation2 + $0x40] sm:$0xff]
        %v2117 = vld [vmem:[#allocation2 + $0x48] sm:$0xff]
        %v2118 = vld [vmem:[#allocation2 + $0x50] sm:$0xff]
        %v2119 = vld [vmem:[#allocation2 + $0x58] sm:$0xff]
        %v2120 = vld [vmem:[#allocation2 + $0x60] sm:$0xff]
        %v2121 = vld [vmem:[#allocation2 + $0x68] sm:$0xff]
        %v2122 = vld [vmem:[#allocation2 + $0x70] sm:$0xff]
        %v2123 = vld [vmem:[#allocation2 + $0x78] sm:$0xff]
        %v2124 = vld [vmem:[#allocation2 + $0x80] sm:$0xff]
        %v2125 = vld [vmem:[#allocation2 + $0x88] sm:$0xff]
        %v2126 = vld [vmem:[#allocation2 + $0x90] sm:$0xff]
        %v2127 = vld [vmem:[#allocation2 + $0x98] sm:$0xff]
        %v2128 = vld [vmem:[#allocation2 + $0xa0] sm:$0xff]
        %v2129 = vld [vmem:[#allocation2 + $0xa8] sm:$0xff]
        %v2130 = vld [vmem:[#allocation2 + $0xb0] sm:$0xff]
        %v2131 = vld [vmem:[#allocation2 + $0xb8] sm:$0xff]
        %v2132 = vadd.f32 %v2108, %v2014
        %v2133 = vadd.f32 %v2109, %v2017
        %v2134 = vadd.f32 %v2110, %v2022
        %v2135 = vadd.f32 %v2111, %v2025
        %v2136 = vadd.f32 %v2112, %v2030
        %v2137 = vadd.f32 %v2113, %v2033
        %v2138 = vadd.f32 %v2114, %v2038
        %v2139 = vadd.f32 %v2115, %v2041
        %v2140 = vadd.f32 %v2116, %v2046
        %v2141 = vadd.f32 %v2117, %v2049
        %v2142 = vadd.f32 %v2118, %v2054
        %v2143 = vadd.f32 %v2119, %v2057
        %v2144 = vadd.f32 %v2120, %v2062
        %v2145 = vadd.f32 %v2121, %v2065
        %v2146 = vadd.f32 %v2122, %v2070
        %v2147 = vadd.f32 %v2123, %v2073
        %v2148 = vadd.f32 %v2124, %v2078
        %v2149 = vadd.f32 %v2125, %v2081
        %v2150 = vadd.f32 %v2126, %v2086
        %v2151 = vadd.f32 %v2127, %v2089
        %v2152 = vadd.f32 %v2128, %v2094
        %v2153 = vadd.f32 %v2129, %v2097
        %v2154 = vadd.f32 %v2130, %v2102
        %v2155 = vadd.f32 %v2131, %v2105
        %2156 = vst.msk [vmem:[#allocation2] sm:$0xff] %vm492, %v2132
        %2157 = vst.msk [vmem:[#allocation2 + $0x8] sm:$0xff] %vm492, %v2133
        %2158 = vst.msk [vmem:[#allocation2 + $0x10] sm:$0xff] %vm492, %v2134
        %2159 = vst.msk [vmem:[#allocation2 + $0x18] sm:$0xff] %vm492, %v2135
        %2160 = vst.msk [vmem:[#allocation2 + $0x20] sm:$0xff] %vm492, %v2136
        %2161 = vst.msk [vmem:[#allocation2 + $0x28] sm:$0xff] %vm492, %v2137
        %2162 = vst.msk [vmem:[#allocation2 + $0x30] sm:$0xff] %vm492, %v2138
        %2163 = vst.msk [vmem:[#allocation2 + $0x38] sm:$0xff] %vm492, %v2139
        %2164 = vst.msk [vmem:[#allocation2 + $0x40] sm:$0xff] %vm492, %v2140
        %2165 = vst.msk [vmem:[#allocation2 + $0x48] sm:$0xff] %vm492, %v2141
        %2166 = vst.msk [vmem:[#allocation2 + $0x50] sm:$0xff] %vm492, %v2142
        %2167 = vst.msk [vmem:[#allocation2 + $0x58] sm:$0xff] %vm492, %v2143
        %2168 = vst.msk [vmem:[#allocation2 + $0x60] sm:$0xff] %vm492, %v2144
        %2169 = vst.msk [vmem:[#allocation2 + $0x68] sm:$0xff] %vm492, %v2145
        %2170 = vst.msk [vmem:[#allocation2 + $0x70] sm:$0xff] %vm492, %v2146
        %2171 = vst.msk [vmem:[#allocation2 + $0x78] sm:$0xff] %vm492, %v2147
        %2172 = vst.msk [vmem:[#allocation2 + $0x80] sm:$0xff] %vm492, %v2148
        %2173 = vst.msk [vmem:[#allocation2 + $0x88] sm:$0xff] %vm492, %v2149
        %2174 = vst.msk [vmem:[#allocation2 + $0x90] sm:$0xff] %vm492, %v2150
        %2175 = vst.msk [vmem:[#allocation2 + $0x98] sm:$0xff] %vm492, %v2151
        %2176 = vst.msk [vmem:[#allocation2 + $0xa0] sm:$0xff] %vm492, %v2152
        %2177 = vst.msk [vmem:[#allocation2 + $0xa8] sm:$0xff] %vm492, %v2153
        %2178 = vst.msk [vmem:[#allocation2 + $0xb0] sm:$0xff] %vm492, %v2154
        %2179 = vst.msk [vmem:[#allocation2 + $0xb8] sm:$0xff] %vm492, %v2155
        %v2180 = vpack.c.bf16 %v467, %v466
        %v2181 = vpack.c.bf16 %v469, %v468
        %v2182 = vpack.c.bf16 %v471, %v470
        %s2183 = scalar_lea.vmem %s3, 48
        %v2184 = vld [vmem:[%s2183] sm:$0xf]
        %v2185 = vld [vmem:[%s2183 + $0x4] sm:$0xf]
        %v2188 = vunpack.c.l.b16 %v2184
        %v2189 = vunpack.c.l.b16 %v2185
        %v2190 = vpack.c.b16 %v2189, %v2188
        %v2193 = vsel %vm492, %v2180, 0
        %v2196 = vsel %vm492, %v2181, 0
        %v2199 = vsel %vm492, %v2182, 0
        %2201 = vmatprep.subr.bf16.mxu0 0
        %2202 = vmatpush1.bf16.msra.mxu0 %v2190
        %2203 = vmatprep.subr.bf16.mxu0 0
        %2204 = vmatpush1.bf16.msra.mxu0 0
        %2205 = vmatprep.subr.bf16.mxu0 0
        %2206 = vmatpush1.bf16.msra.mxu0 0
        %2207 = vmatprep.subr.bf16.mxu0 0
        %2208 = vmatpush1.bf16.msra.mxu0 0
        %2209 = vmatprep.subr.bf16.mxu0 0
        %2210 = vmatpush1.bf16.msra.mxu0 0
        %2211 = vmatprep.subr.bf16.mxu0 0
        %2212 = vmatpush1.bf16.msra.mxu0 0
        %2213 = vmatprep.subr.bf16.mxu0 0
        %2214 = vmatpush1.bf16.msra.mxu0 0
        %2215 = vmatprep.subr.bf16.mxu0 0
        %2216 = vmatpush1.bf16.msra.mxu0 0
        %2217 = vmatprep.subr.bf16.mxu0 0
        %2218 = vmatpush1.bf16.msra.mxu0 0
        %2219 = vmatprep.subr.bf16.mxu0 0
        %2220 = vmatpush1.bf16.msra.mxu0 0
        %2221 = vmatprep.subr.bf16.mxu0 0
        %2222 = vmatpush1.bf16.msra.mxu0 0
        %2223 = vmatprep.subr.bf16.mxu0 0
        %2224 = vmatpush1.bf16.msra.mxu0 0
        %2225 = vmatprep.subr.bf16.mxu0 0
        %2226 = vmatpush1.bf16.msra.mxu0 0
        %2227 = vmatprep.subr.bf16.mxu0 0
        %2228 = vmatpush1.bf16.msra.mxu0 0
        %2229 = vmatprep.subr.bf16.mxu0 0
        %2230 = vmatpush1.bf16.msra.mxu0 0
        %2231 = vmatprep.subr.bf16.mxu0 0
        %2232 = vmatpush1.bf16.msra.mxu0 0
        %2233 = vmatprep.mubr.bf16.mxu0 0
        %2234 = vmatmul.mubr.bf16.gmra.mrb[0].mxu0 %v503
        %v2235 = vpop.f32.mrb[0].mxu0
        %v2236 = vadd.f32 0.0, %v2235
        %v2237 = vpop.f32.mrb[0].mxu0
        %v2238 = vpop.f32.mrb[0].mxu0
        %v2239 = vadd.f32 0.0, %v2238
        %v2240 = vpop.f32.mrb[0].mxu0
        %2241 = vmatprep.mubr.bf16.mxu0 0
        %2242 = vmatmul.mubr.bf16.gmra.mrb[0].mxu0 %v506
        %v2243 = vpop.f32.mrb[0].mxu0
        %v2244 = vadd.f32 0.0, %v2243
        %v2245 = vpop.f32.mrb[0].mxu0
        %v2246 = vpop.f32.mrb[0].mxu0
        %v2247 = vadd.f32 0.0, %v2246
        %v2248 = vpop.f32.mrb[0].mxu0
        %2249 = vmatprep.mubr.bf16.mxu0 0
        %2250 = vmatmul.mubr.bf16.gmra.mrb[0].mxu0 %v509
        %v2251 = vpop.f32.mrb[0].mxu0
        %v2252 = vadd.f32 0.0, %v2251
        %v2253 = vpop.f32.mrb[0].mxu0
        %v2254 = vpop.f32.mrb[0].mxu0
        %v2255 = vadd.f32 0.0, %v2254
        %v2256 = vpop.f32.mrb[0].mxu0
        %2257 = vmatprep.mubr.bf16.mxu0 0
        %2258 = vmatmul.mubr.bf16.gmra.mrb[0].mxu0 %v512
        %v2259 = vpop.f32.mrb[0].mxu0
        %v2260 = vadd.f32 0.0, %v2259
        %v2261 = vpop.f32.mrb[0].mxu0
        %v2262 = vpop.f32.mrb[0].mxu0
        %v2263 = vadd.f32 0.0, %v2262
        %v2264 = vpop.f32.mrb[0].mxu0
        %2265 = vmatprep.mubr.bf16.mxu0 0
        %2266 = vmatmul.mubr.bf16.gmra.mrb[0].mxu0 %v515
        %v2267 = vpop.f32.mrb[0].mxu0
        %v2268 = vadd.f32 0.0, %v2267
        %v2269 = vpop.f32.mrb[0].mxu0
        %v2270 = vpop.f32.mrb[0].mxu0
        %v2271 = vadd.f32 0.0, %v2270
        %v2272 = vpop.f32.mrb[0].mxu0
        %2273 = vmatprep.mubr.bf16.mxu0 0
        %2274 = vmatmul.mubr.bf16.gmra.mrb[0].mxu0 %v518
        %v2275 = vpop.f32.mrb[0].mxu0
        %v2276 = vadd.f32 0.0, %v2275
        %v2277 = vpop.f32.mrb[0].mxu0
        %v2278 = vpop.f32.mrb[0].mxu0
        %v2279 = vadd.f32 0.0, %v2278
        %v2280 = vpop.f32.mrb[0].mxu0
        %2281 = vmatprep.mubr.bf16.mxu0 0
        %2282 = vmatmul.mubr.bf16.gmra.mrb[0].mxu0 %v521
        %v2283 = vpop.f32.mrb[0].mxu0
        %v2284 = vadd.f32 0.0, %v2283
        %v2285 = vpop.f32.mrb[0].mxu0
        %v2286 = vpop.f32.mrb[0].mxu0
        %v2287 = vadd.f32 0.0, %v2286
        %v2288 = vpop.f32.mrb[0].mxu0
        %2289 = vmatprep.mubr.bf16.mxu0 0
        %2290 = vmatmul.mubr.bf16.gmra.mrb[0].mxu0 %v524
        %v2291 = vpop.f32.mrb[0].mxu0
        %v2292 = vadd.f32 0.0, %v2291
        %v2293 = vpop.f32.mrb[0].mxu0
        %v2294 = vpop.f32.mrb[0].mxu0
        %v2295 = vadd.f32 0.0, %v2294
        %v2296 = vpop.f32.mrb[0].mxu0
        %2297 = vmatprep.mubr.bf16.mxu0 0
        %2298 = vmatmul.mubr.bf16.gmra.mrb[0].mxu0 %v527
        %v2299 = vpop.f32.mrb[0].mxu0
        %v2300 = vadd.f32 0.0, %v2299
        %v2301 = vpop.f32.mrb[0].mxu0
        %v2302 = vpop.f32.mrb[0].mxu0
        %v2303 = vadd.f32 0.0, %v2302
        %v2304 = vpop.f32.mrb[0].mxu0
        %2305 = vmatprep.mubr.bf16.mxu0 0
        %2306 = vmatmul.mubr.bf16.gmra.mrb[0].mxu0 %v2193
        %v2307 = vpop.f32.mrb[0].mxu0
        %v2308 = vadd.f32 0.0, %v2307
        %v2309 = vpop.f32.mrb[0].mxu0
        %v2310 = vpop.f32.mrb[0].mxu0
        %v2311 = vadd.f32 0.0, %v2310
        %v2312 = vpop.f32.mrb[0].mxu0
        %2313 = vmatprep.mubr.bf16.mxu0 0
        %2314 = vmatmul.mubr.bf16.gmra.mrb[0].mxu0 %v2196
        %v2315 = vpop.f32.mrb[0].mxu0
        %v2316 = vadd.f32 0.0, %v2315
        %v2317 = vpop.f32.mrb[0].mxu0
        %v2318 = vpop.f32.mrb[0].mxu0
        %v2319 = vadd.f32 0.0, %v2318
        %v2320 = vpop.f32.mrb[0].mxu0
        %2321 = vmatprep.mubr.bf16.mxu0 0
        %2322 = vmatmul.mubr.bf16.gmra.mrb[0].mxu0 %v2199
        %v2323 = vpop.f32.mrb[0].mxu0
        %v2324 = vadd.f32 0.0, %v2323
        %v2325 = vpop.f32.mrb[0].mxu0
        %v2326 = vpop.f32.mrb[0].mxu0
        %v2327 = vadd.f32 0.0, %v2326
        %v2328 = vpop.f32.mrb[0].mxu0
        %2329 = vdwg.mxu0
        %v2330 = vld [vmem:[#allocation2] sm:$0xff]
        %v2331 = vld [vmem:[#allocation2 + $0x8] sm:$0xff]
        %v2332 = vld [vmem:[#allocation2 + $0x10] sm:$0xff]
        %v2333 = vld [vmem:[#allocation2 + $0x18] sm:$0xff]
        %v2334 = vld [vmem:[#allocation2 + $0x20] sm:$0xff]
        %v2335 = vld [vmem:[#allocation2 + $0x28] sm:$0xff]
        %v2336 = vld [vmem:[#allocation2 + $0x30] sm:$0xff]
        %v2337 = vld [vmem:[#allocation2 + $0x38] sm:$0xff]
        %v2338 = vld [vmem:[#allocation2 + $0x40] sm:$0xff]
        %v2339 = vld [vmem:[#allocation2 + $0x48] sm:$0xff]
        %v2340 = vld [vmem:[#allocation2 + $0x50] sm:$0xff]
        %v2341 = vld [vmem:[#allocation2 + $0x58] sm:$0xff]
        %v2342 = vld [vmem:[#allocation2 + $0x60] sm:$0xff]
        %v2343 = vld [vmem:[#allocation2 + $0x68] sm:$0xff]
        %v2344 = vld [vmem:[#allocation2 + $0x70] sm:$0xff]
        %v2345 = vld [vmem:[#allocation2 + $0x78] sm:$0xff]
        %v2346 = vld [vmem:[#allocation2 + $0x80] sm:$0xff]
        %v2347 = vld [vmem:[#allocation2 + $0x88] sm:$0xff]
        %v2348 = vld [vmem:[#allocation2 + $0x90] sm:$0xff]
        %v2349 = vld [vmem:[#allocation2 + $0x98] sm:$0xff]
        %v2350 = vld [vmem:[#allocation2 + $0xa0] sm:$0xff]
        %v2351 = vld [vmem:[#allocation2 + $0xa8] sm:$0xff]
        %v2352 = vld [vmem:[#allocation2 + $0xb0] sm:$0xff]
        %v2353 = vld [vmem:[#allocation2 + $0xb8] sm:$0xff]
        %v2354 = vadd.f32 %v2330, %v2236
        %v2355 = vadd.f32 %v2331, %v2239
        %v2356 = vadd.f32 %v2332, %v2244
        %v2357 = vadd.f32 %v2333, %v2247
        %v2358 = vadd.f32 %v2334, %v2252
        %v2359 = vadd.f32 %v2335, %v2255
        %v2360 = vadd.f32 %v2336, %v2260
        %v2361 = vadd.f32 %v2337, %v2263
        %v2362 = vadd.f32 %v2338, %v2268
        %v2363 = vadd.f32 %v2339, %v2271
        %v2364 = vadd.f32 %v2340, %v2276
        %v2365 = vadd.f32 %v2341, %v2279
        %v2366 = vadd.f32 %v2342, %v2284
        %v2367 = vadd.f32 %v2343, %v2287
        %v2368 = vadd.f32 %v2344, %v2292
        %v2369 = vadd.f32 %v2345, %v2295
        %v2370 = vadd.f32 %v2346, %v2300
        %v2371 = vadd.f32 %v2347, %v2303
        %v2372 = vadd.f32 %v2348, %v2308
        %v2373 = vadd.f32 %v2349, %v2311
        %v2374 = vadd.f32 %v2350, %v2316
        %v2375 = vadd.f32 %v2351, %v2319
        %v2376 = vadd.f32 %v2352, %v2324
        %v2377 = vadd.f32 %v2353, %v2327
        %2378 = vst.msk [vmem:[#allocation2] sm:$0xff] %vm492, %v2354
        %2379 = vst.msk [vmem:[#allocation2 + $0x8] sm:$0xff] %vm492, %v2355
        %2380 = vst.msk [vmem:[#allocation2 + $0x10] sm:$0xff] %vm492, %v2356
        %2381 = vst.msk [vmem:[#allocation2 + $0x18] sm:$0xff] %vm492, %v2357
        %2382 = vst.msk [vmem:[#allocation2 + $0x20] sm:$0xff] %vm492, %v2358
        %2383 = vst.msk [vmem:[#allocation2 + $0x28] sm:$0xff] %vm492, %v2359
        %2384 = vst.msk [vmem:[#allocation2 + $0x30] sm:$0xff] %vm492, %v2360
        %2385 = vst.msk [vmem:[#allocation2 + $0x38] sm:$0xff] %vm492, %v2361
        %2386 = vst.msk [vmem:[#allocation2 + $0x40] sm:$0xff] %vm492, %v2362
        %2387 = vst.msk [vmem:[#allocation2 + $0x48] sm:$0xff] %vm492, %v2363
        %2388 = vst.msk [vmem:[#allocation2 + $0x50] sm:$0xff] %vm492, %v2364
        %2389 = vst.msk [vmem:[#allocation2 + $0x58] sm:$0xff] %vm492, %v2365
        %2390 = vst.msk [vmem:[#allocation2 + $0x60] sm:$0xff] %vm492, %v2366
        %2391 = vst.msk [vmem:[#allocation2 + $0x68] sm:$0xff] %vm492, %v2367
        %2392 = vst.msk [vmem:[#allocation2 + $0x70] sm:$0xff] %vm492, %v2368
        %2393 = vst.msk [vmem:[#allocation2 + $0x78] sm:$0xff] %vm492, %v2369
        %2394 = vst.msk [vmem:[#allocation2 + $0x80] sm:$0xff] %vm492, %v2370
        %2395 = vst.msk [vmem:[#allocation2 + $0x88] sm:$0xff] %vm492, %v2371
        %2396 = vst.msk [vmem:[#allocation2 + $0x90] sm:$0xff] %vm492, %v2372
        %2397 = vst.msk [vmem:[#allocation2 + $0x98] sm:$0xff] %vm492, %v2373
        %2398 = vst.msk [vmem:[#allocation2 + $0xa0] sm:$0xff] %vm492, %v2374
        %2399 = vst.msk [vmem:[#allocation2 + $0xa8] sm:$0xff] %vm492, %v2375
        %2400 = vst.msk [vmem:[#allocation2 + $0xb0] sm:$0xff] %vm492, %v2376
        %2401 = vst.msk [vmem:[#allocation2 + $0xb8] sm:$0xff] %vm492, %v2377
        %v2402 = vpack.c.bf16 0.0, 0.0
        %s2403 = scalar_lea.vmem %s3, 56
        %v2404 = vld [vmem:[%s2403] sm:$0xf]
        %v2405 = vld [vmem:[%s2403 + $0x4] sm:$0xf]
        %v2406 = vshll.u32 %v2180, 16
        %v2408 = vrot.slane %v2406, 1
        %v2409 = vsel %vm686, %v769, %v2408
        %v2410 = vshrl.u32 %v2180, 16
        %v2412 = vor.u32 %v2410, %v2408
        %v2413 = vshll.u32 %v2181, 16
        %v2415 = vrot.slane %v2413, 1
        %v2416 = vsel %vm686, %v2412, %v2415
        %v2417 = vshrl.u32 %v2181, 16
        %v2419 = vor.u32 %v2417, %v2415
        %v2420 = vshll.u32 %v2182, 16
        %v2422 = vrot.slane %v2420, 1
        %v2423 = vsel %vm686, %v2419, %v2422
        %v2424 = vshrl.u32 %v2182, 16
        %v2426 = vor.u32 %v2424, %v2422
        %v2428 = vshll.u32 %v2402, 16
        %v2430 = vrot.slane %v2428, 1
        %v2431 = vsel %vm686, %v2426, %v2430
        %v2434 = vunpack.c.l.b16 %v2404
        %v2435 = vunpack.c.l.b16 %v2405
        %v2436 = vpack.c.b16 %v2435, %v2434
        %v2439 = vsel %vm492, %v2409, 0
        %v2442 = vsel %vm492, %v2416, 0
        %v2445 = vsel %vm492, %v2423, 0
        %v2448 = vsel %vm492, %v2431, 0
        %2450 = vmatprep.subr.bf16.mxu0 0
        %2451 = vmatpush1.bf16.msra.mxu0 %v2436
        %2452 = vmatprep.subr.bf16.mxu0 0
        %2453 = vmatpush1.bf16.msra.mxu0 0
        %2454 = vmatprep.subr.bf16.mxu0 0
        %2455 = vmatpush1.bf16.msra.mxu0 0
        %2456 = vmatprep.subr.bf16.mxu0 0
        %2457 = vmatpush1.bf16.msra.mxu0 0
        %2458 = vmatprep.subr.bf16.mxu0 0
        %2459 = vmatpush1.bf16.msra.mxu0 0
        %2460 = vmatprep.subr.bf16.mxu0 0
        %2461 = vmatpush1.bf16.msra.mxu0 0
        %2462 = vmatprep.subr.bf16.mxu0 0
        %2463 = vmatpush1.bf16.msra.mxu0 0
        %2464 = vmatprep.subr.bf16.mxu0 0
        %2465 = vmatpush1.bf16.msra.mxu0 0
        %2466 = vmatprep.subr.bf16.mxu0 0
        %2467 = vmatpush1.bf16.msra.mxu0 0
        %2468 = vmatprep.subr.bf16.mxu0 0
        %2469 = vmatpush1.bf16.msra.mxu0 0
        %2470 = vmatprep.subr.bf16.mxu0 0
        %2471 = vmatpush1.bf16.msra.mxu0 0
        %2472 = vmatprep.subr.bf16.mxu0 0
        %2473 = vmatpush1.bf16.msra.mxu0 0
        %2474 = vmatprep.subr.bf16.mxu0 0
        %2475 = vmatpush1.bf16.msra.mxu0 0
        %2476 = vmatprep.subr.bf16.mxu0 0
        %2477 = vmatpush1.bf16.msra.mxu0 0
        %2478 = vmatprep.subr.bf16.mxu0 0
        %2479 = vmatpush1.bf16.msra.mxu0 0
        %2480 = vmatprep.subr.bf16.mxu0 0
        %2481 = vmatpush1.bf16.msra.mxu0 0
        %2482 = vmatprep.mubr.bf16.mxu0 0
        %2483 = vmatmul.mubr.bf16.gmra.mrb[0].mxu0 %v791
        %v2484 = vpop.f32.mrb[0].mxu0
        %v2485 = vadd.f32 0.0, %v2484
        %v2486 = vpop.f32.mrb[0].mxu0
        %v2487 = vpop.f32.mrb[0].mxu0
        %v2488 = vadd.f32 0.0, %v2487
        %v2489 = vpop.f32.mrb[0].mxu0
        %2490 = vmatprep.mubr.bf16.mxu0 0
        %2491 = vmatmul.mubr.bf16.gmra.mrb[0].mxu0 %v794
        %v2492 = vpop.f32.mrb[0].mxu0
        %v2493 = vadd.f32 0.0, %v2492
        %v2494 = vpop.f32.mrb[0].mxu0
        %v2495 = vpop.f32.mrb[0].mxu0
        %v2496 = vadd.f32 0.0, %v2495
        %v2497 = vpop.f32.mrb[0].mxu0
        %2498 = vmatprep.mubr.bf16.mxu0 0
        %2499 = vmatmul.mubr.bf16.gmra.mrb[0].mxu0 %v797
        %v2500 = vpop.f32.mrb[0].mxu0
        %v2501 = vadd.f32 0.0, %v2500
        %v2502 = vpop.f32.mrb[0].mxu0
        %v2503 = vpop.f32.mrb[0].mxu0
        %v2504 = vadd.f32 0.0, %v2503
        %v2505 = vpop.f32.mrb[0].mxu0
        %2506 = vmatprep.mubr.bf16.mxu0 0
        %2507 = vmatmul.mubr.bf16.gmra.mrb[0].mxu0 %v800
        %v2508 = vpop.f32.mrb[0].mxu0
        %v2509 = vadd.f32 0.0, %v2508
        %v2510 = vpop.f32.mrb[0].mxu0
        %v2511 = vpop.f32.mrb[0].mxu0
        %v2512 = vadd.f32 0.0, %v2511
        %v2513 = vpop.f32.mrb[0].mxu0
        %2514 = vmatprep.mubr.bf16.mxu0 0
        %2515 = vmatmul.mubr.bf16.gmra.mrb[0].mxu0 %v803
        %v2516 = vpop.f32.mrb[0].mxu0
        %v2517 = vadd.f32 0.0, %v2516
        %v2518 = vpop.f32.mrb[0].mxu0
        %v2519 = vpop.f32.mrb[0].mxu0
        %v2520 = vadd.f32 0.0, %v2519
        %v2521 = vpop.f32.mrb[0].mxu0
        %2522 = vmatprep.mubr.bf16.mxu0 0
        %2523 = vmatmul.mubr.bf16.gmra.mrb[0].mxu0 %v806
        %v2524 = vpop.f32.mrb[0].mxu0
        %v2525 = vadd.f32 0.0, %v2524
        %v2526 = vpop.f32.mrb[0].mxu0
        %v2527 = vpop.f32.mrb[0].mxu0
        %v2528 = vadd.f32 0.0, %v2527
        %v2529 = vpop.f32.mrb[0].mxu0
        %2530 = vmatprep.mubr.bf16.mxu0 0
        %2531 = vmatmul.mubr.bf16.gmra.mrb[0].mxu0 %v809
        %v2532 = vpop.f32.mrb[0].mxu0
        %v2533 = vadd.f32 0.0, %v2532
        %v2534 = vpop.f32.mrb[0].mxu0
        %v2535 = vpop.f32.mrb[0].mxu0
        %v2536 = vadd.f32 0.0, %v2535
        %v2537 = vpop.f32.mrb[0].mxu0
        %2538 = vmatprep.mubr.bf16.mxu0 0
        %2539 = vmatmul.mubr.bf16.gmra.mrb[0].mxu0 %v812
        %v2540 = vpop.f32.mrb[0].mxu0
        %v2541 = vadd.f32 0.0, %v2540
        %v2542 = vpop.f32.mrb[0].mxu0
        %v2543 = vpop.f32.mrb[0].mxu0
        %v2544 = vadd.f32 0.0, %v2543
        %v2545 = vpop.f32.mrb[0].mxu0
        %2546 = vmatprep.mubr.bf16.mxu0 0
        %2547 = vmatmul.mubr.bf16.gmra.mrb[0].mxu0 %v2439
        %v2548 = vpop.f32.mrb[0].mxu0
        %v2549 = vadd.f32 0.0, %v2548
        %v2550 = vpop.f32.mrb[0].mxu0
        %v2551 = vpop.f32.mrb[0].mxu0
        %v2552 = vadd.f32 0.0, %v2551
        %v2553 = vpop.f32.mrb[0].mxu0
        %2554 = vmatprep.mubr.bf16.mxu0 0
        %2555 = vmatmul.mubr.bf16.gmra.mrb[0].mxu0 %v2442
        %v2556 = vpop.f32.mrb[0].mxu0
        %v2557 = vadd.f32 0.0, %v2556
        %v2558 = vpop.f32.mrb[0].mxu0
        %v2559 = vpop.f32.mrb[0].mxu0
        %v2560 = vadd.f32 0.0, %v2559
        %v2561 = vpop.f32.mrb[0].mxu0
        %2562 = vmatprep.mubr.bf16.mxu0 0
        %2563 = vmatmul.mubr.bf16.gmra.mrb[0].mxu0 %v2445
        %v2564 = vpop.f32.mrb[0].mxu0
        %v2565 = vadd.f32 0.0, %v2564
        %v2566 = vpop.f32.mrb[0].mxu0
        %v2567 = vpop.f32.mrb[0].mxu0
        %v2568 = vadd.f32 0.0, %v2567
        %v2569 = vpop.f32.mrb[0].mxu0
        %2570 = vmatprep.mubr.bf16.mxu0 0
        %2571 = vmatmul.mubr.bf16.gmra.mrb[0].mxu0 %v2448
        %v2572 = vpop.f32.mrb[0].mxu0
        %v2573 = vadd.f32 0.0, %v2572
        %v2574 = vpop.f32.mrb[0].mxu0
        %v2575 = vpop.f32.mrb[0].mxu0
        %v2576 = vadd.f32 0.0, %v2575
        %v2577 = vpop.f32.mrb[0].mxu0
        %2578 = vdwg.mxu0
        %v2579 = vld [vmem:[#allocation2] sm:$0xff]
        %v2580 = vld [vmem:[#allocation2 + $0x8] sm:$0xff]
        %v2581 = vld [vmem:[#allocation2 + $0x10] sm:$0xff]
        %v2582 = vld [vmem:[#allocation2 + $0x18] sm:$0xff]
        %v2583 = vld [vmem:[#allocation2 + $0x20] sm:$0xff]
        %v2584 = vld [vmem:[#allocation2 + $0x28] sm:$0xff]
        %v2585 = vld [vmem:[#allocation2 + $0x30] sm:$0xff]
        %v2586 = vld [vmem:[#allocation2 + $0x38] sm:$0xff]
        %v2587 = vld [vmem:[#allocation2 + $0x40] sm:$0xff]
        %v2588 = vld [vmem:[#allocation2 + $0x48] sm:$0xff]
        %v2589 = vld [vmem:[#allocation2 + $0x50] sm:$0xff]
        %v2590 = vld [vmem:[#allocation2 + $0x58] sm:$0xff]
        %v2591 = vld [vmem:[#allocation2 + $0x60] sm:$0xff]
        %v2592 = vld [vmem:[#allocation2 + $0x68] sm:$0xff]
        %v2593 = vld [vmem:[#allocation2 + $0x70] sm:$0xff]
        %v2594 = vld [vmem:[#allocation2 + $0x78] sm:$0xff]
        %v2595 = vld [vmem:[#allocation2 + $0x80] sm:$0xff]
        %v2596 = vld [vmem:[#allocation2 + $0x88] sm:$0xff]
        %v2597 = vld [vmem:[#allocation2 + $0x90] sm:$0xff]
        %v2598 = vld [vmem:[#allocation2 + $0x98] sm:$0xff]
        %v2599 = vld [vmem:[#allocation2 + $0xa0] sm:$0xff]
        %v2600 = vld [vmem:[#allocation2 + $0xa8] sm:$0xff]
        %v2601 = vld [vmem:[#allocation2 + $0xb0] sm:$0xff]
        %v2602 = vld [vmem:[#allocation2 + $0xb8] sm:$0xff]
        %v2603 = vadd.f32 %v2579, %v2485
        %v2604 = vadd.f32 %v2580, %v2488
        %v2605 = vadd.f32 %v2581, %v2493
        %v2606 = vadd.f32 %v2582, %v2496
        %v2607 = vadd.f32 %v2583, %v2501
        %v2608 = vadd.f32 %v2584, %v2504
        %v2609 = vadd.f32 %v2585, %v2509
        %v2610 = vadd.f32 %v2586, %v2512
        %v2611 = vadd.f32 %v2587, %v2517
        %v2612 = vadd.f32 %v2588, %v2520
        %v2613 = vadd.f32 %v2589, %v2525
        %v2614 = vadd.f32 %v2590, %v2528
        %v2615 = vadd.f32 %v2591, %v2533
        %v2616 = vadd.f32 %v2592, %v2536
        %v2617 = vadd.f32 %v2593, %v2541
        %v2618 = vadd.f32 %v2594, %v2544
        %v2619 = vadd.f32 %v2595, %v2549
        %v2620 = vadd.f32 %v2596, %v2552
        %v2621 = vadd.f32 %v2597, %v2557
        %v2622 = vadd.f32 %v2598, %v2560
        %v2623 = vadd.f32 %v2599, %v2565
        %v2624 = vadd.f32 %v2600, %v2568
        %v2625 = vadd.f32 %v2601, %v2573
        %v2626 = vadd.f32 %v2602, %v2576
        %2627 = vst.msk [vmem:[#allocation2] sm:$0xff] %vm492, %v2603
        %2628 = vst.msk [vmem:[#allocation2 + $0x8] sm:$0xff] %vm492, %v2604
        %2629 = vst.msk [vmem:[#allocation2 + $0x10] sm:$0xff] %vm492, %v2605
        %2630 = vst.msk [vmem:[#allocation2 + $0x18] sm:$0xff] %vm492, %v2606
        %2631 = vst.msk [vmem:[#allocation2 + $0x20] sm:$0xff] %vm492, %v2607
        %2632 = vst.msk [vmem:[#allocation2 + $0x28] sm:$0xff] %vm492, %v2608
        %2633 = vst.msk [vmem:[#allocation2 + $0x30] sm:$0xff] %vm492, %v2609
        %2634 = vst.msk [vmem:[#allocation2 + $0x38] sm:$0xff] %vm492, %v2610
        %2635 = vst.msk [vmem:[#allocation2 + $0x40] sm:$0xff] %vm492, %v2611
        %2636 = vst.msk [vmem:[#allocation2 + $0x48] sm:$0xff] %vm492, %v2612
        %2637 = vst.msk [vmem:[#allocation2 + $0x50] sm:$0xff] %vm492, %v2613
        %2638 = vst.msk [vmem:[#allocation2 + $0x58] sm:$0xff] %vm492, %v2614
        %2639 = vst.msk [vmem:[#allocation2 + $0x60] sm:$0xff] %vm492, %v2615
        %2640 = vst.msk [vmem:[#allocation2 + $0x68] sm:$0xff] %vm492, %v2616
        %2641 = vst.msk [vmem:[#allocation2 + $0x70] sm:$0xff] %vm492, %v2617
        %2642 = vst.msk [vmem:[#allocation2 + $0x78] sm:$0xff] %vm492, %v2618
        %2643 = vst.msk [vmem:[#allocation2 + $0x80] sm:$0xff] %vm492, %v2619
        %2644 = vst.msk [vmem:[#allocation2 + $0x88] sm:$0xff] %vm492, %v2620
        %2645 = vst.msk [vmem:[#allocation2 + $0x90] sm:$0xff] %vm492, %v2621
        %2646 = vst.msk [vmem:[#allocation2 + $0x98] sm:$0xff] %vm492, %v2622
        %2647 = vst.msk [vmem:[#allocation2 + $0xa0] sm:$0xff] %vm492, %v2623
        %2648 = vst.msk [vmem:[#allocation2 + $0xa8] sm:$0xff] %vm492, %v2624
        %2649 = vst.msk [vmem:[#allocation2 + $0xb0] sm:$0xff] %vm492, %v2625
        %2650 = vst.msk [vmem:[#allocation2 + $0xb8] sm:$0xff] %vm492, %v2626
        %s2651 = scalar_lea.vmem %s3, 64
        %v2652 = vld [vmem:[%s2651] sm:$0xf]
        %v2653 = vld [vmem:[%s2651 + $0x4] sm:$0xf]
        %v2658 = vrot.slane %v2180, 1
        %v2659 = vsel %vm1034, %v1056, %v2658
        %v2660 = vrot.slane %v2181, 1
        %v2661 = vsel %vm1034, %v2658, %v2660
        %v2662 = vrot.slane %v2182, 1
        %v2663 = vsel %vm1034, %v2660, %v2662
        %v2664 = vrot.slane %v2402, 1
        %v2665 = vsel %vm1034, %v2662, %v2664
        %v2668 = vunpack.c.l.b16 %v2652
        %v2669 = vunpack.c.l.b16 %v2653
        %v2670 = vpack.c.b16 %v2669, %v2668
        %v2673 = vsel %vm492, %v2659, 0
        %v2676 = vsel %vm492, %v2661, 0
        %v2679 = vsel %vm492, %v2663, 0
        %v2682 = vsel %vm492, %v2665, 0
        %2684 = vmatprep.subr.bf16.mxu0 0
        %2685 = vmatpush1.bf16.msra.mxu0 %v2670
        %2686 = vmatprep.subr.bf16.mxu0 0
        %2687 = vmatpush1.bf16.msra.mxu0 0
        %2688 = vmatprep.subr.bf16.mxu0 0
        %2689 = vmatpush1.bf16.msra.mxu0 0
        %2690 = vmatprep.subr.bf16.mxu0 0
        %2691 = vmatpush1.bf16.msra.mxu0 0
        %2692 = vmatprep.subr.bf16.mxu0 0
        %2693 = vmatpush1.bf16.msra.mxu0 0
        %2694 = vmatprep.subr.bf16.mxu0 0
        %2695 = vmatpush1.bf16.msra.mxu0 0
        %2696 = vmatprep.subr.bf16.mxu0 0
        %2697 = vmatpush1.bf16.msra.mxu0 0
        %2698 = vmatprep.subr.bf16.mxu0 0
        %2699 = vmatpush1.bf16.msra.mxu0 0
        %2700 = vmatprep.subr.bf16.mxu0 0
        %2701 = vmatpush1.bf16.msra.mxu0 0
        %2702 = vmatprep.subr.bf16.mxu0 0
        %2703 = vmatpush1.bf16.msra.mxu0 0
        %2704 = vmatprep.subr.bf16.mxu0 0
        %2705 = vmatpush1.bf16.msra.mxu0 0
        %2706 = vmatprep.subr.bf16.mxu0 0
        %2707 = vmatpush1.bf16.msra.mxu0 0
        %2708 = vmatprep.subr.bf16.mxu0 0
        %2709 = vmatpush1.bf16.msra.mxu0 0
        %2710 = vmatprep.subr.bf16.mxu0 0
        %2711 = vmatpush1.bf16.msra.mxu0 0
        %2712 = vmatprep.subr.bf16.mxu0 0
        %2713 = vmatpush1.bf16.msra.mxu0 0
        %2714 = vmatprep.subr.bf16.mxu0 0
        %2715 = vmatpush1.bf16.msra.mxu0 0
        %2716 = vmatprep.mubr.bf16.mxu0 0
        %2717 = vmatmul.mubr.bf16.gmra.mrb[0].mxu0 %v1076
        %v2718 = vpop.f32.mrb[0].mxu0
        %v2719 = vadd.f32 0.0, %v2718
        %v2720 = vpop.f32.mrb[0].mxu0
        %v2721 = vpop.f32.mrb[0].mxu0
        %v2722 = vadd.f32 0.0, %v2721
        %v2723 = vpop.f32.mrb[0].mxu0
        %2724 = vmatprep.mubr.bf16.mxu0 0
        %2725 = vmatmul.mubr.bf16.gmra.mrb[0].mxu0 %v1079
        %v2726 = vpop.f32.mrb[0].mxu0
        %v2727 = vadd.f32 0.0, %v2726
        %v2728 = vpop.f32.mrb[0].mxu0
        %v2729 = vpop.f32.mrb[0].mxu0
        %v2730 = vadd.f32 0.0, %v2729
        %v2731 = vpop.f32.mrb[0].mxu0
        %2732 = vmatprep.mubr.bf16.mxu0 0
        %2733 = vmatmul.mubr.bf16.gmra.mrb[0].mxu0 %v1082
        %v2734 = vpop.f32.mrb[0].mxu0
        %v2735 = vadd.f32 0.0, %v2734
        %v2736 = vpop.f32.mrb[0].mxu0
        %v2737 = vpop.f32.mrb[0].mxu0
        %v2738 = vadd.f32 0.0, %v2737
        %v2739 = vpop.f32.mrb[0].mxu0
        %2740 = vmatprep.mubr.bf16.mxu0 0
        %2741 = vmatmul.mubr.bf16.gmra.mrb[0].mxu0 %v1085
        %v2742 = vpop.f32.mrb[0].mxu0
        %v2743 = vadd.f32 0.0, %v2742
        %v2744 = vpop.f32.mrb[0].mxu0
        %v2745 = vpop.f32.mrb[0].mxu0
        %v2746 = vadd.f32 0.0, %v2745
        %v2747 = vpop.f32.mrb[0].mxu0
        %2748 = vmatprep.mubr.bf16.mxu0 0
        %2749 = vmatmul.mubr.bf16.gmra.mrb[0].mxu0 %v1088
        %v2750 = vpop.f32.mrb[0].mxu0
        %v2751 = vadd.f32 0.0, %v2750
        %v2752 = vpop.f32.mrb[0].mxu0
        %v2753 = vpop.f32.mrb[0].mxu0
        %v2754 = vadd.f32 0.0, %v2753
        %v2755 = vpop.f32.mrb[0].mxu0
        %2756 = vmatprep.mubr.bf16.mxu0 0
        %2757 = vmatmul.mubr.bf16.gmra.mrb[0].mxu0 %v1091
        %v2758 = vpop.f32.mrb[0].mxu0
        %v2759 = vadd.f32 0.0, %v2758
        %v2760 = vpop.f32.mrb[0].mxu0
        %v2761 = vpop.f32.mrb[0].mxu0
        %v2762 = vadd.f32 0.0, %v2761
        %v2763 = vpop.f32.mrb[0].mxu0
        %2764 = vmatprep.mubr.bf16.mxu0 0
        %2765 = vmatmul.mubr.bf16.gmra.mrb[0].mxu0 %v1094
        %v2766 = vpop.f32.mrb[0].mxu0
        %v2767 = vadd.f32 0.0, %v2766
        %v2768 = vpop.f32.mrb[0].mxu0
        %v2769 = vpop.f32.mrb[0].mxu0
        %v2770 = vadd.f32 0.0, %v2769
        %v2771 = vpop.f32.mrb[0].mxu0
        %2772 = vmatprep.mubr.bf16.mxu0 0
        %2773 = vmatmul.mubr.bf16.gmra.mrb[0].mxu0 %v1097
        %v2774 = vpop.f32.mrb[0].mxu0
        %v2775 = vadd.f32 0.0, %v2774
        %v2776 = vpop.f32.mrb[0].mxu0
        %v2777 = vpop.f32.mrb[0].mxu0
        %v2778 = vadd.f32 0.0, %v2777
        %v2779 = vpop.f32.mrb[0].mxu0
        %2780 = vmatprep.mubr.bf16.mxu0 0
        %2781 = vmatmul.mubr.bf16.gmra.mrb[0].mxu0 %v2673
        %v2782 = vpop.f32.mrb[0].mxu0
        %v2783 = vadd.f32 0.0, %v2782
        %v2784 = vpop.f32.mrb[0].mxu0
        %v2785 = vpop.f32.mrb[0].mxu0
        %v2786 = vadd.f32 0.0, %v2785
        %v2787 = vpop.f32.mrb[0].mxu0
        %2788 = vmatprep.mubr.bf16.mxu0 0
        %2789 = vmatmul.mubr.bf16.gmra.mrb[0].mxu0 %v2676
        %v2790 = vpop.f32.mrb[0].mxu0
        %v2791 = vadd.f32 0.0, %v2790
        %v2792 = vpop.f32.mrb[0].mxu0
        %v2793 = vpop.f32.mrb[0].mxu0
        %v2794 = vadd.f32 0.0, %v2793
        %v2795 = vpop.f32.mrb[0].mxu0
        %2796 = vmatprep.mubr.bf16.mxu0 0
        %2797 = vmatmul.mubr.bf16.gmra.mrb[0].mxu0 %v2679
        %v2798 = vpop.f32.mrb[0].mxu0
        %v2799 = vadd.f32 0.0, %v2798
        %v2800 = vpop.f32.mrb[0].mxu0
        %v2801 = vpop.f32.mrb[0].mxu0
        %v2802 = vadd.f32 0.0, %v2801
        %v2803 = vpop.f32.mrb[0].mxu0
        %2804 = vmatprep.mubr.bf16.mxu0 0
        %2805 = vmatmul.mubr.bf16.gmra.mrb[0].mxu0 %v2682
        %v2806 = vpop.f32.mrb[0].mxu0
        %v2807 = vadd.f32 0.0, %v2806
        %v2808 = vpop.f32.mrb[0].mxu0
        %v2809 = vpop.f32.mrb[0].mxu0
        %v2810 = vadd.f32 0.0, %v2809
        %v2811 = vpop.f32.mrb[0].mxu0
        %2812 = vdwg.mxu0
        %v2813 = vld [vmem:[#allocation2] sm:$0xff]
        %v2814 = vld [vmem:[#allocation2 + $0x8] sm:$0xff]
        %v2815 = vld [vmem:[#allocation2 + $0x10] sm:$0xff]
        %v2816 = vld [vmem:[#allocation2 + $0x18] sm:$0xff]
        %v2817 = vld [vmem:[#allocation2 + $0x20] sm:$0xff]
        %v2818 = vld [vmem:[#allocation2 + $0x28] sm:$0xff]
        %v2819 = vld [vmem:[#allocation2 + $0x30] sm:$0xff]
        %v2820 = vld [vmem:[#allocation2 + $0x38] sm:$0xff]
        %v2821 = vld [vmem:[#allocation2 + $0x40] sm:$0xff]
        %v2822 = vld [vmem:[#allocation2 + $0x48] sm:$0xff]
        %v2823 = vld [vmem:[#allocation2 + $0x50] sm:$0xff]
        %v2824 = vld [vmem:[#allocation2 + $0x58] sm:$0xff]
        %v2825 = vld [vmem:[#allocation2 + $0x60] sm:$0xff]
        %v2826 = vld [vmem:[#allocation2 + $0x68] sm:$0xff]
        %v2827 = vld [vmem:[#allocation2 + $0x70] sm:$0xff]
        %v2828 = vld [vmem:[#allocation2 + $0x78] sm:$0xff]
        %v2829 = vld [vmem:[#allocation2 + $0x80] sm:$0xff]
        %v2830 = vld [vmem:[#allocation2 + $0x88] sm:$0xff]
        %v2831 = vld [vmem:[#allocation2 + $0x90] sm:$0xff]
        %v2832 = vld [vmem:[#allocation2 + $0x98] sm:$0xff]
        %v2833 = vld [vmem:[#allocation2 + $0xa0] sm:$0xff]
        %v2834 = vld [vmem:[#allocation2 + $0xa8] sm:$0xff]
        %v2835 = vld [vmem:[#allocation2 + $0xb0] sm:$0xff]
        %v2836 = vld [vmem:[#allocation2 + $0xb8] sm:$0xff]
        %v2837 = vadd.f32 %v2813, %v2719
        %v2838 = vadd.f32 %v2814, %v2722
        %v2839 = vadd.f32 %v2815, %v2727
        %v2840 = vadd.f32 %v2816, %v2730
        %v2841 = vadd.f32 %v2817, %v2735
        %v2842 = vadd.f32 %v2818, %v2738
        %v2843 = vadd.f32 %v2819, %v2743
        %v2844 = vadd.f32 %v2820, %v2746
        %v2845 = vadd.f32 %v2821, %v2751
        %v2846 = vadd.f32 %v2822, %v2754
        %v2847 = vadd.f32 %v2823, %v2759
        %v2848 = vadd.f32 %v2824, %v2762
        %v2849 = vadd.f32 %v2825, %v2767
        %v2850 = vadd.f32 %v2826, %v2770
        %v2851 = vadd.f32 %v2827, %v2775
        %v2852 = vadd.f32 %v2828, %v2778
        %v2853 = vadd.f32 %v2829, %v2783
        %v2854 = vadd.f32 %v2830, %v2786
        %v2855 = vadd.f32 %v2831, %v2791
        %v2856 = vadd.f32 %v2832, %v2794
        %v2857 = vadd.f32 %v2833, %v2799
        %v2858 = vadd.f32 %v2834, %v2802
        %v2859 = vadd.f32 %v2835, %v2807
        %v2860 = vadd.f32 %v2836, %v2810
        %2861 = vst.msk [vmem:[#allocation2] sm:$0xff] %vm492, %v2837
        %2862 = vst.msk [vmem:[#allocation2 + $0x8] sm:$0xff] %vm492, %v2838
        %2863 = vst.msk [vmem:[#allocation2 + $0x10] sm:$0xff] %vm492, %v2839
        %2864 = vst.msk [vmem:[#allocation2 + $0x18] sm:$0xff] %vm492, %v2840
        %2865 = vst.msk [vmem:[#allocation2 + $0x20] sm:$0xff] %vm492, %v2841
        %2866 = vst.msk [vmem:[#allocation2 + $0x28] sm:$0xff] %vm492, %v2842
        %2867 = vst.msk [vmem:[#allocation2 + $0x30] sm:$0xff] %vm492, %v2843
        %2868 = vst.msk [vmem:[#allocation2 + $0x38] sm:$0xff] %vm492, %v2844
        %2869 = vst.msk [vmem:[#allocation2 + $0x40] sm:$0xff] %vm492, %v2845
        %2870 = vst.msk [vmem:[#allocation2 + $0x48] sm:$0xff] %vm492, %v2846
        %2871 = vst.msk [vmem:[#allocation2 + $0x50] sm:$0xff] %vm492, %v2847
        %2872 = vst.msk [vmem:[#allocation2 + $0x58] sm:$0xff] %vm492, %v2848
        %2873 = vst.msk [vmem:[#allocation2 + $0x60] sm:$0xff] %vm492, %v2849
        %2874 = vst.msk [vmem:[#allocation2 + $0x68] sm:$0xff] %vm492, %v2850
        %2875 = vst.msk [vmem:[#allocation2 + $0x70] sm:$0xff] %vm492, %v2851
        %2876 = vst.msk [vmem:[#allocation2 + $0x78] sm:$0xff] %vm492, %v2852
        %2877 = vst.msk [vmem:[#allocation2 + $0x80] sm:$0xff] %vm492, %v2853
        %2878 = vst.msk [vmem:[#allocation2 + $0x88] sm:$0xff] %vm492, %v2854
        %2879 = vst.msk [vmem:[#allocation2 + $0x90] sm:$0xff] %vm492, %v2855
        %2880 = vst.msk [vmem:[#allocation2 + $0x98] sm:$0xff] %vm492, %v2856
        %2881 = vst.msk [vmem:[#allocation2 + $0xa0] sm:$0xff] %vm492, %v2857
        %2882 = vst.msk [vmem:[#allocation2 + $0xa8] sm:$0xff] %vm492, %v2858
        %2883 = vst.msk [vmem:[#allocation2 + $0xb0] sm:$0xff] %vm492, %v2859
        %2884 = vst.msk [vmem:[#allocation2 + $0xb8] sm:$0xff] %vm492, %v2860
        %v2885 = vld [vmem:[#allocation2] sm:$0xff]
        %v2886 = vld [vmem:[#allocation2 + $0x8] sm:$0xff]
        %v2887 = vld [vmem:[#allocation2 + $0x10] sm:$0xff]
        %v2888 = vld [vmem:[#allocation2 + $0x18] sm:$0xff]
        %v2889 = vld [vmem:[#allocation2 + $0x20] sm:$0xff]
        %v2890 = vld [vmem:[#allocation2 + $0x28] sm:$0xff]
        %v2891 = vld [vmem:[#allocation2 + $0x30] sm:$0xff]
        %v2892 = vld [vmem:[#allocation2 + $0x38] sm:$0xff]
        %v2893 = vld [vmem:[#allocation2 + $0x40] sm:$0xff]
        %v2894 = vld [vmem:[#allocation2 + $0x48] sm:$0xff]
        %v2895 = vld [vmem:[#allocation2 + $0x50] sm:$0xff]
        %v2896 = vld [vmem:[#allocation2 + $0x58] sm:$0xff]
        %v2897 = vld [vmem:[#allocation2 + $0x60] sm:$0xff]
        %v2898 = vld [vmem:[#allocation2 + $0x68] sm:$0xff]
        %v2899 = vld [vmem:[#allocation2 + $0x70] sm:$0xff]
        %v2900 = vld [vmem:[#allocation2 + $0x78] sm:$0xff]
        %v2901 = vld [vmem:[#allocation2 + $0x80] sm:$0xff]
        %v2902 = vld [vmem:[#allocation2 + $0x88] sm:$0xff]
        %v2903 = vld [vmem:[#allocation2 + $0x90] sm:$0xff]
        %v2904 = vld [vmem:[#allocation2 + $0x98] sm:$0xff]
        %v2905 = vld [vmem:[#allocation2 + $0xa0] sm:$0xff]
        %v2906 = vld [vmem:[#allocation2 + $0xa8] sm:$0xff]
        %v2907 = vld [vmem:[#allocation2 + $0xb0] sm:$0xff]
        %v2908 = vld [vmem:[#allocation2 + $0xb8] sm:$0xff]
        %v2909 = vld [vmem:[%s4] sm:$0x1]
        %v2911 = vlaneseq
        %v2912 = vshrl.u32 %v2911, 7
        %v2913 = vsub.s32 0, %v2912
        %v2914 = vrot.slane %v2909, %v2913
        %v2916 = vadd.f32 %v2885, %v2914
        %v2917 = vadd.f32 %v2886, %v2914
        %v2918 = vadd.f32 %v2887, %v2914
        %v2919 = vadd.f32 %v2888, %v2914
        %v2920 = vadd.f32 %v2889, %v2914
        %v2921 = vadd.f32 %v2890, %v2914
        %v2922 = vadd.f32 %v2891, %v2914
        %v2923 = vadd.f32 %v2892, %v2914
        %v2924 = vadd.f32 %v2893, %v2914
        %v2925 = vadd.f32 %v2894, %v2914
        %v2926 = vadd.f32 %v2895, %v2914
        %v2927 = vadd.f32 %v2896, %v2914
        %v2928 = vadd.f32 %v2897, %v2914
        %v2929 = vadd.f32 %v2898, %v2914
        %v2930 = vadd.f32 %v2899, %v2914
        %v2931 = vadd.f32 %v2900, %v2914
        %v2932 = vadd.f32 %v2901, %v2914
        %v2933 = vadd.f32 %v2902, %v2914
        %v2934 = vadd.f32 %v2903, %v2914
        %v2935 = vadd.f32 %v2904, %v2914
        %v2936 = vadd.f32 %v2905, %v2914
        %v2937 = vadd.f32 %v2906, %v2914
        %v2938 = vadd.f32 %v2907, %v2914
        %v2939 = vadd.f32 %v2908, %v2914
        %v2940 = vmax.f32 %v2916, 0.0
        %v2941 = vmax.f32 %v2917, 0.0
        %v2942 = vmax.f32 %v2918, 0.0
        %v2943 = vmax.f32 %v2919, 0.0
        %v2944 = vmax.f32 %v2920, 0.0
        %v2945 = vmax.f32 %v2921, 0.0
        %v2946 = vmax.f32 %v2922, 0.0
        %v2947 = vmax.f32 %v2923, 0.0
        %v2948 = vmax.f32 %v2924, 0.0
        %v2949 = vmax.f32 %v2925, 0.0
        %v2950 = vmax.f32 %v2926, 0.0
        %v2951 = vmax.f32 %v2927, 0.0
        %v2952 = vmax.f32 %v2928, 0.0
        %v2953 = vmax.f32 %v2929, 0.0
        %v2954 = vmax.f32 %v2930, 0.0
        %v2955 = vmax.f32 %v2931, 0.0
        %v2956 = vmax.f32 %v2932, 0.0
        %v2957 = vmax.f32 %v2933, 0.0
        %v2958 = vmax.f32 %v2934, 0.0
        %v2959 = vmax.f32 %v2935, 0.0
        %v2960 = vmax.f32 %v2936, 0.0
        %v2961 = vmax.f32 %v2937, 0.0
        %v2962 = vmax.f32 %v2938, 0.0
        %v2963 = vmax.f32 %v2939, 0.0
        %v2964 = vpack.c.bf16 %v2941, %v2940
        %v2965 = vpack.c.bf16 %v2943, %v2942
        %v2966 = vpack.c.bf16 %v2945, %v2944
        %v2967 = vpack.c.bf16 %v2947, %v2946
        %v2968 = vpack.c.bf16 %v2949, %v2948
        %v2969 = vpack.c.bf16 %v2951, %v2950
        %v2970 = vpack.c.bf16 %v2953, %v2952
        %v2971 = vpack.c.bf16 %v2955, %v2954
        %v2972 = vpack.c.bf16 %v2957, %v2956
        %v2973 = vpack.c.bf16 %v2959, %v2958
        %v2974 = vpack.c.bf16 %v2961, %v2960
        %v2975 = vpack.c.bf16 %v2963, %v2962
        %v2976 = vld [vmem:[%s5] sm:$0xf]
        %v2977 = vld [vmem:[%s5 + $0x4] sm:$0xf]
        %v2978 = vld [vmem:[%s6] sm:$0x1]
        %v2980 = vlaneseq
        %v2981 = vshrl.u32 %v2980, 7
        %v2982 = vsub.s32 0, %v2981
        %v2983 = vrot.slane %v2978, %v2982
        %v2987 = vunpack.c.l.b16 %v2976
        %v2988 = vunpack.c.l.b16 %v2977
        %v2989 = vpack.c.b16 %v2988, %v2987
        %v2992 = vsel %vm492, %v2964, 0
        %v2995 = vsel %vm492, %v2965, 0
        %v2998 = vsel %vm492, %v2966, 0
        %v3001 = vsel %vm492, %v2967, 0
        %v3004 = vsel %vm492, %v2968, 0
        %v3007 = vsel %vm492, %v2969, 0
        %v3010 = vsel %vm492, %v2970, 0
        %v3013 = vsel %vm492, %v2971, 0
        %v3016 = vsel %vm492, %v2972, 0
        %v3019 = vsel %vm492, %v2973, 0
        %v3022 = vsel %vm492, %v2974, 0
        %v3025 = vsel %vm492, %v2975, 0
        %3027 = vmatprep.subr.bf16.mxu0 0
        %3028 = vmatpush1.bf16.msra.mxu0 %v2989
        %3029 = vmatprep.subr.bf16.mxu0 0
        %3030 = vmatpush1.bf16.msra.mxu0 0
        %3031 = vmatprep.subr.bf16.mxu0 0
        %3032 = vmatpush1.bf16.msra.mxu0 0
        %3033 = vmatprep.subr.bf16.mxu0 0
        %3034 = vmatpush1.bf16.msra.mxu0 0
        %3035 = vmatprep.subr.bf16.mxu0 0
        %3036 = vmatpush1.bf16.msra.mxu0 0
        %3037 = vmatprep.subr.bf16.mxu0 0
        %3038 = vmatpush1.bf16.msra.mxu0 0
        %3039 = vmatprep.subr.bf16.mxu0 0
        %3040 = vmatpush1.bf16.msra.mxu0 0
        %3041 = vmatprep.subr.bf16.mxu0 0
        %3042 = vmatpush1.bf16.msra.mxu0 0
        %3043 = vmatprep.subr.bf16.mxu0 0
        %3044 = vmatpush1.bf16.msra.mxu0 0
        %3045 = vmatprep.subr.bf16.mxu0 0
        %3046 = vmatpush1.bf16.msra.mxu0 0
        %3047 = vmatprep.subr.bf16.mxu0 0
        %3048 = vmatpush1.bf16.msra.mxu0 0
        %3049 = vmatprep.subr.bf16.mxu0 0
        %3050 = vmatpush1.bf16.msra.mxu0 0
        %3051 = vmatprep.subr.bf16.mxu0 0
        %3052 = vmatpush1.bf16.msra.mxu0 0
        %3053 = vmatprep.subr.bf16.mxu0 0
        %3054 = vmatpush1.bf16.msra.mxu0 0
        %3055 = vmatprep.subr.bf16.mxu0 0
        %3056 = vmatpush1.bf16.msra.mxu0 0
        %3057 = vmatprep.subr.bf16.mxu0 0
        %3058 = vmatpush1.bf16.msra.mxu0 0
        %3059 = vmatprep.mubr.bf16.mxu0 0
        %3060 = vmatmul.mubr.bf16.gmra.mrb[0].mxu0 %v2992
        %v3061 = vpop.f32.mrb[0].mxu0
        %v3062 = vadd.f32 %v2983, %v3061
        %v3063 = vpop.f32.mrb[0].mxu0
        %v3064 = vpop.f32.mrb[0].mxu0
        %v3065 = vadd.f32 %v2983, %v3064
        %v3066 = vpop.f32.mrb[0].mxu0
        %3067 = vmatprep.mubr.bf16.mxu0 0
        %3068 = vmatmul.mubr.bf16.gmra.mrb[0].mxu0 %v2995
        %v3069 = vpop.f32.mrb[0].mxu0
        %v3070 = vadd.f32 %v2983, %v3069
        %v3071 = vpop.f32.mrb[0].mxu0
        %v3072 = vpop.f32.mrb[0].mxu0
        %v3073 = vadd.f32 %v2983, %v3072
        %v3074 = vpop.f32.mrb[0].mxu0
        %3075 = vmatprep.mubr.bf16.mxu0 0
        %3076 = vmatmul.mubr.bf16.gmra.mrb[0].mxu0 %v2998
        %v3077 = vpop.f32.mrb[0].mxu0
        %v3078 = vadd.f32 %v2983, %v3077
        %v3079 = vpop.f32.mrb[0].mxu0
        %v3080 = vpop.f32.mrb[0].mxu0
        %v3081 = vadd.f32 %v2983, %v3080
        %v3082 = vpop.f32.mrb[0].mxu0
        %3083 = vmatprep.mubr.bf16.mxu0 0
        %3084 = vmatmul.mubr.bf16.gmra.mrb[0].mxu0 %v3001
        %v3085 = vpop.f32.mrb[0].mxu0
        %v3086 = vadd.f32 %v2983, %v3085
        %v3087 = vpop.f32.mrb[0].mxu0
        %v3088 = vpop.f32.mrb[0].mxu0
        %v3089 = vadd.f32 %v2983, %v3088
        %v3090 = vpop.f32.mrb[0].mxu0
        %3091 = vmatprep.mubr.bf16.mxu0 0
        %3092 = vmatmul.mubr.bf16.gmra.mrb[0].mxu0 %v3004
        %v3093 = vpop.f32.mrb[0].mxu0
        %v3094 = vadd.f32 %v2983, %v3093
        %v3095 = vpop.f32.mrb[0].mxu0
        %v3096 = vpop.f32.mrb[0].mxu0
        %v3097 = vadd.f32 %v2983, %v3096
        %v3098 = vpop.f32.mrb[0].mxu0
        %3099 = vmatprep.mubr.bf16.mxu0 0
        %3100 = vmatmul.mubr.bf16.gmra.mrb[0].mxu0 %v3007
        %v3101 = vpop.f32.mrb[0].mxu0
        %v3102 = vadd.f32 %v2983, %v3101
        %v3103 = vpop.f32.mrb[0].mxu0
        %v3104 = vpop.f32.mrb[0].mxu0
        %v3105 = vadd.f32 %v2983, %v3104
        %v3106 = vpop.f32.mrb[0].mxu0
        %3107 = vmatprep.mubr.bf16.mxu0 0
        %3108 = vmatmul.mubr.bf16.gmra.mrb[0].mxu0 %v3010
        %v3109 = vpop.f32.mrb[0].mxu0
        %v3110 = vadd.f32 %v2983, %v3109
        %v3111 = vpop.f32.mrb[0].mxu0
        %v3112 = vpop.f32.mrb[0].mxu0
        %v3113 = vadd.f32 %v2983, %v3112
        %v3114 = vpop.f32.mrb[0].mxu0
        %3115 = vmatprep.mubr.bf16.mxu0 0
        %3116 = vmatmul.mubr.bf16.gmra.mrb[0].mxu0 %v3013
        %v3117 = vpop.f32.mrb[0].mxu0
        %v3118 = vadd.f32 %v2983, %v3117
        %v3119 = vpop.f32.mrb[0].mxu0
        %v3120 = vpop.f32.mrb[0].mxu0
        %v3121 = vadd.f32 %v2983, %v3120
        %v3122 = vpop.f32.mrb[0].mxu0
        %3123 = vmatprep.mubr.bf16.mxu0 0
        %3124 = vmatmul.mubr.bf16.gmra.mrb[0].mxu0 %v3016
        %v3125 = vpop.f32.mrb[0].mxu0
        %v3126 = vadd.f32 %v2983, %v3125
        %v3127 = vpop.f32.mrb[0].mxu0
        %v3128 = vpop.f32.mrb[0].mxu0
        %v3129 = vadd.f32 %v2983, %v3128
        %v3130 = vpop.f32.mrb[0].mxu0
        %3131 = vmatprep.mubr.bf16.mxu0 0
        %3132 = vmatmul.mubr.bf16.gmra.mrb[0].mxu0 %v3019
        %v3133 = vpop.f32.mrb[0].mxu0
        %v3134 = vadd.f32 %v2983, %v3133
        %v3135 = vpop.f32.mrb[0].mxu0
        %v3136 = vpop.f32.mrb[0].mxu0
        %v3137 = vadd.f32 %v2983, %v3136
        %v3138 = vpop.f32.mrb[0].mxu0
        %3139 = vmatprep.mubr.bf16.mxu0 0
        %3140 = vmatmul.mubr.bf16.gmra.mrb[0].mxu0 %v3022
        %v3141 = vpop.f32.mrb[0].mxu0
        %v3142 = vadd.f32 %v2983, %v3141
        %v3143 = vpop.f32.mrb[0].mxu0
        %v3144 = vpop.f32.mrb[0].mxu0
        %v3145 = vadd.f32 %v2983, %v3144
        %v3146 = vpop.f32.mrb[0].mxu0
        %3147 = vmatprep.mubr.bf16.mxu0 0
        %3148 = vmatmul.mubr.bf16.gmra.mrb[0].mxu0 %v3025
        %v3149 = vpop.f32.mrb[0].mxu0
        %v3150 = vadd.f32 %v2983, %v3149
        %v3151 = vpop.f32.mrb[0].mxu0
        %v3152 = vpop.f32.mrb[0].mxu0
        %v3153 = vadd.f32 %v2983, %v3152
        %v3154 = vpop.f32.mrb[0].mxu0
        %3155 = vdwg.mxu0
        %v3156 = vmin.f32 %v3062, 4.1351666
        %v3157 = vmin.f32 %v3065, 4.1351666
        %v3158 = vmin.f32 %v3070, 4.1351666
        %v3159 = vmin.f32 %v3073, 4.1351666
        %v3160 = vmin.f32 %v3078, 4.1351666
        %v3161 = vmin.f32 %v3081, 4.1351666
        %v3162 = vmin.f32 %v3086, 4.1351666
        %v3163 = vmin.f32 %v3089, 4.1351666
        %v3164 = vmin.f32 %v3094, 4.1351666
        %v3165 = vmin.f32 %v3097, 4.1351666
        %v3166 = vmin.f32 %v3102, 4.1351666
        %v3167 = vmin.f32 %v3105, 4.1351666
        %v3168 = vmin.f32 %v3110, 4.1351666
        %v3169 = vmin.f32 %v3113, 4.1351666
        %v3170 = vmin.f32 %v3118, 4.1351666
        %v3171 = vmin.f32 %v3121, 4.1351666
        %v3172 = vmin.f32 %v3126, 4.1351666
        %v3173 = vmin.f32 %v3129, 4.1351666
        %v3174 = vmin.f32 %v3134, 4.1351666
        %v3175 = vmin.f32 %v3137, 4.1351666
        %v3176 = vmin.f32 %v3142, 4.1351666
        %v3177 = vmin.f32 %v3145, 4.1351666
        %v3178 = vmin.f32 %v3150, 4.1351666
        %v3179 = vmin.f32 %v3153, 4.1351666
        %v3180 = vld [vmem:[%s408] sm:$0xff]
        %v3181 = vld [vmem:[%s408 + $0x8] sm:$0xff]
        %v3182 = vld [vmem:[%s408 + $0x10] sm:$0xff]
        %v3183 = vld [vmem:[%s408 + $0x18] sm:$0xff]
        %v3184 = vld [vmem:[%s408 + $0x20] sm:$0xff]
        %v3185 = vld [vmem:[%s408 + $0x28] sm:$0xff]
        %v3186 = vld [vmem:[%s408 + $0x30] sm:$0xff]
        %v3187 = vld [vmem:[%s408 + $0x38] sm:$0xff]
        %v3188 = vld [vmem:[%s408 + $0x40] sm:$0xff]
        %v3189 = vld [vmem:[%s408 + $0x48] sm:$0xff]
        %v3190 = vld [vmem:[%s408 + $0x50] sm:$0xff]
        %v3191 = vld [vmem:[%s408 + $0x58] sm:$0xff]
        %v3192 = vld [vmem:[%s408 + $0x60] sm:$0xff]
        %v3193 = vld [vmem:[%s408 + $0x68] sm:$0xff]
        %v3194 = vld [vmem:[%s408 + $0x70] sm:$0xff]
        %v3195 = vld [vmem:[%s408 + $0x78] sm:$0xff]
        %v3196 = vld [vmem:[%s408 + $0x80] sm:$0xff]
        %v3197 = vld [vmem:[%s408 + $0x88] sm:$0xff]
        %v3198 = vld [vmem:[%s408 + $0x90] sm:$0xff]
        %v3199 = vld [vmem:[%s408 + $0x98] sm:$0xff]
        %v3200 = vld [vmem:[%s408 + $0xa0] sm:$0xff]
        %v3201 = vld [vmem:[%s408 + $0xa8] sm:$0xff]
        %v3202 = vld [vmem:[%s408 + $0xb0] sm:$0xff]
        %v3203 = vld [vmem:[%s408 + $0xb8] sm:$0xff]
        %3228 = vrot.lane.b32.xlu0 %v3180, 6
        %v3229 = vpop.permute.xlu0 %3228
        %3230 = vrot.lane.b32.xlu0 %v3181, 6
        %v3231 = vpop.permute.xlu0 %3230
        %3232 = vrot.lane.b32.xlu0 %v3182, 6
        %v3233 = vpop.permute.xlu0 %3232
        %3234 = vrot.lane.b32.xlu0 %v3183, 6
        %v3235 = vpop.permute.xlu0 %3234
        %3236 = vrot.lane.b32.xlu0 %v3184, 6
        %v3237 = vpop.permute.xlu0 %3236
        %3238 = vrot.lane.b32.xlu0 %v3185, 6
        %v3239 = vpop.permute.xlu0 %3238
        %3240 = vrot.lane.b32.xlu0 %v3186, 6
        %v3241 = vpop.permute.xlu0 %3240
        %3242 = vrot.lane.b32.xlu0 %v3187, 6
        %v3243 = vpop.permute.xlu0 %3242
        %3244 = vrot.lane.b32.xlu0 %v3188, 6
        %v3245 = vpop.permute.xlu0 %3244
        %3246 = vrot.lane.b32.xlu0 %v3189, 6
        %v3247 = vpop.permute.xlu0 %3246
        %3248 = vrot.lane.b32.xlu0 %v3190, 6
        %v3249 = vpop.permute.xlu0 %3248
        %3250 = vrot.lane.b32.xlu0 %v3191, 6
        %v3251 = vpop.permute.xlu0 %3250
        %3252 = vrot.lane.b32.xlu0 %v3192, 6
        %v3253 = vpop.permute.xlu0 %3252
        %3254 = vrot.lane.b32.xlu0 %v3193, 6
        %v3255 = vpop.permute.xlu0 %3254
        %3256 = vrot.lane.b32.xlu0 %v3194, 6
        %v3257 = vpop.permute.xlu0 %3256
        %3258 = vrot.lane.b32.xlu0 %v3195, 6
        %v3259 = vpop.permute.xlu0 %3258
        %3260 = vrot.lane.b32.xlu0 %v3196, 6
        %v3261 = vpop.permute.xlu0 %3260
        %3262 = vrot.lane.b32.xlu0 %v3197, 6
        %v3263 = vpop.permute.xlu0 %3262
        %3264 = vrot.lane.b32.xlu0 %v3198, 6
        %v3265 = vpop.permute.xlu0 %3264
        %3266 = vrot.lane.b32.xlu0 %v3199, 6
        %v3267 = vpop.permute.xlu0 %3266
        %3268 = vrot.lane.b32.xlu0 %v3200, 6
        %v3269 = vpop.permute.xlu0 %3268
        %3270 = vrot.lane.b32.xlu0 %v3201, 6
        %v3271 = vpop.permute.xlu0 %3270
        %3272 = vrot.lane.b32.xlu0 %v3202, 6
        %v3273 = vpop.permute.xlu0 %3272
        %3274 = vrot.lane.b32.xlu0 %v3203, 6
        %v3275 = vpop.permute.xlu0 %3274
        %v3300 = vsub.f32 %v3180, %v3229
        %v3301 = vsub.f32 %v3181, %v3231
        %v3302 = vsub.f32 %v3182, %v3233
        %v3303 = vsub.f32 %v3183, %v3235
        %v3304 = vsub.f32 %v3184, %v3237
        %v3305 = vsub.f32 %v3185, %v3239
        %v3306 = vsub.f32 %v3186, %v3241
        %v3307 = vsub.f32 %v3187, %v3243
        %v3308 = vsub.f32 %v3188, %v3245
        %v3309 = vsub.f32 %v3189, %v3247
        %v3310 = vsub.f32 %v3190, %v3249
        %v3311 = vsub.f32 %v3191, %v3251
        %v3312 = vsub.f32 %v3192, %v3253
        %v3313 = vsub.f32 %v3193, %v3255
        %v3314 = vsub.f32 %v3194, %v3257
        %v3315 = vsub.f32 %v3195, %v3259
        %v3316 = vsub.f32 %v3196, %v3261
        %v3317 = vsub.f32 %v3197, %v3263
        %v3318 = vsub.f32 %v3198, %v3265
        %v3319 = vsub.f32 %v3199, %v3267
        %v3320 = vsub.f32 %v3200, %v3269
        %v3321 = vsub.f32 %v3201, %v3271
        %v3322 = vsub.f32 %v3202, %v3273
        %v3323 = vsub.f32 %v3203, %v3275
        %v3324 = vadd.f32 %v3300, 1.0
        %v3325 = vadd.f32 %v3301, 1.0
        %v3326 = vadd.f32 %v3302, 1.0
        %v3327 = vadd.f32 %v3303, 1.0
        %v3328 = vadd.f32 %v3304, 1.0
        %v3329 = vadd.f32 %v3305, 1.0
        %v3330 = vadd.f32 %v3306, 1.0
        %v3331 = vadd.f32 %v3307, 1.0
        %v3332 = vadd.f32 %v3308, 1.0
        %v3333 = vadd.f32 %v3309, 1.0
        %v3334 = vadd.f32 %v3310, 1.0
        %v3335 = vadd.f32 %v3311, 1.0
        %v3336 = vadd.f32 %v3312, 1.0
        %v3337 = vadd.f32 %v3313, 1.0
        %v3338 = vadd.f32 %v3314, 1.0
        %v3339 = vadd.f32 %v3315, 1.0
        %v3340 = vadd.f32 %v3316, 1.0
        %v3341 = vadd.f32 %v3317, 1.0
        %v3342 = vadd.f32 %v3318, 1.0
        %v3343 = vadd.f32 %v3319, 1.0
        %v3344 = vadd.f32 %v3320, 1.0
        %v3345 = vadd.f32 %v3321, 1.0
        %v3346 = vadd.f32 %v3322, 1.0
        %v3347 = vadd.f32 %v3323, 1.0
        %v3348 = vmul.f32 %v3324, 0.5
        %v3349 = vmul.f32 %v3325, 0.5
        %v3350 = vmul.f32 %v3326, 0.5
        %v3351 = vmul.f32 %v3327, 0.5
        %v3352 = vmul.f32 %v3328, 0.5
        %v3353 = vmul.f32 %v3329, 0.5
        %v3354 = vmul.f32 %v3330, 0.5
        %v3355 = vmul.f32 %v3331, 0.5
        %v3356 = vmul.f32 %v3332, 0.5
        %v3357 = vmul.f32 %v3333, 0.5
        %v3358 = vmul.f32 %v3334, 0.5
        %v3359 = vmul.f32 %v3335, 0.5
        %v3360 = vmul.f32 %v3336, 0.5
        %v3361 = vmul.f32 %v3337, 0.5
        %v3362 = vmul.f32 %v3338, 0.5
        %v3363 = vmul.f32 %v3339, 0.5
        %v3364 = vmul.f32 %v3340, 0.5
        %v3365 = vmul.f32 %v3341, 0.5
        %v3366 = vmul.f32 %v3342, 0.5
        %v3367 = vmul.f32 %v3343, 0.5
        %v3368 = vmul.f32 %v3344, 0.5
        %v3369 = vmul.f32 %v3345, 0.5
        %v3370 = vmul.f32 %v3346, 0.5
        %v3371 = vmul.f32 %v3347, 0.5
        %3396 = vrot.lane.b32.xlu0 %v3348, 122
        %v3397 = vpop.permute.xlu0 %3396
        %3398 = vrot.lane.b32.xlu0 %v3349, 122
        %v3399 = vpop.permute.xlu0 %3398
        %3400 = vrot.lane.b32.xlu0 %v3350, 122
        %v3401 = vpop.permute.xlu0 %3400
        %3402 = vrot.lane.b32.xlu0 %v3351, 122
        %v3403 = vpop.permute.xlu0 %3402
        %3404 = vrot.lane.b32.xlu0 %v3352, 122
        %v3405 = vpop.permute.xlu0 %3404
        %3406 = vrot.lane.b32.xlu0 %v3353, 122
        %v3407 = vpop.permute.xlu0 %3406
        %3408 = vrot.lane.b32.xlu0 %v3354, 122
        %v3409 = vpop.permute.xlu0 %3408
        %3410 = vrot.lane.b32.xlu0 %v3355, 122
        %v3411 = vpop.permute.xlu0 %3410
        %3412 = vrot.lane.b32.xlu0 %v3356, 122
        %v3413 = vpop.permute.xlu0 %3412
        %3414 = vrot.lane.b32.xlu0 %v3357, 122
        %v3415 = vpop.permute.xlu0 %3414
        %3416 = vrot.lane.b32.xlu0 %v3358, 122
        %v3417 = vpop.permute.xlu0 %3416
        %3418 = vrot.lane.b32.xlu0 %v3359, 122
        %v3419 = vpop.permute.xlu0 %3418
        %3420 = vrot.lane.b32.xlu0 %v3360, 122
        %v3421 = vpop.permute.xlu0 %3420
        %3422 = vrot.lane.b32.xlu0 %v3361, 122
        %v3423 = vpop.permute.xlu0 %3422
        %3424 = vrot.lane.b32.xlu0 %v3362, 122
        %v3425 = vpop.permute.xlu0 %3424
        %3426 = vrot.lane.b32.xlu0 %v3363, 122
        %v3427 = vpop.permute.xlu0 %3426
        %3428 = vrot.lane.b32.xlu0 %v3364, 122
        %v3429 = vpop.permute.xlu0 %3428
        %3430 = vrot.lane.b32.xlu0 %v3365, 122
        %v3431 = vpop.permute.xlu0 %3430
        %3432 = vrot.lane.b32.xlu0 %v3366, 122
        %v3433 = vpop.permute.xlu0 %3432
        %3434 = vrot.lane.b32.xlu0 %v3367, 122
        %v3435 = vpop.permute.xlu0 %3434
        %3436 = vrot.lane.b32.xlu0 %v3368, 122
        %v3437 = vpop.permute.xlu0 %3436
        %3438 = vrot.lane.b32.xlu0 %v3369, 122
        %v3439 = vpop.permute.xlu0 %3438
        %3440 = vrot.lane.b32.xlu0 %v3370, 122
        %v3441 = vpop.permute.xlu0 %3440
        %3442 = vrot.lane.b32.xlu0 %v3371, 122
        %v3443 = vpop.permute.xlu0 %3442
        %v3468 = vadd.f32 %v3180, %v3397
        %v3469 = vadd.f32 %v3181, %v3399
        %v3470 = vadd.f32 %v3182, %v3401
        %v3471 = vadd.f32 %v3183, %v3403
        %v3472 = vadd.f32 %v3184, %v3405
        %v3473 = vadd.f32 %v3185, %v3407
        %v3474 = vadd.f32 %v3186, %v3409
        %v3475 = vadd.f32 %v3187, %v3411
        %v3476 = vadd.f32 %v3188, %v3413
        %v3477 = vadd.f32 %v3189, %v3415
        %v3478 = vadd.f32 %v3190, %v3417
        %v3479 = vadd.f32 %v3191, %v3419
        %v3480 = vadd.f32 %v3192, %v3421
        %v3481 = vadd.f32 %v3193, %v3423
        %v3482 = vadd.f32 %v3194, %v3425
        %v3483 = vadd.f32 %v3195, %v3427
        %v3484 = vadd.f32 %v3196, %v3429
        %v3485 = vadd.f32 %v3197, %v3431
        %v3486 = vadd.f32 %v3198, %v3433
        %v3487 = vadd.f32 %v3199, %v3435
        %v3488 = vadd.f32 %v3200, %v3437
        %v3489 = vadd.f32 %v3201, %v3439
        %v3490 = vadd.f32 %v3202, %v3441
        %v3491 = vadd.f32 %v3203, %v3443
        %3516 = vrot.lane.b32.xlu0 %v3324, 125
        %v3517 = vpop.permute.xlu0 %3516
        %3518 = vrot.lane.b32.xlu0 %v3325, 125
        %v3519 = vpop.permute.xlu0 %3518
        %3520 = vrot.lane.b32.xlu0 %v3326, 125
        %v3521 = vpop.permute.xlu0 %3520
        %3522 = vrot.lane.b32.xlu0 %v3327, 125
        %v3523 = vpop.permute.xlu0 %3522
        %3524 = vrot.lane.b32.xlu0 %v3328, 125
        %v3525 = vpop.permute.xlu0 %3524
        %3526 = vrot.lane.b32.xlu0 %v3329, 125
        %v3527 = vpop.permute.xlu0 %3526
        %3528 = vrot.lane.b32.xlu0 %v3330, 125
        %v3529 = vpop.permute.xlu0 %3528
        %3530 = vrot.lane.b32.xlu0 %v3331, 125
        %v3531 = vpop.permute.xlu0 %3530
        %3532 = vrot.lane.b32.xlu0 %v3332, 125
        %v3533 = vpop.permute.xlu0 %3532
        %3534 = vrot.lane.b32.xlu0 %v3333, 125
        %v3535 = vpop.permute.xlu0 %3534
        %3536 = vrot.lane.b32.xlu0 %v3334, 125
        %v3537 = vpop.permute.xlu0 %3536
        %3538 = vrot.lane.b32.xlu0 %v3335, 125
        %v3539 = vpop.permute.xlu0 %3538
        %3540 = vrot.lane.b32.xlu0 %v3336, 125
        %v3541 = vpop.permute.xlu0 %3540
        %3542 = vrot.lane.b32.xlu0 %v3337, 125
        %v3543 = vpop.permute.xlu0 %3542
        %3544 = vrot.lane.b32.xlu0 %v3338, 125
        %v3545 = vpop.permute.xlu0 %3544
        %3546 = vrot.lane.b32.xlu0 %v3339, 125
        %v3547 = vpop.permute.xlu0 %3546
        %3548 = vrot.lane.b32.xlu0 %v3340, 125
        %v3549 = vpop.permute.xlu0 %3548
        %3550 = vrot.lane.b32.xlu0 %v3341, 125
        %v3551 = vpop.permute.xlu0 %3550
        %3552 = vrot.lane.b32.xlu0 %v3342, 125
        %v3553 = vpop.permute.xlu0 %3552
        %3554 = vrot.lane.b32.xlu0 %v3343, 125
        %v3555 = vpop.permute.xlu0 %3554
        %3556 = vrot.lane.b32.xlu0 %v3344, 125
        %v3557 = vpop.permute.xlu0 %3556
        %3558 = vrot.lane.b32.xlu0 %v3345, 125
        %v3559 = vpop.permute.xlu0 %3558
        %3560 = vrot.lane.b32.xlu0 %v3346, 125
        %v3561 = vpop.permute.xlu0 %3560
        %3562 = vrot.lane.b32.xlu0 %v3347, 125
        %v3563 = vpop.permute.xlu0 %3562
        %v3588 = vmul.f32 %v3062, %v3517
        %v3589 = vmul.f32 %v3065, %v3519
        %v3590 = vmul.f32 %v3070, %v3521
        %v3591 = vmul.f32 %v3073, %v3523
        %v3592 = vmul.f32 %v3078, %v3525
        %v3593 = vmul.f32 %v3081, %v3527
        %v3594 = vmul.f32 %v3086, %v3529
        %v3595 = vmul.f32 %v3089, %v3531
        %v3596 = vmul.f32 %v3094, %v3533
        %v3597 = vmul.f32 %v3097, %v3535
        %v3598 = vmul.f32 %v3102, %v3537
        %v3599 = vmul.f32 %v3105, %v3539
        %v3600 = vmul.f32 %v3110, %v3541
        %v3601 = vmul.f32 %v3113, %v3543
        %v3602 = vmul.f32 %v3118, %v3545
        %v3603 = vmul.f32 %v3121, %v3547
        %v3604 = vmul.f32 %v3126, %v3549
        %v3605 = vmul.f32 %v3129, %v3551
        %v3606 = vmul.f32 %v3134, %v3553
        %v3607 = vmul.f32 %v3137, %v3555
        %v3608 = vmul.f32 %v3142, %v3557
        %v3609 = vmul.f32 %v3145, %v3559
        %v3610 = vmul.f32 %v3150, %v3561
        %v3611 = vmul.f32 %v3153, %v3563
        %3636 = vrot.lane.b32.xlu0 %v3468, 3
        %v3637 = vpop.permute.xlu0 %3636
        %3638 = vrot.lane.b32.xlu0 %v3469, 3
        %v3639 = vpop.permute.xlu0 %3638
        %3640 = vrot.lane.b32.xlu0 %v3470, 3
        %v3641 = vpop.permute.xlu0 %3640
        %3642 = vrot.lane.b32.xlu0 %v3471, 3
        %v3643 = vpop.permute.xlu0 %3642
        %3644 = vrot.lane.b32.xlu0 %v3472, 3
        %v3645 = vpop.permute.xlu0 %3644
        %3646 = vrot.lane.b32.xlu0 %v3473, 3
        %v3647 = vpop.permute.xlu0 %3646
        %3648 = vrot.lane.b32.xlu0 %v3474, 3
        %v3649 = vpop.permute.xlu0 %3648
        %3650 = vrot.lane.b32.xlu0 %v3475, 3
        %v3651 = vpop.permute.xlu0 %3650
        %3652 = vrot.lane.b32.xlu0 %v3476, 3
        %v3653 = vpop.permute.xlu0 %3652
        %3654 = vrot.lane.b32.xlu0 %v3477, 3
        %v3655 = vpop.permute.xlu0 %3654
        %3656 = vrot.lane.b32.xlu0 %v3478, 3
        %v3657 = vpop.permute.xlu0 %3656
        %3658 = vrot.lane.b32.xlu0 %v3479, 3
        %v3659 = vpop.permute.xlu0 %3658
        %3660 = vrot.lane.b32.xlu0 %v3480, 3
        %v3661 = vpop.permute.xlu0 %3660
        %3662 = vrot.lane.b32.xlu0 %v3481, 3
        %v3663 = vpop.permute.xlu0 %3662
        %3664 = vrot.lane.b32.xlu0 %v3482, 3
        %v3665 = vpop.permute.xlu0 %3664
        %3666 = vrot.lane.b32.xlu0 %v3483, 3
        %v3667 = vpop.permute.xlu0 %3666
        %3668 = vrot.lane.b32.xlu0 %v3484, 3
        %v3669 = vpop.permute.xlu0 %3668
        %3670 = vrot.lane.b32.xlu0 %v3485, 3
        %v3671 = vpop.permute.xlu0 %3670
        %3672 = vrot.lane.b32.xlu0 %v3486, 3
        %v3673 = vpop.permute.xlu0 %3672
        %3674 = vrot.lane.b32.xlu0 %v3487, 3
        %v3675 = vpop.permute.xlu0 %3674
        %3676 = vrot.lane.b32.xlu0 %v3488, 3
        %v3677 = vpop.permute.xlu0 %3676
        %3678 = vrot.lane.b32.xlu0 %v3489, 3
        %v3679 = vpop.permute.xlu0 %3678
        %3680 = vrot.lane.b32.xlu0 %v3490, 3
        %v3681 = vpop.permute.xlu0 %3680
        %3682 = vrot.lane.b32.xlu0 %v3491, 3
        %v3683 = vpop.permute.xlu0 %3682
        %v3708 = vadd.f32 %v3588, %v3637
        %v3709 = vadd.f32 %v3589, %v3639
        %v3710 = vadd.f32 %v3590, %v3641
        %v3711 = vadd.f32 %v3591, %v3643
        %v3712 = vadd.f32 %v3592, %v3645
        %v3713 = vadd.f32 %v3593, %v3647
        %v3714 = vadd.f32 %v3594, %v3649
        %v3715 = vadd.f32 %v3595, %v3651
        %v3716 = vadd.f32 %v3596, %v3653
        %v3717 = vadd.f32 %v3597, %v3655
        %v3718 = vadd.f32 %v3598, %v3657
        %v3719 = vadd.f32 %v3599, %v3659
        %v3720 = vadd.f32 %v3600, %v3661
        %v3721 = vadd.f32 %v3601, %v3663
        %v3722 = vadd.f32 %v3602, %v3665
        %v3723 = vadd.f32 %v3603, %v3667
        %v3724 = vadd.f32 %v3604, %v3669
        %v3725 = vadd.f32 %v3605, %v3671
        %v3726 = vadd.f32 %v3606, %v3673
        %v3727 = vadd.f32 %v3607, %v3675
        %v3728 = vadd.f32 %v3608, %v3677
        %v3729 = vadd.f32 %v3609, %v3679
        %v3730 = vadd.f32 %v3610, %v3681
        %v3731 = vadd.f32 %v3611, %v3683
        %v3732 = vmul.f32 %v3156, 1.442695
        %v3733 = vpow.pop %v3732
        %v3734 = vmul.f32 %v3157, 1.442695
        %v3735 = vpow.pop %v3734
        %v3736 = vmul.f32 %v3158, 1.442695
        %v3737 = vpow.pop %v3736
        %v3738 = vmul.f32 %v3159, 1.442695
        %v3739 = vpow.pop %v3738
        %v3740 = vmul.f32 %v3160, 1.442695
        %v3741 = vpow.pop %v3740
        %v3742 = vmul.f32 %v3161, 1.442695
        %v3743 = vpow.pop %v3742
        %v3744 = vmul.f32 %v3162, 1.442695
        %v3745 = vpow.pop %v3744
        %v3746 = vmul.f32 %v3163, 1.442695
        %v3747 = vpow.pop %v3746
        %v3748 = vmul.f32 %v3164, 1.442695
        %v3749 = vpow.pop %v3748
        %v3750 = vmul.f32 %v3165, 1.442695
        %v3751 = vpow.pop %v3750
        %v3752 = vmul.f32 %v3166, 1.442695
        %v3753 = vpow.pop %v3752
        %v3754 = vmul.f32 %v3167, 1.442695
        %v3755 = vpow.pop %v3754
        %v3756 = vmul.f32 %v3168, 1.442695
        %v3757 = vpow.pop %v3756
        %v3758 = vmul.f32 %v3169, 1.442695
        %v3759 = vpow.pop %v3758
        %v3760 = vmul.f32 %v3170, 1.442695
        %v3761 = vpow.pop %v3760
        %v3762 = vmul.f32 %v3171, 1.442695
        %v3763 = vpow.pop %v3762
        %v3764 = vmul.f32 %v3172, 1.442695
        %v3765 = vpow.pop %v3764
        %v3766 = vmul.f32 %v3173, 1.442695
        %v3767 = vpow.pop %v3766
        %v3768 = vmul.f32 %v3174, 1.442695
        %v3769 = vpow.pop %v3768
        %v3770 = vmul.f32 %v3175, 1.442695
        %v3771 = vpow.pop %v3770
        %v3772 = vmul.f32 %v3176, 1.442695
        %v3773 = vpow.pop %v3772
        %v3774 = vmul.f32 %v3177, 1.442695
        %v3775 = vpow.pop %v3774
        %v3776 = vmul.f32 %v3178, 1.442695
        %v3777 = vpow.pop %v3776
        %v3778 = vmul.f32 %v3179, 1.442695
        %v3779 = vpow.pop %v3778
        %3780 = vrot.lane.b32.xlu0 %v3324, 3
        %v3781 = vpop.permute.xlu0 %3780
        %3782 = vrot.lane.b32.xlu0 %v3325, 3
        %v3783 = vpop.permute.xlu0 %3782
        %3784 = vrot.lane.b32.xlu0 %v3326, 3
        %v3785 = vpop.permute.xlu0 %3784
        %3786 = vrot.lane.b32.xlu0 %v3327, 3
        %v3787 = vpop.permute.xlu0 %3786
        %3788 = vrot.lane.b32.xlu0 %v3328, 3
        %v3789 = vpop.permute.xlu0 %3788
        %3790 = vrot.lane.b32.xlu0 %v3329, 3
        %v3791 = vpop.permute.xlu0 %3790
        %3792 = vrot.lane.b32.xlu0 %v3330, 3
        %v3793 = vpop.permute.xlu0 %3792
        %3794 = vrot.lane.b32.xlu0 %v3331, 3
        %v3795 = vpop.permute.xlu0 %3794
        %3796 = vrot.lane.b32.xlu0 %v3332, 3
        %v3797 = vpop.permute.xlu0 %3796
        %3798 = vrot.lane.b32.xlu0 %v3333, 3
        %v3799 = vpop.permute.xlu0 %3798
        %3800 = vrot.lane.b32.xlu0 %v3334, 3
        %v3801 = vpop.permute.xlu0 %3800
        %3802 = vrot.lane.b32.xlu0 %v3335, 3
        %v3803 = vpop.permute.xlu0 %3802
        %3804 = vrot.lane.b32.xlu0 %v3336, 3
        %v3805 = vpop.permute.xlu0 %3804
        %3806 = vrot.lane.b32.xlu0 %v3337, 3
        %v3807 = vpop.permute.xlu0 %3806
        %3808 = vrot.lane.b32.xlu0 %v3338, 3
        %v3809 = vpop.permute.xlu0 %3808
        %3810 = vrot.lane.b32.xlu0 %v3339, 3
        %v3811 = vpop.permute.xlu0 %3810
        %3812 = vrot.lane.b32.xlu0 %v3340, 3
        %v3813 = vpop.permute.xlu0 %3812
        %3814 = vrot.lane.b32.xlu0 %v3341, 3
        %v3815 = vpop.permute.xlu0 %3814
        %3816 = vrot.lane.b32.xlu0 %v3342, 3
        %v3817 = vpop.permute.xlu0 %3816
        %3818 = vrot.lane.b32.xlu0 %v3343, 3
        %v3819 = vpop.permute.xlu0 %3818
        %3820 = vrot.lane.b32.xlu0 %v3344, 3
        %v3821 = vpop.permute.xlu0 %3820
        %3822 = vrot.lane.b32.xlu0 %v3345, 3
        %v3823 = vpop.permute.xlu0 %3822
        %3824 = vrot.lane.b32.xlu0 %v3346, 3
        %v3825 = vpop.permute.xlu0 %3824
        %3826 = vrot.lane.b32.xlu0 %v3347, 3
        %v3827 = vpop.permute.xlu0 %3826
        %v3852 = vmul.f32 %v3733, %v3781
        %v3853 = vmul.f32 %v3735, %v3783
        %v3854 = vmul.f32 %v3737, %v3785
        %v3855 = vmul.f32 %v3739, %v3787
        %v3856 = vmul.f32 %v3741, %v3789
        %v3857 = vmul.f32 %v3743, %v3791
        %v3858 = vmul.f32 %v3745, %v3793
        %v3859 = vmul.f32 %v3747, %v3795
        %v3860 = vmul.f32 %v3749, %v3797
        %v3861 = vmul.f32 %v3751, %v3799
        %v3862 = vmul.f32 %v3753, %v3801
        %v3863 = vmul.f32 %v3755, %v3803
        %v3864 = vmul.f32 %v3757, %v3805
        %v3865 = vmul.f32 %v3759, %v3807
        %v3866 = vmul.f32 %v3761, %v3809
        %v3867 = vmul.f32 %v3763, %v3811
        %v3868 = vmul.f32 %v3765, %v3813
        %v3869 = vmul.f32 %v3767, %v3815
        %v3870 = vmul.f32 %v3769, %v3817
        %v3871 = vmul.f32 %v3771, %v3819
        %v3872 = vmul.f32 %v3773, %v3821
        %v3873 = vmul.f32 %v3775, %v3823
        %v3874 = vmul.f32 %v3777, %v3825
        %v3875 = vmul.f32 %v3779, %v3827
        %v3876 = vmul.f32 %v3852, 0.5
        %v3877 = vmul.f32 %v3853, 0.5
        %v3878 = vmul.f32 %v3854, 0.5
        %v3879 = vmul.f32 %v3855, 0.5
        %v3880 = vmul.f32 %v3856, 0.5
        %v3881 = vmul.f32 %v3857, 0.5
        %v3882 = vmul.f32 %v3858, 0.5
        %v3883 = vmul.f32 %v3859, 0.5
        %v3884 = vmul.f32 %v3860, 0.5
        %v3885 = vmul.f32 %v3861, 0.5
        %v3886 = vmul.f32 %v3862, 0.5
        %v3887 = vmul.f32 %v3863, 0.5
        %v3888 = vmul.f32 %v3864, 0.5
        %v3889 = vmul.f32 %v3865, 0.5
        %v3890 = vmul.f32 %v3866, 0.5
        %v3891 = vmul.f32 %v3867, 0.5
        %v3892 = vmul.f32 %v3868, 0.5
        %v3893 = vmul.f32 %v3869, 0.5
        %v3894 = vmul.f32 %v3870, 0.5
        %v3895 = vmul.f32 %v3871, 0.5
        %v3896 = vmul.f32 %v3872, 0.5
        %v3897 = vmul.f32 %v3873, 0.5
        %v3898 = vmul.f32 %v3874, 0.5
        %v3899 = vmul.f32 %v3875, 0.5
        %3924 = vrot.lane.b32.xlu0 %v3876, 122
        %v3925 = vpop.permute.xlu0 %3924
        %3926 = vrot.lane.b32.xlu0 %v3877, 122
        %v3927 = vpop.permute.xlu0 %3926
        %3928 = vrot.lane.b32.xlu0 %v3878, 122
        %v3929 = vpop.permute.xlu0 %3928
        %3930 = vrot.lane.b32.xlu0 %v3879, 122
        %v3931 = vpop.permute.xlu0 %3930
        %3932 = vrot.lane.b32.xlu0 %v3880, 122
        %v3933 = vpop.permute.xlu0 %3932
        %3934 = vrot.lane.b32.xlu0 %v3881, 122
        %v3935 = vpop.permute.xlu0 %3934
        %3936 = vrot.lane.b32.xlu0 %v3882, 122
        %v3937 = vpop.permute.xlu0 %3936
        %3938 = vrot.lane.b32.xlu0 %v3883, 122
        %v3939 = vpop.permute.xlu0 %3938
        %3940 = vrot.lane.b32.xlu0 %v3884, 122
        %v3941 = vpop.permute.xlu0 %3940
        %3942 = vrot.lane.b32.xlu0 %v3885, 122
        %v3943 = vpop.permute.xlu0 %3942
        %3944 = vrot.lane.b32.xlu0 %v3886, 122
        %v3945 = vpop.permute.xlu0 %3944
        %3946 = vrot.lane.b32.xlu0 %v3887, 122
        %v3947 = vpop.permute.xlu0 %3946
        %3948 = vrot.lane.b32.xlu0 %v3888, 122
        %v3949 = vpop.permute.xlu0 %3948
        %3950 = vrot.lane.b32.xlu0 %v3889, 122
        %v3951 = vpop.permute.xlu0 %3950
        %3952 = vrot.lane.b32.xlu0 %v3890, 122
        %v3953 = vpop.permute.xlu0 %3952
        %3954 = vrot.lane.b32.xlu0 %v3891, 122
        %v3955 = vpop.permute.xlu0 %3954
        %3956 = vrot.lane.b32.xlu0 %v3892, 122
        %v3957 = vpop.permute.xlu0 %3956
        %3958 = vrot.lane.b32.xlu0 %v3893, 122
        %v3959 = vpop.permute.xlu0 %3958
        %3960 = vrot.lane.b32.xlu0 %v3894, 122
        %v3961 = vpop.permute.xlu0 %3960
        %3962 = vrot.lane.b32.xlu0 %v3895, 122
        %v3963 = vpop.permute.xlu0 %3962
        %3964 = vrot.lane.b32.xlu0 %v3896, 122
        %v3965 = vpop.permute.xlu0 %3964
        %3966 = vrot.lane.b32.xlu0 %v3897, 122
        %v3967 = vpop.permute.xlu0 %3966
        %3968 = vrot.lane.b32.xlu0 %v3898, 122
        %v3969 = vpop.permute.xlu0 %3968
        %3970 = vrot.lane.b32.xlu0 %v3899, 122
        %v3971 = vpop.permute.xlu0 %3970
        %v3996 = vsub.f32 %v3708, %v3925
        %v3997 = vsub.f32 %v3709, %v3927
        %v3998 = vsub.f32 %v3710, %v3929
        %v3999 = vsub.f32 %v3711, %v3931
        %v4000 = vsub.f32 %v3712, %v3933
        %v4001 = vsub.f32 %v3713, %v3935
        %v4002 = vsub.f32 %v3714, %v3937
        %v4003 = vsub.f32 %v3715, %v3939
        %v4004 = vsub.f32 %v3716, %v3941
        %v4005 = vsub.f32 %v3717, %v3943
        %v4006 = vsub.f32 %v3718, %v3945
        %v4007 = vsub.f32 %v3719, %v3947
        %v4008 = vsub.f32 %v3720, %v3949
        %v4009 = vsub.f32 %v3721, %v3951
        %v4010 = vsub.f32 %v3722, %v3953
        %v4011 = vsub.f32 %v3723, %v3955
        %v4012 = vsub.f32 %v3724, %v3957
        %v4013 = vsub.f32 %v3725, %v3959
        %v4014 = vsub.f32 %v3726, %v3961
        %v4015 = vsub.f32 %v3727, %v3963
        %v4016 = vsub.f32 %v3728, %v3965
        %v4017 = vsub.f32 %v3729, %v3967
        %v4018 = vsub.f32 %v3730, %v3969
        %v4019 = vsub.f32 %v3731, %v3971
        %v4020 = vmax.f32 %v3996, 0.0
        %v4021 = vmax.f32 %v3997, 0.0
        %v4022 = vmax.f32 %v3998, 0.0
        %v4023 = vmax.f32 %v3999, 0.0
        %v4024 = vmax.f32 %v4000, 0.0
        %v4025 = vmax.f32 %v4001, 0.0
        %v4026 = vmax.f32 %v4002, 0.0
        %v4027 = vmax.f32 %v4003, 0.0
        %v4028 = vmax.f32 %v4004, 0.0
        %v4029 = vmax.f32 %v4005, 0.0
        %v4030 = vmax.f32 %v4006, 0.0
        %v4031 = vmax.f32 %v4007, 0.0
        %v4032 = vmax.f32 %v4008, 0.0
        %v4033 = vmax.f32 %v4009, 0.0
        %v4034 = vmax.f32 %v4010, 0.0
        %v4035 = vmax.f32 %v4011, 0.0
        %v4036 = vmax.f32 %v4012, 0.0
        %v4037 = vmax.f32 %v4013, 0.0
        %v4038 = vmax.f32 %v4014, 0.0
        %v4039 = vmax.f32 %v4015, 0.0
        %v4040 = vmax.f32 %v4016, 0.0
        %v4041 = vmax.f32 %v4017, 0.0
        %v4042 = vmax.f32 %v4018, 0.0
        %v4043 = vmax.f32 %v4019, 0.0
        %v4044 = vmin.f32 %v4020, 127.0
        %v4045 = vmin.f32 %v4021, 127.0
        %v4046 = vmin.f32 %v4022, 127.0
        %v4047 = vmin.f32 %v4023, 127.0
        %v4048 = vmin.f32 %v4024, 127.0
        %v4049 = vmin.f32 %v4025, 127.0
        %v4050 = vmin.f32 %v4026, 127.0
        %v4051 = vmin.f32 %v4027, 127.0
        %v4052 = vmin.f32 %v4028, 127.0
        %v4053 = vmin.f32 %v4029, 127.0
        %v4054 = vmin.f32 %v4030, 127.0
        %v4055 = vmin.f32 %v4031, 127.0
        %v4056 = vmin.f32 %v4032, 127.0
        %v4057 = vmin.f32 %v4033, 127.0
        %v4058 = vmin.f32 %v4034, 127.0
        %v4059 = vmin.f32 %v4035, 127.0
        %v4060 = vmin.f32 %v4036, 127.0
        %v4061 = vmin.f32 %v4037, 127.0
        %v4062 = vmin.f32 %v4038, 127.0
        %v4063 = vmin.f32 %v4039, 127.0
        %v4064 = vmin.f32 %v4040, 127.0
        %v4065 = vmin.f32 %v4041, 127.0
        %v4066 = vmin.f32 %v4042, 127.0
        %v4067 = vmin.f32 %v4043, 127.0
        %v4068 = vadd.f32 %v3708, %v3925
        %v4069 = vadd.f32 %v3709, %v3927
        %v4070 = vadd.f32 %v3710, %v3929
        %v4071 = vadd.f32 %v3711, %v3931
        %v4072 = vadd.f32 %v3712, %v3933
        %v4073 = vadd.f32 %v3713, %v3935
        %v4074 = vadd.f32 %v3714, %v3937
        %v4075 = vadd.f32 %v3715, %v3939
        %v4076 = vadd.f32 %v3716, %v3941
        %v4077 = vadd.f32 %v3717, %v3943
        %v4078 = vadd.f32 %v3718, %v3945
        %v4079 = vadd.f32 %v3719, %v3947
        %v4080 = vadd.f32 %v3720, %v3949
        %v4081 = vadd.f32 %v3721, %v3951
        %v4082 = vadd.f32 %v3722, %v3953
        %v4083 = vadd.f32 %v3723, %v3955
        %v4084 = vadd.f32 %v3724, %v3957
        %v4085 = vadd.f32 %v3725, %v3959
        %v4086 = vadd.f32 %v3726, %v3961
        %v4087 = vadd.f32 %v3727, %v3963
        %v4088 = vadd.f32 %v3728, %v3965
        %v4089 = vadd.f32 %v3729, %v3967
        %v4090 = vadd.f32 %v3730, %v3969
        %v4091 = vadd.f32 %v3731, %v3971
        %v4092 = vsub.f32 %v4068, 1.0
        %v4093 = vsub.f32 %v4069, 1.0
        %v4094 = vsub.f32 %v4070, 1.0
        %v4095 = vsub.f32 %v4071, 1.0
        %v4096 = vsub.f32 %v4072, 1.0
        %v4097 = vsub.f32 %v4073, 1.0
        %v4098 = vsub.f32 %v4074, 1.0
        %v4099 = vsub.f32 %v4075, 1.0
        %v4100 = vsub.f32 %v4076, 1.0
        %v4101 = vsub.f32 %v4077, 1.0
        %v4102 = vsub.f32 %v4078, 1.0
        %v4103 = vsub.f32 %v4079, 1.0
        %v4104 = vsub.f32 %v4080, 1.0
        %v4105 = vsub.f32 %v4081, 1.0
        %v4106 = vsub.f32 %v4082, 1.0
        %v4107 = vsub.f32 %v4083, 1.0
        %v4108 = vsub.f32 %v4084, 1.0
        %v4109 = vsub.f32 %v4085, 1.0
        %v4110 = vsub.f32 %v4086, 1.0
        %v4111 = vsub.f32 %v4087, 1.0
        %v4112 = vsub.f32 %v4088, 1.0
        %v4113 = vsub.f32 %v4089, 1.0
        %v4114 = vsub.f32 %v4090, 1.0
        %v4115 = vsub.f32 %v4091, 1.0
        %v4116 = vmax.f32 %v4092, 0.0
        %v4117 = vmax.f32 %v4093, 0.0
        %v4118 = vmax.f32 %v4094, 0.0
        %v4119 = vmax.f32 %v4095, 0.0
        %v4120 = vmax.f32 %v4096, 0.0
        %v4121 = vmax.f32 %v4097, 0.0
        %v4122 = vmax.f32 %v4098, 0.0
        %v4123 = vmax.f32 %v4099, 0.0
        %v4124 = vmax.f32 %v4100, 0.0
        %v4125 = vmax.f32 %v4101, 0.0
        %v4126 = vmax.f32 %v4102, 0.0
        %v4127 = vmax.f32 %v4103, 0.0
        %v4128 = vmax.f32 %v4104, 0.0
        %v4129 = vmax.f32 %v4105, 0.0
        %v4130 = vmax.f32 %v4106, 0.0
        %v4131 = vmax.f32 %v4107, 0.0
        %v4132 = vmax.f32 %v4108, 0.0
        %v4133 = vmax.f32 %v4109, 0.0
        %v4134 = vmax.f32 %v4110, 0.0
        %v4135 = vmax.f32 %v4111, 0.0
        %v4136 = vmax.f32 %v4112, 0.0
        %v4137 = vmax.f32 %v4113, 0.0
        %v4138 = vmax.f32 %v4114, 0.0
        %v4139 = vmax.f32 %v4115, 0.0
        %v4140 = vmin.f32 %v4116, 127.0
        %v4141 = vmin.f32 %v4117, 127.0
        %v4142 = vmin.f32 %v4118, 127.0
        %v4143 = vmin.f32 %v4119, 127.0
        %v4144 = vmin.f32 %v4120, 127.0
        %v4145 = vmin.f32 %v4121, 127.0
        %v4146 = vmin.f32 %v4122, 127.0
        %v4147 = vmin.f32 %v4123, 127.0
        %v4148 = vmin.f32 %v4124, 127.0
        %v4149 = vmin.f32 %v4125, 127.0
        %v4150 = vmin.f32 %v4126, 127.0
        %v4151 = vmin.f32 %v4127, 127.0
        %v4152 = vmin.f32 %v4128, 127.0
        %v4153 = vmin.f32 %v4129, 127.0
        %v4154 = vmin.f32 %v4130, 127.0
        %v4155 = vmin.f32 %v4131, 127.0
        %v4156 = vmin.f32 %v4132, 127.0
        %v4157 = vmin.f32 %v4133, 127.0
        %v4158 = vmin.f32 %v4134, 127.0
        %v4159 = vmin.f32 %v4135, 127.0
        %v4160 = vmin.f32 %v4136, 127.0
        %v4161 = vmin.f32 %v4137, 127.0
        %v4162 = vmin.f32 %v4138, 127.0
        %v4163 = vmin.f32 %v4139, 127.0
        %v4164 = vxor.u32 %v3062, 2147483648
        %v4165 = vxor.u32 %v3065, 2147483648
        %v4166 = vxor.u32 %v3070, 2147483648
        %v4167 = vxor.u32 %v3073, 2147483648
        %v4168 = vxor.u32 %v3078, 2147483648
        %v4169 = vxor.u32 %v3081, 2147483648
        %v4170 = vxor.u32 %v3086, 2147483648
        %v4171 = vxor.u32 %v3089, 2147483648
        %v4172 = vxor.u32 %v3094, 2147483648
        %v4173 = vxor.u32 %v3097, 2147483648
        %v4174 = vxor.u32 %v3102, 2147483648
        %v4175 = vxor.u32 %v3105, 2147483648
        %v4176 = vxor.u32 %v3110, 2147483648
        %v4177 = vxor.u32 %v3113, 2147483648
        %v4178 = vxor.u32 %v3118, 2147483648
        %v4179 = vxor.u32 %v3121, 2147483648
        %v4180 = vxor.u32 %v3126, 2147483648
        %v4181 = vxor.u32 %v3129, 2147483648
        %v4182 = vxor.u32 %v3134, 2147483648
        %v4183 = vxor.u32 %v3137, 2147483648
        %v4184 = vxor.u32 %v3142, 2147483648
        %v4185 = vxor.u32 %v3145, 2147483648
        %v4186 = vxor.u32 %v3150, 2147483648
        %v4187 = vxor.u32 %v3153, 2147483648
        %v4188 = vmul.f32 %v4164, 1.442695
        %v4189 = vpow.pop %v4188
        %v4190 = vmul.f32 %v4165, 1.442695
        %v4191 = vpow.pop %v4190
        %v4192 = vmul.f32 %v4166, 1.442695
        %v4193 = vpow.pop %v4192
        %v4194 = vmul.f32 %v4167, 1.442695
        %v4195 = vpow.pop %v4194
        %v4196 = vmul.f32 %v4168, 1.442695
        %v4197 = vpow.pop %v4196
        %v4198 = vmul.f32 %v4169, 1.442695
        %v4199 = vpow.pop %v4198
        %v4200 = vmul.f32 %v4170, 1.442695
        %v4201 = vpow.pop %v4200
        %v4202 = vmul.f32 %v4171, 1.442695
        %v4203 = vpow.pop %v4202
        %v4204 = vmul.f32 %v4172, 1.442695
        %v4205 = vpow.pop %v4204
        %v4206 = vmul.f32 %v4173, 1.442695
        %v4207 = vpow.pop %v4206
        %v4208 = vmul.f32 %v4174, 1.442695
        %v4209 = vpow.pop %v4208
        %v4210 = vmul.f32 %v4175, 1.442695
        %v4211 = vpow.pop %v4210
        %v4212 = vmul.f32 %v4176, 1.442695
        %v4213 = vpow.pop %v4212
        %v4214 = vmul.f32 %v4177, 1.442695
        %v4215 = vpow.pop %v4214
        %v4216 = vmul.f32 %v4178, 1.442695
        %v4217 = vpow.pop %v4216
        %v4218 = vmul.f32 %v4179, 1.442695
        %v4219 = vpow.pop %v4218
        %v4220 = vmul.f32 %v4180, 1.442695
        %v4221 = vpow.pop %v4220
        %v4222 = vmul.f32 %v4181, 1.442695
        %v4223 = vpow.pop %v4222
        %v4224 = vmul.f32 %v4182, 1.442695
        %v4225 = vpow.pop %v4224
        %v4226 = vmul.f32 %v4183, 1.442695
        %v4227 = vpow.pop %v4226
        %v4228 = vmul.f32 %v4184, 1.442695
        %v4229 = vpow.pop %v4228
        %v4230 = vmul.f32 %v4185, 1.442695
        %v4231 = vpow.pop %v4230
        %v4232 = vmul.f32 %v4186, 1.442695
        %v4233 = vpow.pop %v4232
        %v4234 = vmul.f32 %v4187, 1.442695
        %v4235 = vpow.pop %v4234
        %v4236 = vadd.f32 %v4189, 1.0
        %v4237 = vadd.f32 %v4191, 1.0
        %v4238 = vadd.f32 %v4193, 1.0
        %v4239 = vadd.f32 %v4195, 1.0
        %v4240 = vadd.f32 %v4197, 1.0
        %v4241 = vadd.f32 %v4199, 1.0
        %v4242 = vadd.f32 %v4201, 1.0
        %v4243 = vadd.f32 %v4203, 1.0
        %v4244 = vadd.f32 %v4205, 1.0
        %v4245 = vadd.f32 %v4207, 1.0
        %v4246 = vadd.f32 %v4209, 1.0
        %v4247 = vadd.f32 %v4211, 1.0
        %v4248 = vadd.f32 %v4213, 1.0
        %v4249 = vadd.f32 %v4215, 1.0
        %v4250 = vadd.f32 %v4217, 1.0
        %v4251 = vadd.f32 %v4219, 1.0
        %v4252 = vadd.f32 %v4221, 1.0
        %v4253 = vadd.f32 %v4223, 1.0
        %v4254 = vadd.f32 %v4225, 1.0
        %v4255 = vadd.f32 %v4227, 1.0
        %v4256 = vadd.f32 %v4229, 1.0
        %v4257 = vadd.f32 %v4231, 1.0
        %v4258 = vadd.f32 %v4233, 1.0
        %v4259 = vadd.f32 %v4235, 1.0
        %v4260 = vrcp.pop %v4236
        %v4261 = vmul.f32 1.0, %v4260
        %v4262 = vrcp.pop %v4237
        %v4263 = vmul.f32 1.0, %v4262
        %v4264 = vrcp.pop %v4238
        %v4265 = vmul.f32 1.0, %v4264
        %v4266 = vrcp.pop %v4239
        %v4267 = vmul.f32 1.0, %v4266
        %v4268 = vrcp.pop %v4240
        %v4269 = vmul.f32 1.0, %v4268
        %v4270 = vrcp.pop %v4241
        %v4271 = vmul.f32 1.0, %v4270
        %v4272 = vrcp.pop %v4242
        %v4273 = vmul.f32 1.0, %v4272
        %v4274 = vrcp.pop %v4243
        %v4275 = vmul.f32 1.0, %v4274
        %v4276 = vrcp.pop %v4244
        %v4277 = vmul.f32 1.0, %v4276
        %v4278 = vrcp.pop %v4245
        %v4279 = vmul.f32 1.0, %v4278
        %v4280 = vrcp.pop %v4246
        %v4281 = vmul.f32 1.0, %v4280
        %v4282 = vrcp.pop %v4247
        %v4283 = vmul.f32 1.0, %v4282
        %v4284 = vrcp.pop %v4248
        %v4285 = vmul.f32 1.0, %v4284
        %v4286 = vrcp.pop %v4249
        %v4287 = vmul.f32 1.0, %v4286
        %v4288 = vrcp.pop %v4250
        %v4289 = vmul.f32 1.0, %v4288
        %v4290 = vrcp.pop %v4251
        %v4291 = vmul.f32 1.0, %v4290
        %v4292 = vrcp.pop %v4252
        %v4293 = vmul.f32 1.0, %v4292
        %v4294 = vrcp.pop %v4253
        %v4295 = vmul.f32 1.0, %v4294
        %v4296 = vrcp.pop %v4254
        %v4297 = vmul.f32 1.0, %v4296
        %v4298 = vrcp.pop %v4255
        %v4299 = vmul.f32 1.0, %v4298
        %v4300 = vrcp.pop %v4256
        %v4301 = vmul.f32 1.0, %v4300
        %v4302 = vrcp.pop %v4257
        %v4303 = vmul.f32 1.0, %v4302
        %v4304 = vrcp.pop %v4258
        %v4305 = vmul.f32 1.0, %v4304
        %v4306 = vrcp.pop %v4259
        %v4307 = vmul.f32 1.0, %v4306
        %vm4308 = vcmask 23552
        %4309 = vst.msk [vmem:[%s367] sm:$0xff] %vm4308, %v4261
        %4310 = vst.msk [vmem:[%s367 + $0x8] sm:$0xff] %vm4308, %v4263
        %4311 = vst.msk [vmem:[%s367 + $0x10] sm:$0xff] %vm4308, %v4265
        %4312 = vst.msk [vmem:[%s367 + $0x18] sm:$0xff] %vm4308, %v4267
        %4313 = vst.msk [vmem:[%s367 + $0x20] sm:$0xff] %vm4308, %v4269
        %4314 = vst.msk [vmem:[%s367 + $0x28] sm:$0xff] %vm4308, %v4271
        %4315 = vst.msk [vmem:[%s367 + $0x30] sm:$0xff] %vm4308, %v4273
        %4316 = vst.msk [vmem:[%s367 + $0x38] sm:$0xff] %vm4308, %v4275
        %4317 = vst.msk [vmem:[%s367 + $0x40] sm:$0xff] %vm4308, %v4277
        %4318 = vst.msk [vmem:[%s367 + $0x48] sm:$0xff] %vm4308, %v4279
        %4319 = vst.msk [vmem:[%s367 + $0x50] sm:$0xff] %vm4308, %v4281
        %4320 = vst.msk [vmem:[%s367 + $0x58] sm:$0xff] %vm4308, %v4283
        %4321 = vst.msk [vmem:[%s367 + $0x60] sm:$0xff] %vm4308, %v4285
        %4322 = vst.msk [vmem:[%s367 + $0x68] sm:$0xff] %vm4308, %v4287
        %4323 = vst.msk [vmem:[%s367 + $0x70] sm:$0xff] %vm4308, %v4289
        %4324 = vst.msk [vmem:[%s367 + $0x78] sm:$0xff] %vm4308, %v4291
        %4325 = vst.msk [vmem:[%s367 + $0x80] sm:$0xff] %vm4308, %v4293
        %4326 = vst.msk [vmem:[%s367 + $0x88] sm:$0xff] %vm4308, %v4295
        %4327 = vst.msk [vmem:[%s367 + $0x90] sm:$0xff] %vm4308, %v4297
        %4328 = vst.msk [vmem:[%s367 + $0x98] sm:$0xff] %vm4308, %v4299
        %4329 = vst.msk [vmem:[%s367 + $0xa0] sm:$0xff] %vm4308, %v4301
        %4330 = vst.msk [vmem:[%s367 + $0xa8] sm:$0xff] %vm4308, %v4303
        %4331 = vst.msk [vmem:[%s367 + $0xb0] sm:$0xff] %vm4308, %v4305
        %4332 = vst.msk [vmem:[%s367 + $0xb8] sm:$0xff] %vm4308, %v4307
        %vm4333 = vcmask 48152
        %4334 = vst.msk [vmem:[%s367] sm:$0xff] %vm4333, %v4044
        %4335 = vst.msk [vmem:[%s367 + $0x8] sm:$0xff] %vm4333, %v4045
        %4336 = vst.msk [vmem:[%s367 + $0x10] sm:$0xff] %vm4333, %v4046
        %4337 = vst.msk [vmem:[%s367 + $0x18] sm:$0xff] %vm4333, %v4047
        %4338 = vst.msk [vmem:[%s367 + $0x20] sm:$0xff] %vm4333, %v4048
        %4339 = vst.msk [vmem:[%s367 + $0x28] sm:$0xff] %vm4333, %v4049
        %4340 = vst.msk [vmem:[%s367 + $0x30] sm:$0xff] %vm4333, %v4050
        %4341 = vst.msk [vmem:[%s367 + $0x38] sm:$0xff] %vm4333, %v4051
        %4342 = vst.msk [vmem:[%s367 + $0x40] sm:$0xff] %vm4333, %v4052
        %4343 = vst.msk [vmem:[%s367 + $0x48] sm:$0xff] %vm4333, %v4053
        %4344 = vst.msk [vmem:[%s367 + $0x50] sm:$0xff] %vm4333, %v4054
        %4345 = vst.msk [vmem:[%s367 + $0x58] sm:$0xff] %vm4333, %v4055
        %4346 = vst.msk [vmem:[%s367 + $0x60] sm:$0xff] %vm4333, %v4056
        %4347 = vst.msk [vmem:[%s367 + $0x68] sm:$0xff] %vm4333, %v4057
        %4348 = vst.msk [vmem:[%s367 + $0x70] sm:$0xff] %vm4333, %v4058
        %4349 = vst.msk [vmem:[%s367 + $0x78] sm:$0xff] %vm4333, %v4059
        %4350 = vst.msk [vmem:[%s367 + $0x80] sm:$0xff] %vm4333, %v4060
        %4351 = vst.msk [vmem:[%s367 + $0x88] sm:$0xff] %vm4333, %v4061
        %4352 = vst.msk [vmem:[%s367 + $0x90] sm:$0xff] %vm4333, %v4062
        %4353 = vst.msk [vmem:[%s367 + $0x98] sm:$0xff] %vm4333, %v4063
        %4354 = vst.msk [vmem:[%s367 + $0xa0] sm:$0xff] %vm4333, %v4064
        %4355 = vst.msk [vmem:[%s367 + $0xa8] sm:$0xff] %vm4333, %v4065
        %4356 = vst.msk [vmem:[%s367 + $0xb0] sm:$0xff] %vm4333, %v4066
        %4357 = vst.msk [vmem:[%s367 + $0xb8] sm:$0xff] %vm4333, %v4067
        %vm4358 = vcmask 72752
        %4359 = vst.msk [vmem:[%s367] sm:$0xff] %vm4358, %v4044
        %4360 = vst.msk [vmem:[%s367 + $0x8] sm:$0xff] %vm4358, %v4045
        %4361 = vst.msk [vmem:[%s367 + $0x10] sm:$0xff] %vm4358, %v4046
        %4362 = vst.msk [vmem:[%s367 + $0x18] sm:$0xff] %vm4358, %v4047
        %4363 = vst.msk [vmem:[%s367 + $0x20] sm:$0xff] %vm4358, %v4048
        %4364 = vst.msk [vmem:[%s367 + $0x28] sm:$0xff] %vm4358, %v4049
        %4365 = vst.msk [vmem:[%s367 + $0x30] sm:$0xff] %vm4358, %v4050
        %4366 = vst.msk [vmem:[%s367 + $0x38] sm:$0xff] %vm4358, %v4051
        %4367 = vst.msk [vmem:[%s367 + $0x40] sm:$0xff] %vm4358, %v4052
        %4368 = vst.msk [vmem:[%s367 + $0x48] sm:$0xff] %vm4358, %v4053
        %4369 = vst.msk [vmem:[%s367 + $0x50] sm:$0xff] %vm4358, %v4054
        %4370 = vst.msk [vmem:[%s367 + $0x58] sm:$0xff] %vm4358, %v4055
        %4371 = vst.msk [vmem:[%s367 + $0x60] sm:$0xff] %vm4358, %v4056
        %4372 = vst.msk [vmem:[%s367 + $0x68] sm:$0xff] %vm4358, %v4057
        %4373 = vst.msk [vmem:[%s367 + $0x70] sm:$0xff] %vm4358, %v4058
        %4374 = vst.msk [vmem:[%s367 + $0x78] sm:$0xff] %vm4358, %v4059
        %4375 = vst.msk [vmem:[%s367 + $0x80] sm:$0xff] %vm4358, %v4060
        %4376 = vst.msk [vmem:[%s367 + $0x88] sm:$0xff] %vm4358, %v4061
        %4377 = vst.msk [vmem:[%s367 + $0x90] sm:$0xff] %vm4358, %v4062
        %4378 = vst.msk [vmem:[%s367 + $0x98] sm:$0xff] %vm4358, %v4063
        %4379 = vst.msk [vmem:[%s367 + $0xa0] sm:$0xff] %vm4358, %v4064
        %4380 = vst.msk [vmem:[%s367 + $0xa8] sm:$0xff] %vm4358, %v4065
        %4381 = vst.msk [vmem:[%s367 + $0xb0] sm:$0xff] %vm4358, %v4066
        %4382 = vst.msk [vmem:[%s367 + $0xb8] sm:$0xff] %vm4358, %v4067
        %4407 = vrot.lane.b32.xlu0 %v4140, 6
        %v4408 = vpop.permute.xlu0 %4407
        %4409 = vrot.lane.b32.xlu0 %v4141, 6
        %v4410 = vpop.permute.xlu0 %4409
        %4411 = vrot.lane.b32.xlu0 %v4142, 6
        %v4412 = vpop.permute.xlu0 %4411
        %4413 = vrot.lane.b32.xlu0 %v4143, 6
        %v4414 = vpop.permute.xlu0 %4413
        %4415 = vrot.lane.b32.xlu0 %v4144, 6
        %v4416 = vpop.permute.xlu0 %4415
        %4417 = vrot.lane.b32.xlu0 %v4145, 6
        %v4418 = vpop.permute.xlu0 %4417
        %4419 = vrot.lane.b32.xlu0 %v4146, 6
        %v4420 = vpop.permute.xlu0 %4419
        %4421 = vrot.lane.b32.xlu0 %v4147, 6
        %v4422 = vpop.permute.xlu0 %4421
        %4423 = vrot.lane.b32.xlu0 %v4148, 6
        %v4424 = vpop.permute.xlu0 %4423
        %4425 = vrot.lane.b32.xlu0 %v4149, 6
        %v4426 = vpop.permute.xlu0 %4425
        %4427 = vrot.lane.b32.xlu0 %v4150, 6
        %v4428 = vpop.permute.xlu0 %4427
        %4429 = vrot.lane.b32.xlu0 %v4151, 6
        %v4430 = vpop.permute.xlu0 %4429
        %4431 = vrot.lane.b32.xlu0 %v4152, 6
        %v4432 = vpop.permute.xlu0 %4431
        %4433 = vrot.lane.b32.xlu0 %v4153, 6
        %v4434 = vpop.permute.xlu0 %4433
        %4435 = vrot.lane.b32.xlu0 %v4154, 6
        %v4436 = vpop.permute.xlu0 %4435
        %4437 = vrot.lane.b32.xlu0 %v4155, 6
        %v4438 = vpop.permute.xlu0 %4437
        %4439 = vrot.lane.b32.xlu0 %v4156, 6
        %v4440 = vpop.permute.xlu0 %4439
        %4441 = vrot.lane.b32.xlu0 %v4157, 6
        %v4442 = vpop.permute.xlu0 %4441
        %4443 = vrot.lane.b32.xlu0 %v4158, 6
        %v4444 = vpop.permute.xlu0 %4443
        %4445 = vrot.lane.b32.xlu0 %v4159, 6
        %v4446 = vpop.permute.xlu0 %4445
        %4447 = vrot.lane.b32.xlu0 %v4160, 6
        %v4448 = vpop.permute.xlu0 %4447
        %4449 = vrot.lane.b32.xlu0 %v4161, 6
        %v4450 = vpop.permute.xlu0 %4449
        %4451 = vrot.lane.b32.xlu0 %v4162, 6
        %v4452 = vpop.permute.xlu0 %4451
        %4453 = vrot.lane.b32.xlu0 %v4163, 6
        %v4454 = vpop.permute.xlu0 %4453
        %vm4479 = vcmask 97352
        %4480 = vst.msk [vmem:[%s367] sm:$0xff] %vm4479, %v4408
        %4481 = vst.msk [vmem:[%s367 + $0x8] sm:$0xff] %vm4479, %v4410
        %4482 = vst.msk [vmem:[%s367 + $0x10] sm:$0xff] %vm4479, %v4412
        %4483 = vst.msk [vmem:[%s367 + $0x18] sm:$0xff] %vm4479, %v4414
        %4484 = vst.msk [vmem:[%s367 + $0x20] sm:$0xff] %vm4479, %v4416
        %4485 = vst.msk [vmem:[%s367 + $0x28] sm:$0xff] %vm4479, %v4418
        %4486 = vst.msk [vmem:[%s367 + $0x30] sm:$0xff] %vm4479, %v4420
        %4487 = vst.msk [vmem:[%s367 + $0x38] sm:$0xff] %vm4479, %v4422
        %4488 = vst.msk [vmem:[%s367 + $0x40] sm:$0xff] %vm4479, %v4424
        %4489 = vst.msk [vmem:[%s367 + $0x48] sm:$0xff] %vm4479, %v4426
        %4490 = vst.msk [vmem:[%s367 + $0x50] sm:$0xff] %vm4479, %v4428
        %4491 = vst.msk [vmem:[%s367 + $0x58] sm:$0xff] %vm4479, %v4430
        %4492 = vst.msk [vmem:[%s367 + $0x60] sm:$0xff] %vm4479, %v4432
        %4493 = vst.msk [vmem:[%s367 + $0x68] sm:$0xff] %vm4479, %v4434
        %4494 = vst.msk [vmem:[%s367 + $0x70] sm:$0xff] %vm4479, %v4436
        %4495 = vst.msk [vmem:[%s367 + $0x78] sm:$0xff] %vm4479, %v4438
        %4496 = vst.msk [vmem:[%s367 + $0x80] sm:$0xff] %vm4479, %v4440
        %4497 = vst.msk [vmem:[%s367 + $0x88] sm:$0xff] %vm4479, %v4442
        %4498 = vst.msk [vmem:[%s367 + $0x90] sm:$0xff] %vm4479, %v4444
        %4499 = vst.msk [vmem:[%s367 + $0x98] sm:$0xff] %vm4479, %v4446
        %4500 = vst.msk [vmem:[%s367 + $0xa0] sm:$0xff] %vm4479, %v4448
        %4501 = vst.msk [vmem:[%s367 + $0xa8] sm:$0xff] %vm4479, %v4450
        %4502 = vst.msk [vmem:[%s367 + $0xb0] sm:$0xff] %vm4479, %v4452
        %4503 = vst.msk [vmem:[%s367 + $0xb8] sm:$0xff] %vm4479, %v4454
        %vm4504 = vcmask 121952
        %4505 = vst.msk [vmem:[%s367] sm:$0xff] %vm4504, %v4408
        %4506 = vst.msk [vmem:[%s367 + $0x8] sm:$0xff] %vm4504, %v4410
        %4507 = vst.msk [vmem:[%s367 + $0x10] sm:$0xff] %vm4504, %v4412
        %4508 = vst.msk [vmem:[%s367 + $0x18] sm:$0xff] %vm4504, %v4414
        %4509 = vst.msk [vmem:[%s367 + $0x20] sm:$0xff] %vm4504, %v4416
        %4510 = vst.msk [vmem:[%s367 + $0x28] sm:$0xff] %vm4504, %v4418
        %4511 = vst.msk [vmem:[%s367 + $0x30] sm:$0xff] %vm4504, %v4420
        %4512 = vst.msk [vmem:[%s367 + $0x38] sm:$0xff] %vm4504, %v4422
        %4513 = vst.msk [vmem:[%s367 + $0x40] sm:$0xff] %vm4504, %v4424
        %4514 = vst.msk [vmem:[%s367 + $0x48] sm:$0xff] %vm4504, %v4426
        %4515 = vst.msk [vmem:[%s367 + $0x50] sm:$0xff] %vm4504, %v4428
        %4516 = vst.msk [vmem:[%s367 + $0x58] sm:$0xff] %vm4504, %v4430
        %4517 = vst.msk [vmem:[%s367 + $0x60] sm:$0xff] %vm4504, %v4432
        %4518 = vst.msk [vmem:[%s367 + $0x68] sm:$0xff] %vm4504, %v4434
        %4519 = vst.msk [vmem:[%s367 + $0x70] sm:$0xff] %vm4504, %v4436
        %4520 = vst.msk [vmem:[%s367 + $0x78] sm:$0xff] %vm4504, %v4438
        %4521 = vst.msk [vmem:[%s367 + $0x80] sm:$0xff] %vm4504, %v4440
        %4522 = vst.msk [vmem:[%s367 + $0x88] sm:$0xff] %vm4504, %v4442
        %4523 = vst.msk [vmem:[%s367 + $0x90] sm:$0xff] %vm4504, %v4444
        %4524 = vst.msk [vmem:[%s367 + $0x98] sm:$0xff] %vm4504, %v4446
        %4525 = vst.msk [vmem:[%s367 + $0xa0] sm:$0xff] %vm4504, %v4448
        %4526 = vst.msk [vmem:[%s367 + $0xa8] sm:$0xff] %vm4504, %v4450
        %4527 = vst.msk [vmem:[%s367 + $0xb0] sm:$0xff] %vm4504, %v4452
        %4528 = vst.msk [vmem:[%s367 + $0xb8] sm:$0xff] %vm4504, %v4454
        %s4529 = sand.u32 %s213, 1
        %s4530 = scalar_lea.sflag [#allocation4], %s4529
        %s4531 = sand.u32 %s213, 1
        %s4532 = smul.addr %s4531, 192
        %s4533 = scalar_lea.vmem [#allocation3], %s4532
        // Predicated region
        $region49: #{tpu_custom_call.1} parent=47 // pred_check
          %p4534 = pneg %p223
        $region50: #{tpu_custom_call.1} parent=47 // pred_check_branch
          %4536 = sbr.rel (%p4534) target = $region52
        $region51: #{tpu_custom_call.1} parent=47 // pred_region
          %s4537 = smul.u32 24, %s26
          %s4539 = ssub.s32 3072, 3072
          %4540 = vsyncadd %s4530, %s4539
          %s4541 = smul.addr %s25, 48
          %s4542 = sadd.s32 %s4537, %s4541
          %s4543 = smul.addr %s4542, 128
          %s4544 = scalar_lea.hbm %s7, %s4543
          %s4545 = sshll.u32 %s4533, 4
          %s4546 = int_to_ptr.vmem [resolvable:$true] %s4545
          %4551 = dma.vmem_to_hbm [thread:$0]  %s4546, 3072, %s4544, %s4530, 128, 128, 8
        $region52: #{tpu_custom_call.1} parent=47 // pred_fallthru
          _
      $region48: #{tpu_custom_call.1} parent=5 // pred_fallthru
        _
      %p4552 = scmp.le.s32.totalorder 2, %s16
      // Predicated region
      $region53: #{tpu_custom_call.1} parent=5 // pred_check
        %p4553 = pneg %p4552
      $region54: #{tpu_custom_call.1} parent=5 // pred_check_branch
        %4555 = sbr.rel (%p4553) target = $region56
      $region55: #{tpu_custom_call.1} parent=5 // pred_region
        %s4556 = ssub.s32 %s16, 2
        // Predicated region
        $region57: #{tpu_custom_call.1} parent=55 // pred_check
          %p4557 = pneg %p229
        $region58: #{tpu_custom_call.1} parent=55 // pred_check_branch
          %4559 = sbr.rel (%p4557) target = $region60
        $region59: #{tpu_custom_call.1} parent=55 // pred_region
          %s4560 = sand.u32 %s214, 1
          %s4561 = scalar_lea.sflag [#allocation4], %s4560
          %s4562 = sand.u32 %s214, 1
          %s4563 = smul.addr %s4562, 192
          %s4564 = scalar_lea.vmem [#allocation3], %s4563
          %4565 = dma.done %s4561, 3072
        $region60: #{tpu_custom_call.1} parent=55 // pred_fallthru
          _
      $region56: #{tpu_custom_call.1} parent=5 // pred_fallthru
        _
    $region6: #{tpu_custom_call.1} parent=1 // loop_footer
      %s20 = sadd.s32 1, %s16
    $region7: #{tpu_custom_call.1} parent=1 // loop_footer_branch
      %15 = sbr.rel target = $region3
    $region8: #{tpu_custom_call.1} parent=1 // loop_exit
      _
    %4566 = vsyncpa [#allocation4], 1
    %s4567 = scalar_lea.sflag [#allocation4], 1
    %4568 = vsyncpa %s4567, 1

</llo_original>
